<compile_context>
chip_gen: v7x
topology: tpu7x:2x2x1
jax: 0.10.0
libtpu: 0.0.40
codegen_flags: <defaults>
</compile_context>

<pallas_src>
import functools

import jax
import jax.numpy as jnp
from jax.experimental import pallas as pl
from jax.experimental.pallas import tpu as pltpu

SLOPE = 2.0        # nn.LeakyReLU(2)
CP = 256           # padded channel width (lane-dense, full MXU N)
CIN_PAD = 128      # padded K width for conv1's 4-tap patch matrix
EMB_PAD = 128      # padded embedding width (sliced back to embedding_dim)


# ---------------------------------------------------------------------------
# Kernel
# ---------------------------------------------------------------------------
def _conv2x2_lrelu(src_ref, w_ref, b_ref, m, n3, w_img):
    """One 2x2 / stride-1 conv + LeakyReLU as 4 shift-accumulated matmuls.

    Rows of src_ref are ordered (h, w, n): row = (h*W + w)*n3 + n, so the
    kernel tap (i, j) is a row shift of (i*W + j)*n3.
    """
    cin = w_ref.shape[0] // 4
    cout = w_ref.shape[1]
    acc = jnp.zeros((m, cout), jnp.float32)
    shifts = (0, n3, w_img * n3, (w_img + 1) * n3)          # (0,0),(0,1),(1,0),(1,1)
    for t, s in enumerate(shifts):
        patch = src_ref[pl.ds(s, m), :]                     # (m, cin) bf16
        w_ij = w_ref[t * cin:(t + 1) * cin, :]              # (cin, cout) bf16
        acc = acc + jnp.dot(patch, w_ij, preferred_element_type=jnp.float32)
    y = acc + b_ref[...]
    return jnp.where(y >= 0.0, y, SLOPE * y)


def _siamese_kernel(patch_ref, w1_ref, b1_ref, w2_ref, b2_ref, w3_ref, b3_ref,
                    f1w_hbm, f1b_ref, f2w_ref, f2b_ref, f3w_ref, f3b_ref,
                    o_ref,
                    buf1_ref, buf2_ref, buf3_ref, f1w_vmem, dma_sem,
                    *, m, n3, w_img, oh, ow, rpad):
    """Whole network fused: conv1..conv3 (+LeakyReLU) -> fc1 -> fc2 -> fc3."""
    # ---- Overlap the dominant HBM transfer (fc1 weights) with conv compute.
    f1_copy = pltpu.make_async_copy(f1w_hbm, f1w_vmem, dma_sem)
    f1_copy.start()

    # ---- Zero halo rows so shifted conv reads stay finite.
    halo = jnp.zeros((rpad, CP), jnp.bfloat16)
    buf1_ref[pl.ds(m, rpad), :] = halo
    buf2_ref[pl.ds(m, rpad), :] = halo

    # ---- conv1: a single matmul (patch columns 0..3 hold the 4 taps).
    y1 = jnp.dot(patch_ref[...], w1_ref[...], preferred_element_type=jnp.float32)
    y1 = y1 + b1_ref[...]
    y1 = jnp.where(y1 >= 0.0, y1, SLOPE * y1)
    buf1_ref[pl.ds(0, m), :] = y1.astype(jnp.bfloat16)

    # ---- conv2 / conv3: 4 shift-accumulated matmuls each, bf16 scratch.
    y2 = _conv2x2_lrelu(buf1_ref, w2_ref, b2_ref, m, n3, w_img)
    buf2_ref[pl.ds(0, m), :] = y2.astype(jnp.bfloat16)
    y3 = _conv2x2_lrelu(buf2_ref, w3_ref, b3_ref, m, n3, w_img)
    buf3_ref[...] = y3.astype(jnp.bfloat16)

    # ---- fc1: accumulate over the oh*ow valid positions.
    f1_copy.wait()                                           # bytes now in VMEM
    acc = jnp.zeros((n3, CP), jnp.float32)
    for ph in range(oh):
        for pw in range(ow):
            p = ph * ow + pw
            row0 = (ph * w_img + pw) * n3                    # (h, w, n) row order
            z_p = buf3_ref[pl.ds(row0, n3), :]               # (n3, CP) bf16
            w_p = f1w_vmem[pl.ds(p * CP, CP), :]             # (CP, CP) bf16
            acc = acc + jnp.dot(z_p, w_p, preferred_element_type=jnp.float32)
    h = acc + f1b_ref[...]
    h = jnp.where(h >= 0.0, h, SLOPE * h)

    # ---- fc2 (bf16 MXU).
    h = jnp.dot(h.astype(jnp.bfloat16), f2w_ref[...],
                preferred_element_type=jnp.float32) + f2b_ref[...]
    h = jnp.where(h >= 0.0, h, SLOPE * h)

    # ---- fc3 (kept f32 for accuracy; trivially small).
    h = jnp.dot(h, f3w_ref[...], preferred_element_type=jnp.float32) + f3b_ref[...]
    o_ref[...] = h


# ---------------------------------------------------------------------------
# Parameters
# ---------------------------------------------------------------------------
def init_params(key, embedding_dim=2, in_hw=(8, 8)):
    """Canonical (PyTorch-layout) parameters of the reference module."""
    h_img, w_img = in_hw
    feat = 156 * (h_img - 3) * (w_img - 3)          # LazyLinear in_features
    ks = jax.random.split(key, 12)

    def w(k, shape, scale=0.05):
        return scale * jax.random.normal(k, shape, dtype=jnp.float32)

    return {
        "c1w": w(ks[0], (156, 1, 2, 2)),    "c1b": w(ks[1], (156,)),
        # TODO(synk): reference says Conv2d(256, 156, ...) here (inconsistent
        # with conv1's 156 output channels); we use 156 so the forward runs.
        "c2w": w(ks[2], (156, 156, 2, 2)),  "c2b": w(ks[3], (156,)),
        "c3w": w(ks[4], (156, 156, 2, 2)),  "c3b": w(ks[5], (156,)),
        # FC weights stored as (in_features, out_features); fc1 rows follow the
        # PyTorch NCHW .view(N, -1) order: index = c*OH*OW + h*OW + w.
        "f1w": w(ks[6], (feat, 156)),           "f1b": w(ks[7], (156,)),
        "f2w": w(ks[8], (156, 156)),            "f2b": w(ks[9], (156,)),
        "f3w": w(ks[10], (156, embedding_dim)), "f3b": w(ks[11], (embedding_dim,)),
    }


def prepare_params(params, in_hw=(8, 8)):
    """One-time layout work: im2col weight matrices, fc1 per-position blocks,
    zero-padding of channel dims, bf16 casts (fc3 kept f32)."""
    h_img, w_img = in_hw
    oh, ow = h_img - 3, w_img - 3
    emb = params["f3w"].shape[1]

    def conv1_w(w_oihw):
        # (156, 1, 2, 2) -> (4, 156): row = tap i*2+j, col = out channel.
        cout = w_oihw.shape[0]
        wm = jnp.transpose(w_oihw, (2, 3, 1, 0)).reshape(4, cout)
        wm = jnp.pad(wm, ((0, CIN_PAD - 4), (0, CP - cout)))
        return wm.astype(jnp.bfloat16)                       # (128, 256)

    def conv_w(w_oihw):
        cout, cin, kh, kw = w_oihw.shape
        wm = jnp.transpose(w_oihw, (2, 3, 1, 0))             # (kh, kw, cin, cout)
        wm = jnp.pad(wm, ((0, 0), (0, 0), (0, CP - cin), (0, CP - cout)))
        return wm.reshape(kh * kw * CP, CP).astype(jnp.bfloat16)

    def bias(b, width):
        return jnp.pad(b, (0, width - b.shape[0])).reshape(1, width).astype(jnp.float32)

    # fc1 as per-position (256, 256) blocks: W_p[c, o] = f1w[c*OH*OW + p, o].
    f1 = params["f1w"].reshape(156, oh * ow, 156)            # (c, p, out)
    f1 = jnp.transpose(f1, (1, 0, 2))                        # (p, c, out)
    f1 = jnp.pad(f1, ((0, 0), (0, CP - 156), (0, CP - 156)))
    f1 = f1.reshape(oh * ow * CP, CP).astype(jnp.bfloat16)   # (25*256, 256)

    f2 = jnp.pad(params["f2w"], ((0, CP - 156), (0, CP - 156))).astype(jnp.bfloat16)
    f3 = jnp.pad(params["f3w"], ((0, CP - 156), (0, EMB_PAD - emb))).astype(jnp.float32)

    return {
        "w1": conv1_w(params["c1w"]), "b1": bias(params["c1b"], CP),
        "w2": conv_w(params["c2w"]),  "b2": bias(params["c2b"], CP),
        "w3": conv_w(params["c3w"]),  "b3": bias(params["c3b"], CP),
        "f1w": f1, "f1b": bias(params["f1b"], CP),
        "f2w": f2, "f2b": bias(params["f2b"], CP),
        "f3w": f3, "f3b": bias(params["f3b"], EMB_PAD),
    }


# ---------------------------------------------------------------------------
# Forward
# ---------------------------------------------------------------------------
def siamese_forward(rt, input1, input2, input3, *, embedding_dim=2):
    """Batched triplet forward.  Inputs are NCHW (B, 1, H, W)."""
    b, cin, h_img, w_img = input1.shape
    # The shift-accumulate / garbage-row trick is ONLY valid for this exact
    # structure (three VALID 2x2/stride-1 convs feeding a flatten).
    assert cin == 1
    assert h_img >= 4 and w_img >= 4
    n3 = 3 * b
    m = n3 * h_img * w_img
    oh, ow = h_img - 3, w_img - 3
    rpad = ((w_img + 1) * n3 + 7) // 8 * 8      # zero halo rows (>= max shift)

    # Rows ordered (h, w, n): row = (h*W + w)*n3 + n  (layout plumbing only).
    x = jnp.concatenate([input1, input2, input3], axis=0).astype(jnp.float32)
    xr = x.reshape(n3, h_img * w_img).T.reshape(m)
    xr = jnp.pad(xr, (0, (w_img + 1) * n3))
    shifts = (0, n3, w_img * n3, (w_img + 1) * n3)
    patch = jnp.stack([xr[s:s + m] for s in shifts], axis=1)        # (m, 4)
    patch = jnp.pad(patch, ((0, 0), (0, CIN_PAD - 4))).astype(jnp.bfloat16)

    kernel = functools.partial(_siamese_kernel, m=m, n3=n3, w_img=w_img,
                               oh=oh, ow=ow, rpad=rpad)

    vmem = pltpu.MemorySpace.VMEM
    in_specs = ([pl.BlockSpec(memory_space=vmem)] * 7
                + [pl.BlockSpec(memory_space=pl.ANY)]        # f1w stays in HBM
                + [pl.BlockSpec(memory_space=vmem)] * 5)

    out = pl.pallas_call(
        kernel,
        out_shape=jax.ShapeDtypeStruct((n3, EMB_PAD), jnp.float32),
        in_specs=in_specs,
        out_specs=pl.BlockSpec(memory_space=vmem),
        scratch_shapes=[
            pltpu.VMEM((m + rpad, CP), jnp.bfloat16),         # conv1 out (+halo)
            pltpu.VMEM((m + rpad, CP), jnp.bfloat16),         # conv2 out (+halo)
            pltpu.VMEM((m, CP), jnp.bfloat16),                # conv3 out
            pltpu.VMEM((oh * ow * CP, CP), jnp.bfloat16),     # fc1 weight buffer
            pltpu.SemaphoreType.DMA(()),
        ],
    )(patch, rt["w1"], rt["b1"], rt["w2"], rt["b2"], rt["w3"], rt["b3"],
      rt["f1w"], rt["f1b"], rt["f2w"], rt["f2b"], rt["f3w"], rt["f3b"])

    out = out[:, :embedding_dim]
    return out[:b], out[b:2 * b], out[2 * b:]


# ---------------------------------------------------------------------------
# Pure-XLA reference (f32) for a sanity check.
# ---------------------------------------------------------------------------
def reference_forward_once(params, x_nchw):
    y = x_nchw.astype(jnp.float32)
    for wk, bk in (("c1w", "c1b"), ("c2w", "c2b"), ("c3w", "c3b")):
        y = jax.lax.conv_general_dilated(
            y, params[wk], window_strides=(1, 1), padding="VALID",
            dimension_numbers=("NCHW", "OIHW", "NCHW"))
        y = y + params[bk][None, :, None, None]
        y = jnp.where(y >= 0.0, y, SLOPE * y)
    h = y.reshape(y.shape[0], -1)                      # NCHW flatten (c, h, w)
    for wk, bk, act in (("f1w", "f1b", True), ("f2w", "f2b", True),
                        ("f3w", "f3b", False)):
        h = h @ params[wk] + params[bk]
        if act:
            h = jnp.where(h >= 0.0, h, SLOPE * h)
    return h


if __name__ == "__main__":
    key = jax.random.PRNGKey(0)
    k_params, k1, k2, k3 = jax.random.split(key, 4)

    B, C, H, W = 2, 1, 8, 8
    params = init_params(k_params, embedding_dim=2, in_hw=(H, W))
    rt = prepare_params(params, in_hw=(H, W))

    input1 = jax.random.normal(k1, (B, C, H, W), dtype=jnp.float32)
    input2 = jax.random.normal(k2, (B, C, H, W), dtype=jnp.float32)
    input3 = jax.random.normal(k3, (B, C, H, W), dtype=jnp.float32)

    fwd = jax.jit(functools.partial(siamese_forward, embedding_dim=2))
    o1, o2, o3 = fwd(rt, input1, input2, input3)
    jax.block_until_ready((o1, o2, o3))

    assert o1.shape == (B, 2) and o2.shape == (B, 2) and o3.shape == (B, 2)

    # Loose-tolerance check vs. f32 XLA reference (kernel uses bf16 operands).
    r1 = reference_forward_once(params, input1)
    r2 = reference_forward_once(params, input2)
    r3 = reference_forward_once(params, input3)
    assert jnp.allclose(o1, r1, rtol=0.2, atol=0.2), "branch 1 mismatch"
    assert jnp.allclose(o2, r2, rtol=0.2, atol=0.2), "branch 2 mismatch"
    assert jnp.allclose(o3, r3, rtol=0.2, atol=0.2), "branch 3 mismatch"

    print("KERNEL_OK")
</pallas_src>

<mosaic_0001>
module attributes {stable_mosaic.version = 11 : i64} {
  func.func @_siamese_kernel(%arg0: memref<384x128xbf16, #tpu.memory_space<vmem>>, %arg1: memref<128x256xbf16, #tpu.memory_space<vmem>>, %arg2: memref<1x256xf32, #tpu.memory_space<vmem>>, %arg3: memref<1024x256xbf16, #tpu.memory_space<vmem>>, %arg4: memref<1x256xf32, #tpu.memory_space<vmem>>, %arg5: memref<1024x256xbf16, #tpu.memory_space<vmem>>, %arg6: memref<1x256xf32, #tpu.memory_space<vmem>>, %arg7: memref<6400x256xbf16, #tpu.memory_space<any>>, %arg8: memref<1x256xf32, #tpu.memory_space<vmem>>, %arg9: memref<256x256xbf16, #tpu.memory_space<vmem>>, %arg10: memref<1x256xf32, #tpu.memory_space<vmem>>, %arg11: memref<256x128xf32, #tpu.memory_space<vmem>>, %arg12: memref<1x128xf32, #tpu.memory_space<vmem>>, %arg13: memref<6x128xf32, #tpu.memory_space<vmem>>, %arg14: memref<440x256xbf16, #tpu.memory_space<vmem>>, %arg15: memref<440x256xbf16, #tpu.memory_space<vmem>>, %arg16: memref<384x256xbf16, #tpu.memory_space<vmem>>, %arg17: memref<6400x256xbf16, #tpu.memory_space<vmem>>, %arg18: memref<!tpu.dma_semaphore, #tpu.memory_space<semaphore_mem>>) attributes {dimension_semantics = [], scalar_prefetch = 0 : i64, scratch_operands = 5 : i64, tpu.core_type = #tpu.core_type<tc>} {
    tpu.enqueue_dma source(%arg7 : memref<6400x256xbf16, #tpu.memory_space<any>>) target(%arg17 : memref<6400x256xbf16, #tpu.memory_space<vmem>>) target_semaphore(%arg18 : memref<!tpu.dma_semaphore, #tpu.memory_space<semaphore_mem>>)
    %cst = arith.constant 0.000000e+00 : bf16
    %0 = vector.broadcast %cst : bf16 to vector<56x256xbf16>
    %c384 = arith.constant 384 : index
    %c0 = arith.constant 0 : index
    %1 = vector.load %arg14[%c384, %c0] : memref<440x256xbf16, #tpu.memory_space<vmem>>, vector<56x256xbf16>
    tpu.vector_store %arg14[%c384, %c0], %0 {strides = array<i32>} : memref<440x256xbf16, #tpu.memory_space<vmem>>, vector<56x256xbf16>,
    %c384_0 = arith.constant 384 : index
    %c0_1 = arith.constant 0 : index
    %2 = vector.load %arg15[%c384_0, %c0_1] : memref<440x256xbf16, #tpu.memory_space<vmem>>, vector<56x256xbf16>
    tpu.vector_store %arg15[%c384_0, %c0_1], %0 {strides = array<i32>} : memref<440x256xbf16, #tpu.memory_space<vmem>>, vector<56x256xbf16>,
    %c0_2 = arith.constant 0 : index
    %c0_3 = arith.constant 0 : index
    %3 = vector.load %arg0[%c0_2, %c0_3] : memref<384x128xbf16, #tpu.memory_space<vmem>>, vector<384x128xbf16>
    %c0_4 = arith.constant 0 : index
    %c0_5 = arith.constant 0 : index
    %4 = vector.load %arg1[%c0_4, %c0_5] : memref<128x256xbf16, #tpu.memory_space<vmem>>, vector<128x256xbf16>
    %cst_6 = arith.constant dense<0.000000e+00> : vector<384x256xf32>
    %5 = tpu.matmul %3, %4, %cst_6 {dimension_numbers = #tpu.dot_dimension_numbers<[1], [0], [0], [1], [0, 0, 1, 1], [], []>} : vector<384x128xbf16>, vector<128x256xbf16>, vector<384x256xf32> -> vector<384x256xf32>
    %c0_7 = arith.constant 0 : index
    %c0_8 = arith.constant 0 : index
    %6 = vector.load %arg2[%c0_7, %c0_8] : memref<1x256xf32, #tpu.memory_space<vmem>>, vector<1x256xf32>
    %7 = vector.broadcast %6 : vector<1x256xf32> to vector<384x256xf32>
    %8 = arith.addf %5, %7 : vector<384x256xf32>
    %cst_9 = arith.constant 0.000000e+00 : f32
    %9 = vector.broadcast %cst_9 : f32 to vector<384x256xf32>
    %10 = arith.cmpf oge, %8, %9 : vector<384x256xf32>
    %cst_10 = arith.constant 2.000000e+00 : f32
    %11 = vector.broadcast %cst_10 : f32 to vector<384x256xf32>
    %12 = arith.mulf %11, %8 : vector<384x256xf32>
    %13 = arith.select %10, %8, %12 : vector<384x256xi1>, vector<384x256xf32>
    %14 = arith.truncf %13 : vector<384x256xf32> to vector<384x256xbf16>
    %c0_11 = arith.constant 0 : index
    %c0_12 = arith.constant 0 : index
    %15 = vector.load %arg14[%c0_11, %c0_12] : memref<440x256xbf16, #tpu.memory_space<vmem>>, vector<384x256xbf16>
    tpu.vector_store %arg14[%c0_11, %c0_12], %14 {strides = array<i32>} : memref<440x256xbf16, #tpu.memory_space<vmem>>, vector<384x256xbf16>,
    %cst_13 = arith.constant 0.000000e+00 : f32
    %16 = vector.broadcast %cst_13 : f32 to vector<384x256xf32>
    %c0_14 = arith.constant 0 : index
    %c0_15 = arith.constant 0 : index
    %17 = vector.load %arg14[%c0_14, %c0_15] : memref<440x256xbf16, #tpu.memory_space<vmem>>, vector<384x256xbf16>
    %c0_16 = arith.constant 0 : index
    %c0_17 = arith.constant 0 : index
    %18 = vector.load %arg3[%c0_16, %c0_17] : memref<1024x256xbf16, #tpu.memory_space<vmem>>, vector<256x256xbf16>
    %cst_18 = arith.constant dense<0.000000e+00> : vector<384x256xf32>
    %19 = tpu.matmul %17, %18, %cst_18 {dimension_numbers = #tpu.dot_dimension_numbers<[1], [0], [0], [1], [0, 0, 1, 1], [], []>} : vector<384x256xbf16>, vector<256x256xbf16>, vector<384x256xf32> -> vector<384x256xf32>
    %20 = arith.addf %16, %19 : vector<384x256xf32>
    %c6 = arith.constant 6 : index
    %c0_19 = arith.constant 0 : index
    %21 = vector.load %arg14[%c6, %c0_19] : memref<440x256xbf16, #tpu.memory_space<vmem>>, vector<384x256xbf16>
    %c256 = arith.constant 256 : index
    %c0_20 = arith.constant 0 : index
    %22 = vector.load %arg3[%c256, %c0_20] : memref<1024x256xbf16, #tpu.memory_space<vmem>>, vector<256x256xbf16>
    %cst_21 = arith.constant dense<0.000000e+00> : vector<384x256xf32>
    %23 = tpu.matmul %21, %22, %cst_21 {dimension_numbers = #tpu.dot_dimension_numbers<[1], [0], [0], [1], [0, 0, 1, 1], [], []>} : vector<384x256xbf16>, vector<256x256xbf16>, vector<384x256xf32> -> vector<384x256xf32>
    %24 = arith.addf %20, %23 : vector<384x256xf32>
    %c48 = arith.constant 48 : index
    %c0_22 = arith.constant 0 : index
    %25 = vector.load %arg14[%c48, %c0_22] : memref<440x256xbf16, #tpu.memory_space<vmem>>, vector<384x256xbf16>
    %c512 = arith.constant 512 : index
    %c0_23 = arith.constant 0 : index
    %26 = vector.load %arg3[%c512, %c0_23] : memref<1024x256xbf16, #tpu.memory_space<vmem>>, vector<256x256xbf16>
    %cst_24 = arith.constant dense<0.000000e+00> : vector<384x256xf32>
    %27 = tpu.matmul %25, %26, %cst_24 {dimension_numbers = #tpu.dot_dimension_numbers<[1], [0], [0], [1], [0, 0, 1, 1], [], []>} : vector<384x256xbf16>, vector<256x256xbf16>, vector<384x256xf32> -> vector<384x256xf32>
    %28 = arith.addf %24, %27 : vector<384x256xf32>
    %c54 = arith.constant 54 : index
    %c0_25 = arith.constant 0 : index
    %29 = vector.load %arg14[%c54, %c0_25] : memref<440x256xbf16, #tpu.memory_space<vmem>>, vector<384x256xbf16>
    %c768 = arith.constant 768 : index
    %c0_26 = arith.constant 0 : index
    %30 = vector.load %arg3[%c768, %c0_26] : memref<1024x256xbf16, #tpu.memory_space<vmem>>, vector<256x256xbf16>
    %cst_27 = arith.constant dense<0.000000e+00> : vector<384x256xf32>
    %31 = tpu.matmul %29, %30, %cst_27 {dimension_numbers = #tpu.dot_dimension_numbers<[1], [0], [0], [1], [0, 0, 1, 1], [], []>} : vector<384x256xbf16>, vector<256x256xbf16>, vector<384x256xf32> -> vector<384x256xf32>
    %32 = arith.addf %28, %31 : vector<384x256xf32>
    %c0_28 = arith.constant 0 : index
    %c0_29 = arith.constant 0 : index
    %33 = vector.load %arg4[%c0_28, %c0_29] : memref<1x256xf32, #tpu.memory_space<vmem>>, vector<1x256xf32>
    %34 = vector.broadcast %33 : vector<1x256xf32> to vector<384x256xf32>
    %35 = arith.addf %32, %34 : vector<384x256xf32>
    %cst_30 = arith.constant 0.000000e+00 : f32
    %36 = vector.broadcast %cst_30 : f32 to vector<384x256xf32>
    %37 = arith.cmpf oge, %35, %36 : vector<384x256xf32>
    %cst_31 = arith.constant 2.000000e+00 : f32
    %38 = vector.broadcast %cst_31 : f32 to vector<384x256xf32>
    %39 = arith.mulf %38, %35 : vector<384x256xf32>
    %40 = arith.select %37, %35, %39 : vector<384x256xi1>, vector<384x256xf32>
    %41 = arith.truncf %40 : vector<384x256xf32> to vector<384x256xbf16>
    %c0_32 = arith.constant 0 : index
    %c0_33 = arith.constant 0 : index
    %42 = vector.load %arg15[%c0_32, %c0_33] : memref<440x256xbf16, #tpu.memory_space<vmem>>, vector<384x256xbf16>
    tpu.vector_store %arg15[%c0_32, %c0_33], %41 {strides = array<i32>} : memref<440x256xbf16, #tpu.memory_space<vmem>>, vector<384x256xbf16>,
    %cst_34 = arith.constant 0.000000e+00 : f32
    %43 = vector.broadcast %cst_34 : f32 to vector<384x256xf32>
    %c0_35 = arith.constant 0 : index
    %c0_36 = arith.constant 0 : index
    %44 = vector.load %arg15[%c0_35, %c0_36] : memref<440x256xbf16, #tpu.memory_space<vmem>>, vector<384x256xbf16>
    %c0_37 = arith.constant 0 : index
    %c0_38 = arith.constant 0 : index
    %45 = vector.load %arg5[%c0_37, %c0_38] : memref<1024x256xbf16, #tpu.memory_space<vmem>>, vector<256x256xbf16>
    %cst_39 = arith.constant dense<0.000000e+00> : vector<384x256xf32>
    %46 = tpu.matmul %44, %45, %cst_39 {dimension_numbers = #tpu.dot_dimension_numbers<[1], [0], [0], [1], [0, 0, 1, 1], [], []>} : vector<384x256xbf16>, vector<256x256xbf16>, vector<384x256xf32> -> vector<384x256xf32>
    %47 = arith.addf %43, %46 : vector<384x256xf32>
    %c6_40 = arith.constant 6 : index
    %c0_41 = arith.constant 0 : index
    %48 = vector.load %arg15[%c6_40, %c0_41] : memref<440x256xbf16, #tpu.memory_space<vmem>>, vector<384x256xbf16>
    %c256_42 = arith.constant 256 : index
    %c0_43 = arith.constant 0 : index
    %49 = vector.load %arg5[%c256_42, %c0_43] : memref<1024x256xbf16, #tpu.memory_space<vmem>>, vector<256x256xbf16>
    %cst_44 = arith.constant dense<0.000000e+00> : vector<384x256xf32>
    %50 = tpu.matmul %48, %49, %cst_44 {dimension_numbers = #tpu.dot_dimension_numbers<[1], [0], [0], [1], [0, 0, 1, 1], [], []>} : vector<384x256xbf16>, vector<256x256xbf16>, vector<384x256xf32> -> vector<384x256xf32>
    %51 = arith.addf %47, %50 : vector<384x256xf32>
    %c48_45 = arith.constant 48 : index
    %c0_46 = arith.constant 0 : index
    %52 = vector.load %arg15[%c48_45, %c0_46] : memref<440x256xbf16, #tpu.memory_space<vmem>>, vector<384x256xbf16>
    %c512_47 = arith.constant 512 : index
    %c0_48 = arith.constant 0 : index
    %53 = vector.load %arg5[%c512_47, %c0_48] : memref<1024x256xbf16, #tpu.memory_space<vmem>>, vector<256x256xbf16>
    %cst_49 = arith.constant dense<0.000000e+00> : vector<384x256xf32>
    %54 = tpu.matmul %52, %53, %cst_49 {dimension_numbers = #tpu.dot_dimension_numbers<[1], [0], [0], [1], [0, 0, 1, 1], [], []>} : vector<384x256xbf16>, vector<256x256xbf16>, vector<384x256xf32> -> vector<384x256xf32>
    %55 = arith.addf %51, %54 : vector<384x256xf32>
    %c54_50 = arith.constant 54 : index
    %c0_51 = arith.constant 0 : index
    %56 = vector.load %arg15[%c54_50, %c0_51] : memref<440x256xbf16, #tpu.memory_space<vmem>>, vector<384x256xbf16>
    %c768_52 = arith.constant 768 : index
    %c0_53 = arith.constant 0 : index
    %57 = vector.load %arg5[%c768_52, %c0_53] : memref<1024x256xbf16, #tpu.memory_space<vmem>>, vector<256x256xbf16>
    %cst_54 = arith.constant dense<0.000000e+00> : vector<384x256xf32>
    %58 = tpu.matmul %56, %57, %cst_54 {dimension_numbers = #tpu.dot_dimension_numbers<[1], [0], [0], [1], [0, 0, 1, 1], [], []>} : vector<384x256xbf16>, vector<256x256xbf16>, vector<384x256xf32> -> vector<384x256xf32>
    %59 = arith.addf %55, %58 : vector<384x256xf32>
    %c0_55 = arith.constant 0 : index
    %c0_56 = arith.constant 0 : index
    %60 = vector.load %arg6[%c0_55, %c0_56] : memref<1x256xf32, #tpu.memory_space<vmem>>, vector<1x256xf32>
    %61 = vector.broadcast %60 : vector<1x256xf32> to vector<384x256xf32>
    %62 = arith.addf %59, %61 : vector<384x256xf32>
    %cst_57 = arith.constant 0.000000e+00 : f32
    %63 = vector.broadcast %cst_57 : f32 to vector<384x256xf32>
    %64 = arith.cmpf oge, %62, %63 : vector<384x256xf32>
    %cst_58 = arith.constant 2.000000e+00 : f32
    %65 = vector.broadcast %cst_58 : f32 to vector<384x256xf32>
    %66 = arith.mulf %65, %62 : vector<384x256xf32>
    %67 = arith.select %64, %62, %66 : vector<384x256xi1>, vector<384x256xf32>
    %68 = arith.truncf %67 : vector<384x256xf32> to vector<384x256xbf16>
    %c0_59 = arith.constant 0 : index
    %c0_60 = arith.constant 0 : index
    %69 = vector.load %arg16[%c0_59, %c0_60] : memref<384x256xbf16, #tpu.memory_space<vmem>>, vector<384x256xbf16>
    tpu.vector_store %arg16[%c0_59, %c0_60], %68 {strides = array<i32>} : memref<384x256xbf16, #tpu.memory_space<vmem>>, vector<384x256xbf16>,
    tpu.wait_dma2 semaphore(%arg18 : memref<!tpu.dma_semaphore, #tpu.memory_space<semaphore_mem>>) src(%arg7 : memref<6400x256xbf16, #tpu.memory_space<any>>) dst(%arg17 : memref<6400x256xbf16, #tpu.memory_space<vmem>>)
    %cst_61 = arith.constant 0.000000e+00 : f32
    %70 = vector.broadcast %cst_61 : f32 to vector<6x256xf32>
    %c0_62 = arith.constant 0 : index
    %c0_63 = arith.constant 0 : index
    %71 = vector.load %arg16[%c0_62, %c0_63] : memref<384x256xbf16, #tpu.memory_space<vmem>>, vector<6x256xbf16>
    %c0_64 = arith.constant 0 : index
    %c0_65 = arith.constant 0 : index
    %72 = vector.load %arg17[%c0_64, %c0_65] : memref<6400x256xbf16, #tpu.memory_space<vmem>>, vector<256x256xbf16>
    %cst_66 = arith.constant dense<0.000000e+00> : vector<6x256xf32>
    %73 = tpu.matmul %71, %72, %cst_66 {dimension_numbers = #tpu.dot_dimension_numbers<[1], [0], [0], [1], [0, 0, 1, 1], [], []>} : vector<6x256xbf16>, vector<256x256xbf16>, vector<6x256xf32> -> vector<6x256xf32>
    %74 = arith.addf %70, %73 : vector<6x256xf32>
    %c6_67 = arith.constant 6 : index
    %c0_68 = arith.constant 0 : index
    %75 = vector.load %arg16[%c6_67, %c0_68] : memref<384x256xbf16, #tpu.memory_space<vmem>>, vector<6x256xbf16>
    %c256_69 = arith.constant 256 : index
    %c0_70 = arith.constant 0 : index
    %76 = vector.load %arg17[%c256_69, %c0_70] : memref<6400x256xbf16, #tpu.memory_space<vmem>>, vector<256x256xbf16>
    %cst_71 = arith.constant dense<0.000000e+00> : vector<6x256xf32>
    %77 = tpu.matmul %75, %76, %cst_71 {dimension_numbers = #tpu.dot_dimension_numbers<[1], [0], [0], [1], [0, 0, 1, 1], [], []>} : vector<6x256xbf16>, vector<256x256xbf16>, vector<6x256xf32> -> vector<6x256xf32>
    %78 = arith.addf %74, %77 : vector<6x256xf32>
    %c12 = arith.constant 12 : index
    %c0_72 = arith.constant 0 : index
    %79 = vector.load %arg16[%c12, %c0_72] : memref<384x256xbf16, #tpu.memory_space<vmem>>, vector<6x256xbf16>
    %c512_73 = arith.constant 512 : index
    %c0_74 = arith.constant 0 : index
    %80 = vector.load %arg17[%c512_73, %c0_74] : memref<6400x256xbf16, #tpu.memory_space<vmem>>, vector<256x256xbf16>
    %cst_75 = arith.constant dense<0.000000e+00> : vector<6x256xf32>
    %81 = tpu.matmul %79, %80, %cst_75 {dimension_numbers = #tpu.dot_dimension_numbers<[1], [0], [0], [1], [0, 0, 1, 1], [], []>} : vector<6x256xbf16>, vector<256x256xbf16>, vector<6x256xf32> -> vector<6x256xf32>
    %82 = arith.addf %78, %81 : vector<6x256xf32>
    %c18 = arith.constant 18 : index
    %c0_76 = arith.constant 0 : index
    %83 = vector.load %arg16[%c18, %c0_76] : memref<384x256xbf16, #tpu.memory_space<vmem>>, vector<6x256xbf16>
    %c768_77 = arith.constant 768 : index
    %c0_78 = arith.constant 0 : index
    %84 = vector.load %arg17[%c768_77, %c0_78] : memref<6400x256xbf16, #tpu.memory_space<vmem>>, vector<256x256xbf16>
    %cst_79 = arith.constant dense<0.000000e+00> : vector<6x256xf32>
    %85 = tpu.matmul %83, %84, %cst_79 {dimension_numbers = #tpu.dot_dimension_numbers<[1], [0], [0], [1], [0, 0, 1, 1], [], []>} : vector<6x256xbf16>, vector<256x256xbf16>, vector<6x256xf32> -> vector<6x256xf32>
    %86 = arith.addf %82, %85 : vector<6x256xf32>
    %c24 = arith.constant 24 : index
    %c0_80 = arith.constant 0 : index
    %87 = vector.load %arg16[%c24, %c0_80] : memref<384x256xbf16, #tpu.memory_space<vmem>>, vector<6x256xbf16>
    %c1024 = arith.constant 1024 : index
    %c0_81 = arith.constant 0 : index
    %88 = vector.load %arg17[%c1024, %c0_81] : memref<6400x256xbf16, #tpu.memory_space<vmem>>, vector<256x256xbf16>
    %cst_82 = arith.constant dense<0.000000e+00> : vector<6x256xf32>
    %89 = tpu.matmul %87, %88, %cst_82 {dimension_numbers = #tpu.dot_dimension_numbers<[1], [0], [0], [1], [0, 0, 1, 1], [], []>} : vector<6x256xbf16>, vector<256x256xbf16>, vector<6x256xf32> -> vector<6x256xf32>
    %90 = arith.addf %86, %89 : vector<6x256xf32>
    %c48_83 = arith.constant 48 : index
    %c0_84 = arith.constant 0 : index
    %91 = vector.load %arg16[%c48_83, %c0_84] : memref<384x256xbf16, #tpu.memory_space<vmem>>, vector<6x256xbf16>
    %c1280 = arith.constant 1280 : index
    %c0_85 = arith.constant 0 : index
    %92 = vector.load %arg17[%c1280, %c0_85] : memref<6400x256xbf16, #tpu.memory_space<vmem>>, vector<256x256xbf16>
    %cst_86 = arith.constant dense<0.000000e+00> : vector<6x256xf32>
    %93 = tpu.matmul %91, %92, %cst_86 {dimension_numbers = #tpu.dot_dimension_numbers<[1], [0], [0], [1], [0, 0, 1, 1], [], []>} : vector<6x256xbf16>, vector<256x256xbf16>, vector<6x256xf32> -> vector<6x256xf32>
    %94 = arith.addf %90, %93 : vector<6x256xf32>
    %c54_87 = arith.constant 54 : index
    %c0_88 = arith.constant 0 : index
    %95 = vector.load %arg16[%c54_87, %c0_88] : memref<384x256xbf16, #tpu.memory_space<vmem>>, vector<6x256xbf16>
    %c1536 = arith.constant 1536 : index
    %c0_89 = arith.constant 0 : index
    %96 = vector.load %arg17[%c1536, %c0_89] : memref<6400x256xbf16, #tpu.memory_space<vmem>>, vector<256x256xbf16>
    %cst_90 = arith.constant dense<0.000000e+00> : vector<6x256xf32>
    %97 = tpu.matmul %95, %96, %cst_90 {dimension_numbers = #tpu.dot_dimension_numbers<[1], [0], [0], [1], [0, 0, 1, 1], [], []>} : vector<6x256xbf16>, vector<256x256xbf16>, vector<6x256xf32> -> vector<6x256xf32>
    %98 = arith.addf %94, %97 : vector<6x256xf32>
    %c60 = arith.constant 60 : index
    %c0_91 = arith.constant 0 : index
    %99 = vector.load %arg16[%c60, %c0_91] : memref<384x256xbf16, #tpu.memory_space<vmem>>, vector<6x256xbf16>
    %c1792 = arith.constant 1792 : index
    %c0_92 = arith.constant 0 : index
    %100 = vector.load %arg17[%c1792, %c0_92] : memref<6400x256xbf16, #tpu.memory_space<vmem>>, vector<256x256xbf16>
    %cst_93 = arith.constant dense<0.000000e+00> : vector<6x256xf32>
    %101 = tpu.matmul %99, %100, %cst_93 {dimension_numbers = #tpu.dot_dimension_numbers<[1], [0], [0], [1], [0, 0, 1, 1], [], []>} : vector<6x256xbf16>, vector<256x256xbf16>, vector<6x256xf32> -> vector<6x256xf32>
    %102 = arith.addf %98, %101 : vector<6x256xf32>
    %c66 = arith.constant 66 : index
    %c0_94 = arith.constant 0 : index
    %103 = vector.load %arg16[%c66, %c0_94] : memref<384x256xbf16, #tpu.memory_space<vmem>>, vector<6x256xbf16>
    %c2048 = arith.constant 2048 : index
    %c0_95 = arith.constant 0 : index
    %104 = vector.load %arg17[%c2048, %c0_95] : memref<6400x256xbf16, #tpu.memory_space<vmem>>, vector<256x256xbf16>
    %cst_96 = arith.constant dense<0.000000e+00> : vector<6x256xf32>
    %105 = tpu.matmul %103, %104, %cst_96 {dimension_numbers = #tpu.dot_dimension_numbers<[1], [0], [0], [1], [0, 0, 1, 1], [], []>} : vector<6x256xbf16>, vector<256x256xbf16>, vector<6x256xf32> -> vector<6x256xf32>
    %106 = arith.addf %102, %105 : vector<6x256xf32>
    %c72 = arith.constant 72 : index
    %c0_97 = arith.constant 0 : index
    %107 = vector.load %arg16[%c72, %c0_97] : memref<384x256xbf16, #tpu.memory_space<vmem>>, vector<6x256xbf16>
    %c2304 = arith.constant 2304 : index
    %c0_98 = arith.constant 0 : index
    %108 = vector.load %arg17[%c2304, %c0_98] : memref<6400x256xbf16, #tpu.memory_space<vmem>>, vector<256x256xbf16>
    %cst_99 = arith.constant dense<0.000000e+00> : vector<6x256xf32>
    %109 = tpu.matmul %107, %108, %cst_99 {dimension_numbers = #tpu.dot_dimension_numbers<[1], [0], [0], [1], [0, 0, 1, 1], [], []>} : vector<6x256xbf16>, vector<256x256xbf16>, vector<6x256xf32> -> vector<6x256xf32>
    %110 = arith.addf %106, %109 : vector<6x256xf32>
    %c96 = arith.constant 96 : index
    %c0_100 = arith.constant 0 : index
    %111 = vector.load %arg16[%c96, %c0_100] : memref<384x256xbf16, #tpu.memory_space<vmem>>, vector<6x256xbf16>
    %c2560 = arith.constant 2560 : index
    %c0_101 = arith.constant 0 : index
    %112 = vector.load %arg17[%c2560, %c0_101] : memref<6400x256xbf16, #tpu.memory_space<vmem>>, vector<256x256xbf16>
    %cst_102 = arith.constant dense<0.000000e+00> : vector<6x256xf32>
    %113 = tpu.matmul %111, %112, %cst_102 {dimension_numbers = #tpu.dot_dimension_numbers<[1], [0], [0], [1], [0, 0, 1, 1], [], []>} : vector<6x256xbf16>, vector<256x256xbf16>, vector<6x256xf32> -> vector<6x256xf32>
    %114 = arith.addf %110, %113 : vector<6x256xf32>
    %c102 = arith.constant 102 : index
    %c0_103 = arith.constant 0 : index
    %115 = vector.load %arg16[%c102, %c0_103] : memref<384x256xbf16, #tpu.memory_space<vmem>>, vector<6x256xbf16>
    %c2816 = arith.constant 2816 : index
    %c0_104 = arith.constant 0 : index
    %116 = vector.load %arg17[%c2816, %c0_104] : memref<6400x256xbf16, #tpu.memory_space<vmem>>, vector<256x256xbf16>
    %cst_105 = arith.constant dense<0.000000e+00> : vector<6x256xf32>
    %117 = tpu.matmul %115, %116, %cst_105 {dimension_numbers = #tpu.dot_dimension_numbers<[1], [0], [0], [1], [0, 0, 1, 1], [], []>} : vector<6x256xbf16>, vector<256x256xbf16>, vector<6x256xf32> -> vector<6x256xf32>
    %118 = arith.addf %114, %117 : vector<6x256xf32>
    %c108 = arith.constant 108 : index
    %c0_106 = arith.constant 0 : index
    %119 = vector.load %arg16[%c108, %c0_106] : memref<384x256xbf16, #tpu.memory_space<vmem>>, vector<6x256xbf16>
    %c3072 = arith.constant 3072 : index
    %c0_107 = arith.constant 0 : index
    %120 = vector.load %arg17[%c3072, %c0_107] : memref<6400x256xbf16, #tpu.memory_space<vmem>>, vector<256x256xbf16>
    %cst_108 = arith.constant dense<0.000000e+00> : vector<6x256xf32>
    %121 = tpu.matmul %119, %120, %cst_108 {dimension_numbers = #tpu.dot_dimension_numbers<[1], [0], [0], [1], [0, 0, 1, 1], [], []>} : vector<6x256xbf16>, vector<256x256xbf16>, vector<6x256xf32> -> vector<6x256xf32>
    %122 = arith.addf %118, %121 : vector<6x256xf32>
    %c114 = arith.constant 114 : index
    %c0_109 = arith.constant 0 : index
    %123 = vector.load %arg16[%c114, %c0_109] : memref<384x256xbf16, #tpu.memory_space<vmem>>, vector<6x256xbf16>
    %c3328 = arith.constant 3328 : index
    %c0_110 = arith.constant 0 : index
    %124 = vector.load %arg17[%c3328, %c0_110] : memref<6400x256xbf16, #tpu.memory_space<vmem>>, vector<256x256xbf16>
    %cst_111 = arith.constant dense<0.000000e+00> : vector<6x256xf32>
    %125 = tpu.matmul %123, %124, %cst_111 {dimension_numbers = #tpu.dot_dimension_numbers<[1], [0], [0], [1], [0, 0, 1, 1], [], []>} : vector<6x256xbf16>, vector<256x256xbf16>, vector<6x256xf32> -> vector<6x256xf32>
    %126 = arith.addf %122, %125 : vector<6x256xf32>
    %c120 = arith.constant 120 : index
    %c0_112 = arith.constant 0 : index
    %127 = vector.load %arg16[%c120, %c0_112] : memref<384x256xbf16, #tpu.memory_space<vmem>>, vector<6x256xbf16>
    %c3584 = arith.constant 3584 : index
    %c0_113 = arith.constant 0 : index
    %128 = vector.load %arg17[%c3584, %c0_113] : memref<6400x256xbf16, #tpu.memory_space<vmem>>, vector<256x256xbf16>
    %cst_114 = arith.constant dense<0.000000e+00> : vector<6x256xf32>
    %129 = tpu.matmul %127, %128, %cst_114 {dimension_numbers = #tpu.dot_dimension_numbers<[1], [0], [0], [1], [0, 0, 1, 1], [], []>} : vector<6x256xbf16>, vector<256x256xbf16>, vector<6x256xf32> -> vector<6x256xf32>
    %130 = arith.addf %126, %129 : vector<6x256xf32>
    %c144 = arith.constant 144 : index
    %c0_115 = arith.constant 0 : index
    %131 = vector.load %arg16[%c144, %c0_115] : memref<384x256xbf16, #tpu.memory_space<vmem>>, vector<6x256xbf16>
    %c3840 = arith.constant 3840 : index
    %c0_116 = arith.constant 0 : index
    %132 = vector.load %arg17[%c3840, %c0_116] : memref<6400x256xbf16, #tpu.memory_space<vmem>>, vector<256x256xbf16>
    %cst_117 = arith.constant dense<0.000000e+00> : vector<6x256xf32>
    %133 = tpu.matmul %131, %132, %cst_117 {dimension_numbers = #tpu.dot_dimension_numbers<[1], [0], [0], [1], [0, 0, 1, 1], [], []>} : vector<6x256xbf16>, vector<256x256xbf16>, vector<6x256xf32> -> vector<6x256xf32>
    %134 = arith.addf %130, %133 : vector<6x256xf32>
    %c150 = arith.constant 150 : index
    %c0_118 = arith.constant 0 : index
    %135 = vector.load %arg16[%c150, %c0_118] : memref<384x256xbf16, #tpu.memory_space<vmem>>, vector<6x256xbf16>
    %c4096 = arith.constant 4096 : index
    %c0_119 = arith.constant 0 : index
    %136 = vector.load %arg17[%c4096, %c0_119] : memref<6400x256xbf16, #tpu.memory_space<vmem>>, vector<256x256xbf16>
    %cst_120 = arith.constant dense<0.000000e+00> : vector<6x256xf32>
    %137 = tpu.matmul %135, %136, %cst_120 {dimension_numbers = #tpu.dot_dimension_numbers<[1], [0], [0], [1], [0, 0, 1, 1], [], []>} : vector<6x256xbf16>, vector<256x256xbf16>, vector<6x256xf32> -> vector<6x256xf32>
    %138 = arith.addf %134, %137 : vector<6x256xf32>
    %c156 = arith.constant 156 : index
    %c0_121 = arith.constant 0 : index
    %139 = vector.load %arg16[%c156, %c0_121] : memref<384x256xbf16, #tpu.memory_space<vmem>>, vector<6x256xbf16>
    %c4352 = arith.constant 4352 : index
    %c0_122 = arith.constant 0 : index
    %140 = vector.load %arg17[%c4352, %c0_122] : memref<6400x256xbf16, #tpu.memory_space<vmem>>, vector<256x256xbf16>
    %cst_123 = arith.constant dense<0.000000e+00> : vector<6x256xf32>
    %141 = tpu.matmul %139, %140, %cst_123 {dimension_numbers = #tpu.dot_dimension_numbers<[1], [0], [0], [1], [0, 0, 1, 1], [], []>} : vector<6x256xbf16>, vector<256x256xbf16>, vector<6x256xf32> -> vector<6x256xf32>
    %142 = arith.addf %138, %141 : vector<6x256xf32>
    %c162 = arith.constant 162 : index
    %c0_124 = arith.constant 0 : index
    %143 = vector.load %arg16[%c162, %c0_124] : memref<384x256xbf16, #tpu.memory_space<vmem>>, vector<6x256xbf16>
    %c4608 = arith.constant 4608 : index
    %c0_125 = arith.constant 0 : index
    %144 = vector.load %arg17[%c4608, %c0_125] : memref<6400x256xbf16, #tpu.memory_space<vmem>>, vector<256x256xbf16>
    %cst_126 = arith.constant dense<0.000000e+00> : vector<6x256xf32>
    %145 = tpu.matmul %143, %144, %cst_126 {dimension_numbers = #tpu.dot_dimension_numbers<[1], [0], [0], [1], [0, 0, 1, 1], [], []>} : vector<6x256xbf16>, vector<256x256xbf16>, vector<6x256xf32> -> vector<6x256xf32>
    %146 = arith.addf %142, %145 : vector<6x256xf32>
    %c168 = arith.constant 168 : index
    %c0_127 = arith.constant 0 : index
    %147 = vector.load %arg16[%c168, %c0_127] : memref<384x256xbf16, #tpu.memory_space<vmem>>, vector<6x256xbf16>
    %c4864 = arith.constant 4864 : index
    %c0_128 = arith.constant 0 : index
    %148 = vector.load %arg17[%c4864, %c0_128] : memref<6400x256xbf16, #tpu.memory_space<vmem>>, vector<256x256xbf16>
    %cst_129 = arith.constant dense<0.000000e+00> : vector<6x256xf32>
    %149 = tpu.matmul %147, %148, %cst_129 {dimension_numbers = #tpu.dot_dimension_numbers<[1], [0], [0], [1], [0, 0, 1, 1], [], []>} : vector<6x256xbf16>, vector<256x256xbf16>, vector<6x256xf32> -> vector<6x256xf32>
    %150 = arith.addf %146, %149 : vector<6x256xf32>
    %c192 = arith.constant 192 : index
    %c0_130 = arith.constant 0 : index
    %151 = vector.load %arg16[%c192, %c0_130] : memref<384x256xbf16, #tpu.memory_space<vmem>>, vector<6x256xbf16>
    %c5120 = arith.constant 5120 : index
    %c0_131 = arith.constant 0 : index
    %152 = vector.load %arg17[%c5120, %c0_131] : memref<6400x256xbf16, #tpu.memory_space<vmem>>, vector<256x256xbf16>
    %cst_132 = arith.constant dense<0.000000e+00> : vector<6x256xf32>
    %153 = tpu.matmul %151, %152, %cst_132 {dimension_numbers = #tpu.dot_dimension_numbers<[1], [0], [0], [1], [0, 0, 1, 1], [], []>} : vector<6x256xbf16>, vector<256x256xbf16>, vector<6x256xf32> -> vector<6x256xf32>
    %154 = arith.addf %150, %153 : vector<6x256xf32>
    %c198 = arith.constant 198 : index
    %c0_133 = arith.constant 0 : index
    %155 = vector.load %arg16[%c198, %c0_133] : memref<384x256xbf16, #tpu.memory_space<vmem>>, vector<6x256xbf16>
    %c5376 = arith.constant 5376 : index
    %c0_134 = arith.constant 0 : index
    %156 = vector.load %arg17[%c5376, %c0_134] : memref<6400x256xbf16, #tpu.memory_space<vmem>>, vector<256x256xbf16>
    %cst_135 = arith.constant dense<0.000000e+00> : vector<6x256xf32>
    %157 = tpu.matmul %155, %156, %cst_135 {dimension_numbers = #tpu.dot_dimension_numbers<[1], [0], [0], [1], [0, 0, 1, 1], [], []>} : vector<6x256xbf16>, vector<256x256xbf16>, vector<6x256xf32> -> vector<6x256xf32>
    %158 = arith.addf %154, %157 : vector<6x256xf32>
    %c204 = arith.constant 204 : index
    %c0_136 = arith.constant 0 : index
    %159 = vector.load %arg16[%c204, %c0_136] : memref<384x256xbf16, #tpu.memory_space<vmem>>, vector<6x256xbf16>
    %c5632 = arith.constant 5632 : index
    %c0_137 = arith.constant 0 : index
    %160 = vector.load %arg17[%c5632, %c0_137] : memref<6400x256xbf16, #tpu.memory_space<vmem>>, vector<256x256xbf16>
    %cst_138 = arith.constant dense<0.000000e+00> : vector<6x256xf32>
    %161 = tpu.matmul %159, %160, %cst_138 {dimension_numbers = #tpu.dot_dimension_numbers<[1], [0], [0], [1], [0, 0, 1, 1], [], []>} : vector<6x256xbf16>, vector<256x256xbf16>, vector<6x256xf32> -> vector<6x256xf32>
    %162 = arith.addf %158, %161 : vector<6x256xf32>
    %c210 = arith.constant 210 : index
    %c0_139 = arith.constant 0 : index
    %163 = vector.load %arg16[%c210, %c0_139] : memref<384x256xbf16, #tpu.memory_space<vmem>>, vector<6x256xbf16>
    %c5888 = arith.constant 5888 : index
    %c0_140 = arith.constant 0 : index
    %164 = vector.load %arg17[%c5888, %c0_140] : memref<6400x256xbf16, #tpu.memory_space<vmem>>, vector<256x256xbf16>
    %cst_141 = arith.constant dense<0.000000e+00> : vector<6x256xf32>
    %165 = tpu.matmul %163, %164, %cst_141 {dimension_numbers = #tpu.dot_dimension_numbers<[1], [0], [0], [1], [0, 0, 1, 1], [], []>} : vector<6x256xbf16>, vector<256x256xbf16>, vector<6x256xf32> -> vector<6x256xf32>
    %166 = arith.addf %162, %165 : vector<6x256xf32>
    %c216 = arith.constant 216 : index
    %c0_142 = arith.constant 0 : index
    %167 = vector.load %arg16[%c216, %c0_142] : memref<384x256xbf16, #tpu.memory_space<vmem>>, vector<6x256xbf16>
    %c6144 = arith.constant 6144 : index
    %c0_143 = arith.constant 0 : index
    %168 = vector.load %arg17[%c6144, %c0_143] : memref<6400x256xbf16, #tpu.memory_space<vmem>>, vector<256x256xbf16>
    %cst_144 = arith.constant dense<0.000000e+00> : vector<6x256xf32>
    %169 = tpu.matmul %167, %168, %cst_144 {dimension_numbers = #tpu.dot_dimension_numbers<[1], [0], [0], [1], [0, 0, 1, 1], [], []>} : vector<6x256xbf16>, vector<256x256xbf16>, vector<6x256xf32> -> vector<6x256xf32>
    %170 = arith.addf %166, %169 : vector<6x256xf32>
    %c0_145 = arith.constant 0 : index
    %c0_146 = arith.constant 0 : index
    %171 = vector.load %arg8[%c0_145, %c0_146] : memref<1x256xf32, #tpu.memory_space<vmem>>, vector<1x256xf32>
    %172 = vector.broadcast %171 : vector<1x256xf32> to vector<6x256xf32>
    %173 = arith.addf %170, %172 : vector<6x256xf32>
    %cst_147 = arith.constant 0.000000e+00 : f32
    %174 = vector.broadcast %cst_147 : f32 to vector<6x256xf32>
    %175 = arith.cmpf oge, %173, %174 : vector<6x256xf32>
    %cst_148 = arith.constant 2.000000e+00 : f32
    %176 = vector.broadcast %cst_148 : f32 to vector<6x256xf32>
    %177 = arith.mulf %176, %173 : vector<6x256xf32>
    %178 = arith.select %175, %173, %177 : vector<6x256xi1>, vector<6x256xf32>
    %179 = arith.truncf %178 : vector<6x256xf32> to vector<6x256xbf16>
    %c0_149 = arith.constant 0 : index
    %c0_150 = arith.constant 0 : index
    %180 = vector.load %arg9[%c0_149, %c0_150] : memref<256x256xbf16, #tpu.memory_space<vmem>>, vector<256x256xbf16>
    %cst_151 = arith.constant dense<0.000000e+00> : vector<6x256xf32>
    %181 = tpu.matmul %179, %180, %cst_151 {dimension_numbers = #tpu.dot_dimension_numbers<[1], [0], [0], [1], [0, 0, 1, 1], [], []>} : vector<6x256xbf16>, vector<256x256xbf16>, vector<6x256xf32> -> vector<6x256xf32>
    %c0_152 = arith.constant 0 : index
    %c0_153 = arith.constant 0 : index
    %182 = vector.load %arg10[%c0_152, %c0_153] : memref<1x256xf32, #tpu.memory_space<vmem>>, vector<1x256xf32>
    %183 = vector.broadcast %182 : vector<1x256xf32> to vector<6x256xf32>
    %184 = arith.addf %181, %183 : vector<6x256xf32>
    %cst_154 = arith.constant 0.000000e+00 : f32
    %185 = vector.broadcast %cst_154 : f32 to vector<6x256xf32>
    %186 = arith.cmpf oge, %184, %185 : vector<6x256xf32>
    %cst_155 = arith.constant 2.000000e+00 : f32
    %187 = vector.broadcast %cst_155 : f32 to vector<6x256xf32>
    %188 = arith.mulf %187, %184 : vector<6x256xf32>
    %189 = arith.select %186, %184, %188 : vector<6x256xi1>, vector<6x256xf32>
    %c0_156 = arith.constant 0 : index
    %c0_157 = arith.constant 0 : index
    %190 = vector.load %arg11[%c0_156, %c0_157] : memref<256x128xf32, #tpu.memory_space<vmem>>, vector<256x128xf32>
    %cst_158 = arith.constant dense<0.000000e+00> : vector<6x128xf32>
    %191 = tpu.matmul %189, %190, %cst_158 {dimension_numbers = #tpu.dot_dimension_numbers<[1], [0], [0], [1], [0, 0, 1, 1], [], []>} : vector<6x256xf32>, vector<256x128xf32>, vector<6x128xf32> -> vector<6x128xf32>
    %c0_159 = arith.constant 0 : index
    %c0_160 = arith.constant 0 : index
    %192 = vector.load %arg12[%c0_159, %c0_160] : memref<1x128xf32, #tpu.memory_space<vmem>>, vector<1x128xf32>
    %193 = vector.broadcast %192 : vector<1x128xf32> to vector<6x128xf32>
    %194 = arith.addf %191, %193 : vector<6x128xf32>
    %c0_161 = arith.constant 0 : index
    %c0_162 = arith.constant 0 : index
    %195 = vector.load %arg13[%c0_161, %c0_162] : memref<6x128xf32, #tpu.memory_space<vmem>>, vector<6x128xf32>
    tpu.vector_store %arg13[%c0_161, %c0_162], %194 {strides = array<i32>} : memref<6x128xf32, #tpu.memory_space<vmem>>, vector<6x128xf32>,
    return
  }
}

</mosaic_0001>

<llo_original>
// kernel: siamese_forward.1
$region0: #{siamese_forward.1}
  #allocation0 [shape = 'u32[]', space=smem, size = 0x4, offset = 0x4, fixed_abs, tag = 'smem constant byte address 0x4 - core index']
  #allocation1 [shape = 'u32[144,128]{1,0:T(1,128)}', space=vmem, size = 0x12000, scoped, tag = 'internal scratch']
  #allocation2 [shape = 'bf16[440,256]{1,0:T(8,128)(2,1)}', space=vmem, size = 0x37000, scoped, tag = 'scratch operand']
  #allocation3 [shape = 'bf16[440,256]{1,0:T(8,128)(2,1)}', space=vmem, size = 0x37000, scoped, tag = 'scratch operand']
  #allocation4 [shape = 'bf16[384,256]{1,0:T(16,128)(2,1)}', space=vmem, size = 0x30000, scoped, tag = 'scratch operand']
  #allocation5 [shape = 'bf16[6400,256]{1,0:T(16,128)(2,1)}', space=vmem, size = 0x320000, scoped, tag = 'scratch operand']
  #allocation6 [shape = 's32[1]{0}', space=sflag, size = 0x4, scoped, tag = 'scratch operand']
  #allocation24 [shape = 's32[]', space=sflag, size = 0x4, offset = 0, fixed_abs, tag = 'sflag constant byte address 0x0 - dummy sync flag']
  %s0 = inlined_call_operand.vmem [shape: bf16[384,128], index: 0, kind: input, shape index: {}]
  %s1 = inlined_call_operand.hbm [shape: bf16[128,256], index: 1, kind: input, shape index: {}]
  %s2 = inlined_call_operand.hbm [shape: f32[1,256], index: 2, kind: input, shape index: {}]
  %s3 = inlined_call_operand.hbm [shape: bf16[1024,256], index: 3, kind: input, shape index: {}]
  %s4 = inlined_call_operand.hbm [shape: f32[1,256], index: 4, kind: input, shape index: {}]
  %s5 = inlined_call_operand.hbm [shape: bf16[1024,256], index: 5, kind: input, shape index: {}]
  %s6 = inlined_call_operand.hbm [shape: f32[1,256], index: 6, kind: input, shape index: {}]
  %s7 = inlined_call_operand.hbm [shape: bf16[6400,256], index: 7, kind: input, shape index: {}]
  %s8 = inlined_call_operand.hbm [shape: f32[1,256], index: 8, kind: input, shape index: {}]
  %s9 = inlined_call_operand.hbm [shape: bf16[256,256], index: 9, kind: input, shape index: {}]
  %s10 = inlined_call_operand.hbm [shape: f32[1,256], index: 10, kind: input, shape index: {}]
  %s11 = inlined_call_operand.hbm [shape: f32[256,128], index: 11, kind: input, shape index: {}]
  %s12 = inlined_call_operand.hbm [shape: f32[1,128], index: 12, kind: input, shape index: {}]
  %s13 = inlined_call_operand.vmem [shape: f32[6,128], index: 13, kind: output, shape index: {}]
  %s14 = sld [smem:[#allocation0]]
  $region102: #{siamese_forward.1} parent=0
    _
  %s16 = ssub.s32 1, %s14
  %s17 = scalar_select 0, %s16, %s14
  $region1: #{siamese_forward.1} parent=0
    #allocation7 [shape = 'u8[65536]{0}', space=vmem, size = 0x10000, scoped, tag = 'input window, operand 1, single buffered']
    #allocation8 [shape = 's32[1]{0}', space=sflag, size = 0x4, scoped, tag = 'scoped memory for siamese_forward.1']
    #allocation9 [shape = 'u8[1024]{0}', space=vmem, size = 0x400, scoped, tag = 'input window, operand 2, single buffered']
    #allocation10 [shape = 's32[1]{0}', space=sflag, size = 0x4, scoped, tag = 'scoped memory for siamese_forward.1']
    #allocation11 [shape = 'u8[524288]{0}', space=vmem, size = 0x80000, scoped, tag = 'input window, operand 3, single buffered']
    #allocation12 [shape = 'u8[1024]{0}', space=vmem, size = 0x400, scoped, tag = 'input window, operand 4, single buffered']
    #allocation13 [shape = 's32[1]{0}', space=sflag, size = 0x4, scoped, tag = 'scoped memory for siamese_forward.1']
    #allocation14 [shape = 'u8[524288]{0}', space=vmem, size = 0x80000, scoped, tag = 'input window, operand 5, single buffered']
    #allocation15 [shape = 'u8[1024]{0}', space=vmem, size = 0x400, scoped, tag = 'input window, operand 6, single buffered']
    #allocation16 [shape = 's32[1]{0}', space=sflag, size = 0x4, scoped, tag = 'scoped memory for siamese_forward.1']
    #allocation17 [shape = 'u8[1024]{0}', space=vmem, size = 0x400, scoped, tag = 'input window, operand 8, single buffered']
    #allocation18 [shape = 'u8[131072]{0}', space=vmem, size = 0x20000, scoped, tag = 'input window, operand 9, single buffered']
    #allocation19 [shape = 's32[1]{0}', space=sflag, size = 0x4, scoped, tag = 'scoped memory for siamese_forward.1']
    #allocation20 [shape = 'u8[1024]{0}', space=vmem, size = 0x400, scoped, tag = 'input window, operand 10, single buffered']
    #allocation21 [shape = 'u8[131072]{0}', space=vmem, size = 0x20000, scoped, tag = 'input window, operand 11, single buffered']
    #allocation22 [shape = 's32[1]{0}', space=sflag, size = 0x4, scoped, tag = 'scoped memory for siamese_forward.1']
    #allocation23 [shape = 'u8[512]{0}', space=vmem, size = 0x400, scoped, tag = 'input window, operand 12, single buffered']
    #allocation25 [shape = 'u32[9]{0}', space=smem, size = 0x24, scoped, tag = 'DMA stride descriptor']
    %18 = vsyncpa [#allocation8], 0
    %19 = vsyncpa [#allocation10], 0
    %20 = vsyncpa [#allocation13], 0
    %21 = vsyncpa [#allocation16], 0
    %22 = vsyncpa [#allocation19], 0
    %23 = vsyncpa [#allocation22], 0
    // Predicated region
    $region2: #{siamese_forward.1} parent=1 // pred_check
      _
    $region3: #{siamese_forward.1} parent=1 // pred_check_branch
      %25 = sbr.rel (0) target = $region5
    $region4: #{siamese_forward.1} parent=1 // pred_region
      _
    $region5: #{siamese_forward.1} parent=1 // pred_fallthru
      _
    // Predicated region
    $region6: #{siamese_forward.1} parent=1 // pred_check
      _
    $region7: #{siamese_forward.1} parent=1 // pred_check_branch
      %27 = sbr.rel (0) target = $region9
    $region8: #{siamese_forward.1} parent=1 // pred_region
      %s29 = ssub.s32 2048, 2048
      %30 = vsyncadd [#allocation8], %s29
      %s31 = sshll.u32 [#allocation7], 4
      %s32 = int_to_ptr.vmem [resolvable:$true] %s31
      %37 = dma.hbm_to_vmem [thread:$0]  %s1, 2048, %s32, [#allocation8], 128, 128, 8
    $region9: #{siamese_forward.1} parent=1 // pred_fallthru
      _
    // Predicated region
    $region10: #{siamese_forward.1} parent=1 // pred_check
      _
    $region11: #{siamese_forward.1} parent=1 // pred_check_branch
      %39 = sbr.rel (0) target = $region13
    $region12: #{siamese_forward.1} parent=1 // pred_region
      %s41 = ssub.s32 32, 32
      %42 = vsyncadd [#allocation10], %s41
      %s44 = sshll.u32 [#allocation9], 4
      %s45 = int_to_ptr.vmem [resolvable:$true] %s44
      %47 = dma.hbm_to_vmem [thread:$0]  %s2, 32, %s45, [#allocation10]
    $region13: #{siamese_forward.1} parent=1 // pred_fallthru
      _
    // Predicated region
    $region14: #{siamese_forward.1} parent=1 // pred_check
      _
    $region15: #{siamese_forward.1} parent=1 // pred_check_branch
      %49 = sbr.rel (0) target = $region17
    $region16: #{siamese_forward.1} parent=1 // pred_region
      %s51 = ssub.s32 16384, 16384
      %52 = vsyncadd [#allocation10], %s51
      %s53 = sshll.u32 [#allocation11], 4
      %s54 = int_to_ptr.vmem [resolvable:$true] %s53
      %59 = dma.hbm_to_vmem [thread:$0]  %s3, 16384, %s54, [#allocation10], 128, 128, 8
    $region17: #{siamese_forward.1} parent=1 // pred_fallthru
      _
    // Predicated region
    $region18: #{siamese_forward.1} parent=1 // pred_check
      _
    $region19: #{siamese_forward.1} parent=1 // pred_check_branch
      %61 = sbr.rel (0) target = $region21
    $region20: #{siamese_forward.1} parent=1 // pred_region
      %s63 = ssub.s32 32, 32
      %64 = vsyncadd [#allocation13], %s63
      %s66 = sshll.u32 [#allocation12], 4
      %s67 = int_to_ptr.vmem [resolvable:$true] %s66
      %69 = dma.hbm_to_vmem [thread:$0]  %s4, 32, %s67, [#allocation13]
    $region21: #{siamese_forward.1} parent=1 // pred_fallthru
      _
    // Predicated region
    $region22: #{siamese_forward.1} parent=1 // pred_check
      _
    $region23: #{siamese_forward.1} parent=1 // pred_check_branch
      %71 = sbr.rel (0) target = $region25
    $region24: #{siamese_forward.1} parent=1 // pred_region
      %s73 = ssub.s32 16384, 16384
      %74 = vsyncadd [#allocation13], %s73
      %s75 = sshll.u32 [#allocation14], 4
      %s76 = int_to_ptr.vmem [resolvable:$true] %s75
      %81 = dma.hbm_to_vmem [thread:$0]  %s5, 16384, %s76, [#allocation13], 128, 128, 8
    $region25: #{siamese_forward.1} parent=1 // pred_fallthru
      _
    // Predicated region
    $region26: #{siamese_forward.1} parent=1 // pred_check
      _
    $region27: #{siamese_forward.1} parent=1 // pred_check_branch
      %83 = sbr.rel (0) target = $region29
    $region28: #{siamese_forward.1} parent=1 // pred_region
      %s85 = ssub.s32 32, 32
      %86 = vsyncadd [#allocation16], %s85
      %s88 = sshll.u32 [#allocation15], 4
      %s89 = int_to_ptr.vmem [resolvable:$true] %s88
      %91 = dma.hbm_to_vmem [thread:$0]  %s6, 32, %s89, [#allocation16]
    $region29: #{siamese_forward.1} parent=1 // pred_fallthru
      _
    // Predicated region
    $region30: #{siamese_forward.1} parent=1 // pred_check
      _
    $region31: #{siamese_forward.1} parent=1 // pred_check_branch
      %93 = sbr.rel (0) target = $region33
    $region32: #{siamese_forward.1} parent=1 // pred_region
      %s95 = ssub.s32 32, 32
      %96 = vsyncadd [#allocation16], %s95
      %s98 = sshll.u32 [#allocation17], 4
      %s99 = int_to_ptr.vmem [resolvable:$true] %s98
      %101 = dma.hbm_to_vmem [thread:$0]  %s8, 32, %s99, [#allocation16]
    $region33: #{siamese_forward.1} parent=1 // pred_fallthru
      _
    // Predicated region
    $region34: #{siamese_forward.1} parent=1 // pred_check
      _
    $region35: #{siamese_forward.1} parent=1 // pred_check_branch
      %103 = sbr.rel (0) target = $region37
    $region36: #{siamese_forward.1} parent=1 // pred_region
      %s105 = ssub.s32 4096, 4096
      %106 = vsyncadd [#allocation19], %s105
      %s107 = sshll.u32 [#allocation18], 4
      %s108 = int_to_ptr.vmem [resolvable:$true] %s107
      %113 = dma.hbm_to_vmem [thread:$0]  %s9, 4096, %s108, [#allocation19], 128, 128, 8
    $region37: #{siamese_forward.1} parent=1 // pred_fallthru
      _
    // Predicated region
    $region38: #{siamese_forward.1} parent=1 // pred_check
      _
    $region39: #{siamese_forward.1} parent=1 // pred_check_branch
      %115 = sbr.rel (0) target = $region41
    $region40: #{siamese_forward.1} parent=1 // pred_region
      %s117 = ssub.s32 32, 32
      %118 = vsyncadd [#allocation19], %s117
      %s120 = sshll.u32 [#allocation20], 4
      %s121 = int_to_ptr.vmem [resolvable:$true] %s120
      %123 = dma.hbm_to_vmem [thread:$0]  %s10, 32, %s121, [#allocation19]
    $region41: #{siamese_forward.1} parent=1 // pred_fallthru
      _
    // Predicated region
    $region42: #{siamese_forward.1} parent=1 // pred_check
      _
    $region43: #{siamese_forward.1} parent=1 // pred_check_branch
      %125 = sbr.rel (0) target = $region45
    $region44: #{siamese_forward.1} parent=1 // pred_region
      %s127 = ssub.s32 4096, 4096
      %128 = vsyncadd [#allocation22], %s127
      %s129 = sshll.u32 [#allocation21], 4
      %s130 = int_to_ptr.vmem [resolvable:$true] %s129
      %135 = dma.hbm_to_vmem [thread:$0]  %s11, 4096, %s130, [#allocation22], 128, 128, 8
    $region45: #{siamese_forward.1} parent=1 // pred_fallthru
      _
    // Predicated region
    $region46: #{siamese_forward.1} parent=1 // pred_check
      _
    $region47: #{siamese_forward.1} parent=1 // pred_check_branch
      %137 = sbr.rel (0) target = $region49
    $region48: #{siamese_forward.1} parent=1 // pred_region
      %s139 = ssub.s32 16, 16
      %140 = vsyncadd [#allocation22], %s139
      %s142 = sshll.u32 [#allocation23], 4
      %s143 = int_to_ptr.vmem [resolvable:$true] %s142
      %145 = dma.hbm_to_vmem [thread:$0]  %s12, 16, %s143, [#allocation22]
    $region49: #{siamese_forward.1} parent=1 // pred_fallthru
      _
    // Predicated region
    $region50: #{siamese_forward.1} parent=1 // pred_check
      _
    $region51: #{siamese_forward.1} parent=1 // pred_check_branch
      %147 = sbr.rel (0) target = $region53
    $region52: #{siamese_forward.1} parent=1 // pred_region
      %148 = dma.done [#allocation8], 2048
    $region53: #{siamese_forward.1} parent=1 // pred_fallthru
      _
    // Predicated region
    $region54: #{siamese_forward.1} parent=1 // pred_check
      _
    $region55: #{siamese_forward.1} parent=1 // pred_check_branch
      %150 = sbr.rel (0) target = $region57
    $region56: #{siamese_forward.1} parent=1 // pred_region
      %151 = dma.done [#allocation10], 32
    $region57: #{siamese_forward.1} parent=1 // pred_fallthru
      _
    // Predicated region
    $region58: #{siamese_forward.1} parent=1 // pred_check
      _
    $region59: #{siamese_forward.1} parent=1 // pred_check_branch
      %153 = sbr.rel (0) target = $region61
    $region60: #{siamese_forward.1} parent=1 // pred_region
      %154 = dma.done [#allocation10], 16384
    $region61: #{siamese_forward.1} parent=1 // pred_fallthru
      _
    // Predicated region
    $region62: #{siamese_forward.1} parent=1 // pred_check
      _
    $region63: #{siamese_forward.1} parent=1 // pred_check_branch
      %156 = sbr.rel (0) target = $region65
    $region64: #{siamese_forward.1} parent=1 // pred_region
      %157 = dma.done [#allocation13], 32
    $region65: #{siamese_forward.1} parent=1 // pred_fallthru
      _
    // Predicated region
    $region66: #{siamese_forward.1} parent=1 // pred_check
      _
    $region67: #{siamese_forward.1} parent=1 // pred_check_branch
      %159 = sbr.rel (0) target = $region69
    $region68: #{siamese_forward.1} parent=1 // pred_region
      %160 = dma.done [#allocation13], 16384
    $region69: #{siamese_forward.1} parent=1 // pred_fallthru
      _
    // Predicated region
    $region70: #{siamese_forward.1} parent=1 // pred_check
      _
    $region71: #{siamese_forward.1} parent=1 // pred_check_branch
      %162 = sbr.rel (0) target = $region73
    $region72: #{siamese_forward.1} parent=1 // pred_region
      %163 = dma.done [#allocation16], 32
    $region73: #{siamese_forward.1} parent=1 // pred_fallthru
      _
    // Predicated region
    $region74: #{siamese_forward.1} parent=1 // pred_check
      _
    $region75: #{siamese_forward.1} parent=1 // pred_check_branch
      %165 = sbr.rel (0) target = $region77
    $region76: #{siamese_forward.1} parent=1 // pred_region
      %166 = dma.done [#allocation16], 32
    $region77: #{siamese_forward.1} parent=1 // pred_fallthru
      _
    // Predicated region
    $region78: #{siamese_forward.1} parent=1 // pred_check
      _
    $region79: #{siamese_forward.1} parent=1 // pred_check_branch
      %168 = sbr.rel (0) target = $region81
    $region80: #{siamese_forward.1} parent=1 // pred_region
      %169 = dma.done [#allocation19], 4096
    $region81: #{siamese_forward.1} parent=1 // pred_fallthru
      _
    // Predicated region
    $region82: #{siamese_forward.1} parent=1 // pred_check
      _
    $region83: #{siamese_forward.1} parent=1 // pred_check_branch
      %171 = sbr.rel (0) target = $region85
    $region84: #{siamese_forward.1} parent=1 // pred_region
      %172 = dma.done [#allocation19], 32
    $region85: #{siamese_forward.1} parent=1 // pred_fallthru
      _
    // Predicated region
    $region86: #{siamese_forward.1} parent=1 // pred_check
      _
    $region87: #{siamese_forward.1} parent=1 // pred_check_branch
      %174 = sbr.rel (0) target = $region89
    $region88: #{siamese_forward.1} parent=1 // pred_region
      %175 = dma.done [#allocation22], 4096
    $region89: #{siamese_forward.1} parent=1 // pred_fallthru
      _
    // Predicated region
    $region90: #{siamese_forward.1} parent=1 // pred_check
      _
    $region91: #{siamese_forward.1} parent=1 // pred_check_branch
      %177 = sbr.rel (0) target = $region93
    $region92: #{siamese_forward.1} parent=1 // pred_region
      %178 = dma.done [#allocation22], 16
    $region93: #{siamese_forward.1} parent=1 // pred_fallthru
      _
    %s181 = sshll.u32 1, 14
    %s182 = sxor.u32 4294967295, %s181
    %s184 = sld [smem:[#allocation0]]
    %s185 = sadd.s32 2, %s184
    %s187 = sshll.u32 7, 26
    %s188 = sxor.u32 4294967295, %s187
    %s189 = sand.u32 0, %s188
    %s190 = sshll.u32 %s185, 26
    %s191 = sor.u32 %s189, %s190
    %s192 = sshll.u32 [#allocation5], 4
    %s193 = int_to_ptr.vmem [resolvable:$true] %s192
    %196 = sst [smem:[#allocation25]] 256
    %s197 = scalar_lea.smem [#allocation25], 1
    %198 = sst [smem:[%s197]] 256
    %s199 = scalar_lea.smem [#allocation25], 2
    %200 = sst [smem:[%s199]] 2
    %s201 = scalar_lea.smem [#allocation25], 3
    %202 = sst [smem:[%s201]] 64
    %s203 = scalar_lea.smem [#allocation25], 4
    %204 = sst [smem:[%s203]] 128
    %s205 = scalar_lea.smem [#allocation25], 5
    %206 = sst [smem:[%s205]] 2
    %s207 = scalar_lea.smem [#allocation25], 6
    %208 = sst [smem:[%s207]] 128
    %s209 = scalar_lea.smem [#allocation25], 7
    %210 = sst [smem:[%s209]] 64
    %s211 = scalar_lea.smem [#allocation25], 8
    %212 = sst [smem:[%s211]] 4
    %214 = dma.general %s7, 102400, %s193, [#allocation6], [#allocation24], [#allocation25], %s191, 0
    %215 = vst [vmem:[#allocation2 + $0x180] sm:$0xff] 0
    %216 = vst [vmem:[#allocation2 + $0x188] sm:$0xff] 0
    %217 = vst [vmem:[#allocation2 + $0x190] sm:$0xff] 0
    %218 = vst [vmem:[#allocation2 + $0x198] sm:$0xff] 0
    %219 = vst [vmem:[#allocation2 + $0x1a0] sm:$0xff] 0
    %220 = vst [vmem:[#allocation2 + $0x1a8] sm:$0xff] 0
    %221 = vst [vmem:[#allocation2 + $0x1b0] sm:$0xff] 0
    %222 = vst [vmem:[#allocation3 + $0x180] sm:$0xff] 0
    %223 = vst [vmem:[#allocation3 + $0x188] sm:$0xff] 0
    %224 = vst [vmem:[#allocation3 + $0x190] sm:$0xff] 0
    %225 = vst [vmem:[#allocation3 + $0x198] sm:$0xff] 0
    %226 = vst [vmem:[#allocation3 + $0x1a0] sm:$0xff] 0
    %227 = vst [vmem:[#allocation3 + $0x1a8] sm:$0xff] 0
    %228 = vst [vmem:[#allocation3 + $0x1b0] sm:$0xff] 0
    %v229 = vld [vmem:[%s0] sm:$0xf]
    %v230 = vld [vmem:[%s0 + $0x4] sm:$0xf]
    %v231 = vld [vmem:[%s0 + $0x8] sm:$0xf]
    %v232 = vld [vmem:[%s0 + $0xc] sm:$0xf]
    %v233 = vld [vmem:[%s0 + $0x10] sm:$0xf]
    %v234 = vld [vmem:[%s0 + $0x14] sm:$0xf]
    %v235 = vld [vmem:[%s0 + $0x18] sm:$0xf]
    %v236 = vld [vmem:[%s0 + $0x1c] sm:$0xf]
    %v237 = vld [vmem:[%s0 + $0x20] sm:$0xf]
    %v238 = vld [vmem:[%s0 + $0x24] sm:$0xf]
    %v239 = vld [vmem:[%s0 + $0x28] sm:$0xf]
    %v240 = vld [vmem:[%s0 + $0x2c] sm:$0xf]
    %v241 = vld [vmem:[%s0 + $0x30] sm:$0xf]
    %v242 = vld [vmem:[%s0 + $0x34] sm:$0xf]
    %v243 = vld [vmem:[%s0 + $0x38] sm:$0xf]
    %v244 = vld [vmem:[%s0 + $0x3c] sm:$0xf]
    %v245 = vld [vmem:[%s0 + $0x40] sm:$0xf]
    %v246 = vld [vmem:[%s0 + $0x44] sm:$0xf]
    %v247 = vld [vmem:[%s0 + $0x48] sm:$0xf]
    %v248 = vld [vmem:[%s0 + $0x4c] sm:$0xf]
    %v249 = vld [vmem:[%s0 + $0x50] sm:$0xf]
    %v250 = vld [vmem:[%s0 + $0x54] sm:$0xf]
    %v251 = vld [vmem:[%s0 + $0x58] sm:$0xf]
    %v252 = vld [vmem:[%s0 + $0x5c] sm:$0xf]
    %v253 = vld [vmem:[%s0 + $0x60] sm:$0xf]
    %v254 = vld [vmem:[%s0 + $0x64] sm:$0xf]
    %v255 = vld [vmem:[%s0 + $0x68] sm:$0xf]
    %v256 = vld [vmem:[%s0 + $0x6c] sm:$0xf]
    %v257 = vld [vmem:[%s0 + $0x70] sm:$0xf]
    %v258 = vld [vmem:[%s0 + $0x74] sm:$0xf]
    %v259 = vld [vmem:[%s0 + $0x78] sm:$0xf]
    %v260 = vld [vmem:[%s0 + $0x7c] sm:$0xf]
    %v261 = vld [vmem:[%s0 + $0x80] sm:$0xf]
    %v262 = vld [vmem:[%s0 + $0x84] sm:$0xf]
    %v263 = vld [vmem:[%s0 + $0x88] sm:$0xf]
    %v264 = vld [vmem:[%s0 + $0x8c] sm:$0xf]
    %v265 = vld [vmem:[%s0 + $0x90] sm:$0xf]
    %v266 = vld [vmem:[%s0 + $0x94] sm:$0xf]
    %v267 = vld [vmem:[%s0 + $0x98] sm:$0xf]
    %v268 = vld [vmem:[%s0 + $0x9c] sm:$0xf]
    %v269 = vld [vmem:[%s0 + $0xa0] sm:$0xf]
    %v270 = vld [vmem:[%s0 + $0xa4] sm:$0xf]
    %v271 = vld [vmem:[%s0 + $0xa8] sm:$0xf]
    %v272 = vld [vmem:[%s0 + $0xac] sm:$0xf]
    %v273 = vld [vmem:[%s0 + $0xb0] sm:$0xf]
    %v274 = vld [vmem:[%s0 + $0xb4] sm:$0xf]
    %v275 = vld [vmem:[%s0 + $0xb8] sm:$0xf]
    %v276 = vld [vmem:[%s0 + $0xbc] sm:$0xf]
    %v277 = vld [vmem:[#allocation7] sm:$0xff]
    %v278 = vld [vmem:[#allocation7 + $0x8] sm:$0xff]
    %v279 = vld [vmem:[#allocation7 + $0x10] sm:$0xff]
    %v280 = vld [vmem:[#allocation7 + $0x18] sm:$0xff]
    %v281 = vld [vmem:[#allocation7 + $0x20] sm:$0xff]
    %v282 = vld [vmem:[#allocation7 + $0x28] sm:$0xff]
    %v283 = vld [vmem:[#allocation7 + $0x30] sm:$0xff]
    %v284 = vld [vmem:[#allocation7 + $0x38] sm:$0xff]
    %v285 = vld [vmem:[#allocation7 + $0x40] sm:$0xff]
    %v286 = vld [vmem:[#allocation7 + $0x48] sm:$0xff]
    %v287 = vld [vmem:[#allocation7 + $0x50] sm:$0xff]
    %v288 = vld [vmem:[#allocation7 + $0x58] sm:$0xff]
    %v289 = vld [vmem:[#allocation7 + $0x60] sm:$0xff]
    %v290 = vld [vmem:[#allocation7 + $0x68] sm:$0xff]
    %v291 = vld [vmem:[#allocation7 + $0x70] sm:$0xff]
    %v292 = vld [vmem:[#allocation7 + $0x78] sm:$0xff]
    %v293 = vld [vmem:[#allocation9] sm:$0x3]
    %v295 = vlaneseq
    %v296 = vshrl.u32 %v295, 7
    %v297 = vsub.s32 0, %v296
    %v298 = vrot.slane %v293, %v297
    %v299 = vlaneseq
    %v300 = vshrl.u32 %v299, 7
    %v301 = vsub.s32 1, %v300
    %v302 = vrot.slane %v293, %v301
    %v353 = vunpack.c.l.b16 %v229
    %v354 = vunpack.c.l.b16 %v230
    %v355 = vunpack.c.l.b16 %v231
    %v356 = vunpack.c.l.b16 %v232
    %v357 = vunpack.c.l.b16 %v233
    %v358 = vunpack.c.l.b16 %v234
    %v359 = vunpack.c.l.b16 %v235
    %v360 = vunpack.c.l.b16 %v236
    %v361 = vunpack.c.l.b16 %v237
    %v362 = vunpack.c.l.b16 %v238
    %v363 = vunpack.c.l.b16 %v239
    %v364 = vunpack.c.l.b16 %v240
    %v365 = vunpack.c.l.b16 %v241
    %v366 = vunpack.c.l.b16 %v242
    %v367 = vunpack.c.l.b16 %v243
    %v368 = vunpack.c.l.b16 %v244
    %v369 = vunpack.c.l.b16 %v245
    %v370 = vunpack.c.l.b16 %v246
    %v371 = vunpack.c.l.b16 %v247
    %v372 = vunpack.c.l.b16 %v248
    %v373 = vunpack.c.l.b16 %v249
    %v374 = vunpack.c.l.b16 %v250
    %v375 = vunpack.c.l.b16 %v251
    %v376 = vunpack.c.l.b16 %v252
    %v377 = vunpack.c.l.b16 %v253
    %v378 = vunpack.c.l.b16 %v254
    %v379 = vunpack.c.l.b16 %v255
    %v380 = vunpack.c.l.b16 %v256
    %v381 = vunpack.c.l.b16 %v257
    %v382 = vunpack.c.l.b16 %v258
    %v383 = vunpack.c.l.b16 %v259
    %v384 = vunpack.c.l.b16 %v260
    %v385 = vunpack.c.l.b16 %v261
    %v386 = vunpack.c.l.b16 %v262
    %v387 = vunpack.c.l.b16 %v263
    %v388 = vunpack.c.l.b16 %v264
    %v389 = vunpack.c.l.b16 %v265
    %v390 = vunpack.c.l.b16 %v266
    %v391 = vunpack.c.l.b16 %v267
    %v392 = vunpack.c.l.b16 %v268
    %v393 = vunpack.c.l.b16 %v269
    %v394 = vunpack.c.l.b16 %v270
    %v395 = vunpack.c.l.b16 %v271
    %v396 = vunpack.c.l.b16 %v272
    %v397 = vunpack.c.l.b16 %v273
    %v398 = vunpack.c.l.b16 %v274
    %v399 = vunpack.c.l.b16 %v275
    %v400 = vunpack.c.l.b16 %v276
    %v401 = vpack.c.b16 %v354, %v353
    %v402 = vpack.c.b16 %v356, %v355
    %v403 = vpack.c.b16 %v358, %v357
    %v404 = vpack.c.b16 %v360, %v359
    %v405 = vpack.c.b16 %v362, %v361
    %v406 = vpack.c.b16 %v364, %v363
    %v407 = vpack.c.b16 %v366, %v365
    %v408 = vpack.c.b16 %v368, %v367
    %v409 = vpack.c.b16 %v370, %v369
    %v410 = vpack.c.b16 %v372, %v371
    %v411 = vpack.c.b16 %v374, %v373
    %v412 = vpack.c.b16 %v376, %v375
    %v413 = vpack.c.b16 %v378, %v377
    %v414 = vpack.c.b16 %v380, %v379
    %v415 = vpack.c.b16 %v382, %v381
    %v416 = vpack.c.b16 %v384, %v383
    %v417 = vpack.c.b16 %v386, %v385
    %v418 = vpack.c.b16 %v388, %v387
    %v419 = vpack.c.b16 %v390, %v389
    %v420 = vpack.c.b16 %v392, %v391
    %v421 = vpack.c.b16 %v394, %v393
    %v422 = vpack.c.b16 %v396, %v395
    %v423 = vpack.c.b16 %v398, %v397
    %v424 = vpack.c.b16 %v400, %v399
    %v465 = vunpack.c.l.b16 %v277
    %v466 = vunpack.c.h.b16 %v277
    %v467 = vunpack.c.l.b16 %v278
    %v468 = vunpack.c.h.b16 %v278
    %v469 = vunpack.c.l.b16 %v279
    %v470 = vunpack.c.h.b16 %v279
    %v471 = vunpack.c.l.b16 %v280
    %v472 = vunpack.c.h.b16 %v280
    %v473 = vunpack.c.l.b16 %v281
    %v474 = vunpack.c.h.b16 %v281
    %v475 = vunpack.c.l.b16 %v282
    %v476 = vunpack.c.h.b16 %v282
    %v477 = vunpack.c.l.b16 %v283
    %v478 = vunpack.c.h.b16 %v283
    %v479 = vunpack.c.l.b16 %v284
    %v480 = vunpack.c.h.b16 %v284
    %v481 = vunpack.c.l.b16 %v285
    %v482 = vunpack.c.h.b16 %v285
    %v483 = vunpack.c.l.b16 %v286
    %v484 = vunpack.c.h.b16 %v286
    %v485 = vunpack.c.l.b16 %v287
    %v486 = vunpack.c.h.b16 %v287
    %v487 = vunpack.c.l.b16 %v288
    %v488 = vunpack.c.h.b16 %v288
    %v489 = vunpack.c.l.b16 %v289
    %v490 = vunpack.c.h.b16 %v289
    %v491 = vunpack.c.l.b16 %v290
    %v492 = vunpack.c.h.b16 %v290
    %v493 = vunpack.c.l.b16 %v291
    %v494 = vunpack.c.h.b16 %v291
    %v495 = vunpack.c.l.b16 %v292
    %v496 = vunpack.c.h.b16 %v292
    %v497 = vpack.c.b16 %v467, %v465
    %v498 = vpack.c.b16 %v468, %v466
    %v499 = vpack.c.b16 %v471, %v469
    %v500 = vpack.c.b16 %v472, %v470
    %v501 = vpack.c.b16 %v475, %v473
    %v502 = vpack.c.b16 %v476, %v474
    %v503 = vpack.c.b16 %v479, %v477
    %v504 = vpack.c.b16 %v480, %v478
    %v505 = vpack.c.b16 %v483, %v481
    %v506 = vpack.c.b16 %v484, %v482
    %v507 = vpack.c.b16 %v487, %v485
    %v508 = vpack.c.b16 %v488, %v486
    %v509 = vpack.c.b16 %v491, %v489
    %v510 = vpack.c.b16 %v492, %v490
    %v511 = vpack.c.b16 %v495, %v493
    %v512 = vpack.c.b16 %v496, %v494
    %529 = vmatprep.subr.bf16.mxu0 %v498
    %530 = vmatpush1.bf16.msra.mxu0 %v497
    %531 = vmatprep.subr.bf16.mxu0 %v500
    %532 = vmatpush1.bf16.msra.mxu0 %v499
    %533 = vmatprep.subr.bf16.mxu0 %v502
    %534 = vmatpush1.bf16.msra.mxu0 %v501
    %535 = vmatprep.subr.bf16.mxu0 %v504
    %536 = vmatpush1.bf16.msra.mxu0 %v503
    %537 = vmatprep.subr.bf16.mxu0 %v506
    %538 = vmatpush1.bf16.msra.mxu0 %v505
    %539 = vmatprep.subr.bf16.mxu0 %v508
    %540 = vmatpush1.bf16.msra.mxu0 %v507
    %541 = vmatprep.subr.bf16.mxu0 %v510
    %542 = vmatpush1.bf16.msra.mxu0 %v509
    %543 = vmatprep.subr.bf16.mxu0 %v512
    %544 = vmatpush1.bf16.msra.mxu0 %v511
    %545 = vmatprep.subr.bf16.mxu0 0
    %546 = vmatpush1.bf16.msra.mxu0 0
    %547 = vmatprep.subr.bf16.mxu0 0
    %548 = vmatpush1.bf16.msra.mxu0 0
    %549 = vmatprep.subr.bf16.mxu0 0
    %550 = vmatpush1.bf16.msra.mxu0 0
    %551 = vmatprep.subr.bf16.mxu0 0
    %552 = vmatpush1.bf16.msra.mxu0 0
    %553 = vmatprep.subr.bf16.mxu0 0
    %554 = vmatpush1.bf16.msra.mxu0 0
    %555 = vmatprep.subr.bf16.mxu0 0
    %556 = vmatpush1.bf16.msra.mxu0 0
    %557 = vmatprep.subr.bf16.mxu0 0
    %558 = vmatpush1.bf16.msra.mxu0 0
    %559 = vmatprep.subr.bf16.mxu0 0
    %560 = vmatpush1.bf16.msra.mxu0 0
    %561 = vmatprep.mubr.bf16.mxu0 0
    %562 = vmatmul.mubr.bf16.gmra.mrb[0].mxu0 %v401
    %v563 = vpop.f32.mrb[0].mxu0
    %v564 = vadd.f32 %v298, %v563
    %v565 = vpop.f32.mrb[0].mxu0
    %v566 = vadd.f32 %v302, %v565
    %v567 = vpop.f32.mrb[0].mxu0
    %v568 = vadd.f32 %v298, %v567
    %v569 = vpop.f32.mrb[0].mxu0
    %v570 = vadd.f32 %v302, %v569
    %571 = vmatprep.mubr.bf16.mxu0 0
    %572 = vmatmul.mubr.bf16.gmra.mrb[0].mxu0 %v402
    %v573 = vpop.f32.mrb[0].mxu0
    %v574 = vadd.f32 %v298, %v573
    %v575 = vpop.f32.mrb[0].mxu0
    %v576 = vadd.f32 %v302, %v575
    %v577 = vpop.f32.mrb[0].mxu0
    %v578 = vadd.f32 %v298, %v577
    %v579 = vpop.f32.mrb[0].mxu0
    %v580 = vadd.f32 %v302, %v579
    %581 = vmatprep.mubr.bf16.mxu0 0
    %582 = vmatmul.mubr.bf16.gmra.mrb[0].mxu0 %v403
    %v583 = vpop.f32.mrb[0].mxu0
    %v584 = vadd.f32 %v298, %v583
    %v585 = vpop.f32.mrb[0].mxu0
    %v586 = vadd.f32 %v302, %v585
    %v587 = vpop.f32.mrb[0].mxu0
    %v588 = vadd.f32 %v298, %v587
    %v589 = vpop.f32.mrb[0].mxu0
    %v590 = vadd.f32 %v302, %v589
    %591 = vmatprep.mubr.bf16.mxu0 0
    %592 = vmatmul.mubr.bf16.gmra.mrb[0].mxu0 %v404
    %v593 = vpop.f32.mrb[0].mxu0
    %v594 = vadd.f32 %v298, %v593
    %v595 = vpop.f32.mrb[0].mxu0
    %v596 = vadd.f32 %v302, %v595
    %v597 = vpop.f32.mrb[0].mxu0
    %v598 = vadd.f32 %v298, %v597
    %v599 = vpop.f32.mrb[0].mxu0
    %v600 = vadd.f32 %v302, %v599
    %601 = vmatprep.mubr.bf16.mxu0 0
    %602 = vmatmul.mubr.bf16.gmra.mrb[0].mxu0 %v405
    %v603 = vpop.f32.mrb[0].mxu0
    %v604 = vadd.f32 %v298, %v603
    %v605 = vpop.f32.mrb[0].mxu0
    %v606 = vadd.f32 %v302, %v605
    %v607 = vpop.f32.mrb[0].mxu0
    %v608 = vadd.f32 %v298, %v607
    %v609 = vpop.f32.mrb[0].mxu0
    %v610 = vadd.f32 %v302, %v609
    %611 = vmatprep.mubr.bf16.mxu0 0
    %612 = vmatmul.mubr.bf16.gmra.mrb[0].mxu0 %v406
    %v613 = vpop.f32.mrb[0].mxu0
    %v614 = vadd.f32 %v298, %v613
    %v615 = vpop.f32.mrb[0].mxu0
    %v616 = vadd.f32 %v302, %v615
    %v617 = vpop.f32.mrb[0].mxu0
    %v618 = vadd.f32 %v298, %v617
    %v619 = vpop.f32.mrb[0].mxu0
    %v620 = vadd.f32 %v302, %v619
    %621 = vmatprep.mubr.bf16.mxu0 0
    %622 = vmatmul.mubr.bf16.gmra.mrb[0].mxu0 %v407
    %v623 = vpop.f32.mrb[0].mxu0
    %v624 = vadd.f32 %v298, %v623
    %v625 = vpop.f32.mrb[0].mxu0
    %v626 = vadd.f32 %v302, %v625
    %v627 = vpop.f32.mrb[0].mxu0
    %v628 = vadd.f32 %v298, %v627
    %v629 = vpop.f32.mrb[0].mxu0
    %v630 = vadd.f32 %v302, %v629
    %631 = vmatprep.mubr.bf16.mxu0 0
    %632 = vmatmul.mubr.bf16.gmra.mrb[0].mxu0 %v408
    %v633 = vpop.f32.mrb[0].mxu0
    %v634 = vadd.f32 %v298, %v633
    %v635 = vpop.f32.mrb[0].mxu0
    %v636 = vadd.f32 %v302, %v635
    %v637 = vpop.f32.mrb[0].mxu0
    %v638 = vadd.f32 %v298, %v637
    %v639 = vpop.f32.mrb[0].mxu0
    %v640 = vadd.f32 %v302, %v639
    %641 = vmatprep.mubr.bf16.mxu0 0
    %642 = vmatmul.mubr.bf16.gmra.mrb[0].mxu0 %v409
    %v643 = vpop.f32.mrb[0].mxu0
    %v644 = vadd.f32 %v298, %v643
    %v645 = vpop.f32.mrb[0].mxu0
    %v646 = vadd.f32 %v302, %v645
    %v647 = vpop.f32.mrb[0].mxu0
    %v648 = vadd.f32 %v298, %v647
    %v649 = vpop.f32.mrb[0].mxu0
    %v650 = vadd.f32 %v302, %v649
    %651 = vmatprep.mubr.bf16.mxu0 0
    %652 = vmatmul.mubr.bf16.gmra.mrb[0].mxu0 %v410
    %v653 = vpop.f32.mrb[0].mxu0
    %v654 = vadd.f32 %v298, %v653
    %v655 = vpop.f32.mrb[0].mxu0
    %v656 = vadd.f32 %v302, %v655
    %v657 = vpop.f32.mrb[0].mxu0
    %v658 = vadd.f32 %v298, %v657
    %v659 = vpop.f32.mrb[0].mxu0
    %v660 = vadd.f32 %v302, %v659
    %661 = vmatprep.mubr.bf16.mxu0 0
    %662 = vmatmul.mubr.bf16.gmra.mrb[0].mxu0 %v411
    %v663 = vpop.f32.mrb[0].mxu0
    %v664 = vadd.f32 %v298, %v663
    %v665 = vpop.f32.mrb[0].mxu0
    %v666 = vadd.f32 %v302, %v665
    %v667 = vpop.f32.mrb[0].mxu0
    %v668 = vadd.f32 %v298, %v667
    %v669 = vpop.f32.mrb[0].mxu0
    %v670 = vadd.f32 %v302, %v669
    %671 = vmatprep.mubr.bf16.mxu0 0
    %672 = vmatmul.mubr.bf16.gmra.mrb[0].mxu0 %v412
    %v673 = vpop.f32.mrb[0].mxu0
    %v674 = vadd.f32 %v298, %v673
    %v675 = vpop.f32.mrb[0].mxu0
    %v676 = vadd.f32 %v302, %v675
    %v677 = vpop.f32.mrb[0].mxu0
    %v678 = vadd.f32 %v298, %v677
    %v679 = vpop.f32.mrb[0].mxu0
    %v680 = vadd.f32 %v302, %v679
    %681 = vmatprep.mubr.bf16.mxu0 0
    %682 = vmatmul.mubr.bf16.gmra.mrb[0].mxu0 %v413
    %v683 = vpop.f32.mrb[0].mxu0
    %v684 = vadd.f32 %v298, %v683
    %v685 = vpop.f32.mrb[0].mxu0
    %v686 = vadd.f32 %v302, %v685
    %v687 = vpop.f32.mrb[0].mxu0
    %v688 = vadd.f32 %v298, %v687
    %v689 = vpop.f32.mrb[0].mxu0
    %v690 = vadd.f32 %v302, %v689
    %691 = vmatprep.mubr.bf16.mxu0 0
    %692 = vmatmul.mubr.bf16.gmra.mrb[0].mxu0 %v414
    %v693 = vpop.f32.mrb[0].mxu0
    %v694 = vadd.f32 %v298, %v693
    %v695 = vpop.f32.mrb[0].mxu0
    %v696 = vadd.f32 %v302, %v695
    %v697 = vpop.f32.mrb[0].mxu0
    %v698 = vadd.f32 %v298, %v697
    %v699 = vpop.f32.mrb[0].mxu0
    %v700 = vadd.f32 %v302, %v699
    %701 = vmatprep.mubr.bf16.mxu0 0
    %702 = vmatmul.mubr.bf16.gmra.mrb[0].mxu0 %v415
    %v703 = vpop.f32.mrb[0].mxu0
    %v704 = vadd.f32 %v298, %v703
    %v705 = vpop.f32.mrb[0].mxu0
    %v706 = vadd.f32 %v302, %v705
    %v707 = vpop.f32.mrb[0].mxu0
    %v708 = vadd.f32 %v298, %v707
    %v709 = vpop.f32.mrb[0].mxu0
    %v710 = vadd.f32 %v302, %v709
    %711 = vmatprep.mubr.bf16.mxu0 0
    %712 = vmatmul.mubr.bf16.gmra.mrb[0].mxu0 %v416
    %v713 = vpop.f32.mrb[0].mxu0
    %v714 = vadd.f32 %v298, %v713
    %v715 = vpop.f32.mrb[0].mxu0
    %v716 = vadd.f32 %v302, %v715
    %v717 = vpop.f32.mrb[0].mxu0
    %v718 = vadd.f32 %v298, %v717
    %v719 = vpop.f32.mrb[0].mxu0
    %v720 = vadd.f32 %v302, %v719
    %721 = vmatprep.mubr.bf16.mxu0 0
    %722 = vmatmul.mubr.bf16.gmra.mrb[0].mxu0 %v417
    %v723 = vpop.f32.mrb[0].mxu0
    %v724 = vadd.f32 %v298, %v723
    %v725 = vpop.f32.mrb[0].mxu0
    %v726 = vadd.f32 %v302, %v725
    %v727 = vpop.f32.mrb[0].mxu0
    %v728 = vadd.f32 %v298, %v727
    %v729 = vpop.f32.mrb[0].mxu0
    %v730 = vadd.f32 %v302, %v729
    %731 = vmatprep.mubr.bf16.mxu0 0
    %732 = vmatmul.mubr.bf16.gmra.mrb[0].mxu0 %v418
    %v733 = vpop.f32.mrb[0].mxu0
    %v734 = vadd.f32 %v298, %v733
    %v735 = vpop.f32.mrb[0].mxu0
    %v736 = vadd.f32 %v302, %v735
    %v737 = vpop.f32.mrb[0].mxu0
    %v738 = vadd.f32 %v298, %v737
    %v739 = vpop.f32.mrb[0].mxu0
    %v740 = vadd.f32 %v302, %v739
    %741 = vmatprep.mubr.bf16.mxu0 0
    %742 = vmatmul.mubr.bf16.gmra.mrb[0].mxu0 %v419
    %v743 = vpop.f32.mrb[0].mxu0
    %v744 = vadd.f32 %v298, %v743
    %v745 = vpop.f32.mrb[0].mxu0
    %v746 = vadd.f32 %v302, %v745
    %v747 = vpop.f32.mrb[0].mxu0
    %v748 = vadd.f32 %v298, %v747
    %v749 = vpop.f32.mrb[0].mxu0
    %v750 = vadd.f32 %v302, %v749
    %751 = vmatprep.mubr.bf16.mxu0 0
    %752 = vmatmul.mubr.bf16.gmra.mrb[0].mxu0 %v420
    %v753 = vpop.f32.mrb[0].mxu0
    %v754 = vadd.f32 %v298, %v753
    %v755 = vpop.f32.mrb[0].mxu0
    %v756 = vadd.f32 %v302, %v755
    %v757 = vpop.f32.mrb[0].mxu0
    %v758 = vadd.f32 %v298, %v757
    %v759 = vpop.f32.mrb[0].mxu0
    %v760 = vadd.f32 %v302, %v759
    %761 = vmatprep.mubr.bf16.mxu0 0
    %762 = vmatmul.mubr.bf16.gmra.mrb[0].mxu0 %v421
    %v763 = vpop.f32.mrb[0].mxu0
    %v764 = vadd.f32 %v298, %v763
    %v765 = vpop.f32.mrb[0].mxu0
    %v766 = vadd.f32 %v302, %v765
    %v767 = vpop.f32.mrb[0].mxu0
    %v768 = vadd.f32 %v298, %v767
    %v769 = vpop.f32.mrb[0].mxu0
    %v770 = vadd.f32 %v302, %v769
    %771 = vmatprep.mubr.bf16.mxu0 0
    %772 = vmatmul.mubr.bf16.gmra.mrb[0].mxu0 %v422
    %v773 = vpop.f32.mrb[0].mxu0
    %v774 = vadd.f32 %v298, %v773
    %v775 = vpop.f32.mrb[0].mxu0
    %v776 = vadd.f32 %v302, %v775
    %v777 = vpop.f32.mrb[0].mxu0
    %v778 = vadd.f32 %v298, %v777
    %v779 = vpop.f32.mrb[0].mxu0
    %v780 = vadd.f32 %v302, %v779
    %781 = vmatprep.mubr.bf16.mxu0 0
    %782 = vmatmul.mubr.bf16.gmra.mrb[0].mxu0 %v423
    %v783 = vpop.f32.mrb[0].mxu0
    %v784 = vadd.f32 %v298, %v783
    %v785 = vpop.f32.mrb[0].mxu0
    %v786 = vadd.f32 %v302, %v785
    %v787 = vpop.f32.mrb[0].mxu0
    %v788 = vadd.f32 %v298, %v787
    %v789 = vpop.f32.mrb[0].mxu0
    %v790 = vadd.f32 %v302, %v789
    %791 = vmatprep.mubr.bf16.mxu0 0
    %792 = vmatmul.mubr.bf16.gmra.mrb[0].mxu0 %v424
    %v793 = vpop.f32.mrb[0].mxu0
    %v794 = vadd.f32 %v298, %v793
    %v795 = vpop.f32.mrb[0].mxu0
    %v796 = vadd.f32 %v302, %v795
    %v797 = vpop.f32.mrb[0].mxu0
    %v798 = vadd.f32 %v298, %v797
    %v799 = vpop.f32.mrb[0].mxu0
    %v800 = vadd.f32 %v302, %v799
    %801 = vdwg.mxu0
    %vm802 = vcmp.ge.f32.partialorder %v564, 0.0
    %vm803 = vcmp.ge.f32.partialorder %v566, 0.0
    %vm804 = vcmp.ge.f32.partialorder %v568, 0.0
    %vm805 = vcmp.ge.f32.partialorder %v570, 0.0
    %vm806 = vcmp.ge.f32.partialorder %v574, 0.0
    %vm807 = vcmp.ge.f32.partialorder %v576, 0.0
    %vm808 = vcmp.ge.f32.partialorder %v578, 0.0
    %vm809 = vcmp.ge.f32.partialorder %v580, 0.0
    %vm810 = vcmp.ge.f32.partialorder %v584, 0.0
    %vm811 = vcmp.ge.f32.partialorder %v586, 0.0
    %vm812 = vcmp.ge.f32.partialorder %v588, 0.0
    %vm813 = vcmp.ge.f32.partialorder %v590, 0.0
    %vm814 = vcmp.ge.f32.partialorder %v594, 0.0
    %vm815 = vcmp.ge.f32.partialorder %v596, 0.0
    %vm816 = vcmp.ge.f32.partialorder %v598, 0.0
    %vm817 = vcmp.ge.f32.partialorder %v600, 0.0
    %vm818 = vcmp.ge.f32.partialorder %v604, 0.0
    %vm819 = vcmp.ge.f32.partialorder %v606, 0.0
    %vm820 = vcmp.ge.f32.partialorder %v608, 0.0
    %vm821 = vcmp.ge.f32.partialorder %v610, 0.0
    %vm822 = vcmp.ge.f32.partialorder %v614, 0.0
    %vm823 = vcmp.ge.f32.partialorder %v616, 0.0
    %vm824 = vcmp.ge.f32.partialorder %v618, 0.0
    %vm825 = vcmp.ge.f32.partialorder %v620, 0.0
    %vm826 = vcmp.ge.f32.partialorder %v624, 0.0
    %vm827 = vcmp.ge.f32.partialorder %v626, 0.0
    %vm828 = vcmp.ge.f32.partialorder %v628, 0.0
    %vm829 = vcmp.ge.f32.partialorder %v630, 0.0
    %vm830 = vcmp.ge.f32.partialorder %v634, 0.0
    %vm831 = vcmp.ge.f32.partialorder %v636, 0.0
    %vm832 = vcmp.ge.f32.partialorder %v638, 0.0
    %vm833 = vcmp.ge.f32.partialorder %v640, 0.0
    %vm834 = vcmp.ge.f32.partialorder %v644, 0.0
    %vm835 = vcmp.ge.f32.partialorder %v646, 0.0
    %vm836 = vcmp.ge.f32.partialorder %v648, 0.0
    %vm837 = vcmp.ge.f32.partialorder %v650, 0.0
    %vm838 = vcmp.ge.f32.partialorder %v654, 0.0
    %vm839 = vcmp.ge.f32.partialorder %v656, 0.0
    %vm840 = vcmp.ge.f32.partialorder %v658, 0.0
    %vm841 = vcmp.ge.f32.partialorder %v660, 0.0
    %vm842 = vcmp.ge.f32.partialorder %v664, 0.0
    %vm843 = vcmp.ge.f32.partialorder %v666, 0.0
    %vm844 = vcmp.ge.f32.partialorder %v668, 0.0
    %vm845 = vcmp.ge.f32.partialorder %v670, 0.0
    %vm846 = vcmp.ge.f32.partialorder %v674, 0.0
    %vm847 = vcmp.ge.f32.partialorder %v676, 0.0
    %vm848 = vcmp.ge.f32.partialorder %v678, 0.0
    %vm849 = vcmp.ge.f32.partialorder %v680, 0.0
    %vm850 = vcmp.ge.f32.partialorder %v684, 0.0
    %vm851 = vcmp.ge.f32.partialorder %v686, 0.0
    %vm852 = vcmp.ge.f32.partialorder %v688, 0.0
    %vm853 = vcmp.ge.f32.partialorder %v690, 0.0
    %vm854 = vcmp.ge.f32.partialorder %v694, 0.0
    %vm855 = vcmp.ge.f32.partialorder %v696, 0.0
    %vm856 = vcmp.ge.f32.partialorder %v698, 0.0
    %vm857 = vcmp.ge.f32.partialorder %v700, 0.0
    %vm858 = vcmp.ge.f32.partialorder %v704, 0.0
    %vm859 = vcmp.ge.f32.partialorder %v706, 0.0
    %vm860 = vcmp.ge.f32.partialorder %v708, 0.0
    %vm861 = vcmp.ge.f32.partialorder %v710, 0.0
    %vm862 = vcmp.ge.f32.partialorder %v714, 0.0
    %vm863 = vcmp.ge.f32.partialorder %v716, 0.0
    %vm864 = vcmp.ge.f32.partialorder %v718, 0.0
    %vm865 = vcmp.ge.f32.partialorder %v720, 0.0
    %vm866 = vcmp.ge.f32.partialorder %v724, 0.0
    %vm867 = vcmp.ge.f32.partialorder %v726, 0.0
    %vm868 = vcmp.ge.f32.partialorder %v728, 0.0
    %vm869 = vcmp.ge.f32.partialorder %v730, 0.0
    %vm870 = vcmp.ge.f32.partialorder %v734, 0.0
    %vm871 = vcmp.ge.f32.partialorder %v736, 0.0
    %vm872 = vcmp.ge.f32.partialorder %v738, 0.0
    %vm873 = vcmp.ge.f32.partialorder %v740, 0.0
    %vm874 = vcmp.ge.f32.partialorder %v744, 0.0
    %vm875 = vcmp.ge.f32.partialorder %v746, 0.0
    %vm876 = vcmp.ge.f32.partialorder %v748, 0.0
    %vm877 = vcmp.ge.f32.partialorder %v750, 0.0
    %vm878 = vcmp.ge.f32.partialorder %v754, 0.0
    %vm879 = vcmp.ge.f32.partialorder %v756, 0.0
    %vm880 = vcmp.ge.f32.partialorder %v758, 0.0
    %vm881 = vcmp.ge.f32.partialorder %v760, 0.0
    %vm882 = vcmp.ge.f32.partialorder %v764, 0.0
    %vm883 = vcmp.ge.f32.partialorder %v766, 0.0
    %vm884 = vcmp.ge.f32.partialorder %v768, 0.0
    %vm885 = vcmp.ge.f32.partialorder %v770, 0.0
    %vm886 = vcmp.ge.f32.partialorder %v774, 0.0
    %vm887 = vcmp.ge.f32.partialorder %v776, 0.0
    %vm888 = vcmp.ge.f32.partialorder %v778, 0.0
    %vm889 = vcmp.ge.f32.partialorder %v780, 0.0
    %vm890 = vcmp.ge.f32.partialorder %v784, 0.0
    %vm891 = vcmp.ge.f32.partialorder %v786, 0.0
    %vm892 = vcmp.ge.f32.partialorder %v788, 0.0
    %vm893 = vcmp.ge.f32.partialorder %v790, 0.0
    %vm894 = vcmp.ge.f32.partialorder %v794, 0.0
    %vm895 = vcmp.ge.f32.partialorder %v796, 0.0
    %vm896 = vcmp.ge.f32.partialorder %v798, 0.0
    %vm897 = vcmp.ge.f32.partialorder %v800, 0.0
    %v898 = vmul.f32 %v564, 2.0
    %v899 = vmul.f32 %v566, 2.0
    %v900 = vmul.f32 %v568, 2.0
    %v901 = vmul.f32 %v570, 2.0
    %v902 = vmul.f32 %v574, 2.0
    %v903 = vmul.f32 %v576, 2.0
    %v904 = vmul.f32 %v578, 2.0
    %v905 = vmul.f32 %v580, 2.0
    %v906 = vmul.f32 %v584, 2.0
    %v907 = vmul.f32 %v586, 2.0
    %v908 = vmul.f32 %v588, 2.0
    %v909 = vmul.f32 %v590, 2.0
    %v910 = vmul.f32 %v594, 2.0
    %v911 = vmul.f32 %v596, 2.0
    %v912 = vmul.f32 %v598, 2.0
    %v913 = vmul.f32 %v600, 2.0
    %v914 = vmul.f32 %v604, 2.0
    %v915 = vmul.f32 %v606, 2.0
    %v916 = vmul.f32 %v608, 2.0
    %v917 = vmul.f32 %v610, 2.0
    %v918 = vmul.f32 %v614, 2.0
    %v919 = vmul.f32 %v616, 2.0
    %v920 = vmul.f32 %v618, 2.0
    %v921 = vmul.f32 %v620, 2.0
    %v922 = vmul.f32 %v624, 2.0
    %v923 = vmul.f32 %v626, 2.0
    %v924 = vmul.f32 %v628, 2.0
    %v925 = vmul.f32 %v630, 2.0
    %v926 = vmul.f32 %v634, 2.0
    %v927 = vmul.f32 %v636, 2.0
    %v928 = vmul.f32 %v638, 2.0
    %v929 = vmul.f32 %v640, 2.0
    %v930 = vmul.f32 %v644, 2.0
    %v931 = vmul.f32 %v646, 2.0
    %v932 = vmul.f32 %v648, 2.0
    %v933 = vmul.f32 %v650, 2.0
    %v934 = vmul.f32 %v654, 2.0
    %v935 = vmul.f32 %v656, 2.0
    %v936 = vmul.f32 %v658, 2.0
    %v937 = vmul.f32 %v660, 2.0
    %v938 = vmul.f32 %v664, 2.0
    %v939 = vmul.f32 %v666, 2.0
    %v940 = vmul.f32 %v668, 2.0
    %v941 = vmul.f32 %v670, 2.0
    %v942 = vmul.f32 %v674, 2.0
    %v943 = vmul.f32 %v676, 2.0
    %v944 = vmul.f32 %v678, 2.0
    %v945 = vmul.f32 %v680, 2.0
    %v946 = vmul.f32 %v684, 2.0
    %v947 = vmul.f32 %v686, 2.0
    %v948 = vmul.f32 %v688, 2.0
    %v949 = vmul.f32 %v690, 2.0
    %v950 = vmul.f32 %v694, 2.0
    %v951 = vmul.f32 %v696, 2.0
    %v952 = vmul.f32 %v698, 2.0
    %v953 = vmul.f32 %v700, 2.0
    %v954 = vmul.f32 %v704, 2.0
    %v955 = vmul.f32 %v706, 2.0
    %v956 = vmul.f32 %v708, 2.0
    %v957 = vmul.f32 %v710, 2.0
    %v958 = vmul.f32 %v714, 2.0
    %v959 = vmul.f32 %v716, 2.0
    %v960 = vmul.f32 %v718, 2.0
    %v961 = vmul.f32 %v720, 2.0
    %v962 = vmul.f32 %v724, 2.0
    %v963 = vmul.f32 %v726, 2.0
    %v964 = vmul.f32 %v728, 2.0
    %v965 = vmul.f32 %v730, 2.0
    %v966 = vmul.f32 %v734, 2.0
    %v967 = vmul.f32 %v736, 2.0
    %v968 = vmul.f32 %v738, 2.0
    %v969 = vmul.f32 %v740, 2.0
    %v970 = vmul.f32 %v744, 2.0
    %v971 = vmul.f32 %v746, 2.0
    %v972 = vmul.f32 %v748, 2.0
    %v973 = vmul.f32 %v750, 2.0
    %v974 = vmul.f32 %v754, 2.0
    %v975 = vmul.f32 %v756, 2.0
    %v976 = vmul.f32 %v758, 2.0
    %v977 = vmul.f32 %v760, 2.0
    %v978 = vmul.f32 %v764, 2.0
    %v979 = vmul.f32 %v766, 2.0
    %v980 = vmul.f32 %v768, 2.0
    %v981 = vmul.f32 %v770, 2.0
    %v982 = vmul.f32 %v774, 2.0
    %v983 = vmul.f32 %v776, 2.0
    %v984 = vmul.f32 %v778, 2.0
    %v985 = vmul.f32 %v780, 2.0
    %v986 = vmul.f32 %v784, 2.0
    %v987 = vmul.f32 %v786, 2.0
    %v988 = vmul.f32 %v788, 2.0
    %v989 = vmul.f32 %v790, 2.0
    %v990 = vmul.f32 %v794, 2.0
    %v991 = vmul.f32 %v796, 2.0
    %v992 = vmul.f32 %v798, 2.0
    %v993 = vmul.f32 %v800, 2.0
    %v994 = vsel %vm802, %v564, %v898
    %v995 = vsel %vm803, %v566, %v899
    %v996 = vsel %vm804, %v568, %v900
    %v997 = vsel %vm805, %v570, %v901
    %v998 = vsel %vm806, %v574, %v902
    %v999 = vsel %vm807, %v576, %v903
    %v1000 = vsel %vm808, %v578, %v904
    %v1001 = vsel %vm809, %v580, %v905
    %v1002 = vsel %vm810, %v584, %v906
    %v1003 = vsel %vm811, %v586, %v907
    %v1004 = vsel %vm812, %v588, %v908
    %v1005 = vsel %vm813, %v590, %v909
    %v1006 = vsel %vm814, %v594, %v910
    %v1007 = vsel %vm815, %v596, %v911
    %v1008 = vsel %vm816, %v598, %v912
    %v1009 = vsel %vm817, %v600, %v913
    %v1010 = vsel %vm818, %v604, %v914
    %v1011 = vsel %vm819, %v606, %v915
    %v1012 = vsel %vm820, %v608, %v916
    %v1013 = vsel %vm821, %v610, %v917
    %v1014 = vsel %vm822, %v614, %v918
    %v1015 = vsel %vm823, %v616, %v919
    %v1016 = vsel %vm824, %v618, %v920
    %v1017 = vsel %vm825, %v620, %v921
    %v1018 = vsel %vm826, %v624, %v922
    %v1019 = vsel %vm827, %v626, %v923
    %v1020 = vsel %vm828, %v628, %v924
    %v1021 = vsel %vm829, %v630, %v925
    %v1022 = vsel %vm830, %v634, %v926
    %v1023 = vsel %vm831, %v636, %v927
    %v1024 = vsel %vm832, %v638, %v928
    %v1025 = vsel %vm833, %v640, %v929
    %v1026 = vsel %vm834, %v644, %v930
    %v1027 = vsel %vm835, %v646, %v931
    %v1028 = vsel %vm836, %v648, %v932
    %v1029 = vsel %vm837, %v650, %v933
    %v1030 = vsel %vm838, %v654, %v934
    %v1031 = vsel %vm839, %v656, %v935
    %v1032 = vsel %vm840, %v658, %v936
    %v1033 = vsel %vm841, %v660, %v937
    %v1034 = vsel %vm842, %v664, %v938
    %v1035 = vsel %vm843, %v666, %v939
    %v1036 = vsel %vm844, %v668, %v940
    %v1037 = vsel %vm845, %v670, %v941
    %v1038 = vsel %vm846, %v674, %v942
    %v1039 = vsel %vm847, %v676, %v943
    %v1040 = vsel %vm848, %v678, %v944
    %v1041 = vsel %vm849, %v680, %v945
    %v1042 = vsel %vm850, %v684, %v946
    %v1043 = vsel %vm851, %v686, %v947
    %v1044 = vsel %vm852, %v688, %v948
    %v1045 = vsel %vm853, %v690, %v949
    %v1046 = vsel %vm854, %v694, %v950
    %v1047 = vsel %vm855, %v696, %v951
    %v1048 = vsel %vm856, %v698, %v952
    %v1049 = vsel %vm857, %v700, %v953
    %v1050 = vsel %vm858, %v704, %v954
    %v1051 = vsel %vm859, %v706, %v955
    %v1052 = vsel %vm860, %v708, %v956
    %v1053 = vsel %vm861, %v710, %v957
    %v1054 = vsel %vm862, %v714, %v958
    %v1055 = vsel %vm863, %v716, %v959
    %v1056 = vsel %vm864, %v718, %v960
    %v1057 = vsel %vm865, %v720, %v961
    %v1058 = vsel %vm866, %v724, %v962
    %v1059 = vsel %vm867, %v726, %v963
    %v1060 = vsel %vm868, %v728, %v964
    %v1061 = vsel %vm869, %v730, %v965
    %v1062 = vsel %vm870, %v734, %v966
    %v1063 = vsel %vm871, %v736, %v967
    %v1064 = vsel %vm872, %v738, %v968
    %v1065 = vsel %vm873, %v740, %v969
    %v1066 = vsel %vm874, %v744, %v970
    %v1067 = vsel %vm875, %v746, %v971
    %v1068 = vsel %vm876, %v748, %v972
    %v1069 = vsel %vm877, %v750, %v973
    %v1070 = vsel %vm878, %v754, %v974
    %v1071 = vsel %vm879, %v756, %v975
    %v1072 = vsel %vm880, %v758, %v976
    %v1073 = vsel %vm881, %v760, %v977
    %v1074 = vsel %vm882, %v764, %v978
    %v1075 = vsel %vm883, %v766, %v979
    %v1076 = vsel %vm884, %v768, %v980
    %v1077 = vsel %vm885, %v770, %v981
    %v1078 = vsel %vm886, %v774, %v982
    %v1079 = vsel %vm887, %v776, %v983
    %v1080 = vsel %vm888, %v778, %v984
    %v1081 = vsel %vm889, %v780, %v985
    %v1082 = vsel %vm890, %v784, %v986
    %v1083 = vsel %vm891, %v786, %v987
    %v1084 = vsel %vm892, %v788, %v988
    %v1085 = vsel %vm893, %v790, %v989
    %v1086 = vsel %vm894, %v794, %v990
    %v1087 = vsel %vm895, %v796, %v991
    %v1088 = vsel %vm896, %v798, %v992
    %v1089 = vsel %vm897, %v800, %v993
    %v1090 = vpack.c.bf16 %v996, %v994
    %v1091 = vpack.c.bf16 %v997, %v995
    %v1092 = vpack.c.bf16 %v1000, %v998
    %v1093 = vpack.c.bf16 %v1001, %v999
    %v1094 = vpack.c.bf16 %v1004, %v1002
    %v1095 = vpack.c.bf16 %v1005, %v1003
    %v1096 = vpack.c.bf16 %v1008, %v1006
    %v1097 = vpack.c.bf16 %v1009, %v1007
    %v1098 = vpack.c.bf16 %v1012, %v1010
    %v1099 = vpack.c.bf16 %v1013, %v1011
    %v1100 = vpack.c.bf16 %v1016, %v1014
    %v1101 = vpack.c.bf16 %v1017, %v1015
    %v1102 = vpack.c.bf16 %v1020, %v1018
    %v1103 = vpack.c.bf16 %v1021, %v1019
    %v1104 = vpack.c.bf16 %v1024, %v1022
    %v1105 = vpack.c.bf16 %v1025, %v1023
    %v1106 = vpack.c.bf16 %v1028, %v1026
    %v1107 = vpack.c.bf16 %v1029, %v1027
    %v1108 = vpack.c.bf16 %v1032, %v1030
    %v1109 = vpack.c.bf16 %v1033, %v1031
    %v1110 = vpack.c.bf16 %v1036, %v1034
    %v1111 = vpack.c.bf16 %v1037, %v1035
    %v1112 = vpack.c.bf16 %v1040, %v1038
    %v1113 = vpack.c.bf16 %v1041, %v1039
    %v1114 = vpack.c.bf16 %v1044, %v1042
    %v1115 = vpack.c.bf16 %v1045, %v1043
    %v1116 = vpack.c.bf16 %v1048, %v1046
    %v1117 = vpack.c.bf16 %v1049, %v1047
    %v1118 = vpack.c.bf16 %v1052, %v1050
    %v1119 = vpack.c.bf16 %v1053, %v1051
    %v1120 = vpack.c.bf16 %v1056, %v1054
    %v1121 = vpack.c.bf16 %v1057, %v1055
    %v1122 = vpack.c.bf16 %v1060, %v1058
    %v1123 = vpack.c.bf16 %v1061, %v1059
    %v1124 = vpack.c.bf16 %v1064, %v1062
    %v1125 = vpack.c.bf16 %v1065, %v1063
    %v1126 = vpack.c.bf16 %v1068, %v1066
    %v1127 = vpack.c.bf16 %v1069, %v1067
    %v1128 = vpack.c.bf16 %v1072, %v1070
    %v1129 = vpack.c.bf16 %v1073, %v1071
    %v1130 = vpack.c.bf16 %v1076, %v1074
    %v1131 = vpack.c.bf16 %v1077, %v1075
    %v1132 = vpack.c.bf16 %v1080, %v1078
    %v1133 = vpack.c.bf16 %v1081, %v1079
    %v1134 = vpack.c.bf16 %v1084, %v1082
    %v1135 = vpack.c.bf16 %v1085, %v1083
    %v1136 = vpack.c.bf16 %v1088, %v1086
    %v1137 = vpack.c.bf16 %v1089, %v1087
    %v1186 = vunpack.c.l.b16 %v1090
    %v1187 = vunpack.c.l.b16 %v1091
    %v1188 = vunpack.c.h.b16 %v1090
    %v1189 = vunpack.c.h.b16 %v1091
    %v1190 = vunpack.c.l.b16 %v1092
    %v1191 = vunpack.c.l.b16 %v1093
    %v1192 = vunpack.c.h.b16 %v1092
    %v1193 = vunpack.c.h.b16 %v1093
    %v1194 = vunpack.c.l.b16 %v1094
    %v1195 = vunpack.c.l.b16 %v1095
    %v1196 = vunpack.c.h.b16 %v1094
    %v1197 = vunpack.c.h.b16 %v1095
    %v1198 = vunpack.c.l.b16 %v1096
    %v1199 = vunpack.c.l.b16 %v1097
    %v1200 = vunpack.c.h.b16 %v1096
    %v1201 = vunpack.c.h.b16 %v1097
    %v1202 = vunpack.c.l.b16 %v1098
    %v1203 = vunpack.c.l.b16 %v1099
    %v1204 = vunpack.c.h.b16 %v1098
    %v1205 = vunpack.c.h.b16 %v1099
    %v1206 = vunpack.c.l.b16 %v1100
    %v1207 = vunpack.c.l.b16 %v1101
    %v1208 = vunpack.c.h.b16 %v1100
    %v1209 = vunpack.c.h.b16 %v1101
    %v1210 = vunpack.c.l.b16 %v1102
    %v1211 = vunpack.c.l.b16 %v1103
    %v1212 = vunpack.c.h.b16 %v1102
    %v1213 = vunpack.c.h.b16 %v1103
    %v1214 = vunpack.c.l.b16 %v1104
    %v1215 = vunpack.c.l.b16 %v1105
    %v1216 = vunpack.c.h.b16 %v1104
    %v1217 = vunpack.c.h.b16 %v1105
    %v1218 = vunpack.c.l.b16 %v1106
    %v1219 = vunpack.c.l.b16 %v1107
    %v1220 = vunpack.c.h.b16 %v1106
    %v1221 = vunpack.c.h.b16 %v1107
    %v1222 = vunpack.c.l.b16 %v1108
    %v1223 = vunpack.c.l.b16 %v1109
    %v1224 = vunpack.c.h.b16 %v1108
    %v1225 = vunpack.c.h.b16 %v1109
    %v1226 = vunpack.c.l.b16 %v1110
    %v1227 = vunpack.c.l.b16 %v1111
    %v1228 = vunpack.c.h.b16 %v1110
    %v1229 = vunpack.c.h.b16 %v1111
    %v1230 = vunpack.c.l.b16 %v1112
    %v1231 = vunpack.c.l.b16 %v1113
    %v1232 = vunpack.c.h.b16 %v1112
    %v1233 = vunpack.c.h.b16 %v1113
    %v1234 = vunpack.c.l.b16 %v1114
    %v1235 = vunpack.c.l.b16 %v1115
    %v1236 = vunpack.c.h.b16 %v1114
    %v1237 = vunpack.c.h.b16 %v1115
    %v1238 = vunpack.c.l.b16 %v1116
    %v1239 = vunpack.c.l.b16 %v1117
    %v1240 = vunpack.c.h.b16 %v1116
    %v1241 = vunpack.c.h.b16 %v1117
    %v1242 = vunpack.c.l.b16 %v1118
    %v1243 = vunpack.c.l.b16 %v1119
    %v1244 = vunpack.c.h.b16 %v1118
    %v1245 = vunpack.c.h.b16 %v1119
    %v1246 = vunpack.c.l.b16 %v1120
    %v1247 = vunpack.c.l.b16 %v1121
    %v1248 = vunpack.c.h.b16 %v1120
    %v1249 = vunpack.c.h.b16 %v1121
    %v1250 = vunpack.c.l.b16 %v1122
    %v1251 = vunpack.c.l.b16 %v1123
    %v1252 = vunpack.c.h.b16 %v1122
    %v1253 = vunpack.c.h.b16 %v1123
    %v1254 = vunpack.c.l.b16 %v1124
    %v1255 = vunpack.c.l.b16 %v1125
    %v1256 = vunpack.c.h.b16 %v1124
    %v1257 = vunpack.c.h.b16 %v1125
    %v1258 = vunpack.c.l.b16 %v1126
    %v1259 = vunpack.c.l.b16 %v1127
    %v1260 = vunpack.c.h.b16 %v1126
    %v1261 = vunpack.c.h.b16 %v1127
    %v1262 = vunpack.c.l.b16 %v1128
    %v1263 = vunpack.c.l.b16 %v1129
    %v1264 = vunpack.c.h.b16 %v1128
    %v1265 = vunpack.c.h.b16 %v1129
    %v1266 = vunpack.c.l.b16 %v1130
    %v1267 = vunpack.c.l.b16 %v1131
    %v1268 = vunpack.c.h.b16 %v1130
    %v1269 = vunpack.c.h.b16 %v1131
    %v1270 = vunpack.c.l.b16 %v1132
    %v1271 = vunpack.c.l.b16 %v1133
    %v1272 = vunpack.c.h.b16 %v1132
    %v1273 = vunpack.c.h.b16 %v1133
    %v1274 = vunpack.c.l.b16 %v1134
    %v1275 = vunpack.c.l.b16 %v1135
    %v1276 = vunpack.c.h.b16 %v1134
    %v1277 = vunpack.c.h.b16 %v1135
    %v1278 = vunpack.c.l.b16 %v1136
    %v1279 = vunpack.c.l.b16 %v1137
    %v1280 = vunpack.c.h.b16 %v1136
    %v1281 = vunpack.c.h.b16 %v1137
    %v1282 = vpack.c.b16 %v1187, %v1186
    %v1283 = vpack.c.b16 %v1189, %v1188
    %v1284 = vpack.c.b16 %v1191, %v1190
    %v1285 = vpack.c.b16 %v1193, %v1192
    %v1286 = vpack.c.b16 %v1195, %v1194
    %v1287 = vpack.c.b16 %v1197, %v1196
    %v1288 = vpack.c.b16 %v1199, %v1198
    %v1289 = vpack.c.b16 %v1201, %v1200
    %v1290 = vpack.c.b16 %v1203, %v1202
    %v1291 = vpack.c.b16 %v1205, %v1204
    %v1292 = vpack.c.b16 %v1207, %v1206
    %v1293 = vpack.c.b16 %v1209, %v1208
    %v1294 = vpack.c.b16 %v1211, %v1210
    %v1295 = vpack.c.b16 %v1213, %v1212
    %v1296 = vpack.c.b16 %v1215, %v1214
    %v1297 = vpack.c.b16 %v1217, %v1216
    %v1298 = vpack.c.b16 %v1219, %v1218
    %v1299 = vpack.c.b16 %v1221, %v1220
    %v1300 = vpack.c.b16 %v1223, %v1222
    %v1301 = vpack.c.b16 %v1225, %v1224
    %v1302 = vpack.c.b16 %v1227, %v1226
    %v1303 = vpack.c.b16 %v1229, %v1228
    %v1304 = vpack.c.b16 %v1231, %v1230
    %v1305 = vpack.c.b16 %v1233, %v1232
    %v1306 = vpack.c.b16 %v1235, %v1234
    %v1307 = vpack.c.b16 %v1237, %v1236
    %v1308 = vpack.c.b16 %v1239, %v1238
    %v1309 = vpack.c.b16 %v1241, %v1240
    %v1310 = vpack.c.b16 %v1243, %v1242
    %v1311 = vpack.c.b16 %v1245, %v1244
    %v1312 = vpack.c.b16 %v1247, %v1246
    %v1313 = vpack.c.b16 %v1249, %v1248
    %v1314 = vpack.c.b16 %v1251, %v1250
    %v1315 = vpack.c.b16 %v1253, %v1252
    %v1316 = vpack.c.b16 %v1255, %v1254
    %v1317 = vpack.c.b16 %v1257, %v1256
    %v1318 = vpack.c.b16 %v1259, %v1258
    %v1319 = vpack.c.b16 %v1261, %v1260
    %v1320 = vpack.c.b16 %v1263, %v1262
    %v1321 = vpack.c.b16 %v1265, %v1264
    %v1322 = vpack.c.b16 %v1267, %v1266
    %v1323 = vpack.c.b16 %v1269, %v1268
    %v1324 = vpack.c.b16 %v1271, %v1270
    %v1325 = vpack.c.b16 %v1273, %v1272
    %v1326 = vpack.c.b16 %v1275, %v1274
    %v1327 = vpack.c.b16 %v1277, %v1276
    %v1328 = vpack.c.b16 %v1279, %v1278
    %v1329 = vpack.c.b16 %v1281, %v1280
    %1378 = vst [vmem:[#allocation2] sm:$0xff] %v1282
    %1379 = vst [vmem:[#allocation2 + $0x8] sm:$0xff] %v1283
    %1380 = vst [vmem:[#allocation2 + $0x10] sm:$0xff] %v1284
    %1381 = vst [vmem:[#allocation2 + $0x18] sm:$0xff] %v1285
    %1382 = vst [vmem:[#allocation2 + $0x20] sm:$0xff] %v1286
    %1383 = vst [vmem:[#allocation2 + $0x28] sm:$0xff] %v1287
    %1384 = vst [vmem:[#allocation2 + $0x30] sm:$0xff] %v1288
    %1385 = vst [vmem:[#allocation2 + $0x38] sm:$0xff] %v1289
    %1386 = vst [vmem:[#allocation2 + $0x40] sm:$0xff] %v1290
    %1387 = vst [vmem:[#allocation2 + $0x48] sm:$0xff] %v1291
    %1388 = vst [vmem:[#allocation2 + $0x50] sm:$0xff] %v1292
    %1389 = vst [vmem:[#allocation2 + $0x58] sm:$0xff] %v1293
    %1390 = vst [vmem:[#allocation2 + $0x60] sm:$0xff] %v1294
    %1391 = vst [vmem:[#allocation2 + $0x68] sm:$0xff] %v1295
    %1392 = vst [vmem:[#allocation2 + $0x70] sm:$0xff] %v1296
    %1393 = vst [vmem:[#allocation2 + $0x78] sm:$0xff] %v1297
    %1394 = vst [vmem:[#allocation2 + $0x80] sm:$0xff] %v1298
    %1395 = vst [vmem:[#allocation2 + $0x88] sm:$0xff] %v1299
    %1396 = vst [vmem:[#allocation2 + $0x90] sm:$0xff] %v1300
    %1397 = vst [vmem:[#allocation2 + $0x98] sm:$0xff] %v1301
    %1398 = vst [vmem:[#allocation2 + $0xa0] sm:$0xff] %v1302
    %1399 = vst [vmem:[#allocation2 + $0xa8] sm:$0xff] %v1303
    %1400 = vst [vmem:[#allocation2 + $0xb0] sm:$0xff] %v1304
    %1401 = vst [vmem:[#allocation2 + $0xb8] sm:$0xff] %v1305
    %1402 = vst [vmem:[#allocation2 + $0xc0] sm:$0xff] %v1306
    %1403 = vst [vmem:[#allocation2 + $0xc8] sm:$0xff] %v1307
    %1404 = vst [vmem:[#allocation2 + $0xd0] sm:$0xff] %v1308
    %1405 = vst [vmem:[#allocation2 + $0xd8] sm:$0xff] %v1309
    %1406 = vst [vmem:[#allocation2 + $0xe0] sm:$0xff] %v1310
    %1407 = vst [vmem:[#allocation2 + $0xe8] sm:$0xff] %v1311
    %1408 = vst [vmem:[#allocation2 + $0xf0] sm:$0xff] %v1312
    %1409 = vst [vmem:[#allocation2 + $0xf8] sm:$0xff] %v1313
    %1410 = vst [vmem:[#allocation2 + $0x100] sm:$0xff] %v1314
    %1411 = vst [vmem:[#allocation2 + $0x108] sm:$0xff] %v1315
    %1412 = vst [vmem:[#allocation2 + $0x110] sm:$0xff] %v1316
    %1413 = vst [vmem:[#allocation2 + $0x118] sm:$0xff] %v1317
    %1414 = vst [vmem:[#allocation2 + $0x120] sm:$0xff] %v1318
    %1415 = vst [vmem:[#allocation2 + $0x128] sm:$0xff] %v1319
    %1416 = vst [vmem:[#allocation2 + $0x130] sm:$0xff] %v1320
    %1417 = vst [vmem:[#allocation2 + $0x138] sm:$0xff] %v1321
    %1418 = vst [vmem:[#allocation2 + $0x140] sm:$0xff] %v1322
    %1419 = vst [vmem:[#allocation2 + $0x148] sm:$0xff] %v1323
    %1420 = vst [vmem:[#allocation2 + $0x150] sm:$0xff] %v1324
    %1421 = vst [vmem:[#allocation2 + $0x158] sm:$0xff] %v1325
    %1422 = vst [vmem:[#allocation2 + $0x160] sm:$0xff] %v1326
    %1423 = vst [vmem:[#allocation2 + $0x168] sm:$0xff] %v1327
    %1424 = vst [vmem:[#allocation2 + $0x170] sm:$0xff] %v1328
    %1425 = vst [vmem:[#allocation2 + $0x178] sm:$0xff] %v1329
    %v1426 = vld [vmem:[#allocation2] sm:$0xff]
    %v1427 = vld [vmem:[#allocation2 + $0x8] sm:$0xff]
    %v1428 = vld [vmem:[#allocation2 + $0x10] sm:$0xff]
    %v1429 = vld [vmem:[#allocation2 + $0x18] sm:$0xff]
    %v1430 = vld [vmem:[#allocation2 + $0x20] sm:$0xff]
    %v1431 = vld [vmem:[#allocation2 + $0x28] sm:$0xff]
    %v1432 = vld [vmem:[#allocation2 + $0x30] sm:$0xff]
    %v1433 = vld [vmem:[#allocation2 + $0x38] sm:$0xff]
    %v1434 = vld [vmem:[#allocation2 + $0x40] sm:$0xff]
    %v1435 = vld [vmem:[#allocation2 + $0x48] sm:$0xff]
    %v1436 = vld [vmem:[#allocation2 + $0x50] sm:$0xff]
    %v1437 = vld [vmem:[#allocation2 + $0x58] sm:$0xff]
    %v1438 = vld [vmem:[#allocation2 + $0x60] sm:$0xff]
    %v1439 = vld [vmem:[#allocation2 + $0x68] sm:$0xff]
    %v1440 = vld [vmem:[#allocation2 + $0x70] sm:$0xff]
    %v1441 = vld [vmem:[#allocation2 + $0x78] sm:$0xff]
    %v1442 = vld [vmem:[#allocation2 + $0x80] sm:$0xff]
    %v1443 = vld [vmem:[#allocation2 + $0x88] sm:$0xff]
    %v1444 = vld [vmem:[#allocation2 + $0x90] sm:$0xff]
    %v1445 = vld [vmem:[#allocation2 + $0x98] sm:$0xff]
    %v1446 = vld [vmem:[#allocation2 + $0xa0] sm:$0xff]
    %v1447 = vld [vmem:[#allocation2 + $0xa8] sm:$0xff]
    %v1448 = vld [vmem:[#allocation2 + $0xb0] sm:$0xff]
    %v1449 = vld [vmem:[#allocation2 + $0xb8] sm:$0xff]
    %v1450 = vld [vmem:[#allocation2 + $0xc0] sm:$0xff]
    %v1451 = vld [vmem:[#allocation2 + $0xc8] sm:$0xff]
    %v1452 = vld [vmem:[#allocation2 + $0xd0] sm:$0xff]
    %v1453 = vld [vmem:[#allocation2 + $0xd8] sm:$0xff]
    %v1454 = vld [vmem:[#allocation2 + $0xe0] sm:$0xff]
    %v1455 = vld [vmem:[#allocation2 + $0xe8] sm:$0xff]
    %v1456 = vld [vmem:[#allocation2 + $0xf0] sm:$0xff]
    %v1457 = vld [vmem:[#allocation2 + $0xf8] sm:$0xff]
    %v1458 = vld [vmem:[#allocation2 + $0x100] sm:$0xff]
    %v1459 = vld [vmem:[#allocation2 + $0x108] sm:$0xff]
    %v1460 = vld [vmem:[#allocation2 + $0x110] sm:$0xff]
    %v1461 = vld [vmem:[#allocation2 + $0x118] sm:$0xff]
    %v1462 = vld [vmem:[#allocation2 + $0x120] sm:$0xff]
    %v1463 = vld [vmem:[#allocation2 + $0x128] sm:$0xff]
    %v1464 = vld [vmem:[#allocation2 + $0x130] sm:$0xff]
    %v1465 = vld [vmem:[#allocation2 + $0x138] sm:$0xff]
    %v1466 = vld [vmem:[#allocation2 + $0x140] sm:$0xff]
    %v1467 = vld [vmem:[#allocation2 + $0x148] sm:$0xff]
    %v1468 = vld [vmem:[#allocation2 + $0x150] sm:$0xff]
    %v1469 = vld [vmem:[#allocation2 + $0x158] sm:$0xff]
    %v1470 = vld [vmem:[#allocation2 + $0x160] sm:$0xff]
    %v1471 = vld [vmem:[#allocation2 + $0x168] sm:$0xff]
    %v1472 = vld [vmem:[#allocation2 + $0x170] sm:$0xff]
    %v1473 = vld [vmem:[#allocation2 + $0x178] sm:$0xff]
    %v1474 = vld [vmem:[#allocation11] sm:$0xff]
    %v1475 = vld [vmem:[#allocation11 + $0x8] sm:$0xff]
    %v1476 = vld [vmem:[#allocation11 + $0x10] sm:$0xff]
    %v1477 = vld [vmem:[#allocation11 + $0x18] sm:$0xff]
    %v1478 = vld [vmem:[#allocation11 + $0x20] sm:$0xff]
    %v1479 = vld [vmem:[#allocation11 + $0x28] sm:$0xff]
    %v1480 = vld [vmem:[#allocation11 + $0x30] sm:$0xff]
    %v1481 = vld [vmem:[#allocation11 + $0x38] sm:$0xff]
    %v1482 = vld [vmem:[#allocation11 + $0x40] sm:$0xff]
    %v1483 = vld [vmem:[#allocation11 + $0x48] sm:$0xff]
    %v1484 = vld [vmem:[#allocation11 + $0x50] sm:$0xff]
    %v1485 = vld [vmem:[#allocation11 + $0x58] sm:$0xff]
    %v1486 = vld [vmem:[#allocation11 + $0x60] sm:$0xff]
    %v1487 = vld [vmem:[#allocation11 + $0x68] sm:$0xff]
    %v1488 = vld [vmem:[#allocation11 + $0x70] sm:$0xff]
    %v1489 = vld [vmem:[#allocation11 + $0x78] sm:$0xff]
    %v1490 = vld [vmem:[#allocation11 + $0x80] sm:$0xff]
    %v1491 = vld [vmem:[#allocation11 + $0x88] sm:$0xff]
    %v1492 = vld [vmem:[#allocation11 + $0x90] sm:$0xff]
    %v1493 = vld [vmem:[#allocation11 + $0x98] sm:$0xff]
    %v1494 = vld [vmem:[#allocation11 + $0xa0] sm:$0xff]
    %v1495 = vld [vmem:[#allocation11 + $0xa8] sm:$0xff]
    %v1496 = vld [vmem:[#allocation11 + $0xb0] sm:$0xff]
    %v1497 = vld [vmem:[#allocation11 + $0xb8] sm:$0xff]
    %v1498 = vld [vmem:[#allocation11 + $0xc0] sm:$0xff]
    %v1499 = vld [vmem:[#allocation11 + $0xc8] sm:$0xff]
    %v1500 = vld [vmem:[#allocation11 + $0xd0] sm:$0xff]
    %v1501 = vld [vmem:[#allocation11 + $0xd8] sm:$0xff]
    %v1502 = vld [vmem:[#allocation11 + $0xe0] sm:$0xff]
    %v1503 = vld [vmem:[#allocation11 + $0xe8] sm:$0xff]
    %v1504 = vld [vmem:[#allocation11 + $0xf0] sm:$0xff]
    %v1505 = vld [vmem:[#allocation11 + $0xf8] sm:$0xff]
    %v1506 = vld [vmem:[#allocation2] sm:$0x88]
    %v1507 = vld [vmem:[#allocation2 + $0x180] sm:$0x77]
    %v1508 = vld [vmem:[#allocation11 + $0x100] sm:$0xff]
    %v1509 = vld [vmem:[#allocation11 + $0x108] sm:$0xff]
    %v1510 = vld [vmem:[#allocation11 + $0x110] sm:$0xff]
    %v1511 = vld [vmem:[#allocation11 + $0x118] sm:$0xff]
    %v1512 = vld [vmem:[#allocation11 + $0x120] sm:$0xff]
    %v1513 = vld [vmem:[#allocation11 + $0x128] sm:$0xff]
    %v1514 = vld [vmem:[#allocation11 + $0x130] sm:$0xff]
    %v1515 = vld [vmem:[#allocation11 + $0x138] sm:$0xff]
    %v1516 = vld [vmem:[#allocation11 + $0x140] sm:$0xff]
    %v1517 = vld [vmem:[#allocation11 + $0x148] sm:$0xff]
    %v1518 = vld [vmem:[#allocation11 + $0x150] sm:$0xff]
    %v1519 = vld [vmem:[#allocation11 + $0x158] sm:$0xff]
    %v1520 = vld [vmem:[#allocation11 + $0x160] sm:$0xff]
    %v1521 = vld [vmem:[#allocation11 + $0x168] sm:$0xff]
    %v1522 = vld [vmem:[#allocation11 + $0x170] sm:$0xff]
    %v1523 = vld [vmem:[#allocation11 + $0x178] sm:$0xff]
    %v1524 = vld [vmem:[#allocation11 + $0x180] sm:$0xff]
    %v1525 = vld [vmem:[#allocation11 + $0x188] sm:$0xff]
    %v1526 = vld [vmem:[#allocation11 + $0x190] sm:$0xff]
    %v1527 = vld [vmem:[#allocation11 + $0x198] sm:$0xff]
    %v1528 = vld [vmem:[#allocation11 + $0x1a0] sm:$0xff]
    %v1529 = vld [vmem:[#allocation11 + $0x1a8] sm:$0xff]
    %v1530 = vld [vmem:[#allocation11 + $0x1b0] sm:$0xff]
    %v1531 = vld [vmem:[#allocation11 + $0x1b8] sm:$0xff]
    %v1532 = vld [vmem:[#allocation11 + $0x1c0] sm:$0xff]
    %v1533 = vld [vmem:[#allocation11 + $0x1c8] sm:$0xff]
    %v1534 = vld [vmem:[#allocation11 + $0x1d0] sm:$0xff]
    %v1535 = vld [vmem:[#allocation11 + $0x1d8] sm:$0xff]
    %v1536 = vld [vmem:[#allocation11 + $0x1e0] sm:$0xff]
    %v1537 = vld [vmem:[#allocation11 + $0x1e8] sm:$0xff]
    %v1538 = vld [vmem:[#allocation11 + $0x1f0] sm:$0xff]
    %v1539 = vld [vmem:[#allocation11 + $0x1f8] sm:$0xff]
    %v1589 = vunpack.c.l.b16 %v1506
    %v1590 = vunpack.c.h.b16 %v1506
    %v1591 = vunpack.c.l.b16 %v1427
    %v1592 = vunpack.c.h.b16 %v1427
    %v1593 = vunpack.c.l.b16 %v1428
    %v1594 = vunpack.c.h.b16 %v1428
    %v1595 = vunpack.c.l.b16 %v1429
    %v1596 = vunpack.c.h.b16 %v1429
    %v1597 = vunpack.c.l.b16 %v1430
    %v1598 = vunpack.c.h.b16 %v1430
    %v1599 = vunpack.c.l.b16 %v1431
    %v1600 = vunpack.c.h.b16 %v1431
    %v1601 = vunpack.c.l.b16 %v1432
    %v1602 = vunpack.c.h.b16 %v1432
    %v1603 = vunpack.c.l.b16 %v1433
    %v1604 = vunpack.c.h.b16 %v1433
    %v1605 = vunpack.c.l.b16 %v1434
    %v1606 = vunpack.c.h.b16 %v1434
    %v1607 = vunpack.c.l.b16 %v1435
    %v1608 = vunpack.c.h.b16 %v1435
    %v1609 = vunpack.c.l.b16 %v1436
    %v1610 = vunpack.c.h.b16 %v1436
    %v1611 = vunpack.c.l.b16 %v1437
    %v1612 = vunpack.c.h.b16 %v1437
    %v1613 = vunpack.c.l.b16 %v1438
    %v1614 = vunpack.c.h.b16 %v1438
    %v1615 = vunpack.c.l.b16 %v1439
    %v1616 = vunpack.c.h.b16 %v1439
    %v1617 = vunpack.c.l.b16 %v1440
    %v1618 = vunpack.c.h.b16 %v1440
    %v1619 = vunpack.c.l.b16 %v1441
    %v1620 = vunpack.c.h.b16 %v1441
    %v1621 = vunpack.c.l.b16 %v1442
    %v1622 = vunpack.c.h.b16 %v1442
    %v1623 = vunpack.c.l.b16 %v1443
    %v1624 = vunpack.c.h.b16 %v1443
    %v1625 = vunpack.c.l.b16 %v1444
    %v1626 = vunpack.c.h.b16 %v1444
    %v1627 = vunpack.c.l.b16 %v1445
    %v1628 = vunpack.c.h.b16 %v1445
    %v1629 = vunpack.c.l.b16 %v1446
    %v1630 = vunpack.c.h.b16 %v1446
    %v1631 = vunpack.c.l.b16 %v1447
    %v1632 = vunpack.c.h.b16 %v1447
    %v1633 = vunpack.c.l.b16 %v1448
    %v1634 = vunpack.c.h.b16 %v1448
    %v1635 = vunpack.c.l.b16 %v1449
    %v1636 = vunpack.c.h.b16 %v1449
    %v1637 = vunpack.c.l.b16 %v1450
    %v1638 = vunpack.c.h.b16 %v1450
    %v1639 = vunpack.c.l.b16 %v1451
    %v1640 = vunpack.c.h.b16 %v1451
    %v1641 = vunpack.c.l.b16 %v1452
    %v1642 = vunpack.c.h.b16 %v1452
    %v1643 = vunpack.c.l.b16 %v1453
    %v1644 = vunpack.c.h.b16 %v1453
    %v1645 = vunpack.c.l.b16 %v1454
    %v1646 = vunpack.c.h.b16 %v1454
    %v1647 = vunpack.c.l.b16 %v1455
    %v1648 = vunpack.c.h.b16 %v1455
    %v1649 = vunpack.c.l.b16 %v1456
    %v1650 = vunpack.c.h.b16 %v1456
    %v1651 = vunpack.c.l.b16 %v1457
    %v1652 = vunpack.c.h.b16 %v1457
    %v1653 = vunpack.c.l.b16 %v1458
    %v1654 = vunpack.c.h.b16 %v1458
    %v1655 = vunpack.c.l.b16 %v1459
    %v1656 = vunpack.c.h.b16 %v1459
    %v1657 = vunpack.c.l.b16 %v1460
    %v1658 = vunpack.c.h.b16 %v1460
    %v1659 = vunpack.c.l.b16 %v1461
    %v1660 = vunpack.c.h.b16 %v1461
    %v1661 = vunpack.c.l.b16 %v1462
    %v1662 = vunpack.c.h.b16 %v1462
    %v1663 = vunpack.c.l.b16 %v1463
    %v1664 = vunpack.c.h.b16 %v1463
    %v1665 = vunpack.c.l.b16 %v1464
    %v1666 = vunpack.c.h.b16 %v1464
    %v1667 = vunpack.c.l.b16 %v1465
    %v1668 = vunpack.c.h.b16 %v1465
    %v1669 = vunpack.c.l.b16 %v1466
    %v1670 = vunpack.c.h.b16 %v1466
    %v1671 = vunpack.c.l.b16 %v1467
    %v1672 = vunpack.c.h.b16 %v1467
    %v1673 = vunpack.c.l.b16 %v1468
    %v1674 = vunpack.c.h.b16 %v1468
    %v1675 = vunpack.c.l.b16 %v1469
    %v1676 = vunpack.c.h.b16 %v1469
    %v1677 = vunpack.c.l.b16 %v1470
    %v1678 = vunpack.c.h.b16 %v1470
    %v1679 = vunpack.c.l.b16 %v1471
    %v1680 = vunpack.c.h.b16 %v1471
    %v1681 = vunpack.c.l.b16 %v1472
    %v1682 = vunpack.c.h.b16 %v1472
    %v1683 = vunpack.c.l.b16 %v1473
    %v1684 = vunpack.c.h.b16 %v1473
    %v1685 = vunpack.c.l.b16 %v1507
    %v1686 = vunpack.c.h.b16 %v1507
    %v1687 = vpack.c.b16 %v1591, %v1589
    %v1688 = vpack.c.b16 %v1592, %v1590
    %v1689 = vpack.c.b16 %v1595, %v1593
    %v1690 = vpack.c.b16 %v1596, %v1594
    %v1691 = vpack.c.b16 %v1599, %v1597
    %v1692 = vpack.c.b16 %v1600, %v1598
    %v1693 = vpack.c.b16 %v1603, %v1601
    %v1694 = vpack.c.b16 %v1604, %v1602
    %v1695 = vpack.c.b16 %v1607, %v1605
    %v1696 = vpack.c.b16 %v1608, %v1606
    %v1697 = vpack.c.b16 %v1611, %v1609
    %v1698 = vpack.c.b16 %v1612, %v1610
    %v1699 = vpack.c.b16 %v1615, %v1613
    %v1700 = vpack.c.b16 %v1616, %v1614
    %v1701 = vpack.c.b16 %v1619, %v1617
    %v1702 = vpack.c.b16 %v1620, %v1618
    %v1703 = vpack.c.b16 %v1623, %v1621
    %v1704 = vpack.c.b16 %v1624, %v1622
    %v1705 = vpack.c.b16 %v1627, %v1625
    %v1706 = vpack.c.b16 %v1628, %v1626
    %v1707 = vpack.c.b16 %v1631, %v1629
    %v1708 = vpack.c.b16 %v1632, %v1630
    %v1709 = vpack.c.b16 %v1635, %v1633
    %v1710 = vpack.c.b16 %v1636, %v1634
    %v1711 = vpack.c.b16 %v1639, %v1637
    %v1712 = vpack.c.b16 %v1640, %v1638
    %v1713 = vpack.c.b16 %v1643, %v1641
    %v1714 = vpack.c.b16 %v1644, %v1642
    %v1715 = vpack.c.b16 %v1647, %v1645
    %v1716 = vpack.c.b16 %v1648, %v1646
    %v1717 = vpack.c.b16 %v1651, %v1649
    %v1718 = vpack.c.b16 %v1652, %v1650
    %v1719 = vpack.c.b16 %v1655, %v1653
    %v1720 = vpack.c.b16 %v1656, %v1654
    %v1721 = vpack.c.b16 %v1659, %v1657
    %v1722 = vpack.c.b16 %v1660, %v1658
    %v1723 = vpack.c.b16 %v1663, %v1661
    %v1724 = vpack.c.b16 %v1664, %v1662
    %v1725 = vpack.c.b16 %v1667, %v1665
    %v1726 = vpack.c.b16 %v1668, %v1666
    %v1727 = vpack.c.b16 %v1671, %v1669
    %v1728 = vpack.c.b16 %v1672, %v1670
    %v1729 = vpack.c.b16 %v1675, %v1673
    %v1730 = vpack.c.b16 %v1676, %v1674
    %v1731 = vpack.c.b16 %v1679, %v1677
    %v1732 = vpack.c.b16 %v1680, %v1678
    %v1733 = vpack.c.b16 %v1683, %v1681
    %v1734 = vpack.c.b16 %v1684, %v1682
    %v1735 = vpack.c.b16 %v1685, %v1685
    %v1736 = vpack.c.b16 %v1686, %v1686
    %vm1737 = vcmask 1044480
    %v1738 = vrot.slane %v1687, 3
    %v1739 = vrot.slane %v1689, 3
    %v1740 = vsel %vm1737, %v1738, %v1739
    %v1741 = vrot.slane %v1688, 3
    %v1742 = vrot.slane %v1690, 3
    %v1743 = vsel %vm1737, %v1741, %v1742
    %v1744 = vrot.slane %v1691, 3
    %v1745 = vsel %vm1737, %v1739, %v1744
    %v1746 = vrot.slane %v1692, 3
    %v1747 = vsel %vm1737, %v1742, %v1746
    %v1748 = vrot.slane %v1693, 3
    %v1749 = vsel %vm1737, %v1744, %v1748
    %v1750 = vrot.slane %v1694, 3
    %v1751 = vsel %vm1737, %v1746, %v1750
    %v1752 = vrot.slane %v1695, 3
    %v1753 = vsel %vm1737, %v1748, %v1752
    %v1754 = vrot.slane %v1696, 3
    %v1755 = vsel %vm1737, %v1750, %v1754
    %v1756 = vrot.slane %v1697, 3
    %v1757 = vsel %vm1737, %v1752, %v1756
    %v1758 = vrot.slane %v1698, 3
    %v1759 = vsel %vm1737, %v1754, %v1758
    %v1760 = vrot.slane %v1699, 3
    %v1761 = vsel %vm1737, %v1756, %v1760
    %v1762 = vrot.slane %v1700, 3
    %v1763 = vsel %vm1737, %v1758, %v1762
    %v1764 = vrot.slane %v1701, 3
    %v1765 = vsel %vm1737, %v1760, %v1764
    %v1766 = vrot.slane %v1702, 3
    %v1767 = vsel %vm1737, %v1762, %v1766
    %v1768 = vrot.slane %v1703, 3
    %v1769 = vsel %vm1737, %v1764, %v1768
    %v1770 = vrot.slane %v1704, 3
    %v1771 = vsel %vm1737, %v1766, %v1770
    %v1772 = vrot.slane %v1705, 3
    %v1773 = vsel %vm1737, %v1768, %v1772
    %v1774 = vrot.slane %v1706, 3
    %v1775 = vsel %vm1737, %v1770, %v1774
    %v1776 = vrot.slane %v1707, 3
    %v1777 = vsel %vm1737, %v1772, %v1776
    %v1778 = vrot.slane %v1708, 3
    %v1779 = vsel %vm1737, %v1774, %v1778
    %v1780 = vrot.slane %v1709, 3
    %v1781 = vsel %vm1737, %v1776, %v1780
    %v1782 = vrot.slane %v1710, 3
    %v1783 = vsel %vm1737, %v1778, %v1782
    %v1784 = vrot.slane %v1711, 3
    %v1785 = vsel %vm1737, %v1780, %v1784
    %v1786 = vrot.slane %v1712, 3
    %v1787 = vsel %vm1737, %v1782, %v1786
    %v1788 = vrot.slane %v1713, 3
    %v1789 = vsel %vm1737, %v1784, %v1788
    %v1790 = vrot.slane %v1714, 3
    %v1791 = vsel %vm1737, %v1786, %v1790
    %v1792 = vrot.slane %v1715, 3
    %v1793 = vsel %vm1737, %v1788, %v1792
    %v1794 = vrot.slane %v1716, 3
    %v1795 = vsel %vm1737, %v1790, %v1794
    %v1796 = vrot.slane %v1717, 3
    %v1797 = vsel %vm1737, %v1792, %v1796
    %v1798 = vrot.slane %v1718, 3
    %v1799 = vsel %vm1737, %v1794, %v1798
    %v1800 = vrot.slane %v1719, 3
    %v1801 = vsel %vm1737, %v1796, %v1800
    %v1802 = vrot.slane %v1720, 3
    %v1803 = vsel %vm1737, %v1798, %v1802
    %v1804 = vrot.slane %v1721, 3
    %v1805 = vsel %vm1737, %v1800, %v1804
    %v1806 = vrot.slane %v1722, 3
    %v1807 = vsel %vm1737, %v1802, %v1806
    %v1808 = vrot.slane %v1723, 3
    %v1809 = vsel %vm1737, %v1804, %v1808
    %v1810 = vrot.slane %v1724, 3
    %v1811 = vsel %vm1737, %v1806, %v1810
    %v1812 = vrot.slane %v1725, 3
    %v1813 = vsel %vm1737, %v1808, %v1812
    %v1814 = vrot.slane %v1726, 3
    %v1815 = vsel %vm1737, %v1810, %v1814
    %v1816 = vrot.slane %v1727, 3
    %v1817 = vsel %vm1737, %v1812, %v1816
    %v1818 = vrot.slane %v1728, 3
    %v1819 = vsel %vm1737, %v1814, %v1818
    %v1820 = vrot.slane %v1729, 3
    %v1821 = vsel %vm1737, %v1816, %v1820
    %v1822 = vrot.slane %v1730, 3
    %v1823 = vsel %vm1737, %v1818, %v1822
    %v1824 = vrot.slane %v1731, 3
    %v1825 = vsel %vm1737, %v1820, %v1824
    %v1826 = vrot.slane %v1732, 3
    %v1827 = vsel %vm1737, %v1822, %v1826
    %v1828 = vrot.slane %v1733, 3
    %v1829 = vsel %vm1737, %v1824, %v1828
    %v1830 = vrot.slane %v1734, 3
    %v1831 = vsel %vm1737, %v1826, %v1830
    %v1832 = vrot.slane %v1735, 3
    %v1833 = vsel %vm1737, %v1828, %v1832
    %v1834 = vrot.slane %v1736, 3
    %v1835 = vsel %vm1737, %v1830, %v1834
    %v1916 = vunpack.c.l.b16 %v1508
    %v1917 = vunpack.c.h.b16 %v1508
    %v1918 = vunpack.c.l.b16 %v1509
    %v1919 = vunpack.c.h.b16 %v1509
    %v1920 = vunpack.c.l.b16 %v1510
    %v1921 = vunpack.c.h.b16 %v1510
    %v1922 = vunpack.c.l.b16 %v1511
    %v1923 = vunpack.c.h.b16 %v1511
    %v1924 = vunpack.c.l.b16 %v1512
    %v1925 = vunpack.c.h.b16 %v1512
    %v1926 = vunpack.c.l.b16 %v1513
    %v1927 = vunpack.c.h.b16 %v1513
    %v1928 = vunpack.c.l.b16 %v1514
    %v1929 = vunpack.c.h.b16 %v1514
    %v1930 = vunpack.c.l.b16 %v1515
    %v1931 = vunpack.c.h.b16 %v1515
    %v1932 = vunpack.c.l.b16 %v1516
    %v1933 = vunpack.c.h.b16 %v1516
    %v1934 = vunpack.c.l.b16 %v1517
    %v1935 = vunpack.c.h.b16 %v1517
    %v1936 = vunpack.c.l.b16 %v1518
    %v1937 = vunpack.c.h.b16 %v1518
    %v1938 = vunpack.c.l.b16 %v1519
    %v1939 = vunpack.c.h.b16 %v1519
    %v1940 = vunpack.c.l.b16 %v1520
    %v1941 = vunpack.c.h.b16 %v1520
    %v1942 = vunpack.c.l.b16 %v1521
    %v1943 = vunpack.c.h.b16 %v1521
    %v1944 = vunpack.c.l.b16 %v1522
    %v1945 = vunpack.c.h.b16 %v1522
    %v1946 = vunpack.c.l.b16 %v1523
    %v1947 = vunpack.c.h.b16 %v1523
    %v1948 = vunpack.c.l.b16 %v1524
    %v1949 = vunpack.c.h.b16 %v1524
    %v1950 = vunpack.c.l.b16 %v1525
    %v1951 = vunpack.c.h.b16 %v1525
    %v1952 = vunpack.c.l.b16 %v1526
    %v1953 = vunpack.c.h.b16 %v1526
    %v1954 = vunpack.c.l.b16 %v1527
    %v1955 = vunpack.c.h.b16 %v1527
    %v1956 = vunpack.c.l.b16 %v1528
    %v1957 = vunpack.c.h.b16 %v1528
    %v1958 = vunpack.c.l.b16 %v1529
    %v1959 = vunpack.c.h.b16 %v1529
    %v1960 = vunpack.c.l.b16 %v1530
    %v1961 = vunpack.c.h.b16 %v1530
    %v1962 = vunpack.c.l.b16 %v1531
    %v1963 = vunpack.c.h.b16 %v1531
    %v1964 = vunpack.c.l.b16 %v1532
    %v1965 = vunpack.c.h.b16 %v1532
    %v1966 = vunpack.c.l.b16 %v1533
    %v1967 = vunpack.c.h.b16 %v1533
    %v1968 = vunpack.c.l.b16 %v1534
    %v1969 = vunpack.c.h.b16 %v1534
    %v1970 = vunpack.c.l.b16 %v1535
    %v1971 = vunpack.c.h.b16 %v1535
    %v1972 = vunpack.c.l.b16 %v1536
    %v1973 = vunpack.c.h.b16 %v1536
    %v1974 = vunpack.c.l.b16 %v1537
    %v1975 = vunpack.c.h.b16 %v1537
    %v1976 = vunpack.c.l.b16 %v1538
    %v1977 = vunpack.c.h.b16 %v1538
    %v1978 = vunpack.c.l.b16 %v1539
    %v1979 = vunpack.c.h.b16 %v1539
    %v1980 = vpack.c.b16 %v1918, %v1916
    %v1981 = vpack.c.b16 %v1919, %v1917
    %v1982 = vpack.c.b16 %v1922, %v1920
    %v1983 = vpack.c.b16 %v1923, %v1921
    %v1984 = vpack.c.b16 %v1926, %v1924
    %v1985 = vpack.c.b16 %v1927, %v1925
    %v1986 = vpack.c.b16 %v1930, %v1928
    %v1987 = vpack.c.b16 %v1931, %v1929
    %v1988 = vpack.c.b16 %v1934, %v1932
    %v1989 = vpack.c.b16 %v1935, %v1933
    %v1990 = vpack.c.b16 %v1938, %v1936
    %v1991 = vpack.c.b16 %v1939, %v1937
    %v1992 = vpack.c.b16 %v1942, %v1940
    %v1993 = vpack.c.b16 %v1943, %v1941
    %v1994 = vpack.c.b16 %v1946, %v1944
    %v1995 = vpack.c.b16 %v1947, %v1945
    %v1996 = vpack.c.b16 %v1950, %v1948
    %v1997 = vpack.c.b16 %v1951, %v1949
    %v1998 = vpack.c.b16 %v1954, %v1952
    %v1999 = vpack.c.b16 %v1955, %v1953
    %v2000 = vpack.c.b16 %v1958, %v1956
    %v2001 = vpack.c.b16 %v1959, %v1957
    %v2002 = vpack.c.b16 %v1962, %v1960
    %v2003 = vpack.c.b16 %v1963, %v1961
    %v2004 = vpack.c.b16 %v1966, %v1964
    %v2005 = vpack.c.b16 %v1967, %v1965
    %v2006 = vpack.c.b16 %v1970, %v1968
    %v2007 = vpack.c.b16 %v1971, %v1969
    %v2008 = vpack.c.b16 %v1974, %v1972
    %v2009 = vpack.c.b16 %v1975, %v1973
    %v2010 = vpack.c.b16 %v1978, %v1976
    %v2011 = vpack.c.b16 %v1979, %v1977
    %2044 = vmatprep.subr.bf16.mxu0 %v1981
    %2045 = vmatpush1.bf16.msra.mxu0 %v1980
    %2046 = vmatprep.subr.bf16.mxu0 %v1983
    %2047 = vmatpush1.bf16.msra.mxu0 %v1982
    %2048 = vmatprep.subr.bf16.mxu0 %v1985
    %2049 = vmatpush1.bf16.msra.mxu0 %v1984
    %2050 = vmatprep.subr.bf16.mxu0 %v1987
    %2051 = vmatpush1.bf16.msra.mxu0 %v1986
    %2052 = vmatprep.subr.bf16.mxu0 %v1989
    %2053 = vmatpush1.bf16.msra.mxu0 %v1988
    %2054 = vmatprep.subr.bf16.mxu0 %v1991
    %2055 = vmatpush1.bf16.msra.mxu0 %v1990
    %2056 = vmatprep.subr.bf16.mxu0 %v1993
    %2057 = vmatpush1.bf16.msra.mxu0 %v1992
    %2058 = vmatprep.subr.bf16.mxu0 %v1995
    %2059 = vmatpush1.bf16.msra.mxu0 %v1994
    %2060 = vmatprep.subr.bf16.mxu0 %v1997
    %2061 = vmatpush1.bf16.msra.mxu0 %v1996
    %2062 = vmatprep.subr.bf16.mxu0 %v1999
    %2063 = vmatpush1.bf16.msra.mxu0 %v1998
    %2064 = vmatprep.subr.bf16.mxu0 %v2001
    %2065 = vmatpush1.bf16.msra.mxu0 %v2000
    %2066 = vmatprep.subr.bf16.mxu0 %v2003
    %2067 = vmatpush1.bf16.msra.mxu0 %v2002
    %2068 = vmatprep.subr.bf16.mxu0 %v2005
    %2069 = vmatpush1.bf16.msra.mxu0 %v2004
    %2070 = vmatprep.subr.bf16.mxu0 %v2007
    %2071 = vmatpush1.bf16.msra.mxu0 %v2006
    %2072 = vmatprep.subr.bf16.mxu0 %v2009
    %2073 = vmatpush1.bf16.msra.mxu0 %v2008
    %2074 = vmatprep.subr.bf16.mxu0 %v2011
    %2075 = vmatpush1.bf16.msra.mxu0 %v2010
    %2076 = vmatprep.mubr.bf16.mxu0 %v1743
    %2077 = vmatmul.mubr.bf16.gmra.mrb[0].mxu0 %v1740
    %v2078 = vpop.f32.mrb[0].mxu0
    %v2079 = vadd.f32 0.0, %v2078
    %v2080 = vpop.f32.mrb[0].mxu0
    %v2081 = vadd.f32 0.0, %v2080
    %v2082 = vpop.f32.mrb[0].mxu0
    %v2083 = vadd.f32 0.0, %v2082
    %v2084 = vpop.f32.mrb[0].mxu0
    %v2085 = vadd.f32 0.0, %v2084
    %2086 = vmatprep.mubr.bf16.mxu0 %v1747
    %2087 = vmatmul.mubr.bf16.gmra.mrb[0].mxu0 %v1745
    %v2088 = vpop.f32.mrb[0].mxu0
    %v2089 = vadd.f32 0.0, %v2088
    %v2090 = vpop.f32.mrb[0].mxu0
    %v2091 = vadd.f32 0.0, %v2090
    %v2092 = vpop.f32.mrb[0].mxu0
    %v2093 = vadd.f32 0.0, %v2092
    %v2094 = vpop.f32.mrb[0].mxu0
    %v2095 = vadd.f32 0.0, %v2094
    %2096 = vmatprep.mubr.bf16.mxu0 %v1751
    %2097 = vmatmul.mubr.bf16.gmra.mrb[0].mxu0 %v1749
    %v2098 = vpop.f32.mrb[0].mxu0
    %v2099 = vadd.f32 0.0, %v2098
    %v2100 = vpop.f32.mrb[0].mxu0
    %v2101 = vadd.f32 0.0, %v2100
    %v2102 = vpop.f32.mrb[0].mxu0
    %v2103 = vadd.f32 0.0, %v2102
    %v2104 = vpop.f32.mrb[0].mxu0
    %v2105 = vadd.f32 0.0, %v2104
    %2106 = vmatprep.mubr.bf16.mxu0 %v1755
    %2107 = vmatmul.mubr.bf16.gmra.mrb[0].mxu0 %v1753
    %v2108 = vpop.f32.mrb[0].mxu0
    %v2109 = vadd.f32 0.0, %v2108
    %v2110 = vpop.f32.mrb[0].mxu0
    %v2111 = vadd.f32 0.0, %v2110
    %v2112 = vpop.f32.mrb[0].mxu0
    %v2113 = vadd.f32 0.0, %v2112
    %v2114 = vpop.f32.mrb[0].mxu0
    %v2115 = vadd.f32 0.0, %v2114
    %2116 = vmatprep.mubr.bf16.mxu0 %v1759
    %2117 = vmatmul.mubr.bf16.gmra.mrb[0].mxu0 %v1757
    %v2118 = vpop.f32.mrb[0].mxu0
    %v2119 = vadd.f32 0.0, %v2118
    %v2120 = vpop.f32.mrb[0].mxu0
    %v2121 = vadd.f32 0.0, %v2120
    %v2122 = vpop.f32.mrb[0].mxu0
    %v2123 = vadd.f32 0.0, %v2122
    %v2124 = vpop.f32.mrb[0].mxu0
    %v2125 = vadd.f32 0.0, %v2124
    %2126 = vmatprep.mubr.bf16.mxu0 %v1763
    %2127 = vmatmul.mubr.bf16.gmra.mrb[0].mxu0 %v1761
    %v2128 = vpop.f32.mrb[0].mxu0
    %v2129 = vadd.f32 0.0, %v2128
    %v2130 = vpop.f32.mrb[0].mxu0
    %v2131 = vadd.f32 0.0, %v2130
    %v2132 = vpop.f32.mrb[0].mxu0
    %v2133 = vadd.f32 0.0, %v2132
    %v2134 = vpop.f32.mrb[0].mxu0
    %v2135 = vadd.f32 0.0, %v2134
    %2136 = vmatprep.mubr.bf16.mxu0 %v1767
    %2137 = vmatmul.mubr.bf16.gmra.mrb[0].mxu0 %v1765
    %v2138 = vpop.f32.mrb[0].mxu0
    %v2139 = vadd.f32 0.0, %v2138
    %v2140 = vpop.f32.mrb[0].mxu0
    %v2141 = vadd.f32 0.0, %v2140
    %v2142 = vpop.f32.mrb[0].mxu0
    %v2143 = vadd.f32 0.0, %v2142
    %v2144 = vpop.f32.mrb[0].mxu0
    %v2145 = vadd.f32 0.0, %v2144
    %2146 = vmatprep.mubr.bf16.mxu0 %v1771
    %2147 = vmatmul.mubr.bf16.gmra.mrb[0].mxu0 %v1769
    %v2148 = vpop.f32.mrb[0].mxu0
    %v2149 = vadd.f32 0.0, %v2148
    %v2150 = vpop.f32.mrb[0].mxu0
    %v2151 = vadd.f32 0.0, %v2150
    %v2152 = vpop.f32.mrb[0].mxu0
    %v2153 = vadd.f32 0.0, %v2152
    %v2154 = vpop.f32.mrb[0].mxu0
    %v2155 = vadd.f32 0.0, %v2154
    %2156 = vmatprep.mubr.bf16.mxu0 %v1775
    %2157 = vmatmul.mubr.bf16.gmra.mrb[0].mxu0 %v1773
    %v2158 = vpop.f32.mrb[0].mxu0
    %v2159 = vadd.f32 0.0, %v2158
    %v2160 = vpop.f32.mrb[0].mxu0
    %v2161 = vadd.f32 0.0, %v2160
    %v2162 = vpop.f32.mrb[0].mxu0
    %v2163 = vadd.f32 0.0, %v2162
    %v2164 = vpop.f32.mrb[0].mxu0
    %v2165 = vadd.f32 0.0, %v2164
    %2166 = vmatprep.mubr.bf16.mxu0 %v1779
    %2167 = vmatmul.mubr.bf16.gmra.mrb[0].mxu0 %v1777
    %v2168 = vpop.f32.mrb[0].mxu0
    %v2169 = vadd.f32 0.0, %v2168
    %v2170 = vpop.f32.mrb[0].mxu0
    %v2171 = vadd.f32 0.0, %v2170
    %v2172 = vpop.f32.mrb[0].mxu0
    %v2173 = vadd.f32 0.0, %v2172
    %v2174 = vpop.f32.mrb[0].mxu0
    %v2175 = vadd.f32 0.0, %v2174
    %2176 = vmatprep.mubr.bf16.mxu0 %v1783
    %2177 = vmatmul.mubr.bf16.gmra.mrb[0].mxu0 %v1781
    %v2178 = vpop.f32.mrb[0].mxu0
    %v2179 = vadd.f32 0.0, %v2178
    %v2180 = vpop.f32.mrb[0].mxu0
    %v2181 = vadd.f32 0.0, %v2180
    %v2182 = vpop.f32.mrb[0].mxu0
    %v2183 = vadd.f32 0.0, %v2182
    %v2184 = vpop.f32.mrb[0].mxu0
    %v2185 = vadd.f32 0.0, %v2184
    %2186 = vmatprep.mubr.bf16.mxu0 %v1787
    %2187 = vmatmul.mubr.bf16.gmra.mrb[0].mxu0 %v1785
    %v2188 = vpop.f32.mrb[0].mxu0
    %v2189 = vadd.f32 0.0, %v2188
    %v2190 = vpop.f32.mrb[0].mxu0
    %v2191 = vadd.f32 0.0, %v2190
    %v2192 = vpop.f32.mrb[0].mxu0
    %v2193 = vadd.f32 0.0, %v2192
    %v2194 = vpop.f32.mrb[0].mxu0
    %v2195 = vadd.f32 0.0, %v2194
    %2196 = vmatprep.mubr.bf16.mxu0 %v1791
    %2197 = vmatmul.mubr.bf16.gmra.mrb[0].mxu0 %v1789
    %v2198 = vpop.f32.mrb[0].mxu0
    %v2199 = vadd.f32 0.0, %v2198
    %v2200 = vpop.f32.mrb[0].mxu0
    %v2201 = vadd.f32 0.0, %v2200
    %v2202 = vpop.f32.mrb[0].mxu0
    %v2203 = vadd.f32 0.0, %v2202
    %v2204 = vpop.f32.mrb[0].mxu0
    %v2205 = vadd.f32 0.0, %v2204
    %2206 = vmatprep.mubr.bf16.mxu0 %v1795
    %2207 = vmatmul.mubr.bf16.gmra.mrb[0].mxu0 %v1793
    %v2208 = vpop.f32.mrb[0].mxu0
    %v2209 = vadd.f32 0.0, %v2208
    %v2210 = vpop.f32.mrb[0].mxu0
    %v2211 = vadd.f32 0.0, %v2210
    %v2212 = vpop.f32.mrb[0].mxu0
    %v2213 = vadd.f32 0.0, %v2212
    %v2214 = vpop.f32.mrb[0].mxu0
    %v2215 = vadd.f32 0.0, %v2214
    %2216 = vmatprep.mubr.bf16.mxu0 %v1799
    %2217 = vmatmul.mubr.bf16.gmra.mrb[0].mxu0 %v1797
    %v2218 = vpop.f32.mrb[0].mxu0
    %v2219 = vadd.f32 0.0, %v2218
    %v2220 = vpop.f32.mrb[0].mxu0
    %v2221 = vadd.f32 0.0, %v2220
    %v2222 = vpop.f32.mrb[0].mxu0
    %v2223 = vadd.f32 0.0, %v2222
    %v2224 = vpop.f32.mrb[0].mxu0
    %v2225 = vadd.f32 0.0, %v2224
    %2226 = vmatprep.mubr.bf16.mxu0 %v1803
    %2227 = vmatmul.mubr.bf16.gmra.mrb[0].mxu0 %v1801
    %v2228 = vpop.f32.mrb[0].mxu0
    %v2229 = vadd.f32 0.0, %v2228
    %v2230 = vpop.f32.mrb[0].mxu0
    %v2231 = vadd.f32 0.0, %v2230
    %v2232 = vpop.f32.mrb[0].mxu0
    %v2233 = vadd.f32 0.0, %v2232
    %v2234 = vpop.f32.mrb[0].mxu0
    %v2235 = vadd.f32 0.0, %v2234
    %2236 = vmatprep.mubr.bf16.mxu0 %v1807
    %2237 = vmatmul.mubr.bf16.gmra.mrb[0].mxu0 %v1805
    %v2238 = vpop.f32.mrb[0].mxu0
    %v2239 = vadd.f32 0.0, %v2238
    %v2240 = vpop.f32.mrb[0].mxu0
    %v2241 = vadd.f32 0.0, %v2240
    %v2242 = vpop.f32.mrb[0].mxu0
    %v2243 = vadd.f32 0.0, %v2242
    %v2244 = vpop.f32.mrb[0].mxu0
    %v2245 = vadd.f32 0.0, %v2244
    %2246 = vmatprep.mubr.bf16.mxu0 %v1811
    %2247 = vmatmul.mubr.bf16.gmra.mrb[0].mxu0 %v1809
    %v2248 = vpop.f32.mrb[0].mxu0
    %v2249 = vadd.f32 0.0, %v2248
    %v2250 = vpop.f32.mrb[0].mxu0
    %v2251 = vadd.f32 0.0, %v2250
    %v2252 = vpop.f32.mrb[0].mxu0
    %v2253 = vadd.f32 0.0, %v2252
    %v2254 = vpop.f32.mrb[0].mxu0
    %v2255 = vadd.f32 0.0, %v2254
    %2256 = vmatprep.mubr.bf16.mxu0 %v1815
    %2257 = vmatmul.mubr.bf16.gmra.mrb[0].mxu0 %v1813
    %v2258 = vpop.f32.mrb[0].mxu0
    %v2259 = vadd.f32 0.0, %v2258
    %v2260 = vpop.f32.mrb[0].mxu0
    %v2261 = vadd.f32 0.0, %v2260
    %v2262 = vpop.f32.mrb[0].mxu0
    %v2263 = vadd.f32 0.0, %v2262
    %v2264 = vpop.f32.mrb[0].mxu0
    %v2265 = vadd.f32 0.0, %v2264
    %2266 = vmatprep.mubr.bf16.mxu0 %v1819
    %2267 = vmatmul.mubr.bf16.gmra.mrb[0].mxu0 %v1817
    %v2268 = vpop.f32.mrb[0].mxu0
    %v2269 = vadd.f32 0.0, %v2268
    %v2270 = vpop.f32.mrb[0].mxu0
    %v2271 = vadd.f32 0.0, %v2270
    %v2272 = vpop.f32.mrb[0].mxu0
    %v2273 = vadd.f32 0.0, %v2272
    %v2274 = vpop.f32.mrb[0].mxu0
    %v2275 = vadd.f32 0.0, %v2274
    %2276 = vmatprep.mubr.bf16.mxu0 %v1823
    %2277 = vmatmul.mubr.bf16.gmra.mrb[0].mxu0 %v1821
    %v2278 = vpop.f32.mrb[0].mxu0
    %v2279 = vadd.f32 0.0, %v2278
    %v2280 = vpop.f32.mrb[0].mxu0
    %v2281 = vadd.f32 0.0, %v2280
    %v2282 = vpop.f32.mrb[0].mxu0
    %v2283 = vadd.f32 0.0, %v2282
    %v2284 = vpop.f32.mrb[0].mxu0
    %v2285 = vadd.f32 0.0, %v2284
    %2286 = vmatprep.mubr.bf16.mxu0 %v1827
    %2287 = vmatmul.mubr.bf16.gmra.mrb[0].mxu0 %v1825
    %v2288 = vpop.f32.mrb[0].mxu0
    %v2289 = vadd.f32 0.0, %v2288
    %v2290 = vpop.f32.mrb[0].mxu0
    %v2291 = vadd.f32 0.0, %v2290
    %v2292 = vpop.f32.mrb[0].mxu0
    %v2293 = vadd.f32 0.0, %v2292
    %v2294 = vpop.f32.mrb[0].mxu0
    %v2295 = vadd.f32 0.0, %v2294
    %2296 = vmatprep.mubr.bf16.mxu0 %v1831
    %2297 = vmatmul.mubr.bf16.gmra.mrb[0].mxu0 %v1829
    %v2298 = vpop.f32.mrb[0].mxu0
    %v2299 = vadd.f32 0.0, %v2298
    %v2300 = vpop.f32.mrb[0].mxu0
    %v2301 = vadd.f32 0.0, %v2300
    %v2302 = vpop.f32.mrb[0].mxu0
    %v2303 = vadd.f32 0.0, %v2302
    %v2304 = vpop.f32.mrb[0].mxu0
    %v2305 = vadd.f32 0.0, %v2304
    %2306 = vmatprep.mubr.bf16.mxu0 %v1835
    %2307 = vmatmul.mubr.bf16.gmra.mrb[0].mxu0 %v1833
    %v2308 = vpop.f32.mrb[0].mxu0
    %v2309 = vadd.f32 0.0, %v2308
    %v2310 = vpop.f32.mrb[0].mxu0
    %v2311 = vadd.f32 0.0, %v2310
    %v2312 = vpop.f32.mrb[0].mxu0
    %v2313 = vadd.f32 0.0, %v2312
    %v2314 = vpop.f32.mrb[0].mxu0
    %v2315 = vadd.f32 0.0, %v2314
    %2316 = vdwg.mxu0
    %v2318 = vunpack.c.l.b16 %v1426
    %v2319 = vunpack.c.h.b16 %v1426
    %v2320 = vpack.c.b16 %v1591, %v2318
    %v2321 = vpack.c.b16 %v1592, %v2319
    %v2402 = vunpack.c.l.b16 %v1474
    %v2403 = vunpack.c.h.b16 %v1474
    %v2404 = vunpack.c.l.b16 %v1475
    %v2405 = vunpack.c.h.b16 %v1475
    %v2406 = vunpack.c.l.b16 %v1476
    %v2407 = vunpack.c.h.b16 %v1476
    %v2408 = vunpack.c.l.b16 %v1477
    %v2409 = vunpack.c.h.b16 %v1477
    %v2410 = vunpack.c.l.b16 %v1478
    %v2411 = vunpack.c.h.b16 %v1478
    %v2412 = vunpack.c.l.b16 %v1479
    %v2413 = vunpack.c.h.b16 %v1479
    %v2414 = vunpack.c.l.b16 %v1480
    %v2415 = vunpack.c.h.b16 %v1480
    %v2416 = vunpack.c.l.b16 %v1481
    %v2417 = vunpack.c.h.b16 %v1481
    %v2418 = vunpack.c.l.b16 %v1482
    %v2419 = vunpack.c.h.b16 %v1482
    %v2420 = vunpack.c.l.b16 %v1483
    %v2421 = vunpack.c.h.b16 %v1483
    %v2422 = vunpack.c.l.b16 %v1484
    %v2423 = vunpack.c.h.b16 %v1484
    %v2424 = vunpack.c.l.b16 %v1485
    %v2425 = vunpack.c.h.b16 %v1485
    %v2426 = vunpack.c.l.b16 %v1486
    %v2427 = vunpack.c.h.b16 %v1486
    %v2428 = vunpack.c.l.b16 %v1487
    %v2429 = vunpack.c.h.b16 %v1487
    %v2430 = vunpack.c.l.b16 %v1488
    %v2431 = vunpack.c.h.b16 %v1488
    %v2432 = vunpack.c.l.b16 %v1489
    %v2433 = vunpack.c.h.b16 %v1489
    %v2434 = vunpack.c.l.b16 %v1490
    %v2435 = vunpack.c.h.b16 %v1490
    %v2436 = vunpack.c.l.b16 %v1491
    %v2437 = vunpack.c.h.b16 %v1491
    %v2438 = vunpack.c.l.b16 %v1492
    %v2439 = vunpack.c.h.b16 %v1492
    %v2440 = vunpack.c.l.b16 %v1493
    %v2441 = vunpack.c.h.b16 %v1493
    %v2442 = vunpack.c.l.b16 %v1494
    %v2443 = vunpack.c.h.b16 %v1494
    %v2444 = vunpack.c.l.b16 %v1495
    %v2445 = vunpack.c.h.b16 %v1495
    %v2446 = vunpack.c.l.b16 %v1496
    %v2447 = vunpack.c.h.b16 %v1496
    %v2448 = vunpack.c.l.b16 %v1497
    %v2449 = vunpack.c.h.b16 %v1497
    %v2450 = vunpack.c.l.b16 %v1498
    %v2451 = vunpack.c.h.b16 %v1498
    %v2452 = vunpack.c.l.b16 %v1499
    %v2453 = vunpack.c.h.b16 %v1499
    %v2454 = vunpack.c.l.b16 %v1500
    %v2455 = vunpack.c.h.b16 %v1500
    %v2456 = vunpack.c.l.b16 %v1501
    %v2457 = vunpack.c.h.b16 %v1501
    %v2458 = vunpack.c.l.b16 %v1502
    %v2459 = vunpack.c.h.b16 %v1502
    %v2460 = vunpack.c.l.b16 %v1503
    %v2461 = vunpack.c.h.b16 %v1503
    %v2462 = vunpack.c.l.b16 %v1504
    %v2463 = vunpack.c.h.b16 %v1504
    %v2464 = vunpack.c.l.b16 %v1505
    %v2465 = vunpack.c.h.b16 %v1505
    %v2466 = vpack.c.b16 %v2404, %v2402
    %v2467 = vpack.c.b16 %v2405, %v2403
    %v2468 = vpack.c.b16 %v2408, %v2406
    %v2469 = vpack.c.b16 %v2409, %v2407
    %v2470 = vpack.c.b16 %v2412, %v2410
    %v2471 = vpack.c.b16 %v2413, %v2411
    %v2472 = vpack.c.b16 %v2416, %v2414
    %v2473 = vpack.c.b16 %v2417, %v2415
    %v2474 = vpack.c.b16 %v2420, %v2418
    %v2475 = vpack.c.b16 %v2421, %v2419
    %v2476 = vpack.c.b16 %v2424, %v2422
    %v2477 = vpack.c.b16 %v2425, %v2423
    %v2478 = vpack.c.b16 %v2428, %v2426
    %v2479 = vpack.c.b16 %v2429, %v2427
    %v2480 = vpack.c.b16 %v2432, %v2430
    %v2481 = vpack.c.b16 %v2433, %v2431
    %v2482 = vpack.c.b16 %v2436, %v2434
    %v2483 = vpack.c.b16 %v2437, %v2435
    %v2484 = vpack.c.b16 %v2440, %v2438
    %v2485 = vpack.c.b16 %v2441, %v2439
    %v2486 = vpack.c.b16 %v2444, %v2442
    %v2487 = vpack.c.b16 %v2445, %v2443
    %v2488 = vpack.c.b16 %v2448, %v2446
    %v2489 = vpack.c.b16 %v2449, %v2447
    %v2490 = vpack.c.b16 %v2452, %v2450
    %v2491 = vpack.c.b16 %v2453, %v2451
    %v2492 = vpack.c.b16 %v2456, %v2454
    %v2493 = vpack.c.b16 %v2457, %v2455
    %v2494 = vpack.c.b16 %v2460, %v2458
    %v2495 = vpack.c.b16 %v2461, %v2459
    %v2496 = vpack.c.b16 %v2464, %v2462
    %v2497 = vpack.c.b16 %v2465, %v2463
    %2530 = vmatprep.subr.bf16.mxu0 %v2467
    %2531 = vmatpush1.bf16.msra.mxu0 %v2466
    %2532 = vmatprep.subr.bf16.mxu0 %v2469
    %2533 = vmatpush1.bf16.msra.mxu0 %v2468
    %2534 = vmatprep.subr.bf16.mxu0 %v2471
    %2535 = vmatpush1.bf16.msra.mxu0 %v2470
    %2536 = vmatprep.subr.bf16.mxu0 %v2473
    %2537 = vmatpush1.bf16.msra.mxu0 %v2472
    %2538 = vmatprep.subr.bf16.mxu0 %v2475
    %2539 = vmatpush1.bf16.msra.mxu0 %v2474
    %2540 = vmatprep.subr.bf16.mxu0 %v2477
    %2541 = vmatpush1.bf16.msra.mxu0 %v2476
    %2542 = vmatprep.subr.bf16.mxu0 %v2479
    %2543 = vmatpush1.bf16.msra.mxu0 %v2478
    %2544 = vmatprep.subr.bf16.mxu0 %v2481
    %2545 = vmatpush1.bf16.msra.mxu0 %v2480
    %2546 = vmatprep.subr.bf16.mxu0 %v2483
    %2547 = vmatpush1.bf16.msra.mxu0 %v2482
    %2548 = vmatprep.subr.bf16.mxu0 %v2485
    %2549 = vmatpush1.bf16.msra.mxu0 %v2484
    %2550 = vmatprep.subr.bf16.mxu0 %v2487
    %2551 = vmatpush1.bf16.msra.mxu0 %v2486
    %2552 = vmatprep.subr.bf16.mxu0 %v2489
    %2553 = vmatpush1.bf16.msra.mxu0 %v2488
    %2554 = vmatprep.subr.bf16.mxu0 %v2491
    %2555 = vmatpush1.bf16.msra.mxu0 %v2490
    %2556 = vmatprep.subr.bf16.mxu0 %v2493
    %2557 = vmatpush1.bf16.msra.mxu0 %v2492
    %2558 = vmatprep.subr.bf16.mxu0 %v2495
    %2559 = vmatpush1.bf16.msra.mxu0 %v2494
    %2560 = vmatprep.subr.bf16.mxu0 %v2497
    %2561 = vmatpush1.bf16.msra.mxu0 %v2496
    %2562 = vmatprep.mubr.bf16.mxu0 %v2321
    %2563 = vmatmul.mubr.bf16.gmra.mrb[0].mxu0 %v2320
    %v2564 = vpop.f32.mrb[0].mxu0
    %v2565 = vadd.f32 %v2079, %v2564
    %v2566 = vpop.f32.mrb[0].mxu0
    %v2567 = vadd.f32 %v2081, %v2566
    %v2568 = vpop.f32.mrb[0].mxu0
    %v2569 = vadd.f32 %v2083, %v2568
    %v2570 = vpop.f32.mrb[0].mxu0
    %v2571 = vadd.f32 %v2085, %v2570
    %2572 = vmatprep.mubr.bf16.mxu0 %v1690
    %2573 = vmatmul.mubr.bf16.gmra.mrb[0].mxu0 %v1689
    %v2574 = vpop.f32.mrb[0].mxu0
    %v2575 = vadd.f32 %v2089, %v2574
    %v2576 = vpop.f32.mrb[0].mxu0
    %v2577 = vadd.f32 %v2091, %v2576
    %v2578 = vpop.f32.mrb[0].mxu0
    %v2579 = vadd.f32 %v2093, %v2578
    %v2580 = vpop.f32.mrb[0].mxu0
    %v2581 = vadd.f32 %v2095, %v2580
    %2582 = vmatprep.mubr.bf16.mxu0 %v1692
    %2583 = vmatmul.mubr.bf16.gmra.mrb[0].mxu0 %v1691
    %v2584 = vpop.f32.mrb[0].mxu0
    %v2585 = vadd.f32 %v2099, %v2584
    %v2586 = vpop.f32.mrb[0].mxu0
    %v2587 = vadd.f32 %v2101, %v2586
    %v2588 = vpop.f32.mrb[0].mxu0
    %v2589 = vadd.f32 %v2103, %v2588
    %v2590 = vpop.f32.mrb[0].mxu0
    %v2591 = vadd.f32 %v2105, %v2590
    %2592 = vmatprep.mubr.bf16.mxu0 %v1694
    %2593 = vmatmul.mubr.bf16.gmra.mrb[0].mxu0 %v1693
    %v2594 = vpop.f32.mrb[0].mxu0
    %v2595 = vadd.f32 %v2109, %v2594
    %v2596 = vpop.f32.mrb[0].mxu0
    %v2597 = vadd.f32 %v2111, %v2596
    %v2598 = vpop.f32.mrb[0].mxu0
    %v2599 = vadd.f32 %v2113, %v2598
    %v2600 = vpop.f32.mrb[0].mxu0
    %v2601 = vadd.f32 %v2115, %v2600
    %2602 = vmatprep.mubr.bf16.mxu0 %v1696
    %2603 = vmatmul.mubr.bf16.gmra.mrb[0].mxu0 %v1695
    %v2604 = vpop.f32.mrb[0].mxu0
    %v2605 = vadd.f32 %v2119, %v2604
    %v2606 = vpop.f32.mrb[0].mxu0
    %v2607 = vadd.f32 %v2121, %v2606
    %v2608 = vpop.f32.mrb[0].mxu0
    %v2609 = vadd.f32 %v2123, %v2608
    %v2610 = vpop.f32.mrb[0].mxu0
    %v2611 = vadd.f32 %v2125, %v2610
    %2612 = vmatprep.mubr.bf16.mxu0 %v1698
    %2613 = vmatmul.mubr.bf16.gmra.mrb[0].mxu0 %v1697
    %v2614 = vpop.f32.mrb[0].mxu0
    %v2615 = vadd.f32 %v2129, %v2614
    %v2616 = vpop.f32.mrb[0].mxu0
    %v2617 = vadd.f32 %v2131, %v2616
    %v2618 = vpop.f32.mrb[0].mxu0
    %v2619 = vadd.f32 %v2133, %v2618
    %v2620 = vpop.f32.mrb[0].mxu0
    %v2621 = vadd.f32 %v2135, %v2620
    %2622 = vmatprep.mubr.bf16.mxu0 %v1700
    %2623 = vmatmul.mubr.bf16.gmra.mrb[0].mxu0 %v1699
    %v2624 = vpop.f32.mrb[0].mxu0
    %v2625 = vadd.f32 %v2139, %v2624
    %v2626 = vpop.f32.mrb[0].mxu0
    %v2627 = vadd.f32 %v2141, %v2626
    %v2628 = vpop.f32.mrb[0].mxu0
    %v2629 = vadd.f32 %v2143, %v2628
    %v2630 = vpop.f32.mrb[0].mxu0
    %v2631 = vadd.f32 %v2145, %v2630
    %2632 = vmatprep.mubr.bf16.mxu0 %v1702
    %2633 = vmatmul.mubr.bf16.gmra.mrb[0].mxu0 %v1701
    %v2634 = vpop.f32.mrb[0].mxu0
    %v2635 = vadd.f32 %v2149, %v2634
    %v2636 = vpop.f32.mrb[0].mxu0
    %v2637 = vadd.f32 %v2151, %v2636
    %v2638 = vpop.f32.mrb[0].mxu0
    %v2639 = vadd.f32 %v2153, %v2638
    %v2640 = vpop.f32.mrb[0].mxu0
    %v2641 = vadd.f32 %v2155, %v2640
    %2642 = vmatprep.mubr.bf16.mxu0 %v1704
    %2643 = vmatmul.mubr.bf16.gmra.mrb[0].mxu0 %v1703
    %v2644 = vpop.f32.mrb[0].mxu0
    %v2645 = vadd.f32 %v2159, %v2644
    %v2646 = vpop.f32.mrb[0].mxu0
    %v2647 = vadd.f32 %v2161, %v2646
    %v2648 = vpop.f32.mrb[0].mxu0
    %v2649 = vadd.f32 %v2163, %v2648
    %v2650 = vpop.f32.mrb[0].mxu0
    %v2651 = vadd.f32 %v2165, %v2650
    %2652 = vmatprep.mubr.bf16.mxu0 %v1706
    %2653 = vmatmul.mubr.bf16.gmra.mrb[0].mxu0 %v1705
    %v2654 = vpop.f32.mrb[0].mxu0
    %v2655 = vadd.f32 %v2169, %v2654
    %v2656 = vpop.f32.mrb[0].mxu0
    %v2657 = vadd.f32 %v2171, %v2656
    %v2658 = vpop.f32.mrb[0].mxu0
    %v2659 = vadd.f32 %v2173, %v2658
    %v2660 = vpop.f32.mrb[0].mxu0
    %v2661 = vadd.f32 %v2175, %v2660
    %2662 = vmatprep.mubr.bf16.mxu0 %v1708
    %2663 = vmatmul.mubr.bf16.gmra.mrb[0].mxu0 %v1707
    %v2664 = vpop.f32.mrb[0].mxu0
    %v2665 = vadd.f32 %v2179, %v2664
    %v2666 = vpop.f32.mrb[0].mxu0
    %v2667 = vadd.f32 %v2181, %v2666
    %v2668 = vpop.f32.mrb[0].mxu0
    %v2669 = vadd.f32 %v2183, %v2668
    %v2670 = vpop.f32.mrb[0].mxu0
    %v2671 = vadd.f32 %v2185, %v2670
    %2672 = vmatprep.mubr.bf16.mxu0 %v1710
    %2673 = vmatmul.mubr.bf16.gmra.mrb[0].mxu0 %v1709
    %v2674 = vpop.f32.mrb[0].mxu0
    %v2675 = vadd.f32 %v2189, %v2674
    %v2676 = vpop.f32.mrb[0].mxu0
    %v2677 = vadd.f32 %v2191, %v2676
    %v2678 = vpop.f32.mrb[0].mxu0
    %v2679 = vadd.f32 %v2193, %v2678
    %v2680 = vpop.f32.mrb[0].mxu0
    %v2681 = vadd.f32 %v2195, %v2680
    %2682 = vmatprep.mubr.bf16.mxu0 %v1712
    %2683 = vmatmul.mubr.bf16.gmra.mrb[0].mxu0 %v1711
    %v2684 = vpop.f32.mrb[0].mxu0
    %v2685 = vadd.f32 %v2199, %v2684
    %v2686 = vpop.f32.mrb[0].mxu0
    %v2687 = vadd.f32 %v2201, %v2686
    %v2688 = vpop.f32.mrb[0].mxu0
    %v2689 = vadd.f32 %v2203, %v2688
    %v2690 = vpop.f32.mrb[0].mxu0
    %v2691 = vadd.f32 %v2205, %v2690
    %2692 = vmatprep.mubr.bf16.mxu0 %v1714
    %2693 = vmatmul.mubr.bf16.gmra.mrb[0].mxu0 %v1713
    %v2694 = vpop.f32.mrb[0].mxu0
    %v2695 = vadd.f32 %v2209, %v2694
    %v2696 = vpop.f32.mrb[0].mxu0
    %v2697 = vadd.f32 %v2211, %v2696
    %v2698 = vpop.f32.mrb[0].mxu0
    %v2699 = vadd.f32 %v2213, %v2698
    %v2700 = vpop.f32.mrb[0].mxu0
    %v2701 = vadd.f32 %v2215, %v2700
    %2702 = vmatprep.mubr.bf16.mxu0 %v1716
    %2703 = vmatmul.mubr.bf16.gmra.mrb[0].mxu0 %v1715
    %v2704 = vpop.f32.mrb[0].mxu0
    %v2705 = vadd.f32 %v2219, %v2704
    %v2706 = vpop.f32.mrb[0].mxu0
    %v2707 = vadd.f32 %v2221, %v2706
    %v2708 = vpop.f32.mrb[0].mxu0
    %v2709 = vadd.f32 %v2223, %v2708
    %v2710 = vpop.f32.mrb[0].mxu0
    %v2711 = vadd.f32 %v2225, %v2710
    %2712 = vmatprep.mubr.bf16.mxu0 %v1718
    %2713 = vmatmul.mubr.bf16.gmra.mrb[0].mxu0 %v1717
    %v2714 = vpop.f32.mrb[0].mxu0
    %v2715 = vadd.f32 %v2229, %v2714
    %v2716 = vpop.f32.mrb[0].mxu0
    %v2717 = vadd.f32 %v2231, %v2716
    %v2718 = vpop.f32.mrb[0].mxu0
    %v2719 = vadd.f32 %v2233, %v2718
    %v2720 = vpop.f32.mrb[0].mxu0
    %v2721 = vadd.f32 %v2235, %v2720
    %2722 = vmatprep.mubr.bf16.mxu0 %v1720
    %2723 = vmatmul.mubr.bf16.gmra.mrb[0].mxu0 %v1719
    %v2724 = vpop.f32.mrb[0].mxu0
    %v2725 = vadd.f32 %v2239, %v2724
    %v2726 = vpop.f32.mrb[0].mxu0
    %v2727 = vadd.f32 %v2241, %v2726
    %v2728 = vpop.f32.mrb[0].mxu0
    %v2729 = vadd.f32 %v2243, %v2728
    %v2730 = vpop.f32.mrb[0].mxu0
    %v2731 = vadd.f32 %v2245, %v2730
    %2732 = vmatprep.mubr.bf16.mxu0 %v1722
    %2733 = vmatmul.mubr.bf16.gmra.mrb[0].mxu0 %v1721
    %v2734 = vpop.f32.mrb[0].mxu0
    %v2735 = vadd.f32 %v2249, %v2734
    %v2736 = vpop.f32.mrb[0].mxu0
    %v2737 = vadd.f32 %v2251, %v2736
    %v2738 = vpop.f32.mrb[0].mxu0
    %v2739 = vadd.f32 %v2253, %v2738
    %v2740 = vpop.f32.mrb[0].mxu0
    %v2741 = vadd.f32 %v2255, %v2740
    %2742 = vmatprep.mubr.bf16.mxu0 %v1724
    %2743 = vmatmul.mubr.bf16.gmra.mrb[0].mxu0 %v1723
    %v2744 = vpop.f32.mrb[0].mxu0
    %v2745 = vadd.f32 %v2259, %v2744
    %v2746 = vpop.f32.mrb[0].mxu0
    %v2747 = vadd.f32 %v2261, %v2746
    %v2748 = vpop.f32.mrb[0].mxu0
    %v2749 = vadd.f32 %v2263, %v2748
    %v2750 = vpop.f32.mrb[0].mxu0
    %v2751 = vadd.f32 %v2265, %v2750
    %2752 = vmatprep.mubr.bf16.mxu0 %v1726
    %2753 = vmatmul.mubr.bf16.gmra.mrb[0].mxu0 %v1725
    %v2754 = vpop.f32.mrb[0].mxu0
    %v2755 = vadd.f32 %v2269, %v2754
    %v2756 = vpop.f32.mrb[0].mxu0
    %v2757 = vadd.f32 %v2271, %v2756
    %v2758 = vpop.f32.mrb[0].mxu0
    %v2759 = vadd.f32 %v2273, %v2758
    %v2760 = vpop.f32.mrb[0].mxu0
    %v2761 = vadd.f32 %v2275, %v2760
    %2762 = vmatprep.mubr.bf16.mxu0 %v1728
    %2763 = vmatmul.mubr.bf16.gmra.mrb[0].mxu0 %v1727
    %v2764 = vpop.f32.mrb[0].mxu0
    %v2765 = vadd.f32 %v2279, %v2764
    %v2766 = vpop.f32.mrb[0].mxu0
    %v2767 = vadd.f32 %v2281, %v2766
    %v2768 = vpop.f32.mrb[0].mxu0
    %v2769 = vadd.f32 %v2283, %v2768
    %v2770 = vpop.f32.mrb[0].mxu0
    %v2771 = vadd.f32 %v2285, %v2770
    %2772 = vmatprep.mubr.bf16.mxu0 %v1730
    %2773 = vmatmul.mubr.bf16.gmra.mrb[0].mxu0 %v1729
    %v2774 = vpop.f32.mrb[0].mxu0
    %v2775 = vadd.f32 %v2289, %v2774
    %v2776 = vpop.f32.mrb[0].mxu0
    %v2777 = vadd.f32 %v2291, %v2776
    %v2778 = vpop.f32.mrb[0].mxu0
    %v2779 = vadd.f32 %v2293, %v2778
    %v2780 = vpop.f32.mrb[0].mxu0
    %v2781 = vadd.f32 %v2295, %v2780
    %2782 = vmatprep.mubr.bf16.mxu0 %v1732
    %2783 = vmatmul.mubr.bf16.gmra.mrb[0].mxu0 %v1731
    %v2784 = vpop.f32.mrb[0].mxu0
    %v2785 = vadd.f32 %v2299, %v2784
    %v2786 = vpop.f32.mrb[0].mxu0
    %v2787 = vadd.f32 %v2301, %v2786
    %v2788 = vpop.f32.mrb[0].mxu0
    %v2789 = vadd.f32 %v2303, %v2788
    %v2790 = vpop.f32.mrb[0].mxu0
    %v2791 = vadd.f32 %v2305, %v2790
    %2792 = vmatprep.mubr.bf16.mxu0 %v1734
    %2793 = vmatmul.mubr.bf16.gmra.mrb[0].mxu0 %v1733
    %v2794 = vpop.f32.mrb[0].mxu0
    %v2795 = vadd.f32 %v2309, %v2794
    %v2796 = vpop.f32.mrb[0].mxu0
    %v2797 = vadd.f32 %v2311, %v2796
    %v2798 = vpop.f32.mrb[0].mxu0
    %v2799 = vadd.f32 %v2313, %v2798
    %v2800 = vpop.f32.mrb[0].mxu0
    %v2801 = vadd.f32 %v2315, %v2800
    %2802 = vdwg.mxu0
    %v2803 = vld [vmem:[#allocation2 + $0x30] sm:$0xff]
    %v2804 = vld [vmem:[#allocation2 + $0x38] sm:$0xff]
    %v2805 = vld [vmem:[#allocation2 + $0x40] sm:$0xff]
    %v2806 = vld [vmem:[#allocation2 + $0x48] sm:$0xff]
    %v2807 = vld [vmem:[#allocation2 + $0x50] sm:$0xff]
    %v2808 = vld [vmem:[#allocation2 + $0x58] sm:$0xff]
    %v2809 = vld [vmem:[#allocation2 + $0x60] sm:$0xff]
    %v2810 = vld [vmem:[#allocation2 + $0x68] sm:$0xff]
    %v2811 = vld [vmem:[#allocation2 + $0x70] sm:$0xff]
    %v2812 = vld [vmem:[#allocation2 + $0x78] sm:$0xff]
    %v2813 = vld [vmem:[#allocation2 + $0x80] sm:$0xff]
    %v2814 = vld [vmem:[#allocation2 + $0x88] sm:$0xff]
    %v2815 = vld [vmem:[#allocation2 + $0x90] sm:$0xff]
    %v2816 = vld [vmem:[#allocation2 + $0x98] sm:$0xff]
    %v2817 = vld [vmem:[#allocation2 + $0xa0] sm:$0xff]
    %v2818 = vld [vmem:[#allocation2 + $0xa8] sm:$0xff]
    %v2819 = vld [vmem:[#allocation2 + $0xb0] sm:$0xff]
    %v2820 = vld [vmem:[#allocation2 + $0xb8] sm:$0xff]
    %v2821 = vld [vmem:[#allocation2 + $0xc0] sm:$0xff]
    %v2822 = vld [vmem:[#allocation2 + $0xc8] sm:$0xff]
    %v2823 = vld [vmem:[#allocation2 + $0xd0] sm:$0xff]
    %v2824 = vld [vmem:[#allocation2 + $0xd8] sm:$0xff]
    %v2825 = vld [vmem:[#allocation2 + $0xe0] sm:$0xff]
    %v2826 = vld [vmem:[#allocation2 + $0xe8] sm:$0xff]
    %v2827 = vld [vmem:[#allocation2 + $0xf0] sm:$0xff]
    %v2828 = vld [vmem:[#allocation2 + $0xf8] sm:$0xff]
    %v2829 = vld [vmem:[#allocation2 + $0x100] sm:$0xff]
    %v2830 = vld [vmem:[#allocation2 + $0x108] sm:$0xff]
    %v2831 = vld [vmem:[#allocation2 + $0x110] sm:$0xff]
    %v2832 = vld [vmem:[#allocation2 + $0x118] sm:$0xff]
    %v2833 = vld [vmem:[#allocation2 + $0x120] sm:$0xff]
    %v2834 = vld [vmem:[#allocation2 + $0x128] sm:$0xff]
    %v2835 = vld [vmem:[#allocation2 + $0x130] sm:$0xff]
    %v2836 = vld [vmem:[#allocation2 + $0x138] sm:$0xff]
    %v2837 = vld [vmem:[#allocation2 + $0x140] sm:$0xff]
    %v2838 = vld [vmem:[#allocation2 + $0x148] sm:$0xff]
    %v2839 = vld [vmem:[#allocation2 + $0x150] sm:$0xff]
    %v2840 = vld [vmem:[#allocation2 + $0x158] sm:$0xff]
    %v2841 = vld [vmem:[#allocation2 + $0x160] sm:$0xff]
    %v2842 = vld [vmem:[#allocation2 + $0x168] sm:$0xff]
    %v2843 = vld [vmem:[#allocation2 + $0x170] sm:$0xff]
    %v2844 = vld [vmem:[#allocation2 + $0x178] sm:$0xff]
    %v2845 = vld [vmem:[#allocation2 + $0x180] sm:$0xff]
    %v2846 = vld [vmem:[#allocation2 + $0x188] sm:$0xff]
    %v2847 = vld [vmem:[#allocation2 + $0x190] sm:$0xff]
    %v2848 = vld [vmem:[#allocation2 + $0x198] sm:$0xff]
    %v2849 = vld [vmem:[#allocation2 + $0x1a0] sm:$0xff]
    %v2850 = vld [vmem:[#allocation2 + $0x1a8] sm:$0xff]
    %v2851 = vld [vmem:[#allocation11 + $0x200] sm:$0xff]
    %v2852 = vld [vmem:[#allocation11 + $0x208] sm:$0xff]
    %v2853 = vld [vmem:[#allocation11 + $0x210] sm:$0xff]
    %v2854 = vld [vmem:[#allocation11 + $0x218] sm:$0xff]
    %v2855 = vld [vmem:[#allocation11 + $0x220] sm:$0xff]
    %v2856 = vld [vmem:[#allocation11 + $0x228] sm:$0xff]
    %v2857 = vld [vmem:[#allocation11 + $0x230] sm:$0xff]
    %v2858 = vld [vmem:[#allocation11 + $0x238] sm:$0xff]
    %v2859 = vld [vmem:[#allocation11 + $0x240] sm:$0xff]
    %v2860 = vld [vmem:[#allocation11 + $0x248] sm:$0xff]
    %v2861 = vld [vmem:[#allocation11 + $0x250] sm:$0xff]
    %v2862 = vld [vmem:[#allocation11 + $0x258] sm:$0xff]
    %v2863 = vld [vmem:[#allocation11 + $0x260] sm:$0xff]
    %v2864 = vld [vmem:[#allocation11 + $0x268] sm:$0xff]
    %v2865 = vld [vmem:[#allocation11 + $0x270] sm:$0xff]
    %v2866 = vld [vmem:[#allocation11 + $0x278] sm:$0xff]
    %v2867 = vld [vmem:[#allocation11 + $0x280] sm:$0xff]
    %v2868 = vld [vmem:[#allocation11 + $0x288] sm:$0xff]
    %v2869 = vld [vmem:[#allocation11 + $0x290] sm:$0xff]
    %v2870 = vld [vmem:[#allocation11 + $0x298] sm:$0xff]
    %v2871 = vld [vmem:[#allocation11 + $0x2a0] sm:$0xff]
    %v2872 = vld [vmem:[#allocation11 + $0x2a8] sm:$0xff]
    %v2873 = vld [vmem:[#allocation11 + $0x2b0] sm:$0xff]
    %v2874 = vld [vmem:[#allocation11 + $0x2b8] sm:$0xff]
    %v2875 = vld [vmem:[#allocation11 + $0x2c0] sm:$0xff]
    %v2876 = vld [vmem:[#allocation11 + $0x2c8] sm:$0xff]
    %v2877 = vld [vmem:[#allocation11 + $0x2d0] sm:$0xff]
    %v2878 = vld [vmem:[#allocation11 + $0x2d8] sm:$0xff]
    %v2879 = vld [vmem:[#allocation11 + $0x2e0] sm:$0xff]
    %v2880 = vld [vmem:[#allocation11 + $0x2e8] sm:$0xff]
    %v2881 = vld [vmem:[#allocation11 + $0x2f0] sm:$0xff]
    %v2882 = vld [vmem:[#allocation11 + $0x2f8] sm:$0xff]
    %v2931 = vunpack.c.l.b16 %v2803
    %v2932 = vunpack.c.h.b16 %v2803
    %v2933 = vunpack.c.l.b16 %v2804
    %v2934 = vunpack.c.h.b16 %v2804
    %v2935 = vunpack.c.l.b16 %v2805
    %v2936 = vunpack.c.h.b16 %v2805
    %v2937 = vunpack.c.l.b16 %v2806
    %v2938 = vunpack.c.h.b16 %v2806
    %v2939 = vunpack.c.l.b16 %v2807
    %v2940 = vunpack.c.h.b16 %v2807
    %v2941 = vunpack.c.l.b16 %v2808
    %v2942 = vunpack.c.h.b16 %v2808
    %v2943 = vunpack.c.l.b16 %v2809
    %v2944 = vunpack.c.h.b16 %v2809
    %v2945 = vunpack.c.l.b16 %v2810
    %v2946 = vunpack.c.h.b16 %v2810
    %v2947 = vunpack.c.l.b16 %v2811
    %v2948 = vunpack.c.h.b16 %v2811
    %v2949 = vunpack.c.l.b16 %v2812
    %v2950 = vunpack.c.h.b16 %v2812
    %v2951 = vunpack.c.l.b16 %v2813
    %v2952 = vunpack.c.h.b16 %v2813
    %v2953 = vunpack.c.l.b16 %v2814
    %v2954 = vunpack.c.h.b16 %v2814
    %v2955 = vunpack.c.l.b16 %v2815
    %v2956 = vunpack.c.h.b16 %v2815
    %v2957 = vunpack.c.l.b16 %v2816
    %v2958 = vunpack.c.h.b16 %v2816
    %v2959 = vunpack.c.l.b16 %v2817
    %v2960 = vunpack.c.h.b16 %v2817
    %v2961 = vunpack.c.l.b16 %v2818
    %v2962 = vunpack.c.h.b16 %v2818
    %v2963 = vunpack.c.l.b16 %v2819
    %v2964 = vunpack.c.h.b16 %v2819
    %v2965 = vunpack.c.l.b16 %v2820
    %v2966 = vunpack.c.h.b16 %v2820
    %v2967 = vunpack.c.l.b16 %v2821
    %v2968 = vunpack.c.h.b16 %v2821
    %v2969 = vunpack.c.l.b16 %v2822
    %v2970 = vunpack.c.h.b16 %v2822
    %v2971 = vunpack.c.l.b16 %v2823
    %v2972 = vunpack.c.h.b16 %v2823
    %v2973 = vunpack.c.l.b16 %v2824
    %v2974 = vunpack.c.h.b16 %v2824
    %v2975 = vunpack.c.l.b16 %v2825
    %v2976 = vunpack.c.h.b16 %v2825
    %v2977 = vunpack.c.l.b16 %v2826
    %v2978 = vunpack.c.h.b16 %v2826
    %v2979 = vunpack.c.l.b16 %v2827
    %v2980 = vunpack.c.h.b16 %v2827
    %v2981 = vunpack.c.l.b16 %v2828
    %v2982 = vunpack.c.h.b16 %v2828
    %v2983 = vunpack.c.l.b16 %v2829
    %v2984 = vunpack.c.h.b16 %v2829
    %v2985 = vunpack.c.l.b16 %v2830
    %v2986 = vunpack.c.h.b16 %v2830
    %v2987 = vunpack.c.l.b16 %v2831
    %v2988 = vunpack.c.h.b16 %v2831
    %v2989 = vunpack.c.l.b16 %v2832
    %v2990 = vunpack.c.h.b16 %v2832
    %v2991 = vunpack.c.l.b16 %v2833
    %v2992 = vunpack.c.h.b16 %v2833
    %v2993 = vunpack.c.l.b16 %v2834
    %v2994 = vunpack.c.h.b16 %v2834
    %v2995 = vunpack.c.l.b16 %v2835
    %v2996 = vunpack.c.h.b16 %v2835
    %v2997 = vunpack.c.l.b16 %v2836
    %v2998 = vunpack.c.h.b16 %v2836
    %v2999 = vunpack.c.l.b16 %v2837
    %v3000 = vunpack.c.h.b16 %v2837
    %v3001 = vunpack.c.l.b16 %v2838
    %v3002 = vunpack.c.h.b16 %v2838
    %v3003 = vunpack.c.l.b16 %v2839
    %v3004 = vunpack.c.h.b16 %v2839
    %v3005 = vunpack.c.l.b16 %v2840
    %v3006 = vunpack.c.h.b16 %v2840
    %v3007 = vunpack.c.l.b16 %v2841
    %v3008 = vunpack.c.h.b16 %v2841
    %v3009 = vunpack.c.l.b16 %v2842
    %v3010 = vunpack.c.h.b16 %v2842
    %v3011 = vunpack.c.l.b16 %v2843
    %v3012 = vunpack.c.h.b16 %v2843
    %v3013 = vunpack.c.l.b16 %v2844
    %v3014 = vunpack.c.h.b16 %v2844
    %v3015 = vunpack.c.l.b16 %v2845
    %v3016 = vunpack.c.h.b16 %v2845
    %v3017 = vunpack.c.l.b16 %v2846
    %v3018 = vunpack.c.h.b16 %v2846
    %v3019 = vunpack.c.l.b16 %v2847
    %v3020 = vunpack.c.h.b16 %v2847
    %v3021 = vunpack.c.l.b16 %v2848
    %v3022 = vunpack.c.h.b16 %v2848
    %v3023 = vunpack.c.l.b16 %v2849
    %v3024 = vunpack.c.h.b16 %v2849
    %v3025 = vunpack.c.l.b16 %v2850
    %v3026 = vunpack.c.h.b16 %v2850
    %v3027 = vpack.c.b16 %v2933, %v2931
    %v3028 = vpack.c.b16 %v2934, %v2932
    %v3029 = vpack.c.b16 %v2937, %v2935
    %v3030 = vpack.c.b16 %v2938, %v2936
    %v3031 = vpack.c.b16 %v2941, %v2939
    %v3032 = vpack.c.b16 %v2942, %v2940
    %v3033 = vpack.c.b16 %v2945, %v2943
    %v3034 = vpack.c.b16 %v2946, %v2944
    %v3035 = vpack.c.b16 %v2949, %v2947
    %v3036 = vpack.c.b16 %v2950, %v2948
    %v3037 = vpack.c.b16 %v2953, %v2951
    %v3038 = vpack.c.b16 %v2954, %v2952
    %v3039 = vpack.c.b16 %v2957, %v2955
    %v3040 = vpack.c.b16 %v2958, %v2956
    %v3041 = vpack.c.b16 %v2961, %v2959
    %v3042 = vpack.c.b16 %v2962, %v2960
    %v3043 = vpack.c.b16 %v2965, %v2963
    %v3044 = vpack.c.b16 %v2966, %v2964
    %v3045 = vpack.c.b16 %v2969, %v2967
    %v3046 = vpack.c.b16 %v2970, %v2968
    %v3047 = vpack.c.b16 %v2973, %v2971
    %v3048 = vpack.c.b16 %v2974, %v2972
    %v3049 = vpack.c.b16 %v2977, %v2975
    %v3050 = vpack.c.b16 %v2978, %v2976
    %v3051 = vpack.c.b16 %v2981, %v2979
    %v3052 = vpack.c.b16 %v2982, %v2980
    %v3053 = vpack.c.b16 %v2985, %v2983
    %v3054 = vpack.c.b16 %v2986, %v2984
    %v3055 = vpack.c.b16 %v2989, %v2987
    %v3056 = vpack.c.b16 %v2990, %v2988
    %v3057 = vpack.c.b16 %v2993, %v2991
    %v3058 = vpack.c.b16 %v2994, %v2992
    %v3059 = vpack.c.b16 %v2997, %v2995
    %v3060 = vpack.c.b16 %v2998, %v2996
    %v3061 = vpack.c.b16 %v3001, %v2999
    %v3062 = vpack.c.b16 %v3002, %v3000
    %v3063 = vpack.c.b16 %v3005, %v3003
    %v3064 = vpack.c.b16 %v3006, %v3004
    %v3065 = vpack.c.b16 %v3009, %v3007
    %v3066 = vpack.c.b16 %v3010, %v3008
    %v3067 = vpack.c.b16 %v3013, %v3011
    %v3068 = vpack.c.b16 %v3014, %v3012
    %v3069 = vpack.c.b16 %v3017, %v3015
    %v3070 = vpack.c.b16 %v3018, %v3016
    %v3071 = vpack.c.b16 %v3021, %v3019
    %v3072 = vpack.c.b16 %v3022, %v3020
    %v3073 = vpack.c.b16 %v3025, %v3023
    %v3074 = vpack.c.b16 %v3026, %v3024
    %v3155 = vunpack.c.l.b16 %v2851
    %v3156 = vunpack.c.h.b16 %v2851
    %v3157 = vunpack.c.l.b16 %v2852
    %v3158 = vunpack.c.h.b16 %v2852
    %v3159 = vunpack.c.l.b16 %v2853
    %v3160 = vunpack.c.h.b16 %v2853
    %v3161 = vunpack.c.l.b16 %v2854
    %v3162 = vunpack.c.h.b16 %v2854
    %v3163 = vunpack.c.l.b16 %v2855
    %v3164 = vunpack.c.h.b16 %v2855
    %v3165 = vunpack.c.l.b16 %v2856
    %v3166 = vunpack.c.h.b16 %v2856
    %v3167 = vunpack.c.l.b16 %v2857
    %v3168 = vunpack.c.h.b16 %v2857
    %v3169 = vunpack.c.l.b16 %v2858
    %v3170 = vunpack.c.h.b16 %v2858
    %v3171 = vunpack.c.l.b16 %v2859
    %v3172 = vunpack.c.h.b16 %v2859
    %v3173 = vunpack.c.l.b16 %v2860
    %v3174 = vunpack.c.h.b16 %v2860
    %v3175 = vunpack.c.l.b16 %v2861
    %v3176 = vunpack.c.h.b16 %v2861
    %v3177 = vunpack.c.l.b16 %v2862
    %v3178 = vunpack.c.h.b16 %v2862
    %v3179 = vunpack.c.l.b16 %v2863
    %v3180 = vunpack.c.h.b16 %v2863
    %v3181 = vunpack.c.l.b16 %v2864
    %v3182 = vunpack.c.h.b16 %v2864
    %v3183 = vunpack.c.l.b16 %v2865
    %v3184 = vunpack.c.h.b16 %v2865
    %v3185 = vunpack.c.l.b16 %v2866
    %v3186 = vunpack.c.h.b16 %v2866
    %v3187 = vunpack.c.l.b16 %v2867
    %v3188 = vunpack.c.h.b16 %v2867
    %v3189 = vunpack.c.l.b16 %v2868
    %v3190 = vunpack.c.h.b16 %v2868
    %v3191 = vunpack.c.l.b16 %v2869
    %v3192 = vunpack.c.h.b16 %v2869
    %v3193 = vunpack.c.l.b16 %v2870
    %v3194 = vunpack.c.h.b16 %v2870
    %v3195 = vunpack.c.l.b16 %v2871
    %v3196 = vunpack.c.h.b16 %v2871
    %v3197 = vunpack.c.l.b16 %v2872
    %v3198 = vunpack.c.h.b16 %v2872
    %v3199 = vunpack.c.l.b16 %v2873
    %v3200 = vunpack.c.h.b16 %v2873
    %v3201 = vunpack.c.l.b16 %v2874
    %v3202 = vunpack.c.h.b16 %v2874
    %v3203 = vunpack.c.l.b16 %v2875
    %v3204 = vunpack.c.h.b16 %v2875
    %v3205 = vunpack.c.l.b16 %v2876
    %v3206 = vunpack.c.h.b16 %v2876
    %v3207 = vunpack.c.l.b16 %v2877
    %v3208 = vunpack.c.h.b16 %v2877
    %v3209 = vunpack.c.l.b16 %v2878
    %v3210 = vunpack.c.h.b16 %v2878
    %v3211 = vunpack.c.l.b16 %v2879
    %v3212 = vunpack.c.h.b16 %v2879
    %v3213 = vunpack.c.l.b16 %v2880
    %v3214 = vunpack.c.h.b16 %v2880
    %v3215 = vunpack.c.l.b16 %v2881
    %v3216 = vunpack.c.h.b16 %v2881
    %v3217 = vunpack.c.l.b16 %v2882
    %v3218 = vunpack.c.h.b16 %v2882
    %v3219 = vpack.c.b16 %v3157, %v3155
    %v3220 = vpack.c.b16 %v3158, %v3156
    %v3221 = vpack.c.b16 %v3161, %v3159
    %v3222 = vpack.c.b16 %v3162, %v3160
    %v3223 = vpack.c.b16 %v3165, %v3163
    %v3224 = vpack.c.b16 %v3166, %v3164
    %v3225 = vpack.c.b16 %v3169, %v3167
    %v3226 = vpack.c.b16 %v3170, %v3168
    %v3227 = vpack.c.b16 %v3173, %v3171
    %v3228 = vpack.c.b16 %v3174, %v3172
    %v3229 = vpack.c.b16 %v3177, %v3175
    %v3230 = vpack.c.b16 %v3178, %v3176
    %v3231 = vpack.c.b16 %v3181, %v3179
    %v3232 = vpack.c.b16 %v3182, %v3180
    %v3233 = vpack.c.b16 %v3185, %v3183
    %v3234 = vpack.c.b16 %v3186, %v3184
    %v3235 = vpack.c.b16 %v3189, %v3187
    %v3236 = vpack.c.b16 %v3190, %v3188
    %v3237 = vpack.c.b16 %v3193, %v3191
    %v3238 = vpack.c.b16 %v3194, %v3192
    %v3239 = vpack.c.b16 %v3197, %v3195
    %v3240 = vpack.c.b16 %v3198, %v3196
    %v3241 = vpack.c.b16 %v3201, %v3199
    %v3242 = vpack.c.b16 %v3202, %v3200
    %v3243 = vpack.c.b16 %v3205, %v3203
    %v3244 = vpack.c.b16 %v3206, %v3204
    %v3245 = vpack.c.b16 %v3209, %v3207
    %v3246 = vpack.c.b16 %v3210, %v3208
    %v3247 = vpack.c.b16 %v3213, %v3211
    %v3248 = vpack.c.b16 %v3214, %v3212
    %v3249 = vpack.c.b16 %v3217, %v3215
    %v3250 = vpack.c.b16 %v3218, %v3216
    %3283 = vmatprep.subr.bf16.mxu0 %v3220
    %3284 = vmatpush1.bf16.msra.mxu0 %v3219
    %3285 = vmatprep.subr.bf16.mxu0 %v3222
    %3286 = vmatpush1.bf16.msra.mxu0 %v3221
    %3287 = vmatprep.subr.bf16.mxu0 %v3224
    %3288 = vmatpush1.bf16.msra.mxu0 %v3223
    %3289 = vmatprep.subr.bf16.mxu0 %v3226
    %3290 = vmatpush1.bf16.msra.mxu0 %v3225
    %3291 = vmatprep.subr.bf16.mxu0 %v3228
    %3292 = vmatpush1.bf16.msra.mxu0 %v3227
    %3293 = vmatprep.subr.bf16.mxu0 %v3230
    %3294 = vmatpush1.bf16.msra.mxu0 %v3229
    %3295 = vmatprep.subr.bf16.mxu0 %v3232
    %3296 = vmatpush1.bf16.msra.mxu0 %v3231
    %3297 = vmatprep.subr.bf16.mxu0 %v3234
    %3298 = vmatpush1.bf16.msra.mxu0 %v3233
    %3299 = vmatprep.subr.bf16.mxu0 %v3236
    %3300 = vmatpush1.bf16.msra.mxu0 %v3235
    %3301 = vmatprep.subr.bf16.mxu0 %v3238
    %3302 = vmatpush1.bf16.msra.mxu0 %v3237
    %3303 = vmatprep.subr.bf16.mxu0 %v3240
    %3304 = vmatpush1.bf16.msra.mxu0 %v3239
    %3305 = vmatprep.subr.bf16.mxu0 %v3242
    %3306 = vmatpush1.bf16.msra.mxu0 %v3241
    %3307 = vmatprep.subr.bf16.mxu0 %v3244
    %3308 = vmatpush1.bf16.msra.mxu0 %v3243
    %3309 = vmatprep.subr.bf16.mxu0 %v3246
    %3310 = vmatpush1.bf16.msra.mxu0 %v3245
    %3311 = vmatprep.subr.bf16.mxu0 %v3248
    %3312 = vmatpush1.bf16.msra.mxu0 %v3247
    %3313 = vmatprep.subr.bf16.mxu0 %v3250
    %3314 = vmatpush1.bf16.msra.mxu0 %v3249
    %3315 = vmatprep.mubr.bf16.mxu0 %v3028
    %3316 = vmatmul.mubr.bf16.gmra.mrb[0].mxu0 %v3027
    %v3317 = vpop.f32.mrb[0].mxu0
    %v3318 = vadd.f32 0.0, %v3317
    %v3319 = vpop.f32.mrb[0].mxu0
    %v3320 = vadd.f32 0.0, %v3319
    %v3321 = vpop.f32.mrb[0].mxu0
    %v3322 = vadd.f32 0.0, %v3321
    %v3323 = vpop.f32.mrb[0].mxu0
    %v3324 = vadd.f32 0.0, %v3323
    %3325 = vmatprep.mubr.bf16.mxu0 %v3030
    %3326 = vmatmul.mubr.bf16.gmra.mrb[0].mxu0 %v3029
    %v3327 = vpop.f32.mrb[0].mxu0
    %v3328 = vadd.f32 0.0, %v3327
    %v3329 = vpop.f32.mrb[0].mxu0
    %v3330 = vadd.f32 0.0, %v3329
    %v3331 = vpop.f32.mrb[0].mxu0
    %v3332 = vadd.f32 0.0, %v3331
    %v3333 = vpop.f32.mrb[0].mxu0
    %v3334 = vadd.f32 0.0, %v3333
    %3335 = vmatprep.mubr.bf16.mxu0 %v3032
    %3336 = vmatmul.mubr.bf16.gmra.mrb[0].mxu0 %v3031
    %v3337 = vpop.f32.mrb[0].mxu0
    %v3338 = vadd.f32 0.0, %v3337
    %v3339 = vpop.f32.mrb[0].mxu0
    %v3340 = vadd.f32 0.0, %v3339
    %v3341 = vpop.f32.mrb[0].mxu0
    %v3342 = vadd.f32 0.0, %v3341
    %v3343 = vpop.f32.mrb[0].mxu0
    %v3344 = vadd.f32 0.0, %v3343
    %3345 = vmatprep.mubr.bf16.mxu0 %v3034
    %3346 = vmatmul.mubr.bf16.gmra.mrb[0].mxu0 %v3033
    %v3347 = vpop.f32.mrb[0].mxu0
    %v3348 = vadd.f32 0.0, %v3347
    %v3349 = vpop.f32.mrb[0].mxu0
    %v3350 = vadd.f32 0.0, %v3349
    %v3351 = vpop.f32.mrb[0].mxu0
    %v3352 = vadd.f32 0.0, %v3351
    %v3353 = vpop.f32.mrb[0].mxu0
    %v3354 = vadd.f32 0.0, %v3353
    %3355 = vmatprep.mubr.bf16.mxu0 %v3036
    %3356 = vmatmul.mubr.bf16.gmra.mrb[0].mxu0 %v3035
    %v3357 = vpop.f32.mrb[0].mxu0
    %v3358 = vadd.f32 0.0, %v3357
    %v3359 = vpop.f32.mrb[0].mxu0
    %v3360 = vadd.f32 0.0, %v3359
    %v3361 = vpop.f32.mrb[0].mxu0
    %v3362 = vadd.f32 0.0, %v3361
    %v3363 = vpop.f32.mrb[0].mxu0
    %v3364 = vadd.f32 0.0, %v3363
    %3365 = vmatprep.mubr.bf16.mxu0 %v3038
    %3366 = vmatmul.mubr.bf16.gmra.mrb[0].mxu0 %v3037
    %v3367 = vpop.f32.mrb[0].mxu0
    %v3368 = vadd.f32 0.0, %v3367
    %v3369 = vpop.f32.mrb[0].mxu0
    %v3370 = vadd.f32 0.0, %v3369
    %v3371 = vpop.f32.mrb[0].mxu0
    %v3372 = vadd.f32 0.0, %v3371
    %v3373 = vpop.f32.mrb[0].mxu0
    %v3374 = vadd.f32 0.0, %v3373
    %3375 = vmatprep.mubr.bf16.mxu0 %v3040
    %3376 = vmatmul.mubr.bf16.gmra.mrb[0].mxu0 %v3039
    %v3377 = vpop.f32.mrb[0].mxu0
    %v3378 = vadd.f32 0.0, %v3377
    %v3379 = vpop.f32.mrb[0].mxu0
    %v3380 = vadd.f32 0.0, %v3379
    %v3381 = vpop.f32.mrb[0].mxu0
    %v3382 = vadd.f32 0.0, %v3381
    %v3383 = vpop.f32.mrb[0].mxu0
    %v3384 = vadd.f32 0.0, %v3383
    %3385 = vmatprep.mubr.bf16.mxu0 %v3042
    %3386 = vmatmul.mubr.bf16.gmra.mrb[0].mxu0 %v3041
    %v3387 = vpop.f32.mrb[0].mxu0
    %v3388 = vadd.f32 0.0, %v3387
    %v3389 = vpop.f32.mrb[0].mxu0
    %v3390 = vadd.f32 0.0, %v3389
    %v3391 = vpop.f32.mrb[0].mxu0
    %v3392 = vadd.f32 0.0, %v3391
    %v3393 = vpop.f32.mrb[0].mxu0
    %v3394 = vadd.f32 0.0, %v3393
    %3395 = vmatprep.mubr.bf16.mxu0 %v3044
    %3396 = vmatmul.mubr.bf16.gmra.mrb[0].mxu0 %v3043
    %v3397 = vpop.f32.mrb[0].mxu0
    %v3398 = vadd.f32 0.0, %v3397
    %v3399 = vpop.f32.mrb[0].mxu0
    %v3400 = vadd.f32 0.0, %v3399
    %v3401 = vpop.f32.mrb[0].mxu0
    %v3402 = vadd.f32 0.0, %v3401
    %v3403 = vpop.f32.mrb[0].mxu0
    %v3404 = vadd.f32 0.0, %v3403
    %3405 = vmatprep.mubr.bf16.mxu0 %v3046
    %3406 = vmatmul.mubr.bf16.gmra.mrb[0].mxu0 %v3045
    %v3407 = vpop.f32.mrb[0].mxu0
    %v3408 = vadd.f32 0.0, %v3407
    %v3409 = vpop.f32.mrb[0].mxu0
    %v3410 = vadd.f32 0.0, %v3409
    %v3411 = vpop.f32.mrb[0].mxu0
    %v3412 = vadd.f32 0.0, %v3411
    %v3413 = vpop.f32.mrb[0].mxu0
    %v3414 = vadd.f32 0.0, %v3413
    %3415 = vmatprep.mubr.bf16.mxu0 %v3048
    %3416 = vmatmul.mubr.bf16.gmra.mrb[0].mxu0 %v3047
    %v3417 = vpop.f32.mrb[0].mxu0
    %v3418 = vadd.f32 0.0, %v3417
    %v3419 = vpop.f32.mrb[0].mxu0
    %v3420 = vadd.f32 0.0, %v3419
    %v3421 = vpop.f32.mrb[0].mxu0
    %v3422 = vadd.f32 0.0, %v3421
    %v3423 = vpop.f32.mrb[0].mxu0
    %v3424 = vadd.f32 0.0, %v3423
    %3425 = vmatprep.mubr.bf16.mxu0 %v3050
    %3426 = vmatmul.mubr.bf16.gmra.mrb[0].mxu0 %v3049
    %v3427 = vpop.f32.mrb[0].mxu0
    %v3428 = vadd.f32 0.0, %v3427
    %v3429 = vpop.f32.mrb[0].mxu0
    %v3430 = vadd.f32 0.0, %v3429
    %v3431 = vpop.f32.mrb[0].mxu0
    %v3432 = vadd.f32 0.0, %v3431
    %v3433 = vpop.f32.mrb[0].mxu0
    %v3434 = vadd.f32 0.0, %v3433
    %3435 = vmatprep.mubr.bf16.mxu0 %v3052
    %3436 = vmatmul.mubr.bf16.gmra.mrb[0].mxu0 %v3051
    %v3437 = vpop.f32.mrb[0].mxu0
    %v3438 = vadd.f32 0.0, %v3437
    %v3439 = vpop.f32.mrb[0].mxu0
    %v3440 = vadd.f32 0.0, %v3439
    %v3441 = vpop.f32.mrb[0].mxu0
    %v3442 = vadd.f32 0.0, %v3441
    %v3443 = vpop.f32.mrb[0].mxu0
    %v3444 = vadd.f32 0.0, %v3443
    %3445 = vmatprep.mubr.bf16.mxu0 %v3054
    %3446 = vmatmul.mubr.bf16.gmra.mrb[0].mxu0 %v3053
    %v3447 = vpop.f32.mrb[0].mxu0
    %v3448 = vadd.f32 0.0, %v3447
    %v3449 = vpop.f32.mrb[0].mxu0
    %v3450 = vadd.f32 0.0, %v3449
    %v3451 = vpop.f32.mrb[0].mxu0
    %v3452 = vadd.f32 0.0, %v3451
    %v3453 = vpop.f32.mrb[0].mxu0
    %v3454 = vadd.f32 0.0, %v3453
    %3455 = vmatprep.mubr.bf16.mxu0 %v3056
    %3456 = vmatmul.mubr.bf16.gmra.mrb[0].mxu0 %v3055
    %v3457 = vpop.f32.mrb[0].mxu0
    %v3458 = vadd.f32 0.0, %v3457
    %v3459 = vpop.f32.mrb[0].mxu0
    %v3460 = vadd.f32 0.0, %v3459
    %v3461 = vpop.f32.mrb[0].mxu0
    %v3462 = vadd.f32 0.0, %v3461
    %v3463 = vpop.f32.mrb[0].mxu0
    %v3464 = vadd.f32 0.0, %v3463
    %3465 = vmatprep.mubr.bf16.mxu0 %v3058
    %3466 = vmatmul.mubr.bf16.gmra.mrb[0].mxu0 %v3057
    %v3467 = vpop.f32.mrb[0].mxu0
    %v3468 = vadd.f32 0.0, %v3467
    %v3469 = vpop.f32.mrb[0].mxu0
    %v3470 = vadd.f32 0.0, %v3469
    %v3471 = vpop.f32.mrb[0].mxu0
    %v3472 = vadd.f32 0.0, %v3471
    %v3473 = vpop.f32.mrb[0].mxu0
    %v3474 = vadd.f32 0.0, %v3473
    %3475 = vmatprep.mubr.bf16.mxu0 %v3060
    %3476 = vmatmul.mubr.bf16.gmra.mrb[0].mxu0 %v3059
    %v3477 = vpop.f32.mrb[0].mxu0
    %v3478 = vadd.f32 0.0, %v3477
    %v3479 = vpop.f32.mrb[0].mxu0
    %v3480 = vadd.f32 0.0, %v3479
    %v3481 = vpop.f32.mrb[0].mxu0
    %v3482 = vadd.f32 0.0, %v3481
    %v3483 = vpop.f32.mrb[0].mxu0
    %v3484 = vadd.f32 0.0, %v3483
    %3485 = vmatprep.mubr.bf16.mxu0 %v3062
    %3486 = vmatmul.mubr.bf16.gmra.mrb[0].mxu0 %v3061
    %v3487 = vpop.f32.mrb[0].mxu0
    %v3488 = vadd.f32 0.0, %v3487
    %v3489 = vpop.f32.mrb[0].mxu0
    %v3490 = vadd.f32 0.0, %v3489
    %v3491 = vpop.f32.mrb[0].mxu0
    %v3492 = vadd.f32 0.0, %v3491
    %v3493 = vpop.f32.mrb[0].mxu0
    %v3494 = vadd.f32 0.0, %v3493
    %3495 = vmatprep.mubr.bf16.mxu0 %v3064
    %3496 = vmatmul.mubr.bf16.gmra.mrb[0].mxu0 %v3063
    %v3497 = vpop.f32.mrb[0].mxu0
    %v3498 = vadd.f32 0.0, %v3497
    %v3499 = vpop.f32.mrb[0].mxu0
    %v3500 = vadd.f32 0.0, %v3499
    %v3501 = vpop.f32.mrb[0].mxu0
    %v3502 = vadd.f32 0.0, %v3501
    %v3503 = vpop.f32.mrb[0].mxu0
    %v3504 = vadd.f32 0.0, %v3503
    %3505 = vmatprep.mubr.bf16.mxu0 %v3066
    %3506 = vmatmul.mubr.bf16.gmra.mrb[0].mxu0 %v3065
    %v3507 = vpop.f32.mrb[0].mxu0
    %v3508 = vadd.f32 0.0, %v3507
    %v3509 = vpop.f32.mrb[0].mxu0
    %v3510 = vadd.f32 0.0, %v3509
    %v3511 = vpop.f32.mrb[0].mxu0
    %v3512 = vadd.f32 0.0, %v3511
    %v3513 = vpop.f32.mrb[0].mxu0
    %v3514 = vadd.f32 0.0, %v3513
    %3515 = vmatprep.mubr.bf16.mxu0 %v3068
    %3516 = vmatmul.mubr.bf16.gmra.mrb[0].mxu0 %v3067
    %v3517 = vpop.f32.mrb[0].mxu0
    %v3518 = vadd.f32 0.0, %v3517
    %v3519 = vpop.f32.mrb[0].mxu0
    %v3520 = vadd.f32 0.0, %v3519
    %v3521 = vpop.f32.mrb[0].mxu0
    %v3522 = vadd.f32 0.0, %v3521
    %v3523 = vpop.f32.mrb[0].mxu0
    %v3524 = vadd.f32 0.0, %v3523
    %3525 = vmatprep.mubr.bf16.mxu0 %v3070
    %3526 = vmatmul.mubr.bf16.gmra.mrb[0].mxu0 %v3069
    %v3527 = vpop.f32.mrb[0].mxu0
    %v3528 = vadd.f32 0.0, %v3527
    %v3529 = vpop.f32.mrb[0].mxu0
    %v3530 = vadd.f32 0.0, %v3529
    %v3531 = vpop.f32.mrb[0].mxu0
    %v3532 = vadd.f32 0.0, %v3531
    %v3533 = vpop.f32.mrb[0].mxu0
    %v3534 = vadd.f32 0.0, %v3533
    %3535 = vmatprep.mubr.bf16.mxu0 %v3072
    %3536 = vmatmul.mubr.bf16.gmra.mrb[0].mxu0 %v3071
    %v3537 = vpop.f32.mrb[0].mxu0
    %v3538 = vadd.f32 0.0, %v3537
    %v3539 = vpop.f32.mrb[0].mxu0
    %v3540 = vadd.f32 0.0, %v3539
    %v3541 = vpop.f32.mrb[0].mxu0
    %v3542 = vadd.f32 0.0, %v3541
    %v3543 = vpop.f32.mrb[0].mxu0
    %v3544 = vadd.f32 0.0, %v3543
    %3545 = vmatprep.mubr.bf16.mxu0 %v3074
    %3546 = vmatmul.mubr.bf16.gmra.mrb[0].mxu0 %v3073
    %v3547 = vpop.f32.mrb[0].mxu0
    %v3548 = vadd.f32 0.0, %v3547
    %v3549 = vpop.f32.mrb[0].mxu0
    %v3550 = vadd.f32 0.0, %v3549
    %v3551 = vpop.f32.mrb[0].mxu0
    %v3552 = vadd.f32 0.0, %v3551
    %v3553 = vpop.f32.mrb[0].mxu0
    %v3554 = vadd.f32 0.0, %v3553
    %3555 = vdwg.mxu0
    %v3556 = vadd.f32 %v2565, %v3318
    %v3557 = vadd.f32 %v2567, %v3320
    %v3558 = vadd.f32 %v2569, %v3322
    %v3559 = vadd.f32 %v2571, %v3324
    %v3560 = vadd.f32 %v2575, %v3328
    %v3561 = vadd.f32 %v2577, %v3330
    %v3562 = vadd.f32 %v2579, %v3332
    %v3563 = vadd.f32 %v2581, %v3334
    %v3564 = vadd.f32 %v2585, %v3338
    %v3565 = vadd.f32 %v2587, %v3340
    %v3566 = vadd.f32 %v2589, %v3342
    %v3567 = vadd.f32 %v2591, %v3344
    %v3568 = vadd.f32 %v2595, %v3348
    %v3569 = vadd.f32 %v2597, %v3350
    %v3570 = vadd.f32 %v2599, %v3352
    %v3571 = vadd.f32 %v2601, %v3354
    %v3572 = vadd.f32 %v2605, %v3358
    %v3573 = vadd.f32 %v2607, %v3360
    %v3574 = vadd.f32 %v2609, %v3362
    %v3575 = vadd.f32 %v2611, %v3364
    %v3576 = vadd.f32 %v2615, %v3368
    %v3577 = vadd.f32 %v2617, %v3370
    %v3578 = vadd.f32 %v2619, %v3372
    %v3579 = vadd.f32 %v2621, %v3374
    %v3580 = vadd.f32 %v2625, %v3378
    %v3581 = vadd.f32 %v2627, %v3380
    %v3582 = vadd.f32 %v2629, %v3382
    %v3583 = vadd.f32 %v2631, %v3384
    %v3584 = vadd.f32 %v2635, %v3388
    %v3585 = vadd.f32 %v2637, %v3390
    %v3586 = vadd.f32 %v2639, %v3392
    %v3587 = vadd.f32 %v2641, %v3394
    %v3588 = vadd.f32 %v2645, %v3398
    %v3589 = vadd.f32 %v2647, %v3400
    %v3590 = vadd.f32 %v2649, %v3402
    %v3591 = vadd.f32 %v2651, %v3404
    %v3592 = vadd.f32 %v2655, %v3408
    %v3593 = vadd.f32 %v2657, %v3410
    %v3594 = vadd.f32 %v2659, %v3412
    %v3595 = vadd.f32 %v2661, %v3414
    %v3596 = vadd.f32 %v2665, %v3418
    %v3597 = vadd.f32 %v2667, %v3420
    %v3598 = vadd.f32 %v2669, %v3422
    %v3599 = vadd.f32 %v2671, %v3424
    %v3600 = vadd.f32 %v2675, %v3428
    %v3601 = vadd.f32 %v2677, %v3430
    %v3602 = vadd.f32 %v2679, %v3432
    %v3603 = vadd.f32 %v2681, %v3434
    %v3604 = vadd.f32 %v2685, %v3438
    %v3605 = vadd.f32 %v2687, %v3440
    %v3606 = vadd.f32 %v2689, %v3442
    %v3607 = vadd.f32 %v2691, %v3444
    %v3608 = vadd.f32 %v2695, %v3448
    %v3609 = vadd.f32 %v2697, %v3450
    %v3610 = vadd.f32 %v2699, %v3452
    %v3611 = vadd.f32 %v2701, %v3454
    %v3612 = vadd.f32 %v2705, %v3458
    %v3613 = vadd.f32 %v2707, %v3460
    %v3614 = vadd.f32 %v2709, %v3462
    %v3615 = vadd.f32 %v2711, %v3464
    %v3616 = vadd.f32 %v2715, %v3468
    %v3617 = vadd.f32 %v2717, %v3470
    %v3618 = vadd.f32 %v2719, %v3472
    %v3619 = vadd.f32 %v2721, %v3474
    %v3620 = vadd.f32 %v2725, %v3478
    %v3621 = vadd.f32 %v2727, %v3480
    %v3622 = vadd.f32 %v2729, %v3482
    %v3623 = vadd.f32 %v2731, %v3484
    %v3624 = vadd.f32 %v2735, %v3488
    %v3625 = vadd.f32 %v2737, %v3490
    %v3626 = vadd.f32 %v2739, %v3492
    %v3627 = vadd.f32 %v2741, %v3494
    %v3628 = vadd.f32 %v2745, %v3498
    %v3629 = vadd.f32 %v2747, %v3500
    %v3630 = vadd.f32 %v2749, %v3502
    %v3631 = vadd.f32 %v2751, %v3504
    %v3632 = vadd.f32 %v2755, %v3508
    %v3633 = vadd.f32 %v2757, %v3510
    %v3634 = vadd.f32 %v2759, %v3512
    %v3635 = vadd.f32 %v2761, %v3514
    %v3636 = vadd.f32 %v2765, %v3518
    %v3637 = vadd.f32 %v2767, %v3520
    %v3638 = vadd.f32 %v2769, %v3522
    %v3639 = vadd.f32 %v2771, %v3524
    %v3640 = vadd.f32 %v2775, %v3528
    %v3641 = vadd.f32 %v2777, %v3530
    %v3642 = vadd.f32 %v2779, %v3532
    %v3643 = vadd.f32 %v2781, %v3534
    %v3644 = vadd.f32 %v2785, %v3538
    %v3645 = vadd.f32 %v2787, %v3540
    %v3646 = vadd.f32 %v2789, %v3542
    %v3647 = vadd.f32 %v2791, %v3544
    %v3648 = vadd.f32 %v2795, %v3548
    %v3649 = vadd.f32 %v2797, %v3550
    %v3650 = vadd.f32 %v2799, %v3552
    %v3651 = vadd.f32 %v2801, %v3554
    %v3652 = vld [vmem:[#allocation2 + $0x30] sm:$0x88]
    %v3653 = vld [vmem:[#allocation2 + $0x38] sm:$0xff]
    %v3654 = vld [vmem:[#allocation2 + $0x40] sm:$0xff]
    %v3655 = vld [vmem:[#allocation2 + $0x48] sm:$0xff]
    %v3656 = vld [vmem:[#allocation2 + $0x50] sm:$0xff]
    %v3657 = vld [vmem:[#allocation2 + $0x58] sm:$0xff]
    %v3658 = vld [vmem:[#allocation2 + $0x60] sm:$0xff]
    %v3659 = vld [vmem:[#allocation2 + $0x68] sm:$0xff]
    %v3660 = vld [vmem:[#allocation2 + $0x70] sm:$0xff]
    %v3661 = vld [vmem:[#allocation2 + $0x78] sm:$0xff]
    %v3662 = vld [vmem:[#allocation2 + $0x80] sm:$0xff]
    %v3663 = vld [vmem:[#allocation2 + $0x88] sm:$0xff]
    %v3664 = vld [vmem:[#allocation2 + $0x90] sm:$0xff]
    %v3665 = vld [vmem:[#allocation2 + $0x98] sm:$0xff]
    %v3666 = vld [vmem:[#allocation2 + $0xa0] sm:$0xff]
    %v3667 = vld [vmem:[#allocation2 + $0xa8] sm:$0xff]
    %v3668 = vld [vmem:[#allocation2 + $0xb0] sm:$0xff]
    %v3669 = vld [vmem:[#allocation2 + $0xb8] sm:$0xff]
    %v3670 = vld [vmem:[#allocation2 + $0xc0] sm:$0xff]
    %v3671 = vld [vmem:[#allocation2 + $0xc8] sm:$0xff]
    %v3672 = vld [vmem:[#allocation2 + $0xd0] sm:$0xff]
    %v3673 = vld [vmem:[#allocation2 + $0xd8] sm:$0xff]
    %v3674 = vld [vmem:[#allocation2 + $0xe0] sm:$0xff]
    %v3675 = vld [vmem:[#allocation2 + $0xe8] sm:$0xff]
    %v3676 = vld [vmem:[#allocation2 + $0xf0] sm:$0xff]
    %v3677 = vld [vmem:[#allocation2 + $0xf8] sm:$0xff]
    %v3678 = vld [vmem:[#allocation2 + $0x100] sm:$0xff]
    %v3679 = vld [vmem:[#allocation2 + $0x108] sm:$0xff]
    %v3680 = vld [vmem:[#allocation2 + $0x110] sm:$0xff]
    %v3681 = vld [vmem:[#allocation2 + $0x118] sm:$0xff]
    %v3682 = vld [vmem:[#allocation2 + $0x120] sm:$0xff]
    %v3683 = vld [vmem:[#allocation2 + $0x128] sm:$0xff]
    %v3684 = vld [vmem:[#allocation2 + $0x130] sm:$0xff]
    %v3685 = vld [vmem:[#allocation2 + $0x138] sm:$0xff]
    %v3686 = vld [vmem:[#allocation2 + $0x140] sm:$0xff]
    %v3687 = vld [vmem:[#allocation2 + $0x148] sm:$0xff]
    %v3688 = vld [vmem:[#allocation2 + $0x150] sm:$0xff]
    %v3689 = vld [vmem:[#allocation2 + $0x158] sm:$0xff]
    %v3690 = vld [vmem:[#allocation2 + $0x160] sm:$0xff]
    %v3691 = vld [vmem:[#allocation2 + $0x168] sm:$0xff]
    %v3692 = vld [vmem:[#allocation2 + $0x170] sm:$0xff]
    %v3693 = vld [vmem:[#allocation2 + $0x178] sm:$0xff]
    %v3694 = vld [vmem:[#allocation2 + $0x180] sm:$0xff]
    %v3695 = vld [vmem:[#allocation2 + $0x188] sm:$0xff]
    %v3696 = vld [vmem:[#allocation2 + $0x190] sm:$0xff]
    %v3697 = vld [vmem:[#allocation2 + $0x198] sm:$0xff]
    %v3698 = vld [vmem:[#allocation2 + $0x1a0] sm:$0xff]
    %v3699 = vld [vmem:[#allocation2 + $0x1a8] sm:$0xff]
    %v3700 = vld [vmem:[#allocation2 + $0x1b0] sm:$0x77]
    %v3701 = vld [vmem:[#allocation11 + $0x300] sm:$0xff]
    %v3702 = vld [vmem:[#allocation11 + $0x308] sm:$0xff]
    %v3703 = vld [vmem:[#allocation11 + $0x310] sm:$0xff]
    %v3704 = vld [vmem:[#allocation11 + $0x318] sm:$0xff]
    %v3705 = vld [vmem:[#allocation11 + $0x320] sm:$0xff]
    %v3706 = vld [vmem:[#allocation11 + $0x328] sm:$0xff]
    %v3707 = vld [vmem:[#allocation11 + $0x330] sm:$0xff]
    %v3708 = vld [vmem:[#allocation11 + $0x338] sm:$0xff]
    %v3709 = vld [vmem:[#allocation11 + $0x340] sm:$0xff]
    %v3710 = vld [vmem:[#allocation11 + $0x348] sm:$0xff]
    %v3711 = vld [vmem:[#allocation11 + $0x350] sm:$0xff]
    %v3712 = vld [vmem:[#allocation11 + $0x358] sm:$0xff]
    %v3713 = vld [vmem:[#allocation11 + $0x360] sm:$0xff]
    %v3714 = vld [vmem:[#allocation11 + $0x368] sm:$0xff]
    %v3715 = vld [vmem:[#allocation11 + $0x370] sm:$0xff]
    %v3716 = vld [vmem:[#allocation11 + $0x378] sm:$0xff]
    %v3717 = vld [vmem:[#allocation11 + $0x380] sm:$0xff]
    %v3718 = vld [vmem:[#allocation11 + $0x388] sm:$0xff]
    %v3719 = vld [vmem:[#allocation11 + $0x390] sm:$0xff]
    %v3720 = vld [vmem:[#allocation11 + $0x398] sm:$0xff]
    %v3721 = vld [vmem:[#allocation11 + $0x3a0] sm:$0xff]
    %v3722 = vld [vmem:[#allocation11 + $0x3a8] sm:$0xff]
    %v3723 = vld [vmem:[#allocation11 + $0x3b0] sm:$0xff]
    %v3724 = vld [vmem:[#allocation11 + $0x3b8] sm:$0xff]
    %v3725 = vld [vmem:[#allocation11 + $0x3c0] sm:$0xff]
    %v3726 = vld [vmem:[#allocation11 + $0x3c8] sm:$0xff]
    %v3727 = vld [vmem:[#allocation11 + $0x3d0] sm:$0xff]
    %v3728 = vld [vmem:[#allocation11 + $0x3d8] sm:$0xff]
    %v3729 = vld [vmem:[#allocation11 + $0x3e0] sm:$0xff]
    %v3730 = vld [vmem:[#allocation11 + $0x3e8] sm:$0xff]
    %v3731 = vld [vmem:[#allocation11 + $0x3f0] sm:$0xff]
    %v3732 = vld [vmem:[#allocation11 + $0x3f8] sm:$0xff]
    %v3782 = vunpack.c.l.b16 %v3652
    %v3783 = vunpack.c.h.b16 %v3652
    %v3784 = vunpack.c.l.b16 %v3653
    %v3785 = vunpack.c.h.b16 %v3653
    %v3786 = vunpack.c.l.b16 %v3654
    %v3787 = vunpack.c.h.b16 %v3654
    %v3788 = vunpack.c.l.b16 %v3655
    %v3789 = vunpack.c.h.b16 %v3655
    %v3790 = vunpack.c.l.b16 %v3656
    %v3791 = vunpack.c.h.b16 %v3656
    %v3792 = vunpack.c.l.b16 %v3657
    %v3793 = vunpack.c.h.b16 %v3657
    %v3794 = vunpack.c.l.b16 %v3658
    %v3795 = vunpack.c.h.b16 %v3658
    %v3796 = vunpack.c.l.b16 %v3659
    %v3797 = vunpack.c.h.b16 %v3659
    %v3798 = vunpack.c.l.b16 %v3660
    %v3799 = vunpack.c.h.b16 %v3660
    %v3800 = vunpack.c.l.b16 %v3661
    %v3801 = vunpack.c.h.b16 %v3661
    %v3802 = vunpack.c.l.b16 %v3662
    %v3803 = vunpack.c.h.b16 %v3662
    %v3804 = vunpack.c.l.b16 %v3663
    %v3805 = vunpack.c.h.b16 %v3663
    %v3806 = vunpack.c.l.b16 %v3664
    %v3807 = vunpack.c.h.b16 %v3664
    %v3808 = vunpack.c.l.b16 %v3665
    %v3809 = vunpack.c.h.b16 %v3665
    %v3810 = vunpack.c.l.b16 %v3666
    %v3811 = vunpack.c.h.b16 %v3666
    %v3812 = vunpack.c.l.b16 %v3667
    %v3813 = vunpack.c.h.b16 %v3667
    %v3814 = vunpack.c.l.b16 %v3668
    %v3815 = vunpack.c.h.b16 %v3668
    %v3816 = vunpack.c.l.b16 %v3669
    %v3817 = vunpack.c.h.b16 %v3669
    %v3818 = vunpack.c.l.b16 %v3670
    %v3819 = vunpack.c.h.b16 %v3670
    %v3820 = vunpack.c.l.b16 %v3671
    %v3821 = vunpack.c.h.b16 %v3671
    %v3822 = vunpack.c.l.b16 %v3672
    %v3823 = vunpack.c.h.b16 %v3672
    %v3824 = vunpack.c.l.b16 %v3673
    %v3825 = vunpack.c.h.b16 %v3673
    %v3826 = vunpack.c.l.b16 %v3674
    %v3827 = vunpack.c.h.b16 %v3674
    %v3828 = vunpack.c.l.b16 %v3675
    %v3829 = vunpack.c.h.b16 %v3675
    %v3830 = vunpack.c.l.b16 %v3676
    %v3831 = vunpack.c.h.b16 %v3676
    %v3832 = vunpack.c.l.b16 %v3677
    %v3833 = vunpack.c.h.b16 %v3677
    %v3834 = vunpack.c.l.b16 %v3678
    %v3835 = vunpack.c.h.b16 %v3678
    %v3836 = vunpack.c.l.b16 %v3679
    %v3837 = vunpack.c.h.b16 %v3679
    %v3838 = vunpack.c.l.b16 %v3680
    %v3839 = vunpack.c.h.b16 %v3680
    %v3840 = vunpack.c.l.b16 %v3681
    %v3841 = vunpack.c.h.b16 %v3681
    %v3842 = vunpack.c.l.b16 %v3682
    %v3843 = vunpack.c.h.b16 %v3682
    %v3844 = vunpack.c.l.b16 %v3683
    %v3845 = vunpack.c.h.b16 %v3683
    %v3846 = vunpack.c.l.b16 %v3684
    %v3847 = vunpack.c.h.b16 %v3684
    %v3848 = vunpack.c.l.b16 %v3685
    %v3849 = vunpack.c.h.b16 %v3685
    %v3850 = vunpack.c.l.b16 %v3686
    %v3851 = vunpack.c.h.b16 %v3686
    %v3852 = vunpack.c.l.b16 %v3687
    %v3853 = vunpack.c.h.b16 %v3687
    %v3854 = vunpack.c.l.b16 %v3688
    %v3855 = vunpack.c.h.b16 %v3688
    %v3856 = vunpack.c.l.b16 %v3689
    %v3857 = vunpack.c.h.b16 %v3689
    %v3858 = vunpack.c.l.b16 %v3690
    %v3859 = vunpack.c.h.b16 %v3690
    %v3860 = vunpack.c.l.b16 %v3691
    %v3861 = vunpack.c.h.b16 %v3691
    %v3862 = vunpack.c.l.b16 %v3692
    %v3863 = vunpack.c.h.b16 %v3692
    %v3864 = vunpack.c.l.b16 %v3693
    %v3865 = vunpack.c.h.b16 %v3693
    %v3866 = vunpack.c.l.b16 %v3694
    %v3867 = vunpack.c.h.b16 %v3694
    %v3868 = vunpack.c.l.b16 %v3695
    %v3869 = vunpack.c.h.b16 %v3695
    %v3870 = vunpack.c.l.b16 %v3696
    %v3871 = vunpack.c.h.b16 %v3696
    %v3872 = vunpack.c.l.b16 %v3697
    %v3873 = vunpack.c.h.b16 %v3697
    %v3874 = vunpack.c.l.b16 %v3698
    %v3875 = vunpack.c.h.b16 %v3698
    %v3876 = vunpack.c.l.b16 %v3699
    %v3877 = vunpack.c.h.b16 %v3699
    %v3878 = vunpack.c.l.b16 %v3700
    %v3879 = vunpack.c.h.b16 %v3700
    %v3880 = vpack.c.b16 %v3784, %v3782
    %v3881 = vpack.c.b16 %v3785, %v3783
    %v3882 = vpack.c.b16 %v3788, %v3786
    %v3883 = vpack.c.b16 %v3789, %v3787
    %v3884 = vpack.c.b16 %v3792, %v3790
    %v3885 = vpack.c.b16 %v3793, %v3791
    %v3886 = vpack.c.b16 %v3796, %v3794
    %v3887 = vpack.c.b16 %v3797, %v3795
    %v3888 = vpack.c.b16 %v3800, %v3798
    %v3889 = vpack.c.b16 %v3801, %v3799
    %v3890 = vpack.c.b16 %v3804, %v3802
    %v3891 = vpack.c.b16 %v3805, %v3803
    %v3892 = vpack.c.b16 %v3808, %v3806
    %v3893 = vpack.c.b16 %v3809, %v3807
    %v3894 = vpack.c.b16 %v3812, %v3810
    %v3895 = vpack.c.b16 %v3813, %v3811
    %v3896 = vpack.c.b16 %v3816, %v3814
    %v3897 = vpack.c.b16 %v3817, %v3815
    %v3898 = vpack.c.b16 %v3820, %v3818
    %v3899 = vpack.c.b16 %v3821, %v3819
    %v3900 = vpack.c.b16 %v3824, %v3822
    %v3901 = vpack.c.b16 %v3825, %v3823
    %v3902 = vpack.c.b16 %v3828, %v3826
    %v3903 = vpack.c.b16 %v3829, %v3827
    %v3904 = vpack.c.b16 %v3832, %v3830
    %v3905 = vpack.c.b16 %v3833, %v3831
    %v3906 = vpack.c.b16 %v3836, %v3834
    %v3907 = vpack.c.b16 %v3837, %v3835
    %v3908 = vpack.c.b16 %v3840, %v3838
    %v3909 = vpack.c.b16 %v3841, %v3839
    %v3910 = vpack.c.b16 %v3844, %v3842
    %v3911 = vpack.c.b16 %v3845, %v3843
    %v3912 = vpack.c.b16 %v3848, %v3846
    %v3913 = vpack.c.b16 %v3849, %v3847
    %v3914 = vpack.c.b16 %v3852, %v3850
    %v3915 = vpack.c.b16 %v3853, %v3851
    %v3916 = vpack.c.b16 %v3856, %v3854
    %v3917 = vpack.c.b16 %v3857, %v3855
    %v3918 = vpack.c.b16 %v3860, %v3858
    %v3919 = vpack.c.b16 %v3861, %v3859
    %v3920 = vpack.c.b16 %v3864, %v3862
    %v3921 = vpack.c.b16 %v3865, %v3863
    %v3922 = vpack.c.b16 %v3868, %v3866
    %v3923 = vpack.c.b16 %v3869, %v3867
    %v3924 = vpack.c.b16 %v3872, %v3870
    %v3925 = vpack.c.b16 %v3873, %v3871
    %v3926 = vpack.c.b16 %v3876, %v3874
    %v3927 = vpack.c.b16 %v3877, %v3875
    %v3928 = vpack.c.b16 %v3878, %v3878
    %v3929 = vpack.c.b16 %v3879, %v3879
    %v3930 = vrot.slane %v3880, 3
    %v3931 = vrot.slane %v3882, 3
    %v3932 = vsel %vm1737, %v3930, %v3931
    %v3933 = vrot.slane %v3881, 3
    %v3934 = vrot.slane %v3883, 3
    %v3935 = vsel %vm1737, %v3933, %v3934
    %v3936 = vrot.slane %v3884, 3
    %v3937 = vsel %vm1737, %v3931, %v3936
    %v3938 = vrot.slane %v3885, 3
    %v3939 = vsel %vm1737, %v3934, %v3938
    %v3940 = vrot.slane %v3886, 3
    %v3941 = vsel %vm1737, %v3936, %v3940
    %v3942 = vrot.slane %v3887, 3
    %v3943 = vsel %vm1737, %v3938, %v3942
    %v3944 = vrot.slane %v3888, 3
    %v3945 = vsel %vm1737, %v3940, %v3944
    %v3946 = vrot.slane %v3889, 3
    %v3947 = vsel %vm1737, %v3942, %v3946
    %v3948 = vrot.slane %v3890, 3
    %v3949 = vsel %vm1737, %v3944, %v3948
    %v3950 = vrot.slane %v3891, 3
    %v3951 = vsel %vm1737, %v3946, %v3950
    %v3952 = vrot.slane %v3892, 3
    %v3953 = vsel %vm1737, %v3948, %v3952
    %v3954 = vrot.slane %v3893, 3
    %v3955 = vsel %vm1737, %v3950, %v3954
    %v3956 = vrot.slane %v3894, 3
    %v3957 = vsel %vm1737, %v3952, %v3956
    %v3958 = vrot.slane %v3895, 3
    %v3959 = vsel %vm1737, %v3954, %v3958
    %v3960 = vrot.slane %v3896, 3
    %v3961 = vsel %vm1737, %v3956, %v3960
    %v3962 = vrot.slane %v3897, 3
    %v3963 = vsel %vm1737, %v3958, %v3962
    %v3964 = vrot.slane %v3898, 3
    %v3965 = vsel %vm1737, %v3960, %v3964
    %v3966 = vrot.slane %v3899, 3
    %v3967 = vsel %vm1737, %v3962, %v3966
    %v3968 = vrot.slane %v3900, 3
    %v3969 = vsel %vm1737, %v3964, %v3968
    %v3970 = vrot.slane %v3901, 3
    %v3971 = vsel %vm1737, %v3966, %v3970
    %v3972 = vrot.slane %v3902, 3
    %v3973 = vsel %vm1737, %v3968, %v3972
    %v3974 = vrot.slane %v3903, 3
    %v3975 = vsel %vm1737, %v3970, %v3974
    %v3976 = vrot.slane %v3904, 3
    %v3977 = vsel %vm1737, %v3972, %v3976
    %v3978 = vrot.slane %v3905, 3
    %v3979 = vsel %vm1737, %v3974, %v3978
    %v3980 = vrot.slane %v3906, 3
    %v3981 = vsel %vm1737, %v3976, %v3980
    %v3982 = vrot.slane %v3907, 3
    %v3983 = vsel %vm1737, %v3978, %v3982
    %v3984 = vrot.slane %v3908, 3
    %v3985 = vsel %vm1737, %v3980, %v3984
    %v3986 = vrot.slane %v3909, 3
    %v3987 = vsel %vm1737, %v3982, %v3986
    %v3988 = vrot.slane %v3910, 3
    %v3989 = vsel %vm1737, %v3984, %v3988
    %v3990 = vrot.slane %v3911, 3
    %v3991 = vsel %vm1737, %v3986, %v3990
    %v3992 = vrot.slane %v3912, 3
    %v3993 = vsel %vm1737, %v3988, %v3992
    %v3994 = vrot.slane %v3913, 3
    %v3995 = vsel %vm1737, %v3990, %v3994
    %v3996 = vrot.slane %v3914, 3
    %v3997 = vsel %vm1737, %v3992, %v3996
    %v3998 = vrot.slane %v3915, 3
    %v3999 = vsel %vm1737, %v3994, %v3998
    %v4000 = vrot.slane %v3916, 3
    %v4001 = vsel %vm1737, %v3996, %v4000
    %v4002 = vrot.slane %v3917, 3
    %v4003 = vsel %vm1737, %v3998, %v4002
    %v4004 = vrot.slane %v3918, 3
    %v4005 = vsel %vm1737, %v4000, %v4004
    %v4006 = vrot.slane %v3919, 3
    %v4007 = vsel %vm1737, %v4002, %v4006
    %v4008 = vrot.slane %v3920, 3
    %v4009 = vsel %vm1737, %v4004, %v4008
    %v4010 = vrot.slane %v3921, 3
    %v4011 = vsel %vm1737, %v4006, %v4010
    %v4012 = vrot.slane %v3922, 3
    %v4013 = vsel %vm1737, %v4008, %v4012
    %v4014 = vrot.slane %v3923, 3
    %v4015 = vsel %vm1737, %v4010, %v4014
    %v4016 = vrot.slane %v3924, 3
    %v4017 = vsel %vm1737, %v4012, %v4016
    %v4018 = vrot.slane %v3925, 3
    %v4019 = vsel %vm1737, %v4014, %v4018
    %v4020 = vrot.slane %v3926, 3
    %v4021 = vsel %vm1737, %v4016, %v4020
    %v4022 = vrot.slane %v3927, 3
    %v4023 = vsel %vm1737, %v4018, %v4022
    %v4024 = vrot.slane %v3928, 3
    %v4025 = vsel %vm1737, %v4020, %v4024
    %v4026 = vrot.slane %v3929, 3
    %v4027 = vsel %vm1737, %v4022, %v4026
    %v4108 = vunpack.c.l.b16 %v3701
    %v4109 = vunpack.c.h.b16 %v3701
    %v4110 = vunpack.c.l.b16 %v3702
    %v4111 = vunpack.c.h.b16 %v3702
    %v4112 = vunpack.c.l.b16 %v3703
    %v4113 = vunpack.c.h.b16 %v3703
    %v4114 = vunpack.c.l.b16 %v3704
    %v4115 = vunpack.c.h.b16 %v3704
    %v4116 = vunpack.c.l.b16 %v3705
    %v4117 = vunpack.c.h.b16 %v3705
    %v4118 = vunpack.c.l.b16 %v3706
    %v4119 = vunpack.c.h.b16 %v3706
    %v4120 = vunpack.c.l.b16 %v3707
    %v4121 = vunpack.c.h.b16 %v3707
    %v4122 = vunpack.c.l.b16 %v3708
    %v4123 = vunpack.c.h.b16 %v3708
    %v4124 = vunpack.c.l.b16 %v3709
    %v4125 = vunpack.c.h.b16 %v3709
    %v4126 = vunpack.c.l.b16 %v3710
    %v4127 = vunpack.c.h.b16 %v3710
    %v4128 = vunpack.c.l.b16 %v3711
    %v4129 = vunpack.c.h.b16 %v3711
    %v4130 = vunpack.c.l.b16 %v3712
    %v4131 = vunpack.c.h.b16 %v3712
    %v4132 = vunpack.c.l.b16 %v3713
    %v4133 = vunpack.c.h.b16 %v3713
    %v4134 = vunpack.c.l.b16 %v3714
    %v4135 = vunpack.c.h.b16 %v3714
    %v4136 = vunpack.c.l.b16 %v3715
    %v4137 = vunpack.c.h.b16 %v3715
    %v4138 = vunpack.c.l.b16 %v3716
    %v4139 = vunpack.c.h.b16 %v3716
    %v4140 = vunpack.c.l.b16 %v3717
    %v4141 = vunpack.c.h.b16 %v3717
    %v4142 = vunpack.c.l.b16 %v3718
    %v4143 = vunpack.c.h.b16 %v3718
    %v4144 = vunpack.c.l.b16 %v3719
    %v4145 = vunpack.c.h.b16 %v3719
    %v4146 = vunpack.c.l.b16 %v3720
    %v4147 = vunpack.c.h.b16 %v3720
    %v4148 = vunpack.c.l.b16 %v3721
    %v4149 = vunpack.c.h.b16 %v3721
    %v4150 = vunpack.c.l.b16 %v3722
    %v4151 = vunpack.c.h.b16 %v3722
    %v4152 = vunpack.c.l.b16 %v3723
    %v4153 = vunpack.c.h.b16 %v3723
    %v4154 = vunpack.c.l.b16 %v3724
    %v4155 = vunpack.c.h.b16 %v3724
    %v4156 = vunpack.c.l.b16 %v3725
    %v4157 = vunpack.c.h.b16 %v3725
    %v4158 = vunpack.c.l.b16 %v3726
    %v4159 = vunpack.c.h.b16 %v3726
    %v4160 = vunpack.c.l.b16 %v3727
    %v4161 = vunpack.c.h.b16 %v3727
    %v4162 = vunpack.c.l.b16 %v3728
    %v4163 = vunpack.c.h.b16 %v3728
    %v4164 = vunpack.c.l.b16 %v3729
    %v4165 = vunpack.c.h.b16 %v3729
    %v4166 = vunpack.c.l.b16 %v3730
    %v4167 = vunpack.c.h.b16 %v3730
    %v4168 = vunpack.c.l.b16 %v3731
    %v4169 = vunpack.c.h.b16 %v3731
    %v4170 = vunpack.c.l.b16 %v3732
    %v4171 = vunpack.c.h.b16 %v3732
    %v4172 = vpack.c.b16 %v4110, %v4108
    %v4173 = vpack.c.b16 %v4111, %v4109
    %v4174 = vpack.c.b16 %v4114, %v4112
    %v4175 = vpack.c.b16 %v4115, %v4113
    %v4176 = vpack.c.b16 %v4118, %v4116
    %v4177 = vpack.c.b16 %v4119, %v4117
    %v4178 = vpack.c.b16 %v4122, %v4120
    %v4179 = vpack.c.b16 %v4123, %v4121
    %v4180 = vpack.c.b16 %v4126, %v4124
    %v4181 = vpack.c.b16 %v4127, %v4125
    %v4182 = vpack.c.b16 %v4130, %v4128
    %v4183 = vpack.c.b16 %v4131, %v4129
    %v4184 = vpack.c.b16 %v4134, %v4132
    %v4185 = vpack.c.b16 %v4135, %v4133
    %v4186 = vpack.c.b16 %v4138, %v4136
    %v4187 = vpack.c.b16 %v4139, %v4137
    %v4188 = vpack.c.b16 %v4142, %v4140
    %v4189 = vpack.c.b16 %v4143, %v4141
    %v4190 = vpack.c.b16 %v4146, %v4144
    %v4191 = vpack.c.b16 %v4147, %v4145
    %v4192 = vpack.c.b16 %v4150, %v4148
    %v4193 = vpack.c.b16 %v4151, %v4149
    %v4194 = vpack.c.b16 %v4154, %v4152
    %v4195 = vpack.c.b16 %v4155, %v4153
    %v4196 = vpack.c.b16 %v4158, %v4156
    %v4197 = vpack.c.b16 %v4159, %v4157
    %v4198 = vpack.c.b16 %v4162, %v4160
    %v4199 = vpack.c.b16 %v4163, %v4161
    %v4200 = vpack.c.b16 %v4166, %v4164
    %v4201 = vpack.c.b16 %v4167, %v4165
    %v4202 = vpack.c.b16 %v4170, %v4168
    %v4203 = vpack.c.b16 %v4171, %v4169
    %4236 = vmatprep.subr.bf16.mxu0 %v4173
    %4237 = vmatpush1.bf16.msra.mxu0 %v4172
    %4238 = vmatprep.subr.bf16.mxu0 %v4175
    %4239 = vmatpush1.bf16.msra.mxu0 %v4174
    %4240 = vmatprep.subr.bf16.mxu0 %v4177
    %4241 = vmatpush1.bf16.msra.mxu0 %v4176
    %4242 = vmatprep.subr.bf16.mxu0 %v4179
    %4243 = vmatpush1.bf16.msra.mxu0 %v4178
    %4244 = vmatprep.subr.bf16.mxu0 %v4181
    %4245 = vmatpush1.bf16.msra.mxu0 %v4180
    %4246 = vmatprep.subr.bf16.mxu0 %v4183
    %4247 = vmatpush1.bf16.msra.mxu0 %v4182
    %4248 = vmatprep.subr.bf16.mxu0 %v4185
    %4249 = vmatpush1.bf16.msra.mxu0 %v4184
    %4250 = vmatprep.subr.bf16.mxu0 %v4187
    %4251 = vmatpush1.bf16.msra.mxu0 %v4186
    %4252 = vmatprep.subr.bf16.mxu0 %v4189
    %4253 = vmatpush1.bf16.msra.mxu0 %v4188
    %4254 = vmatprep.subr.bf16.mxu0 %v4191
    %4255 = vmatpush1.bf16.msra.mxu0 %v4190
    %4256 = vmatprep.subr.bf16.mxu0 %v4193
    %4257 = vmatpush1.bf16.msra.mxu0 %v4192
    %4258 = vmatprep.subr.bf16.mxu0 %v4195
    %4259 = vmatpush1.bf16.msra.mxu0 %v4194
    %4260 = vmatprep.subr.bf16.mxu0 %v4197
    %4261 = vmatpush1.bf16.msra.mxu0 %v4196
    %4262 = vmatprep.subr.bf16.mxu0 %v4199
    %4263 = vmatpush1.bf16.msra.mxu0 %v4198
    %4264 = vmatprep.subr.bf16.mxu0 %v4201
    %4265 = vmatpush1.bf16.msra.mxu0 %v4200
    %4266 = vmatprep.subr.bf16.mxu0 %v4203
    %4267 = vmatpush1.bf16.msra.mxu0 %v4202
    %4268 = vmatprep.mubr.bf16.mxu0 %v3935
    %4269 = vmatmul.mubr.bf16.gmra.mrb[0].mxu0 %v3932
    %v4270 = vpop.f32.mrb[0].mxu0
    %v4271 = vadd.f32 0.0, %v4270
    %v4272 = vpop.f32.mrb[0].mxu0
    %v4273 = vadd.f32 0.0, %v4272
    %v4274 = vpop.f32.mrb[0].mxu0
    %v4275 = vadd.f32 0.0, %v4274
    %v4276 = vpop.f32.mrb[0].mxu0
    %v4277 = vadd.f32 0.0, %v4276
    %4278 = vmatprep.mubr.bf16.mxu0 %v3939
    %4279 = vmatmul.mubr.bf16.gmra.mrb[0].mxu0 %v3937
    %v4280 = vpop.f32.mrb[0].mxu0
    %v4281 = vadd.f32 0.0, %v4280
    %v4282 = vpop.f32.mrb[0].mxu0
    %v4283 = vadd.f32 0.0, %v4282
    %v4284 = vpop.f32.mrb[0].mxu0
    %v4285 = vadd.f32 0.0, %v4284
    %v4286 = vpop.f32.mrb[0].mxu0
    %v4287 = vadd.f32 0.0, %v4286
    %4288 = vmatprep.mubr.bf16.mxu0 %v3943
    %4289 = vmatmul.mubr.bf16.gmra.mrb[0].mxu0 %v3941
    %v4290 = vpop.f32.mrb[0].mxu0
    %v4291 = vadd.f32 0.0, %v4290
    %v4292 = vpop.f32.mrb[0].mxu0
    %v4293 = vadd.f32 0.0, %v4292
    %v4294 = vpop.f32.mrb[0].mxu0
    %v4295 = vadd.f32 0.0, %v4294
    %v4296 = vpop.f32.mrb[0].mxu0
    %v4297 = vadd.f32 0.0, %v4296
    %4298 = vmatprep.mubr.bf16.mxu0 %v3947
    %4299 = vmatmul.mubr.bf16.gmra.mrb[0].mxu0 %v3945
    %v4300 = vpop.f32.mrb[0].mxu0
    %v4301 = vadd.f32 0.0, %v4300
    %v4302 = vpop.f32.mrb[0].mxu0
    %v4303 = vadd.f32 0.0, %v4302
    %v4304 = vpop.f32.mrb[0].mxu0
    %v4305 = vadd.f32 0.0, %v4304
    %v4306 = vpop.f32.mrb[0].mxu0
    %v4307 = vadd.f32 0.0, %v4306
    %4308 = vmatprep.mubr.bf16.mxu0 %v3951
    %4309 = vmatmul.mubr.bf16.gmra.mrb[0].mxu0 %v3949
    %v4310 = vpop.f32.mrb[0].mxu0
    %v4311 = vadd.f32 0.0, %v4310
    %v4312 = vpop.f32.mrb[0].mxu0
    %v4313 = vadd.f32 0.0, %v4312
    %v4314 = vpop.f32.mrb[0].mxu0
    %v4315 = vadd.f32 0.0, %v4314
    %v4316 = vpop.f32.mrb[0].mxu0
    %v4317 = vadd.f32 0.0, %v4316
    %4318 = vmatprep.mubr.bf16.mxu0 %v3955
    %4319 = vmatmul.mubr.bf16.gmra.mrb[0].mxu0 %v3953
    %v4320 = vpop.f32.mrb[0].mxu0
    %v4321 = vadd.f32 0.0, %v4320
    %v4322 = vpop.f32.mrb[0].mxu0
    %v4323 = vadd.f32 0.0, %v4322
    %v4324 = vpop.f32.mrb[0].mxu0
    %v4325 = vadd.f32 0.0, %v4324
    %v4326 = vpop.f32.mrb[0].mxu0
    %v4327 = vadd.f32 0.0, %v4326
    %4328 = vmatprep.mubr.bf16.mxu0 %v3959
    %4329 = vmatmul.mubr.bf16.gmra.mrb[0].mxu0 %v3957
    %v4330 = vpop.f32.mrb[0].mxu0
    %v4331 = vadd.f32 0.0, %v4330
    %v4332 = vpop.f32.mrb[0].mxu0
    %v4333 = vadd.f32 0.0, %v4332
    %v4334 = vpop.f32.mrb[0].mxu0
    %v4335 = vadd.f32 0.0, %v4334
    %v4336 = vpop.f32.mrb[0].mxu0
    %v4337 = vadd.f32 0.0, %v4336
    %4338 = vmatprep.mubr.bf16.mxu0 %v3963
    %4339 = vmatmul.mubr.bf16.gmra.mrb[0].mxu0 %v3961
    %v4340 = vpop.f32.mrb[0].mxu0
    %v4341 = vadd.f32 0.0, %v4340
    %v4342 = vpop.f32.mrb[0].mxu0
    %v4343 = vadd.f32 0.0, %v4342
    %v4344 = vpop.f32.mrb[0].mxu0
    %v4345 = vadd.f32 0.0, %v4344
    %v4346 = vpop.f32.mrb[0].mxu0
    %v4347 = vadd.f32 0.0, %v4346
    %4348 = vmatprep.mubr.bf16.mxu0 %v3967
    %4349 = vmatmul.mubr.bf16.gmra.mrb[0].mxu0 %v3965
    %v4350 = vpop.f32.mrb[0].mxu0
    %v4351 = vadd.f32 0.0, %v4350
    %v4352 = vpop.f32.mrb[0].mxu0
    %v4353 = vadd.f32 0.0, %v4352
    %v4354 = vpop.f32.mrb[0].mxu0
    %v4355 = vadd.f32 0.0, %v4354
    %v4356 = vpop.f32.mrb[0].mxu0
    %v4357 = vadd.f32 0.0, %v4356
    %4358 = vmatprep.mubr.bf16.mxu0 %v3971
    %4359 = vmatmul.mubr.bf16.gmra.mrb[0].mxu0 %v3969
    %v4360 = vpop.f32.mrb[0].mxu0
    %v4361 = vadd.f32 0.0, %v4360
    %v4362 = vpop.f32.mrb[0].mxu0
    %v4363 = vadd.f32 0.0, %v4362
    %v4364 = vpop.f32.mrb[0].mxu0
    %v4365 = vadd.f32 0.0, %v4364
    %v4366 = vpop.f32.mrb[0].mxu0
    %v4367 = vadd.f32 0.0, %v4366
    %4368 = vmatprep.mubr.bf16.mxu0 %v3975
    %4369 = vmatmul.mubr.bf16.gmra.mrb[0].mxu0 %v3973
    %v4370 = vpop.f32.mrb[0].mxu0
    %v4371 = vadd.f32 0.0, %v4370
    %v4372 = vpop.f32.mrb[0].mxu0
    %v4373 = vadd.f32 0.0, %v4372
    %v4374 = vpop.f32.mrb[0].mxu0
    %v4375 = vadd.f32 0.0, %v4374
    %v4376 = vpop.f32.mrb[0].mxu0
    %v4377 = vadd.f32 0.0, %v4376
    %4378 = vmatprep.mubr.bf16.mxu0 %v3979
    %4379 = vmatmul.mubr.bf16.gmra.mrb[0].mxu0 %v3977
    %v4380 = vpop.f32.mrb[0].mxu0
    %v4381 = vadd.f32 0.0, %v4380
    %v4382 = vpop.f32.mrb[0].mxu0
    %v4383 = vadd.f32 0.0, %v4382
    %v4384 = vpop.f32.mrb[0].mxu0
    %v4385 = vadd.f32 0.0, %v4384
    %v4386 = vpop.f32.mrb[0].mxu0
    %v4387 = vadd.f32 0.0, %v4386
    %4388 = vmatprep.mubr.bf16.mxu0 %v3983
    %4389 = vmatmul.mubr.bf16.gmra.mrb[0].mxu0 %v3981
    %v4390 = vpop.f32.mrb[0].mxu0
    %v4391 = vadd.f32 0.0, %v4390
    %v4392 = vpop.f32.mrb[0].mxu0
    %v4393 = vadd.f32 0.0, %v4392
    %v4394 = vpop.f32.mrb[0].mxu0
    %v4395 = vadd.f32 0.0, %v4394
    %v4396 = vpop.f32.mrb[0].mxu0
    %v4397 = vadd.f32 0.0, %v4396
    %4398 = vmatprep.mubr.bf16.mxu0 %v3987
    %4399 = vmatmul.mubr.bf16.gmra.mrb[0].mxu0 %v3985
    %v4400 = vpop.f32.mrb[0].mxu0
    %v4401 = vadd.f32 0.0, %v4400
    %v4402 = vpop.f32.mrb[0].mxu0
    %v4403 = vadd.f32 0.0, %v4402
    %v4404 = vpop.f32.mrb[0].mxu0
    %v4405 = vadd.f32 0.0, %v4404
    %v4406 = vpop.f32.mrb[0].mxu0
    %v4407 = vadd.f32 0.0, %v4406
    %4408 = vmatprep.mubr.bf16.mxu0 %v3991
    %4409 = vmatmul.mubr.bf16.gmra.mrb[0].mxu0 %v3989
    %v4410 = vpop.f32.mrb[0].mxu0
    %v4411 = vadd.f32 0.0, %v4410
    %v4412 = vpop.f32.mrb[0].mxu0
    %v4413 = vadd.f32 0.0, %v4412
    %v4414 = vpop.f32.mrb[0].mxu0
    %v4415 = vadd.f32 0.0, %v4414
    %v4416 = vpop.f32.mrb[0].mxu0
    %v4417 = vadd.f32 0.0, %v4416
    %4418 = vmatprep.mubr.bf16.mxu0 %v3995
    %4419 = vmatmul.mubr.bf16.gmra.mrb[0].mxu0 %v3993
    %v4420 = vpop.f32.mrb[0].mxu0
    %v4421 = vadd.f32 0.0, %v4420
    %v4422 = vpop.f32.mrb[0].mxu0
    %v4423 = vadd.f32 0.0, %v4422
    %v4424 = vpop.f32.mrb[0].mxu0
    %v4425 = vadd.f32 0.0, %v4424
    %v4426 = vpop.f32.mrb[0].mxu0
    %v4427 = vadd.f32 0.0, %v4426
    %4428 = vmatprep.mubr.bf16.mxu0 %v3999
    %4429 = vmatmul.mubr.bf16.gmra.mrb[0].mxu0 %v3997
    %v4430 = vpop.f32.mrb[0].mxu0
    %v4431 = vadd.f32 0.0, %v4430
    %v4432 = vpop.f32.mrb[0].mxu0
    %v4433 = vadd.f32 0.0, %v4432
    %v4434 = vpop.f32.mrb[0].mxu0
    %v4435 = vadd.f32 0.0, %v4434
    %v4436 = vpop.f32.mrb[0].mxu0
    %v4437 = vadd.f32 0.0, %v4436
    %4438 = vmatprep.mubr.bf16.mxu0 %v4003
    %4439 = vmatmul.mubr.bf16.gmra.mrb[0].mxu0 %v4001
    %v4440 = vpop.f32.mrb[0].mxu0
    %v4441 = vadd.f32 0.0, %v4440
    %v4442 = vpop.f32.mrb[0].mxu0
    %v4443 = vadd.f32 0.0, %v4442
    %v4444 = vpop.f32.mrb[0].mxu0
    %v4445 = vadd.f32 0.0, %v4444
    %v4446 = vpop.f32.mrb[0].mxu0
    %v4447 = vadd.f32 0.0, %v4446
    %4448 = vmatprep.mubr.bf16.mxu0 %v4007
    %4449 = vmatmul.mubr.bf16.gmra.mrb[0].mxu0 %v4005
    %v4450 = vpop.f32.mrb[0].mxu0
    %v4451 = vadd.f32 0.0, %v4450
    %v4452 = vpop.f32.mrb[0].mxu0
    %v4453 = vadd.f32 0.0, %v4452
    %v4454 = vpop.f32.mrb[0].mxu0
    %v4455 = vadd.f32 0.0, %v4454
    %v4456 = vpop.f32.mrb[0].mxu0
    %v4457 = vadd.f32 0.0, %v4456
    %4458 = vmatprep.mubr.bf16.mxu0 %v4011
    %4459 = vmatmul.mubr.bf16.gmra.mrb[0].mxu0 %v4009
    %v4460 = vpop.f32.mrb[0].mxu0
    %v4461 = vadd.f32 0.0, %v4460
    %v4462 = vpop.f32.mrb[0].mxu0
    %v4463 = vadd.f32 0.0, %v4462
    %v4464 = vpop.f32.mrb[0].mxu0
    %v4465 = vadd.f32 0.0, %v4464
    %v4466 = vpop.f32.mrb[0].mxu0
    %v4467 = vadd.f32 0.0, %v4466
    %4468 = vmatprep.mubr.bf16.mxu0 %v4015
    %4469 = vmatmul.mubr.bf16.gmra.mrb[0].mxu0 %v4013
    %v4470 = vpop.f32.mrb[0].mxu0
    %v4471 = vadd.f32 0.0, %v4470
    %v4472 = vpop.f32.mrb[0].mxu0
    %v4473 = vadd.f32 0.0, %v4472
    %v4474 = vpop.f32.mrb[0].mxu0
    %v4475 = vadd.f32 0.0, %v4474
    %v4476 = vpop.f32.mrb[0].mxu0
    %v4477 = vadd.f32 0.0, %v4476
    %4478 = vmatprep.mubr.bf16.mxu0 %v4019
    %4479 = vmatmul.mubr.bf16.gmra.mrb[0].mxu0 %v4017
    %v4480 = vpop.f32.mrb[0].mxu0
    %v4481 = vadd.f32 0.0, %v4480
    %v4482 = vpop.f32.mrb[0].mxu0
    %v4483 = vadd.f32 0.0, %v4482
    %v4484 = vpop.f32.mrb[0].mxu0
    %v4485 = vadd.f32 0.0, %v4484
    %v4486 = vpop.f32.mrb[0].mxu0
    %v4487 = vadd.f32 0.0, %v4486
    %4488 = vmatprep.mubr.bf16.mxu0 %v4023
    %4489 = vmatmul.mubr.bf16.gmra.mrb[0].mxu0 %v4021
    %v4490 = vpop.f32.mrb[0].mxu0
    %v4491 = vadd.f32 0.0, %v4490
    %v4492 = vpop.f32.mrb[0].mxu0
    %v4493 = vadd.f32 0.0, %v4492
    %v4494 = vpop.f32.mrb[0].mxu0
    %v4495 = vadd.f32 0.0, %v4494
    %v4496 = vpop.f32.mrb[0].mxu0
    %v4497 = vadd.f32 0.0, %v4496
    %4498 = vmatprep.mubr.bf16.mxu0 %v4027
    %4499 = vmatmul.mubr.bf16.gmra.mrb[0].mxu0 %v4025
    %v4500 = vpop.f32.mrb[0].mxu0
    %v4501 = vadd.f32 0.0, %v4500
    %v4502 = vpop.f32.mrb[0].mxu0
    %v4503 = vadd.f32 0.0, %v4502
    %v4504 = vpop.f32.mrb[0].mxu0
    %v4505 = vadd.f32 0.0, %v4504
    %v4506 = vpop.f32.mrb[0].mxu0
    %v4507 = vadd.f32 0.0, %v4506
    %4508 = vdwg.mxu0
    %v4509 = vadd.f32 %v3556, %v4271
    %v4510 = vadd.f32 %v3557, %v4273
    %v4511 = vadd.f32 %v3558, %v4275
    %v4512 = vadd.f32 %v3559, %v4277
    %v4513 = vadd.f32 %v3560, %v4281
    %v4514 = vadd.f32 %v3561, %v4283
    %v4515 = vadd.f32 %v3562, %v4285
    %v4516 = vadd.f32 %v3563, %v4287
    %v4517 = vadd.f32 %v3564, %v4291
    %v4518 = vadd.f32 %v3565, %v4293
    %v4519 = vadd.f32 %v3566, %v4295
    %v4520 = vadd.f32 %v3567, %v4297
    %v4521 = vadd.f32 %v3568, %v4301
    %v4522 = vadd.f32 %v3569, %v4303
    %v4523 = vadd.f32 %v3570, %v4305
    %v4524 = vadd.f32 %v3571, %v4307
    %v4525 = vadd.f32 %v3572, %v4311
    %v4526 = vadd.f32 %v3573, %v4313
    %v4527 = vadd.f32 %v3574, %v4315
    %v4528 = vadd.f32 %v3575, %v4317
    %v4529 = vadd.f32 %v3576, %v4321
    %v4530 = vadd.f32 %v3577, %v4323
    %v4531 = vadd.f32 %v3578, %v4325
    %v4532 = vadd.f32 %v3579, %v4327
    %v4533 = vadd.f32 %v3580, %v4331
    %v4534 = vadd.f32 %v3581, %v4333
    %v4535 = vadd.f32 %v3582, %v4335
    %v4536 = vadd.f32 %v3583, %v4337
    %v4537 = vadd.f32 %v3584, %v4341
    %v4538 = vadd.f32 %v3585, %v4343
    %v4539 = vadd.f32 %v3586, %v4345
    %v4540 = vadd.f32 %v3587, %v4347
    %v4541 = vadd.f32 %v3588, %v4351
    %v4542 = vadd.f32 %v3589, %v4353
    %v4543 = vadd.f32 %v3590, %v4355
    %v4544 = vadd.f32 %v3591, %v4357
    %v4545 = vadd.f32 %v3592, %v4361
    %v4546 = vadd.f32 %v3593, %v4363
    %v4547 = vadd.f32 %v3594, %v4365
    %v4548 = vadd.f32 %v3595, %v4367
    %v4549 = vadd.f32 %v3596, %v4371
    %v4550 = vadd.f32 %v3597, %v4373
    %v4551 = vadd.f32 %v3598, %v4375
    %v4552 = vadd.f32 %v3599, %v4377
    %v4553 = vadd.f32 %v3600, %v4381
    %v4554 = vadd.f32 %v3601, %v4383
    %v4555 = vadd.f32 %v3602, %v4385
    %v4556 = vadd.f32 %v3603, %v4387
    %v4557 = vadd.f32 %v3604, %v4391
    %v4558 = vadd.f32 %v3605, %v4393
    %v4559 = vadd.f32 %v3606, %v4395
    %v4560 = vadd.f32 %v3607, %v4397
    %v4561 = vadd.f32 %v3608, %v4401
    %v4562 = vadd.f32 %v3609, %v4403
    %v4563 = vadd.f32 %v3610, %v4405
    %v4564 = vadd.f32 %v3611, %v4407
    %v4565 = vadd.f32 %v3612, %v4411
    %v4566 = vadd.f32 %v3613, %v4413
    %v4567 = vadd.f32 %v3614, %v4415
    %v4568 = vadd.f32 %v3615, %v4417
    %v4569 = vadd.f32 %v3616, %v4421
    %v4570 = vadd.f32 %v3617, %v4423
    %v4571 = vadd.f32 %v3618, %v4425
    %v4572 = vadd.f32 %v3619, %v4427
    %v4573 = vadd.f32 %v3620, %v4431
    %v4574 = vadd.f32 %v3621, %v4433
    %v4575 = vadd.f32 %v3622, %v4435
    %v4576 = vadd.f32 %v3623, %v4437
    %v4577 = vadd.f32 %v3624, %v4441
    %v4578 = vadd.f32 %v3625, %v4443
    %v4579 = vadd.f32 %v3626, %v4445
    %v4580 = vadd.f32 %v3627, %v4447
    %v4581 = vadd.f32 %v3628, %v4451
    %v4582 = vadd.f32 %v3629, %v4453
    %v4583 = vadd.f32 %v3630, %v4455
    %v4584 = vadd.f32 %v3631, %v4457
    %v4585 = vadd.f32 %v3632, %v4461
    %v4586 = vadd.f32 %v3633, %v4463
    %v4587 = vadd.f32 %v3634, %v4465
    %v4588 = vadd.f32 %v3635, %v4467
    %v4589 = vadd.f32 %v3636, %v4471
    %v4590 = vadd.f32 %v3637, %v4473
    %v4591 = vadd.f32 %v3638, %v4475
    %v4592 = vadd.f32 %v3639, %v4477
    %v4593 = vadd.f32 %v3640, %v4481
    %v4594 = vadd.f32 %v3641, %v4483
    %v4595 = vadd.f32 %v3642, %v4485
    %v4596 = vadd.f32 %v3643, %v4487
    %v4597 = vadd.f32 %v3644, %v4491
    %v4598 = vadd.f32 %v3645, %v4493
    %v4599 = vadd.f32 %v3646, %v4495
    %v4600 = vadd.f32 %v3647, %v4497
    %v4601 = vadd.f32 %v3648, %v4501
    %v4602 = vadd.f32 %v3649, %v4503
    %v4603 = vadd.f32 %v3650, %v4505
    %v4604 = vadd.f32 %v3651, %v4507
    %v4605 = vld [vmem:[#allocation12] sm:$0x3]
    %v4607 = vlaneseq
    %v4608 = vshrl.u32 %v4607, 7
    %v4609 = vsub.s32 0, %v4608
    %v4610 = vrot.slane %v4605, %v4609
    %v4611 = vlaneseq
    %v4612 = vshrl.u32 %v4611, 7
    %v4613 = vsub.s32 1, %v4612
    %v4614 = vrot.slane %v4605, %v4613
    %v4617 = vadd.f32 %v4509, %v4610
    %v4618 = vadd.f32 %v4510, %v4614
    %v4619 = vadd.f32 %v4511, %v4610
    %v4620 = vadd.f32 %v4512, %v4614
    %v4621 = vadd.f32 %v4513, %v4610
    %v4622 = vadd.f32 %v4514, %v4614
    %v4623 = vadd.f32 %v4515, %v4610
    %v4624 = vadd.f32 %v4516, %v4614
    %v4625 = vadd.f32 %v4517, %v4610
    %v4626 = vadd.f32 %v4518, %v4614
    %v4627 = vadd.f32 %v4519, %v4610
    %v4628 = vadd.f32 %v4520, %v4614
    %v4629 = vadd.f32 %v4521, %v4610
    %v4630 = vadd.f32 %v4522, %v4614
    %v4631 = vadd.f32 %v4523, %v4610
    %v4632 = vadd.f32 %v4524, %v4614
    %v4633 = vadd.f32 %v4525, %v4610
    %v4634 = vadd.f32 %v4526, %v4614
    %v4635 = vadd.f32 %v4527, %v4610
    %v4636 = vadd.f32 %v4528, %v4614
    %v4637 = vadd.f32 %v4529, %v4610
    %v4638 = vadd.f32 %v4530, %v4614
    %v4639 = vadd.f32 %v4531, %v4610
    %v4640 = vadd.f32 %v4532, %v4614
    %v4641 = vadd.f32 %v4533, %v4610
    %v4642 = vadd.f32 %v4534, %v4614
    %v4643 = vadd.f32 %v4535, %v4610
    %v4644 = vadd.f32 %v4536, %v4614
    %v4645 = vadd.f32 %v4537, %v4610
    %v4646 = vadd.f32 %v4538, %v4614
    %v4647 = vadd.f32 %v4539, %v4610
    %v4648 = vadd.f32 %v4540, %v4614
    %v4649 = vadd.f32 %v4541, %v4610
    %v4650 = vadd.f32 %v4542, %v4614
    %v4651 = vadd.f32 %v4543, %v4610
    %v4652 = vadd.f32 %v4544, %v4614
    %v4653 = vadd.f32 %v4545, %v4610
    %v4654 = vadd.f32 %v4546, %v4614
    %v4655 = vadd.f32 %v4547, %v4610
    %v4656 = vadd.f32 %v4548, %v4614
    %v4657 = vadd.f32 %v4549, %v4610
    %v4658 = vadd.f32 %v4550, %v4614
    %v4659 = vadd.f32 %v4551, %v4610
    %v4660 = vadd.f32 %v4552, %v4614
    %v4661 = vadd.f32 %v4553, %v4610
    %v4662 = vadd.f32 %v4554, %v4614
    %v4663 = vadd.f32 %v4555, %v4610
    %v4664 = vadd.f32 %v4556, %v4614
    %v4665 = vadd.f32 %v4557, %v4610
    %v4666 = vadd.f32 %v4558, %v4614
    %v4667 = vadd.f32 %v4559, %v4610
    %v4668 = vadd.f32 %v4560, %v4614
    %v4669 = vadd.f32 %v4561, %v4610
    %v4670 = vadd.f32 %v4562, %v4614
    %v4671 = vadd.f32 %v4563, %v4610
    %v4672 = vadd.f32 %v4564, %v4614
    %v4673 = vadd.f32 %v4565, %v4610
    %v4674 = vadd.f32 %v4566, %v4614
    %v4675 = vadd.f32 %v4567, %v4610
    %v4676 = vadd.f32 %v4568, %v4614
    %v4677 = vadd.f32 %v4569, %v4610
    %v4678 = vadd.f32 %v4570, %v4614
    %v4679 = vadd.f32 %v4571, %v4610
    %v4680 = vadd.f32 %v4572, %v4614
    %v4681 = vadd.f32 %v4573, %v4610
    %v4682 = vadd.f32 %v4574, %v4614
    %v4683 = vadd.f32 %v4575, %v4610
    %v4684 = vadd.f32 %v4576, %v4614
    %v4685 = vadd.f32 %v4577, %v4610
    %v4686 = vadd.f32 %v4578, %v4614
    %v4687 = vadd.f32 %v4579, %v4610
    %v4688 = vadd.f32 %v4580, %v4614
    %v4689 = vadd.f32 %v4581, %v4610
    %v4690 = vadd.f32 %v4582, %v4614
    %v4691 = vadd.f32 %v4583, %v4610
    %v4692 = vadd.f32 %v4584, %v4614
    %v4693 = vadd.f32 %v4585, %v4610
    %v4694 = vadd.f32 %v4586, %v4614
    %v4695 = vadd.f32 %v4587, %v4610
    %v4696 = vadd.f32 %v4588, %v4614
    %v4697 = vadd.f32 %v4589, %v4610
    %v4698 = vadd.f32 %v4590, %v4614
    %v4699 = vadd.f32 %v4591, %v4610
    %v4700 = vadd.f32 %v4592, %v4614
    %v4701 = vadd.f32 %v4593, %v4610
    %v4702 = vadd.f32 %v4594, %v4614
    %v4703 = vadd.f32 %v4595, %v4610
    %v4704 = vadd.f32 %v4596, %v4614
    %v4705 = vadd.f32 %v4597, %v4610
    %v4706 = vadd.f32 %v4598, %v4614
    %v4707 = vadd.f32 %v4599, %v4610
    %v4708 = vadd.f32 %v4600, %v4614
    %v4709 = vadd.f32 %v4601, %v4610
    %v4710 = vadd.f32 %v4602, %v4614
    %v4711 = vadd.f32 %v4603, %v4610
    %v4712 = vadd.f32 %v4604, %v4614
    %vm4713 = vcmp.ge.f32.partialorder %v4617, 0.0
    %vm4714 = vcmp.ge.f32.partialorder %v4618, 0.0
    %vm4715 = vcmp.ge.f32.partialorder %v4619, 0.0
    %vm4716 = vcmp.ge.f32.partialorder %v4620, 0.0
    %vm4717 = vcmp.ge.f32.partialorder %v4621, 0.0
    %vm4718 = vcmp.ge.f32.partialorder %v4622, 0.0
    %vm4719 = vcmp.ge.f32.partialorder %v4623, 0.0
    %vm4720 = vcmp.ge.f32.partialorder %v4624, 0.0
    %vm4721 = vcmp.ge.f32.partialorder %v4625, 0.0
    %vm4722 = vcmp.ge.f32.partialorder %v4626, 0.0
    %vm4723 = vcmp.ge.f32.partialorder %v4627, 0.0
    %vm4724 = vcmp.ge.f32.partialorder %v4628, 0.0
    %vm4725 = vcmp.ge.f32.partialorder %v4629, 0.0
    %vm4726 = vcmp.ge.f32.partialorder %v4630, 0.0
    %vm4727 = vcmp.ge.f32.partialorder %v4631, 0.0
    %vm4728 = vcmp.ge.f32.partialorder %v4632, 0.0
    %vm4729 = vcmp.ge.f32.partialorder %v4633, 0.0
    %vm4730 = vcmp.ge.f32.partialorder %v4634, 0.0
    %vm4731 = vcmp.ge.f32.partialorder %v4635, 0.0
    %vm4732 = vcmp.ge.f32.partialorder %v4636, 0.0
    %vm4733 = vcmp.ge.f32.partialorder %v4637, 0.0
    %vm4734 = vcmp.ge.f32.partialorder %v4638, 0.0
    %vm4735 = vcmp.ge.f32.partialorder %v4639, 0.0
    %vm4736 = vcmp.ge.f32.partialorder %v4640, 0.0
    %vm4737 = vcmp.ge.f32.partialorder %v4641, 0.0
    %vm4738 = vcmp.ge.f32.partialorder %v4642, 0.0
    %vm4739 = vcmp.ge.f32.partialorder %v4643, 0.0
    %vm4740 = vcmp.ge.f32.partialorder %v4644, 0.0
    %vm4741 = vcmp.ge.f32.partialorder %v4645, 0.0
    %vm4742 = vcmp.ge.f32.partialorder %v4646, 0.0
    %vm4743 = vcmp.ge.f32.partialorder %v4647, 0.0
    %vm4744 = vcmp.ge.f32.partialorder %v4648, 0.0
    %vm4745 = vcmp.ge.f32.partialorder %v4649, 0.0
    %vm4746 = vcmp.ge.f32.partialorder %v4650, 0.0
    %vm4747 = vcmp.ge.f32.partialorder %v4651, 0.0
    %vm4748 = vcmp.ge.f32.partialorder %v4652, 0.0
    %vm4749 = vcmp.ge.f32.partialorder %v4653, 0.0
    %vm4750 = vcmp.ge.f32.partialorder %v4654, 0.0
    %vm4751 = vcmp.ge.f32.partialorder %v4655, 0.0
    %vm4752 = vcmp.ge.f32.partialorder %v4656, 0.0
    %vm4753 = vcmp.ge.f32.partialorder %v4657, 0.0
    %vm4754 = vcmp.ge.f32.partialorder %v4658, 0.0
    %vm4755 = vcmp.ge.f32.partialorder %v4659, 0.0
    %vm4756 = vcmp.ge.f32.partialorder %v4660, 0.0
    %vm4757 = vcmp.ge.f32.partialorder %v4661, 0.0
    %vm4758 = vcmp.ge.f32.partialorder %v4662, 0.0
    %vm4759 = vcmp.ge.f32.partialorder %v4663, 0.0
    %vm4760 = vcmp.ge.f32.partialorder %v4664, 0.0
    %vm4761 = vcmp.ge.f32.partialorder %v4665, 0.0
    %vm4762 = vcmp.ge.f32.partialorder %v4666, 0.0
    %vm4763 = vcmp.ge.f32.partialorder %v4667, 0.0
    %vm4764 = vcmp.ge.f32.partialorder %v4668, 0.0
    %vm4765 = vcmp.ge.f32.partialorder %v4669, 0.0
    %vm4766 = vcmp.ge.f32.partialorder %v4670, 0.0
    %vm4767 = vcmp.ge.f32.partialorder %v4671, 0.0
    %vm4768 = vcmp.ge.f32.partialorder %v4672, 0.0
    %vm4769 = vcmp.ge.f32.partialorder %v4673, 0.0
    %vm4770 = vcmp.ge.f32.partialorder %v4674, 0.0
    %vm4771 = vcmp.ge.f32.partialorder %v4675, 0.0
    %vm4772 = vcmp.ge.f32.partialorder %v4676, 0.0
    %vm4773 = vcmp.ge.f32.partialorder %v4677, 0.0
    %vm4774 = vcmp.ge.f32.partialorder %v4678, 0.0
    %vm4775 = vcmp.ge.f32.partialorder %v4679, 0.0
    %vm4776 = vcmp.ge.f32.partialorder %v4680, 0.0
    %vm4777 = vcmp.ge.f32.partialorder %v4681, 0.0
    %vm4778 = vcmp.ge.f32.partialorder %v4682, 0.0
    %vm4779 = vcmp.ge.f32.partialorder %v4683, 0.0
    %vm4780 = vcmp.ge.f32.partialorder %v4684, 0.0
    %vm4781 = vcmp.ge.f32.partialorder %v4685, 0.0
    %vm4782 = vcmp.ge.f32.partialorder %v4686, 0.0
    %vm4783 = vcmp.ge.f32.partialorder %v4687, 0.0
    %vm4784 = vcmp.ge.f32.partialorder %v4688, 0.0
    %vm4785 = vcmp.ge.f32.partialorder %v4689, 0.0
    %vm4786 = vcmp.ge.f32.partialorder %v4690, 0.0
    %vm4787 = vcmp.ge.f32.partialorder %v4691, 0.0
    %vm4788 = vcmp.ge.f32.partialorder %v4692, 0.0
    %vm4789 = vcmp.ge.f32.partialorder %v4693, 0.0
    %vm4790 = vcmp.ge.f32.partialorder %v4694, 0.0
    %vm4791 = vcmp.ge.f32.partialorder %v4695, 0.0
    %vm4792 = vcmp.ge.f32.partialorder %v4696, 0.0
    %vm4793 = vcmp.ge.f32.partialorder %v4697, 0.0
    %vm4794 = vcmp.ge.f32.partialorder %v4698, 0.0
    %vm4795 = vcmp.ge.f32.partialorder %v4699, 0.0
    %vm4796 = vcmp.ge.f32.partialorder %v4700, 0.0
    %vm4797 = vcmp.ge.f32.partialorder %v4701, 0.0
    %vm4798 = vcmp.ge.f32.partialorder %v4702, 0.0
    %vm4799 = vcmp.ge.f32.partialorder %v4703, 0.0
    %vm4800 = vcmp.ge.f32.partialorder %v4704, 0.0
    %vm4801 = vcmp.ge.f32.partialorder %v4705, 0.0
    %vm4802 = vcmp.ge.f32.partialorder %v4706, 0.0
    %vm4803 = vcmp.ge.f32.partialorder %v4707, 0.0
    %vm4804 = vcmp.ge.f32.partialorder %v4708, 0.0
    %vm4805 = vcmp.ge.f32.partialorder %v4709, 0.0
    %vm4806 = vcmp.ge.f32.partialorder %v4710, 0.0
    %vm4807 = vcmp.ge.f32.partialorder %v4711, 0.0
    %vm4808 = vcmp.ge.f32.partialorder %v4712, 0.0
    %v4809 = vmul.f32 %v4617, 2.0
    %v4810 = vmul.f32 %v4618, 2.0
    %v4811 = vmul.f32 %v4619, 2.0
    %v4812 = vmul.f32 %v4620, 2.0
    %v4813 = vmul.f32 %v4621, 2.0
    %v4814 = vmul.f32 %v4622, 2.0
    %v4815 = vmul.f32 %v4623, 2.0
    %v4816 = vmul.f32 %v4624, 2.0
    %v4817 = vmul.f32 %v4625, 2.0
    %v4818 = vmul.f32 %v4626, 2.0
    %v4819 = vmul.f32 %v4627, 2.0
    %v4820 = vmul.f32 %v4628, 2.0
    %v4821 = vmul.f32 %v4629, 2.0
    %v4822 = vmul.f32 %v4630, 2.0
    %v4823 = vmul.f32 %v4631, 2.0
    %v4824 = vmul.f32 %v4632, 2.0
    %v4825 = vmul.f32 %v4633, 2.0
    %v4826 = vmul.f32 %v4634, 2.0
    %v4827 = vmul.f32 %v4635, 2.0
    %v4828 = vmul.f32 %v4636, 2.0
    %v4829 = vmul.f32 %v4637, 2.0
    %v4830 = vmul.f32 %v4638, 2.0
    %v4831 = vmul.f32 %v4639, 2.0
    %v4832 = vmul.f32 %v4640, 2.0
    %v4833 = vmul.f32 %v4641, 2.0
    %v4834 = vmul.f32 %v4642, 2.0
    %v4835 = vmul.f32 %v4643, 2.0
    %v4836 = vmul.f32 %v4644, 2.0
    %v4837 = vmul.f32 %v4645, 2.0
    %v4838 = vmul.f32 %v4646, 2.0
    %v4839 = vmul.f32 %v4647, 2.0
    %v4840 = vmul.f32 %v4648, 2.0
    %v4841 = vmul.f32 %v4649, 2.0
    %v4842 = vmul.f32 %v4650, 2.0
    %v4843 = vmul.f32 %v4651, 2.0
    %v4844 = vmul.f32 %v4652, 2.0
    %v4845 = vmul.f32 %v4653, 2.0
    %v4846 = vmul.f32 %v4654, 2.0
    %v4847 = vmul.f32 %v4655, 2.0
    %v4848 = vmul.f32 %v4656, 2.0
    %v4849 = vmul.f32 %v4657, 2.0
    %v4850 = vmul.f32 %v4658, 2.0
    %v4851 = vmul.f32 %v4659, 2.0
    %v4852 = vmul.f32 %v4660, 2.0
    %v4853 = vmul.f32 %v4661, 2.0
    %v4854 = vmul.f32 %v4662, 2.0
    %v4855 = vmul.f32 %v4663, 2.0
    %v4856 = vmul.f32 %v4664, 2.0
    %v4857 = vmul.f32 %v4665, 2.0
    %v4858 = vmul.f32 %v4666, 2.0
    %v4859 = vmul.f32 %v4667, 2.0
    %v4860 = vmul.f32 %v4668, 2.0
    %v4861 = vmul.f32 %v4669, 2.0
    %v4862 = vmul.f32 %v4670, 2.0
    %v4863 = vmul.f32 %v4671, 2.0
    %v4864 = vmul.f32 %v4672, 2.0
    %v4865 = vmul.f32 %v4673, 2.0
    %v4866 = vmul.f32 %v4674, 2.0
    %v4867 = vmul.f32 %v4675, 2.0
    %v4868 = vmul.f32 %v4676, 2.0
    %v4869 = vmul.f32 %v4677, 2.0
    %v4870 = vmul.f32 %v4678, 2.0
    %v4871 = vmul.f32 %v4679, 2.0
    %v4872 = vmul.f32 %v4680, 2.0
    %v4873 = vmul.f32 %v4681, 2.0
    %v4874 = vmul.f32 %v4682, 2.0
    %v4875 = vmul.f32 %v4683, 2.0
    %v4876 = vmul.f32 %v4684, 2.0
    %v4877 = vmul.f32 %v4685, 2.0
    %v4878 = vmul.f32 %v4686, 2.0
    %v4879 = vmul.f32 %v4687, 2.0
    %v4880 = vmul.f32 %v4688, 2.0
    %v4881 = vmul.f32 %v4689, 2.0
    %v4882 = vmul.f32 %v4690, 2.0
    %v4883 = vmul.f32 %v4691, 2.0
    %v4884 = vmul.f32 %v4692, 2.0
    %v4885 = vmul.f32 %v4693, 2.0
    %v4886 = vmul.f32 %v4694, 2.0
    %v4887 = vmul.f32 %v4695, 2.0
    %v4888 = vmul.f32 %v4696, 2.0
    %v4889 = vmul.f32 %v4697, 2.0
    %v4890 = vmul.f32 %v4698, 2.0
    %v4891 = vmul.f32 %v4699, 2.0
    %v4892 = vmul.f32 %v4700, 2.0
    %v4893 = vmul.f32 %v4701, 2.0
    %v4894 = vmul.f32 %v4702, 2.0
    %v4895 = vmul.f32 %v4703, 2.0
    %v4896 = vmul.f32 %v4704, 2.0
    %v4897 = vmul.f32 %v4705, 2.0
    %v4898 = vmul.f32 %v4706, 2.0
    %v4899 = vmul.f32 %v4707, 2.0
    %v4900 = vmul.f32 %v4708, 2.0
    %v4901 = vmul.f32 %v4709, 2.0
    %v4902 = vmul.f32 %v4710, 2.0
    %v4903 = vmul.f32 %v4711, 2.0
    %v4904 = vmul.f32 %v4712, 2.0
    %v4905 = vsel %vm4713, %v4617, %v4809
    %v4906 = vsel %vm4714, %v4618, %v4810
    %v4907 = vsel %vm4715, %v4619, %v4811
    %v4908 = vsel %vm4716, %v4620, %v4812
    %v4909 = vsel %vm4717, %v4621, %v4813
    %v4910 = vsel %vm4718, %v4622, %v4814
    %v4911 = vsel %vm4719, %v4623, %v4815
    %v4912 = vsel %vm4720, %v4624, %v4816
    %v4913 = vsel %vm4721, %v4625, %v4817
    %v4914 = vsel %vm4722, %v4626, %v4818
    %v4915 = vsel %vm4723, %v4627, %v4819
    %v4916 = vsel %vm4724, %v4628, %v4820
    %v4917 = vsel %vm4725, %v4629, %v4821
    %v4918 = vsel %vm4726, %v4630, %v4822
    %v4919 = vsel %vm4727, %v4631, %v4823
    %v4920 = vsel %vm4728, %v4632, %v4824
    %v4921 = vsel %vm4729, %v4633, %v4825
    %v4922 = vsel %vm4730, %v4634, %v4826
    %v4923 = vsel %vm4731, %v4635, %v4827
    %v4924 = vsel %vm4732, %v4636, %v4828
    %v4925 = vsel %vm4733, %v4637, %v4829
    %v4926 = vsel %vm4734, %v4638, %v4830
    %v4927 = vsel %vm4735, %v4639, %v4831
    %v4928 = vsel %vm4736, %v4640, %v4832
    %v4929 = vsel %vm4737, %v4641, %v4833
    %v4930 = vsel %vm4738, %v4642, %v4834
    %v4931 = vsel %vm4739, %v4643, %v4835
    %v4932 = vsel %vm4740, %v4644, %v4836
    %v4933 = vsel %vm4741, %v4645, %v4837
    %v4934 = vsel %vm4742, %v4646, %v4838
    %v4935 = vsel %vm4743, %v4647, %v4839
    %v4936 = vsel %vm4744, %v4648, %v4840
    %v4937 = vsel %vm4745, %v4649, %v4841
    %v4938 = vsel %vm4746, %v4650, %v4842
    %v4939 = vsel %vm4747, %v4651, %v4843
    %v4940 = vsel %vm4748, %v4652, %v4844
    %v4941 = vsel %vm4749, %v4653, %v4845
    %v4942 = vsel %vm4750, %v4654, %v4846
    %v4943 = vsel %vm4751, %v4655, %v4847
    %v4944 = vsel %vm4752, %v4656, %v4848
    %v4945 = vsel %vm4753, %v4657, %v4849
    %v4946 = vsel %vm4754, %v4658, %v4850
    %v4947 = vsel %vm4755, %v4659, %v4851
    %v4948 = vsel %vm4756, %v4660, %v4852
    %v4949 = vsel %vm4757, %v4661, %v4853
    %v4950 = vsel %vm4758, %v4662, %v4854
    %v4951 = vsel %vm4759, %v4663, %v4855
    %v4952 = vsel %vm4760, %v4664, %v4856
    %v4953 = vsel %vm4761, %v4665, %v4857
    %v4954 = vsel %vm4762, %v4666, %v4858
    %v4955 = vsel %vm4763, %v4667, %v4859
    %v4956 = vsel %vm4764, %v4668, %v4860
    %v4957 = vsel %vm4765, %v4669, %v4861
    %v4958 = vsel %vm4766, %v4670, %v4862
    %v4959 = vsel %vm4767, %v4671, %v4863
    %v4960 = vsel %vm4768, %v4672, %v4864
    %v4961 = vsel %vm4769, %v4673, %v4865
    %v4962 = vsel %vm4770, %v4674, %v4866
    %v4963 = vsel %vm4771, %v4675, %v4867
    %v4964 = vsel %vm4772, %v4676, %v4868
    %v4965 = vsel %vm4773, %v4677, %v4869
    %v4966 = vsel %vm4774, %v4678, %v4870
    %v4967 = vsel %vm4775, %v4679, %v4871
    %v4968 = vsel %vm4776, %v4680, %v4872
    %v4969 = vsel %vm4777, %v4681, %v4873
    %v4970 = vsel %vm4778, %v4682, %v4874
    %v4971 = vsel %vm4779, %v4683, %v4875
    %v4972 = vsel %vm4780, %v4684, %v4876
    %v4973 = vsel %vm4781, %v4685, %v4877
    %v4974 = vsel %vm4782, %v4686, %v4878
    %v4975 = vsel %vm4783, %v4687, %v4879
    %v4976 = vsel %vm4784, %v4688, %v4880
    %v4977 = vsel %vm4785, %v4689, %v4881
    %v4978 = vsel %vm4786, %v4690, %v4882
    %v4979 = vsel %vm4787, %v4691, %v4883
    %v4980 = vsel %vm4788, %v4692, %v4884
    %v4981 = vsel %vm4789, %v4693, %v4885
    %v4982 = vsel %vm4790, %v4694, %v4886
    %v4983 = vsel %vm4791, %v4695, %v4887
    %v4984 = vsel %vm4792, %v4696, %v4888
    %v4985 = vsel %vm4793, %v4697, %v4889
    %v4986 = vsel %vm4794, %v4698, %v4890
    %v4987 = vsel %vm4795, %v4699, %v4891
    %v4988 = vsel %vm4796, %v4700, %v4892
    %v4989 = vsel %vm4797, %v4701, %v4893
    %v4990 = vsel %vm4798, %v4702, %v4894
    %v4991 = vsel %vm4799, %v4703, %v4895
    %v4992 = vsel %vm4800, %v4704, %v4896
    %v4993 = vsel %vm4801, %v4705, %v4897
    %v4994 = vsel %vm4802, %v4706, %v4898
    %v4995 = vsel %vm4803, %v4707, %v4899
    %v4996 = vsel %vm4804, %v4708, %v4900
    %v4997 = vsel %vm4805, %v4709, %v4901
    %v4998 = vsel %vm4806, %v4710, %v4902
    %v4999 = vsel %vm4807, %v4711, %v4903
    %v5000 = vsel %vm4808, %v4712, %v4904
    %v5001 = vpack.c.bf16 %v4907, %v4905
    %v5002 = vpack.c.bf16 %v4908, %v4906
    %v5003 = vpack.c.bf16 %v4911, %v4909
    %v5004 = vpack.c.bf16 %v4912, %v4910
    %v5005 = vpack.c.bf16 %v4915, %v4913
    %v5006 = vpack.c.bf16 %v4916, %v4914
    %v5007 = vpack.c.bf16 %v4919, %v4917
    %v5008 = vpack.c.bf16 %v4920, %v4918
    %v5009 = vpack.c.bf16 %v4923, %v4921
    %v5010 = vpack.c.bf16 %v4924, %v4922
    %v5011 = vpack.c.bf16 %v4927, %v4925
    %v5012 = vpack.c.bf16 %v4928, %v4926
    %v5013 = vpack.c.bf16 %v4931, %v4929
    %v5014 = vpack.c.bf16 %v4932, %v4930
    %v5015 = vpack.c.bf16 %v4935, %v4933
    %v5016 = vpack.c.bf16 %v4936, %v4934
    %v5017 = vpack.c.bf16 %v4939, %v4937
    %v5018 = vpack.c.bf16 %v4940, %v4938
    %v5019 = vpack.c.bf16 %v4943, %v4941
    %v5020 = vpack.c.bf16 %v4944, %v4942
    %v5021 = vpack.c.bf16 %v4947, %v4945
    %v5022 = vpack.c.bf16 %v4948, %v4946
    %v5023 = vpack.c.bf16 %v4951, %v4949
    %v5024 = vpack.c.bf16 %v4952, %v4950
    %v5025 = vpack.c.bf16 %v4955, %v4953
    %v5026 = vpack.c.bf16 %v4956, %v4954
    %v5027 = vpack.c.bf16 %v4959, %v4957
    %v5028 = vpack.c.bf16 %v4960, %v4958
    %v5029 = vpack.c.bf16 %v4963, %v4961
    %v5030 = vpack.c.bf16 %v4964, %v4962
    %v5031 = vpack.c.bf16 %v4967, %v4965
    %v5032 = vpack.c.bf16 %v4968, %v4966
    %v5033 = vpack.c.bf16 %v4971, %v4969
    %v5034 = vpack.c.bf16 %v4972, %v4970
    %v5035 = vpack.c.bf16 %v4975, %v4973
    %v5036 = vpack.c.bf16 %v4976, %v4974
    %v5037 = vpack.c.bf16 %v4979, %v4977
    %v5038 = vpack.c.bf16 %v4980, %v4978
    %v5039 = vpack.c.bf16 %v4983, %v4981
    %v5040 = vpack.c.bf16 %v4984, %v4982
    %v5041 = vpack.c.bf16 %v4987, %v4985
    %v5042 = vpack.c.bf16 %v4988, %v4986
    %v5043 = vpack.c.bf16 %v4991, %v4989
    %v5044 = vpack.c.bf16 %v4992, %v4990
    %v5045 = vpack.c.bf16 %v4995, %v4993
    %v5046 = vpack.c.bf16 %v4996, %v4994
    %v5047 = vpack.c.bf16 %v4999, %v4997
    %v5048 = vpack.c.bf16 %v5000, %v4998
    %v5097 = vunpack.c.l.b16 %v5001
    %v5098 = vunpack.c.l.b16 %v5002
    %v5099 = vunpack.c.h.b16 %v5001
    %v5100 = vunpack.c.h.b16 %v5002
    %v5101 = vunpack.c.l.b16 %v5003
    %v5102 = vunpack.c.l.b16 %v5004
    %v5103 = vunpack.c.h.b16 %v5003
    %v5104 = vunpack.c.h.b16 %v5004
    %v5105 = vunpack.c.l.b16 %v5005
    %v5106 = vunpack.c.l.b16 %v5006
    %v5107 = vunpack.c.h.b16 %v5005
    %v5108 = vunpack.c.h.b16 %v5006
    %v5109 = vunpack.c.l.b16 %v5007
    %v5110 = vunpack.c.l.b16 %v5008
    %v5111 = vunpack.c.h.b16 %v5007
    %v5112 = vunpack.c.h.b16 %v5008
    %v5113 = vunpack.c.l.b16 %v5009
    %v5114 = vunpack.c.l.b16 %v5010
    %v5115 = vunpack.c.h.b16 %v5009
    %v5116 = vunpack.c.h.b16 %v5010
    %v5117 = vunpack.c.l.b16 %v5011
    %v5118 = vunpack.c.l.b16 %v5012
    %v5119 = vunpack.c.h.b16 %v5011
    %v5120 = vunpack.c.h.b16 %v5012
    %v5121 = vunpack.c.l.b16 %v5013
    %v5122 = vunpack.c.l.b16 %v5014
    %v5123 = vunpack.c.h.b16 %v5013
    %v5124 = vunpack.c.h.b16 %v5014
    %v5125 = vunpack.c.l.b16 %v5015
    %v5126 = vunpack.c.l.b16 %v5016
    %v5127 = vunpack.c.h.b16 %v5015
    %v5128 = vunpack.c.h.b16 %v5016
    %v5129 = vunpack.c.l.b16 %v5017
    %v5130 = vunpack.c.l.b16 %v5018
    %v5131 = vunpack.c.h.b16 %v5017
    %v5132 = vunpack.c.h.b16 %v5018
    %v5133 = vunpack.c.l.b16 %v5019
    %v5134 = vunpack.c.l.b16 %v5020
    %v5135 = vunpack.c.h.b16 %v5019
    %v5136 = vunpack.c.h.b16 %v5020
    %v5137 = vunpack.c.l.b16 %v5021
    %v5138 = vunpack.c.l.b16 %v5022
    %v5139 = vunpack.c.h.b16 %v5021
    %v5140 = vunpack.c.h.b16 %v5022
    %v5141 = vunpack.c.l.b16 %v5023
    %v5142 = vunpack.c.l.b16 %v5024
    %v5143 = vunpack.c.h.b16 %v5023
    %v5144 = vunpack.c.h.b16 %v5024
    %v5145 = vunpack.c.l.b16 %v5025
    %v5146 = vunpack.c.l.b16 %v5026
    %v5147 = vunpack.c.h.b16 %v5025
    %v5148 = vunpack.c.h.b16 %v5026
    %v5149 = vunpack.c.l.b16 %v5027
    %v5150 = vunpack.c.l.b16 %v5028
    %v5151 = vunpack.c.h.b16 %v5027
    %v5152 = vunpack.c.h.b16 %v5028
    %v5153 = vunpack.c.l.b16 %v5029
    %v5154 = vunpack.c.l.b16 %v5030
    %v5155 = vunpack.c.h.b16 %v5029
    %v5156 = vunpack.c.h.b16 %v5030
    %v5157 = vunpack.c.l.b16 %v5031
    %v5158 = vunpack.c.l.b16 %v5032
    %v5159 = vunpack.c.h.b16 %v5031
    %v5160 = vunpack.c.h.b16 %v5032
    %v5161 = vunpack.c.l.b16 %v5033
    %v5162 = vunpack.c.l.b16 %v5034
    %v5163 = vunpack.c.h.b16 %v5033
    %v5164 = vunpack.c.h.b16 %v5034
    %v5165 = vunpack.c.l.b16 %v5035
    %v5166 = vunpack.c.l.b16 %v5036
    %v5167 = vunpack.c.h.b16 %v5035
    %v5168 = vunpack.c.h.b16 %v5036
    %v5169 = vunpack.c.l.b16 %v5037
    %v5170 = vunpack.c.l.b16 %v5038
    %v5171 = vunpack.c.h.b16 %v5037
    %v5172 = vunpack.c.h.b16 %v5038
    %v5173 = vunpack.c.l.b16 %v5039
    %v5174 = vunpack.c.l.b16 %v5040
    %v5175 = vunpack.c.h.b16 %v5039
    %v5176 = vunpack.c.h.b16 %v5040
    %v5177 = vunpack.c.l.b16 %v5041
    %v5178 = vunpack.c.l.b16 %v5042
    %v5179 = vunpack.c.h.b16 %v5041
    %v5180 = vunpack.c.h.b16 %v5042
    %v5181 = vunpack.c.l.b16 %v5043
    %v5182 = vunpack.c.l.b16 %v5044
    %v5183 = vunpack.c.h.b16 %v5043
    %v5184 = vunpack.c.h.b16 %v5044
    %v5185 = vunpack.c.l.b16 %v5045
    %v5186 = vunpack.c.l.b16 %v5046
    %v5187 = vunpack.c.h.b16 %v5045
    %v5188 = vunpack.c.h.b16 %v5046
    %v5189 = vunpack.c.l.b16 %v5047
    %v5190 = vunpack.c.l.b16 %v5048
    %v5191 = vunpack.c.h.b16 %v5047
    %v5192 = vunpack.c.h.b16 %v5048
    %v5193 = vpack.c.b16 %v5098, %v5097
    %v5194 = vpack.c.b16 %v5100, %v5099
    %v5195 = vpack.c.b16 %v5102, %v5101
    %v5196 = vpack.c.b16 %v5104, %v5103
    %v5197 = vpack.c.b16 %v5106, %v5105
    %v5198 = vpack.c.b16 %v5108, %v5107
    %v5199 = vpack.c.b16 %v5110, %v5109
    %v5200 = vpack.c.b16 %v5112, %v5111
    %v5201 = vpack.c.b16 %v5114, %v5113
    %v5202 = vpack.c.b16 %v5116, %v5115
    %v5203 = vpack.c.b16 %v5118, %v5117
    %v5204 = vpack.c.b16 %v5120, %v5119
    %v5205 = vpack.c.b16 %v5122, %v5121
    %v5206 = vpack.c.b16 %v5124, %v5123
    %v5207 = vpack.c.b16 %v5126, %v5125
    %v5208 = vpack.c.b16 %v5128, %v5127
    %v5209 = vpack.c.b16 %v5130, %v5129
    %v5210 = vpack.c.b16 %v5132, %v5131
    %v5211 = vpack.c.b16 %v5134, %v5133
    %v5212 = vpack.c.b16 %v5136, %v5135
    %v5213 = vpack.c.b16 %v5138, %v5137
    %v5214 = vpack.c.b16 %v5140, %v5139
    %v5215 = vpack.c.b16 %v5142, %v5141
    %v5216 = vpack.c.b16 %v5144, %v5143
    %v5217 = vpack.c.b16 %v5146, %v5145
    %v5218 = vpack.c.b16 %v5148, %v5147
    %v5219 = vpack.c.b16 %v5150, %v5149
    %v5220 = vpack.c.b16 %v5152, %v5151
    %v5221 = vpack.c.b16 %v5154, %v5153
    %v5222 = vpack.c.b16 %v5156, %v5155
    %v5223 = vpack.c.b16 %v5158, %v5157
    %v5224 = vpack.c.b16 %v5160, %v5159
    %v5225 = vpack.c.b16 %v5162, %v5161
    %v5226 = vpack.c.b16 %v5164, %v5163
    %v5227 = vpack.c.b16 %v5166, %v5165
    %v5228 = vpack.c.b16 %v5168, %v5167
    %v5229 = vpack.c.b16 %v5170, %v5169
    %v5230 = vpack.c.b16 %v5172, %v5171
    %v5231 = vpack.c.b16 %v5174, %v5173
    %v5232 = vpack.c.b16 %v5176, %v5175
    %v5233 = vpack.c.b16 %v5178, %v5177
    %v5234 = vpack.c.b16 %v5180, %v5179
    %v5235 = vpack.c.b16 %v5182, %v5181
    %v5236 = vpack.c.b16 %v5184, %v5183
    %v5237 = vpack.c.b16 %v5186, %v5185
    %v5238 = vpack.c.b16 %v5188, %v5187
    %v5239 = vpack.c.b16 %v5190, %v5189
    %v5240 = vpack.c.b16 %v5192, %v5191
    %5289 = vst [vmem:[#allocation3] sm:$0xff] %v5193
    %5290 = vst [vmem:[#allocation3 + $0x8] sm:$0xff] %v5194
    %5291 = vst [vmem:[#allocation3 + $0x10] sm:$0xff] %v5195
    %5292 = vst [vmem:[#allocation3 + $0x18] sm:$0xff] %v5196
    %5293 = vst [vmem:[#allocation3 + $0x20] sm:$0xff] %v5197
    %5294 = vst [vmem:[#allocation3 + $0x28] sm:$0xff] %v5198
    %5295 = vst [vmem:[#allocation3 + $0x30] sm:$0xff] %v5199
    %5296 = vst [vmem:[#allocation3 + $0x38] sm:$0xff] %v5200
    %5297 = vst [vmem:[#allocation3 + $0x40] sm:$0xff] %v5201
    %5298 = vst [vmem:[#allocation3 + $0x48] sm:$0xff] %v5202
    %5299 = vst [vmem:[#allocation3 + $0x50] sm:$0xff] %v5203
    %5300 = vst [vmem:[#allocation3 + $0x58] sm:$0xff] %v5204
    %5301 = vst [vmem:[#allocation3 + $0x60] sm:$0xff] %v5205
    %5302 = vst [vmem:[#allocation3 + $0x68] sm:$0xff] %v5206
    %5303 = vst [vmem:[#allocation3 + $0x70] sm:$0xff] %v5207
    %5304 = vst [vmem:[#allocation3 + $0x78] sm:$0xff] %v5208
    %5305 = vst [vmem:[#allocation3 + $0x80] sm:$0xff] %v5209
    %5306 = vst [vmem:[#allocation3 + $0x88] sm:$0xff] %v5210
    %5307 = vst [vmem:[#allocation3 + $0x90] sm:$0xff] %v5211
    %5308 = vst [vmem:[#allocation3 + $0x98] sm:$0xff] %v5212
    %5309 = vst [vmem:[#allocation3 + $0xa0] sm:$0xff] %v5213
    %5310 = vst [vmem:[#allocation3 + $0xa8] sm:$0xff] %v5214
    %5311 = vst [vmem:[#allocation3 + $0xb0] sm:$0xff] %v5215
    %5312 = vst [vmem:[#allocation3 + $0xb8] sm:$0xff] %v5216
    %5313 = vst [vmem:[#allocation3 + $0xc0] sm:$0xff] %v5217
    %5314 = vst [vmem:[#allocation3 + $0xc8] sm:$0xff] %v5218
    %5315 = vst [vmem:[#allocation3 + $0xd0] sm:$0xff] %v5219
    %5316 = vst [vmem:[#allocation3 + $0xd8] sm:$0xff] %v5220
    %5317 = vst [vmem:[#allocation3 + $0xe0] sm:$0xff] %v5221
    %5318 = vst [vmem:[#allocation3 + $0xe8] sm:$0xff] %v5222
    %5319 = vst [vmem:[#allocation3 + $0xf0] sm:$0xff] %v5223
    %5320 = vst [vmem:[#allocation3 + $0xf8] sm:$0xff] %v5224
    %5321 = vst [vmem:[#allocation3 + $0x100] sm:$0xff] %v5225
    %5322 = vst [vmem:[#allocation3 + $0x108] sm:$0xff] %v5226
    %5323 = vst [vmem:[#allocation3 + $0x110] sm:$0xff] %v5227
    %5324 = vst [vmem:[#allocation3 + $0x118] sm:$0xff] %v5228
    %5325 = vst [vmem:[#allocation3 + $0x120] sm:$0xff] %v5229
    %5326 = vst [vmem:[#allocation3 + $0x128] sm:$0xff] %v5230
    %5327 = vst [vmem:[#allocation3 + $0x130] sm:$0xff] %v5231
    %5328 = vst [vmem:[#allocation3 + $0x138] sm:$0xff] %v5232
    %5329 = vst [vmem:[#allocation3 + $0x140] sm:$0xff] %v5233
    %5330 = vst [vmem:[#allocation3 + $0x148] sm:$0xff] %v5234
    %5331 = vst [vmem:[#allocation3 + $0x150] sm:$0xff] %v5235
    %5332 = vst [vmem:[#allocation3 + $0x158] sm:$0xff] %v5236
    %5333 = vst [vmem:[#allocation3 + $0x160] sm:$0xff] %v5237
    %5334 = vst [vmem:[#allocation3 + $0x168] sm:$0xff] %v5238
    %5335 = vst [vmem:[#allocation3 + $0x170] sm:$0xff] %v5239
    %5336 = vst [vmem:[#allocation3 + $0x178] sm:$0xff] %v5240
    %v5337 = vld [vmem:[#allocation3] sm:$0xff]
    %v5338 = vld [vmem:[#allocation3 + $0x8] sm:$0xff]
    %v5339 = vld [vmem:[#allocation3 + $0x10] sm:$0xff]
    %v5340 = vld [vmem:[#allocation3 + $0x18] sm:$0xff]
    %v5341 = vld [vmem:[#allocation3 + $0x20] sm:$0xff]
    %v5342 = vld [vmem:[#allocation3 + $0x28] sm:$0xff]
    %v5343 = vld [vmem:[#allocation3 + $0x30] sm:$0xff]
    %v5344 = vld [vmem:[#allocation3 + $0x38] sm:$0xff]
    %v5345 = vld [vmem:[#allocation3 + $0x40] sm:$0xff]
    %v5346 = vld [vmem:[#allocation3 + $0x48] sm:$0xff]
    %v5347 = vld [vmem:[#allocation3 + $0x50] sm:$0xff]
    %v5348 = vld [vmem:[#allocation3 + $0x58] sm:$0xff]
    %v5349 = vld [vmem:[#allocation3 + $0x60] sm:$0xff]
    %v5350 = vld [vmem:[#allocation3 + $0x68] sm:$0xff]
    %v5351 = vld [vmem:[#allocation3 + $0x70] sm:$0xff]
    %v5352 = vld [vmem:[#allocation3 + $0x78] sm:$0xff]
    %v5353 = vld [vmem:[#allocation3 + $0x80] sm:$0xff]
    %v5354 = vld [vmem:[#allocation3 + $0x88] sm:$0xff]
    %v5355 = vld [vmem:[#allocation3 + $0x90] sm:$0xff]
    %v5356 = vld [vmem:[#allocation3 + $0x98] sm:$0xff]
    %v5357 = vld [vmem:[#allocation3 + $0xa0] sm:$0xff]
    %v5358 = vld [vmem:[#allocation3 + $0xa8] sm:$0xff]
    %v5359 = vld [vmem:[#allocation3 + $0xb0] sm:$0xff]
    %v5360 = vld [vmem:[#allocation3 + $0xb8] sm:$0xff]
    %v5361 = vld [vmem:[#allocation3 + $0xc0] sm:$0xff]
    %v5362 = vld [vmem:[#allocation3 + $0xc8] sm:$0xff]
    %v5363 = vld [vmem:[#allocation3 + $0xd0] sm:$0xff]
    %v5364 = vld [vmem:[#allocation3 + $0xd8] sm:$0xff]
    %v5365 = vld [vmem:[#allocation3 + $0xe0] sm:$0xff]
    %v5366 = vld [vmem:[#allocation3 + $0xe8] sm:$0xff]
    %v5367 = vld [vmem:[#allocation3 + $0xf0] sm:$0xff]
    %v5368 = vld [vmem:[#allocation3 + $0xf8] sm:$0xff]
    %v5369 = vld [vmem:[#allocation3 + $0x100] sm:$0xff]
    %v5370 = vld [vmem:[#allocation3 + $0x108] sm:$0xff]
    %v5371 = vld [vmem:[#allocation3 + $0x110] sm:$0xff]
    %v5372 = vld [vmem:[#allocation3 + $0x118] sm:$0xff]
    %v5373 = vld [vmem:[#allocation3 + $0x120] sm:$0xff]
    %v5374 = vld [vmem:[#allocation3 + $0x128] sm:$0xff]
    %v5375 = vld [vmem:[#allocation3 + $0x130] sm:$0xff]
    %v5376 = vld [vmem:[#allocation3 + $0x138] sm:$0xff]
    %v5377 = vld [vmem:[#allocation3 + $0x140] sm:$0xff]
    %v5378 = vld [vmem:[#allocation3 + $0x148] sm:$0xff]
    %v5379 = vld [vmem:[#allocation3 + $0x150] sm:$0xff]
    %v5380 = vld [vmem:[#allocation3 + $0x158] sm:$0xff]
    %v5381 = vld [vmem:[#allocation3 + $0x160] sm:$0xff]
    %v5382 = vld [vmem:[#allocation3 + $0x168] sm:$0xff]
    %v5383 = vld [vmem:[#allocation3 + $0x170] sm:$0xff]
    %v5384 = vld [vmem:[#allocation3 + $0x178] sm:$0xff]
    %v5385 = vld [vmem:[#allocation14] sm:$0xff]
    %v5386 = vld [vmem:[#allocation14 + $0x8] sm:$0xff]
    %v5387 = vld [vmem:[#allocation14 + $0x10] sm:$0xff]
    %v5388 = vld [vmem:[#allocation14 + $0x18] sm:$0xff]
    %v5389 = vld [vmem:[#allocation14 + $0x20] sm:$0xff]
    %v5390 = vld [vmem:[#allocation14 + $0x28] sm:$0xff]
    %v5391 = vld [vmem:[#allocation14 + $0x30] sm:$0xff]
    %v5392 = vld [vmem:[#allocation14 + $0x38] sm:$0xff]
    %v5393 = vld [vmem:[#allocation14 + $0x40] sm:$0xff]
    %v5394 = vld [vmem:[#allocation14 + $0x48] sm:$0xff]
    %v5395 = vld [vmem:[#allocation14 + $0x50] sm:$0xff]
    %v5396 = vld [vmem:[#allocation14 + $0x58] sm:$0xff]
    %v5397 = vld [vmem:[#allocation14 + $0x60] sm:$0xff]
    %v5398 = vld [vmem:[#allocation14 + $0x68] sm:$0xff]
    %v5399 = vld [vmem:[#allocation14 + $0x70] sm:$0xff]
    %v5400 = vld [vmem:[#allocation14 + $0x78] sm:$0xff]
    %v5401 = vld [vmem:[#allocation14 + $0x80] sm:$0xff]
    %v5402 = vld [vmem:[#allocation14 + $0x88] sm:$0xff]
    %v5403 = vld [vmem:[#allocation14 + $0x90] sm:$0xff]
    %v5404 = vld [vmem:[#allocation14 + $0x98] sm:$0xff]
    %v5405 = vld [vmem:[#allocation14 + $0xa0] sm:$0xff]
    %v5406 = vld [vmem:[#allocation14 + $0xa8] sm:$0xff]
    %v5407 = vld [vmem:[#allocation14 + $0xb0] sm:$0xff]
    %v5408 = vld [vmem:[#allocation14 + $0xb8] sm:$0xff]
    %v5409 = vld [vmem:[#allocation14 + $0xc0] sm:$0xff]
    %v5410 = vld [vmem:[#allocation14 + $0xc8] sm:$0xff]
    %v5411 = vld [vmem:[#allocation14 + $0xd0] sm:$0xff]
    %v5412 = vld [vmem:[#allocation14 + $0xd8] sm:$0xff]
    %v5413 = vld [vmem:[#allocation14 + $0xe0] sm:$0xff]
    %v5414 = vld [vmem:[#allocation14 + $0xe8] sm:$0xff]
    %v5415 = vld [vmem:[#allocation14 + $0xf0] sm:$0xff]
    %v5416 = vld [vmem:[#allocation14 + $0xf8] sm:$0xff]
    %v5417 = vld [vmem:[#allocation3] sm:$0x88]
    %v5418 = vld [vmem:[#allocation3 + $0x180] sm:$0x77]
    %v5419 = vld [vmem:[#allocation14 + $0x100] sm:$0xff]
    %v5420 = vld [vmem:[#allocation14 + $0x108] sm:$0xff]
    %v5421 = vld [vmem:[#allocation14 + $0x110] sm:$0xff]
    %v5422 = vld [vmem:[#allocation14 + $0x118] sm:$0xff]
    %v5423 = vld [vmem:[#allocation14 + $0x120] sm:$0xff]
    %v5424 = vld [vmem:[#allocation14 + $0x128] sm:$0xff]
    %v5425 = vld [vmem:[#allocation14 + $0x130] sm:$0xff]
    %v5426 = vld [vmem:[#allocation14 + $0x138] sm:$0xff]
    %v5427 = vld [vmem:[#allocation14 + $0x140] sm:$0xff]
    %v5428 = vld [vmem:[#allocation14 + $0x148] sm:$0xff]
    %v5429 = vld [vmem:[#allocation14 + $0x150] sm:$0xff]
    %v5430 = vld [vmem:[#allocation14 + $0x158] sm:$0xff]
    %v5431 = vld [vmem:[#allocation14 + $0x160] sm:$0xff]
    %v5432 = vld [vmem:[#allocation14 + $0x168] sm:$0xff]
    %v5433 = vld [vmem:[#allocation14 + $0x170] sm:$0xff]
    %v5434 = vld [vmem:[#allocation14 + $0x178] sm:$0xff]
    %v5435 = vld [vmem:[#allocation14 + $0x180] sm:$0xff]
    %v5436 = vld [vmem:[#allocation14 + $0x188] sm:$0xff]
    %v5437 = vld [vmem:[#allocation14 + $0x190] sm:$0xff]
    %v5438 = vld [vmem:[#allocation14 + $0x198] sm:$0xff]
    %v5439 = vld [vmem:[#allocation14 + $0x1a0] sm:$0xff]
    %v5440 = vld [vmem:[#allocation14 + $0x1a8] sm:$0xff]
    %v5441 = vld [vmem:[#allocation14 + $0x1b0] sm:$0xff]
    %v5442 = vld [vmem:[#allocation14 + $0x1b8] sm:$0xff]
    %v5443 = vld [vmem:[#allocation14 + $0x1c0] sm:$0xff]
    %v5444 = vld [vmem:[#allocation14 + $0x1c8] sm:$0xff]
    %v5445 = vld [vmem:[#allocation14 + $0x1d0] sm:$0xff]
    %v5446 = vld [vmem:[#allocation14 + $0x1d8] sm:$0xff]
    %v5447 = vld [vmem:[#allocation14 + $0x1e0] sm:$0xff]
    %v5448 = vld [vmem:[#allocation14 + $0x1e8] sm:$0xff]
    %v5449 = vld [vmem:[#allocation14 + $0x1f0] sm:$0xff]
    %v5450 = vld [vmem:[#allocation14 + $0x1f8] sm:$0xff]
    %v5500 = vunpack.c.l.b16 %v5417
    %v5501 = vunpack.c.h.b16 %v5417
    %v5502 = vunpack.c.l.b16 %v5338
    %v5503 = vunpack.c.h.b16 %v5338
    %v5504 = vunpack.c.l.b16 %v5339
    %v5505 = vunpack.c.h.b16 %v5339
    %v5506 = vunpack.c.l.b16 %v5340
    %v5507 = vunpack.c.h.b16 %v5340
    %v5508 = vunpack.c.l.b16 %v5341
    %v5509 = vunpack.c.h.b16 %v5341
    %v5510 = vunpack.c.l.b16 %v5342
    %v5511 = vunpack.c.h.b16 %v5342
    %v5512 = vunpack.c.l.b16 %v5343
    %v5513 = vunpack.c.h.b16 %v5343
    %v5514 = vunpack.c.l.b16 %v5344
    %v5515 = vunpack.c.h.b16 %v5344
    %v5516 = vunpack.c.l.b16 %v5345
    %v5517 = vunpack.c.h.b16 %v5345
    %v5518 = vunpack.c.l.b16 %v5346
    %v5519 = vunpack.c.h.b16 %v5346
    %v5520 = vunpack.c.l.b16 %v5347
    %v5521 = vunpack.c.h.b16 %v5347
    %v5522 = vunpack.c.l.b16 %v5348
    %v5523 = vunpack.c.h.b16 %v5348
    %v5524 = vunpack.c.l.b16 %v5349
    %v5525 = vunpack.c.h.b16 %v5349
    %v5526 = vunpack.c.l.b16 %v5350
    %v5527 = vunpack.c.h.b16 %v5350
    %v5528 = vunpack.c.l.b16 %v5351
    %v5529 = vunpack.c.h.b16 %v5351
    %v5530 = vunpack.c.l.b16 %v5352
    %v5531 = vunpack.c.h.b16 %v5352
    %v5532 = vunpack.c.l.b16 %v5353
    %v5533 = vunpack.c.h.b16 %v5353
    %v5534 = vunpack.c.l.b16 %v5354
    %v5535 = vunpack.c.h.b16 %v5354
    %v5536 = vunpack.c.l.b16 %v5355
    %v5537 = vunpack.c.h.b16 %v5355
    %v5538 = vunpack.c.l.b16 %v5356
    %v5539 = vunpack.c.h.b16 %v5356
    %v5540 = vunpack.c.l.b16 %v5357
    %v5541 = vunpack.c.h.b16 %v5357
    %v5542 = vunpack.c.l.b16 %v5358
    %v5543 = vunpack.c.h.b16 %v5358
    %v5544 = vunpack.c.l.b16 %v5359
    %v5545 = vunpack.c.h.b16 %v5359
    %v5546 = vunpack.c.l.b16 %v5360
    %v5547 = vunpack.c.h.b16 %v5360
    %v5548 = vunpack.c.l.b16 %v5361
    %v5549 = vunpack.c.h.b16 %v5361
    %v5550 = vunpack.c.l.b16 %v5362
    %v5551 = vunpack.c.h.b16 %v5362
    %v5552 = vunpack.c.l.b16 %v5363
    %v5553 = vunpack.c.h.b16 %v5363
    %v5554 = vunpack.c.l.b16 %v5364
    %v5555 = vunpack.c.h.b16 %v5364
    %v5556 = vunpack.c.l.b16 %v5365
    %v5557 = vunpack.c.h.b16 %v5365
    %v5558 = vunpack.c.l.b16 %v5366
    %v5559 = vunpack.c.h.b16 %v5366
    %v5560 = vunpack.c.l.b16 %v5367
    %v5561 = vunpack.c.h.b16 %v5367
    %v5562 = vunpack.c.l.b16 %v5368
    %v5563 = vunpack.c.h.b16 %v5368
    %v5564 = vunpack.c.l.b16 %v5369
    %v5565 = vunpack.c.h.b16 %v5369
    %v5566 = vunpack.c.l.b16 %v5370
    %v5567 = vunpack.c.h.b16 %v5370
    %v5568 = vunpack.c.l.b16 %v5371
    %v5569 = vunpack.c.h.b16 %v5371
    %v5570 = vunpack.c.l.b16 %v5372
    %v5571 = vunpack.c.h.b16 %v5372
    %v5572 = vunpack.c.l.b16 %v5373
    %v5573 = vunpack.c.h.b16 %v5373
    %v5574 = vunpack.c.l.b16 %v5374
    %v5575 = vunpack.c.h.b16 %v5374
    %v5576 = vunpack.c.l.b16 %v5375
    %v5577 = vunpack.c.h.b16 %v5375
    %v5578 = vunpack.c.l.b16 %v5376
    %v5579 = vunpack.c.h.b16 %v5376
    %v5580 = vunpack.c.l.b16 %v5377
    %v5581 = vunpack.c.h.b16 %v5377
    %v5582 = vunpack.c.l.b16 %v5378
    %v5583 = vunpack.c.h.b16 %v5378
    %v5584 = vunpack.c.l.b16 %v5379
    %v5585 = vunpack.c.h.b16 %v5379
    %v5586 = vunpack.c.l.b16 %v5380
    %v5587 = vunpack.c.h.b16 %v5380
    %v5588 = vunpack.c.l.b16 %v5381
    %v5589 = vunpack.c.h.b16 %v5381
    %v5590 = vunpack.c.l.b16 %v5382
    %v5591 = vunpack.c.h.b16 %v5382
    %v5592 = vunpack.c.l.b16 %v5383
    %v5593 = vunpack.c.h.b16 %v5383
    %v5594 = vunpack.c.l.b16 %v5384
    %v5595 = vunpack.c.h.b16 %v5384
    %v5596 = vunpack.c.l.b16 %v5418
    %v5597 = vunpack.c.h.b16 %v5418
    %v5598 = vpack.c.b16 %v5502, %v5500
    %v5599 = vpack.c.b16 %v5503, %v5501
    %v5600 = vpack.c.b16 %v5506, %v5504
    %v5601 = vpack.c.b16 %v5507, %v5505
    %v5602 = vpack.c.b16 %v5510, %v5508
    %v5603 = vpack.c.b16 %v5511, %v5509
    %v5604 = vpack.c.b16 %v5514, %v5512
    %v5605 = vpack.c.b16 %v5515, %v5513
    %v5606 = vpack.c.b16 %v5518, %v5516
    %v5607 = vpack.c.b16 %v5519, %v5517
    %v5608 = vpack.c.b16 %v5522, %v5520
    %v5609 = vpack.c.b16 %v5523, %v5521
    %v5610 = vpack.c.b16 %v5526, %v5524
    %v5611 = vpack.c.b16 %v5527, %v5525
    %v5612 = vpack.c.b16 %v5530, %v5528
    %v5613 = vpack.c.b16 %v5531, %v5529
    %v5614 = vpack.c.b16 %v5534, %v5532
    %v5615 = vpack.c.b16 %v5535, %v5533
    %v5616 = vpack.c.b16 %v5538, %v5536
    %v5617 = vpack.c.b16 %v5539, %v5537
    %v5618 = vpack.c.b16 %v5542, %v5540
    %v5619 = vpack.c.b16 %v5543, %v5541
    %v5620 = vpack.c.b16 %v5546, %v5544
    %v5621 = vpack.c.b16 %v5547, %v5545
    %v5622 = vpack.c.b16 %v5550, %v5548
    %v5623 = vpack.c.b16 %v5551, %v5549
    %v5624 = vpack.c.b16 %v5554, %v5552
    %v5625 = vpack.c.b16 %v5555, %v5553
    %v5626 = vpack.c.b16 %v5558, %v5556
    %v5627 = vpack.c.b16 %v5559, %v5557
    %v5628 = vpack.c.b16 %v5562, %v5560
    %v5629 = vpack.c.b16 %v5563, %v5561
    %v5630 = vpack.c.b16 %v5566, %v5564
    %v5631 = vpack.c.b16 %v5567, %v5565
    %v5632 = vpack.c.b16 %v5570, %v5568
    %v5633 = vpack.c.b16 %v5571, %v5569
    %v5634 = vpack.c.b16 %v5574, %v5572
    %v5635 = vpack.c.b16 %v5575, %v5573
    %v5636 = vpack.c.b16 %v5578, %v5576
    %v5637 = vpack.c.b16 %v5579, %v5577
    %v5638 = vpack.c.b16 %v5582, %v5580
    %v5639 = vpack.c.b16 %v5583, %v5581
    %v5640 = vpack.c.b16 %v5586, %v5584
    %v5641 = vpack.c.b16 %v5587, %v5585
    %v5642 = vpack.c.b16 %v5590, %v5588
    %v5643 = vpack.c.b16 %v5591, %v5589
    %v5644 = vpack.c.b16 %v5594, %v5592
    %v5645 = vpack.c.b16 %v5595, %v5593
    %v5646 = vpack.c.b16 %v5596, %v5596
    %v5647 = vpack.c.b16 %v5597, %v5597
    %v5648 = vrot.slane %v5598, 3
    %v5649 = vrot.slane %v5600, 3
    %v5650 = vsel %vm1737, %v5648, %v5649
    %v5651 = vrot.slane %v5599, 3
    %v5652 = vrot.slane %v5601, 3
    %v5653 = vsel %vm1737, %v5651, %v5652
    %v5654 = vrot.slane %v5602, 3
    %v5655 = vsel %vm1737, %v5649, %v5654
    %v5656 = vrot.slane %v5603, 3
    %v5657 = vsel %vm1737, %v5652, %v5656
    %v5658 = vrot.slane %v5604, 3
    %v5659 = vsel %vm1737, %v5654, %v5658
    %v5660 = vrot.slane %v5605, 3
    %v5661 = vsel %vm1737, %v5656, %v5660
    %v5662 = vrot.slane %v5606, 3
    %v5663 = vsel %vm1737, %v5658, %v5662
    %v5664 = vrot.slane %v5607, 3
    %v5665 = vsel %vm1737, %v5660, %v5664
    %v5666 = vrot.slane %v5608, 3
    %v5667 = vsel %vm1737, %v5662, %v5666
    %v5668 = vrot.slane %v5609, 3
    %v5669 = vsel %vm1737, %v5664, %v5668
    %v5670 = vrot.slane %v5610, 3
    %v5671 = vsel %vm1737, %v5666, %v5670
    %v5672 = vrot.slane %v5611, 3
    %v5673 = vsel %vm1737, %v5668, %v5672
    %v5674 = vrot.slane %v5612, 3
    %v5675 = vsel %vm1737, %v5670, %v5674
    %v5676 = vrot.slane %v5613, 3
    %v5677 = vsel %vm1737, %v5672, %v5676
    %v5678 = vrot.slane %v5614, 3
    %v5679 = vsel %vm1737, %v5674, %v5678
    %v5680 = vrot.slane %v5615, 3
    %v5681 = vsel %vm1737, %v5676, %v5680
    %v5682 = vrot.slane %v5616, 3
    %v5683 = vsel %vm1737, %v5678, %v5682
    %v5684 = vrot.slane %v5617, 3
    %v5685 = vsel %vm1737, %v5680, %v5684
    %v5686 = vrot.slane %v5618, 3
    %v5687 = vsel %vm1737, %v5682, %v5686
    %v5688 = vrot.slane %v5619, 3
    %v5689 = vsel %vm1737, %v5684, %v5688
    %v5690 = vrot.slane %v5620, 3
    %v5691 = vsel %vm1737, %v5686, %v5690
    %v5692 = vrot.slane %v5621, 3
    %v5693 = vsel %vm1737, %v5688, %v5692
    %v5694 = vrot.slane %v5622, 3
    %v5695 = vsel %vm1737, %v5690, %v5694
    %v5696 = vrot.slane %v5623, 3
    %v5697 = vsel %vm1737, %v5692, %v5696
    %v5698 = vrot.slane %v5624, 3
    %v5699 = vsel %vm1737, %v5694, %v5698
    %v5700 = vrot.slane %v5625, 3
    %v5701 = vsel %vm1737, %v5696, %v5700
    %v5702 = vrot.slane %v5626, 3
    %v5703 = vsel %vm1737, %v5698, %v5702
    %v5704 = vrot.slane %v5627, 3
    %v5705 = vsel %vm1737, %v5700, %v5704
    %v5706 = vrot.slane %v5628, 3
    %v5707 = vsel %vm1737, %v5702, %v5706
    %v5708 = vrot.slane %v5629, 3
    %v5709 = vsel %vm1737, %v5704, %v5708
    %v5710 = vrot.slane %v5630, 3
    %v5711 = vsel %vm1737, %v5706, %v5710
    %v5712 = vrot.slane %v5631, 3
    %v5713 = vsel %vm1737, %v5708, %v5712
    %v5714 = vrot.slane %v5632, 3
    %v5715 = vsel %vm1737, %v5710, %v5714
    %v5716 = vrot.slane %v5633, 3
    %v5717 = vsel %vm1737, %v5712, %v5716
    %v5718 = vrot.slane %v5634, 3
    %v5719 = vsel %vm1737, %v5714, %v5718
    %v5720 = vrot.slane %v5635, 3
    %v5721 = vsel %vm1737, %v5716, %v5720
    %v5722 = vrot.slane %v5636, 3
    %v5723 = vsel %vm1737, %v5718, %v5722
    %v5724 = vrot.slane %v5637, 3
    %v5725 = vsel %vm1737, %v5720, %v5724
    %v5726 = vrot.slane %v5638, 3
    %v5727 = vsel %vm1737, %v5722, %v5726
    %v5728 = vrot.slane %v5639, 3
    %v5729 = vsel %vm1737, %v5724, %v5728
    %v5730 = vrot.slane %v5640, 3
    %v5731 = vsel %vm1737, %v5726, %v5730
    %v5732 = vrot.slane %v5641, 3
    %v5733 = vsel %vm1737, %v5728, %v5732
    %v5734 = vrot.slane %v5642, 3
    %v5735 = vsel %vm1737, %v5730, %v5734
    %v5736 = vrot.slane %v5643, 3
    %v5737 = vsel %vm1737, %v5732, %v5736
    %v5738 = vrot.slane %v5644, 3
    %v5739 = vsel %vm1737, %v5734, %v5738
    %v5740 = vrot.slane %v5645, 3
    %v5741 = vsel %vm1737, %v5736, %v5740
    %v5742 = vrot.slane %v5646, 3
    %v5743 = vsel %vm1737, %v5738, %v5742
    %v5744 = vrot.slane %v5647, 3
    %v5745 = vsel %vm1737, %v5740, %v5744
    %v5826 = vunpack.c.l.b16 %v5419
    %v5827 = vunpack.c.h.b16 %v5419
    %v5828 = vunpack.c.l.b16 %v5420
    %v5829 = vunpack.c.h.b16 %v5420
    %v5830 = vunpack.c.l.b16 %v5421
    %v5831 = vunpack.c.h.b16 %v5421
    %v5832 = vunpack.c.l.b16 %v5422
    %v5833 = vunpack.c.h.b16 %v5422
    %v5834 = vunpack.c.l.b16 %v5423
    %v5835 = vunpack.c.h.b16 %v5423
    %v5836 = vunpack.c.l.b16 %v5424
    %v5837 = vunpack.c.h.b16 %v5424
    %v5838 = vunpack.c.l.b16 %v5425
    %v5839 = vunpack.c.h.b16 %v5425
    %v5840 = vunpack.c.l.b16 %v5426
    %v5841 = vunpack.c.h.b16 %v5426
    %v5842 = vunpack.c.l.b16 %v5427
    %v5843 = vunpack.c.h.b16 %v5427
    %v5844 = vunpack.c.l.b16 %v5428
    %v5845 = vunpack.c.h.b16 %v5428
    %v5846 = vunpack.c.l.b16 %v5429
    %v5847 = vunpack.c.h.b16 %v5429
    %v5848 = vunpack.c.l.b16 %v5430
    %v5849 = vunpack.c.h.b16 %v5430
    %v5850 = vunpack.c.l.b16 %v5431
    %v5851 = vunpack.c.h.b16 %v5431
    %v5852 = vunpack.c.l.b16 %v5432
    %v5853 = vunpack.c.h.b16 %v5432
    %v5854 = vunpack.c.l.b16 %v5433
    %v5855 = vunpack.c.h.b16 %v5433
    %v5856 = vunpack.c.l.b16 %v5434
    %v5857 = vunpack.c.h.b16 %v5434
    %v5858 = vunpack.c.l.b16 %v5435
    %v5859 = vunpack.c.h.b16 %v5435
    %v5860 = vunpack.c.l.b16 %v5436
    %v5861 = vunpack.c.h.b16 %v5436
    %v5862 = vunpack.c.l.b16 %v5437
    %v5863 = vunpack.c.h.b16 %v5437
    %v5864 = vunpack.c.l.b16 %v5438
    %v5865 = vunpack.c.h.b16 %v5438
    %v5866 = vunpack.c.l.b16 %v5439
    %v5867 = vunpack.c.h.b16 %v5439
    %v5868 = vunpack.c.l.b16 %v5440
    %v5869 = vunpack.c.h.b16 %v5440
    %v5870 = vunpack.c.l.b16 %v5441
    %v5871 = vunpack.c.h.b16 %v5441
    %v5872 = vunpack.c.l.b16 %v5442
    %v5873 = vunpack.c.h.b16 %v5442
    %v5874 = vunpack.c.l.b16 %v5443
    %v5875 = vunpack.c.h.b16 %v5443
    %v5876 = vunpack.c.l.b16 %v5444
    %v5877 = vunpack.c.h.b16 %v5444
    %v5878 = vunpack.c.l.b16 %v5445
    %v5879 = vunpack.c.h.b16 %v5445
    %v5880 = vunpack.c.l.b16 %v5446
    %v5881 = vunpack.c.h.b16 %v5446
    %v5882 = vunpack.c.l.b16 %v5447
    %v5883 = vunpack.c.h.b16 %v5447
    %v5884 = vunpack.c.l.b16 %v5448
    %v5885 = vunpack.c.h.b16 %v5448
    %v5886 = vunpack.c.l.b16 %v5449
    %v5887 = vunpack.c.h.b16 %v5449
    %v5888 = vunpack.c.l.b16 %v5450
    %v5889 = vunpack.c.h.b16 %v5450
    %v5890 = vpack.c.b16 %v5828, %v5826
    %v5891 = vpack.c.b16 %v5829, %v5827
    %v5892 = vpack.c.b16 %v5832, %v5830
    %v5893 = vpack.c.b16 %v5833, %v5831
    %v5894 = vpack.c.b16 %v5836, %v5834
    %v5895 = vpack.c.b16 %v5837, %v5835
    %v5896 = vpack.c.b16 %v5840, %v5838
    %v5897 = vpack.c.b16 %v5841, %v5839
    %v5898 = vpack.c.b16 %v5844, %v5842
    %v5899 = vpack.c.b16 %v5845, %v5843
    %v5900 = vpack.c.b16 %v5848, %v5846
    %v5901 = vpack.c.b16 %v5849, %v5847
    %v5902 = vpack.c.b16 %v5852, %v5850
    %v5903 = vpack.c.b16 %v5853, %v5851
    %v5904 = vpack.c.b16 %v5856, %v5854
    %v5905 = vpack.c.b16 %v5857, %v5855
    %v5906 = vpack.c.b16 %v5860, %v5858
    %v5907 = vpack.c.b16 %v5861, %v5859
    %v5908 = vpack.c.b16 %v5864, %v5862
    %v5909 = vpack.c.b16 %v5865, %v5863
    %v5910 = vpack.c.b16 %v5868, %v5866
    %v5911 = vpack.c.b16 %v5869, %v5867
    %v5912 = vpack.c.b16 %v5872, %v5870
    %v5913 = vpack.c.b16 %v5873, %v5871
    %v5914 = vpack.c.b16 %v5876, %v5874
    %v5915 = vpack.c.b16 %v5877, %v5875
    %v5916 = vpack.c.b16 %v5880, %v5878
    %v5917 = vpack.c.b16 %v5881, %v5879
    %v5918 = vpack.c.b16 %v5884, %v5882
    %v5919 = vpack.c.b16 %v5885, %v5883
    %v5920 = vpack.c.b16 %v5888, %v5886
    %v5921 = vpack.c.b16 %v5889, %v5887
    %5954 = vmatprep.subr.bf16.mxu0 %v5891
    %5955 = vmatpush1.bf16.msra.mxu0 %v5890
    %5956 = vmatprep.subr.bf16.mxu0 %v5893
    %5957 = vmatpush1.bf16.msra.mxu0 %v5892
    %5958 = vmatprep.subr.bf16.mxu0 %v5895
    %5959 = vmatpush1.bf16.msra.mxu0 %v5894
    %5960 = vmatprep.subr.bf16.mxu0 %v5897
    %5961 = vmatpush1.bf16.msra.mxu0 %v5896
    %5962 = vmatprep.subr.bf16.mxu0 %v5899
    %5963 = vmatpush1.bf16.msra.mxu0 %v5898
    %5964 = vmatprep.subr.bf16.mxu0 %v5901
    %5965 = vmatpush1.bf16.msra.mxu0 %v5900
    %5966 = vmatprep.subr.bf16.mxu0 %v5903
    %5967 = vmatpush1.bf16.msra.mxu0 %v5902
    %5968 = vmatprep.subr.bf16.mxu0 %v5905
    %5969 = vmatpush1.bf16.msra.mxu0 %v5904
    %5970 = vmatprep.subr.bf16.mxu0 %v5907
    %5971 = vmatpush1.bf16.msra.mxu0 %v5906
    %5972 = vmatprep.subr.bf16.mxu0 %v5909
    %5973 = vmatpush1.bf16.msra.mxu0 %v5908
    %5974 = vmatprep.subr.bf16.mxu0 %v5911
    %5975 = vmatpush1.bf16.msra.mxu0 %v5910
    %5976 = vmatprep.subr.bf16.mxu0 %v5913
    %5977 = vmatpush1.bf16.msra.mxu0 %v5912
    %5978 = vmatprep.subr.bf16.mxu0 %v5915
    %5979 = vmatpush1.bf16.msra.mxu0 %v5914
    %5980 = vmatprep.subr.bf16.mxu0 %v5917
    %5981 = vmatpush1.bf16.msra.mxu0 %v5916
    %5982 = vmatprep.subr.bf16.mxu0 %v5919
    %5983 = vmatpush1.bf16.msra.mxu0 %v5918
    %5984 = vmatprep.subr.bf16.mxu0 %v5921
    %5985 = vmatpush1.bf16.msra.mxu0 %v5920
    %5986 = vmatprep.mubr.bf16.mxu0 %v5653
    %5987 = vmatmul.mubr.bf16.gmra.mrb[0].mxu0 %v5650
    %v5988 = vpop.f32.mrb[0].mxu0
    %v5989 = vadd.f32 0.0, %v5988
    %v5990 = vpop.f32.mrb[0].mxu0
    %v5991 = vadd.f32 0.0, %v5990
    %v5992 = vpop.f32.mrb[0].mxu0
    %v5993 = vadd.f32 0.0, %v5992
    %v5994 = vpop.f32.mrb[0].mxu0
    %v5995 = vadd.f32 0.0, %v5994
    %5996 = vmatprep.mubr.bf16.mxu0 %v5657
    %5997 = vmatmul.mubr.bf16.gmra.mrb[0].mxu0 %v5655
    %v5998 = vpop.f32.mrb[0].mxu0
    %v5999 = vadd.f32 0.0, %v5998
    %v6000 = vpop.f32.mrb[0].mxu0
    %v6001 = vadd.f32 0.0, %v6000
    %v6002 = vpop.f32.mrb[0].mxu0
    %v6003 = vadd.f32 0.0, %v6002
    %v6004 = vpop.f32.mrb[0].mxu0
    %v6005 = vadd.f32 0.0, %v6004
    %6006 = vmatprep.mubr.bf16.mxu0 %v5661
    %6007 = vmatmul.mubr.bf16.gmra.mrb[0].mxu0 %v5659
    %v6008 = vpop.f32.mrb[0].mxu0
    %v6009 = vadd.f32 0.0, %v6008
    %v6010 = vpop.f32.mrb[0].mxu0
    %v6011 = vadd.f32 0.0, %v6010
    %v6012 = vpop.f32.mrb[0].mxu0
    %v6013 = vadd.f32 0.0, %v6012
    %v6014 = vpop.f32.mrb[0].mxu0
    %v6015 = vadd.f32 0.0, %v6014
    %6016 = vmatprep.mubr.bf16.mxu0 %v5665
    %6017 = vmatmul.mubr.bf16.gmra.mrb[0].mxu0 %v5663
    %v6018 = vpop.f32.mrb[0].mxu0
    %v6019 = vadd.f32 0.0, %v6018
    %v6020 = vpop.f32.mrb[0].mxu0
    %v6021 = vadd.f32 0.0, %v6020
    %v6022 = vpop.f32.mrb[0].mxu0
    %v6023 = vadd.f32 0.0, %v6022
    %v6024 = vpop.f32.mrb[0].mxu0
    %v6025 = vadd.f32 0.0, %v6024
    %6026 = vmatprep.mubr.bf16.mxu0 %v5669
    %6027 = vmatmul.mubr.bf16.gmra.mrb[0].mxu0 %v5667
    %v6028 = vpop.f32.mrb[0].mxu0
    %v6029 = vadd.f32 0.0, %v6028
    %v6030 = vpop.f32.mrb[0].mxu0
    %v6031 = vadd.f32 0.0, %v6030
    %v6032 = vpop.f32.mrb[0].mxu0
    %v6033 = vadd.f32 0.0, %v6032
    %v6034 = vpop.f32.mrb[0].mxu0
    %v6035 = vadd.f32 0.0, %v6034
    %6036 = vmatprep.mubr.bf16.mxu0 %v5673
    %6037 = vmatmul.mubr.bf16.gmra.mrb[0].mxu0 %v5671
    %v6038 = vpop.f32.mrb[0].mxu0
    %v6039 = vadd.f32 0.0, %v6038
    %v6040 = vpop.f32.mrb[0].mxu0
    %v6041 = vadd.f32 0.0, %v6040
    %v6042 = vpop.f32.mrb[0].mxu0
    %v6043 = vadd.f32 0.0, %v6042
    %v6044 = vpop.f32.mrb[0].mxu0
    %v6045 = vadd.f32 0.0, %v6044
    %6046 = vmatprep.mubr.bf16.mxu0 %v5677
    %6047 = vmatmul.mubr.bf16.gmra.mrb[0].mxu0 %v5675
    %v6048 = vpop.f32.mrb[0].mxu0
    %v6049 = vadd.f32 0.0, %v6048
    %v6050 = vpop.f32.mrb[0].mxu0
    %v6051 = vadd.f32 0.0, %v6050
    %v6052 = vpop.f32.mrb[0].mxu0
    %v6053 = vadd.f32 0.0, %v6052
    %v6054 = vpop.f32.mrb[0].mxu0
    %v6055 = vadd.f32 0.0, %v6054
    %6056 = vmatprep.mubr.bf16.mxu0 %v5681
    %6057 = vmatmul.mubr.bf16.gmra.mrb[0].mxu0 %v5679
    %v6058 = vpop.f32.mrb[0].mxu0
    %v6059 = vadd.f32 0.0, %v6058
    %v6060 = vpop.f32.mrb[0].mxu0
    %v6061 = vadd.f32 0.0, %v6060
    %v6062 = vpop.f32.mrb[0].mxu0
    %v6063 = vadd.f32 0.0, %v6062
    %v6064 = vpop.f32.mrb[0].mxu0
    %v6065 = vadd.f32 0.0, %v6064
    %6066 = vmatprep.mubr.bf16.mxu0 %v5685
    %6067 = vmatmul.mubr.bf16.gmra.mrb[0].mxu0 %v5683
    %v6068 = vpop.f32.mrb[0].mxu0
    %v6069 = vadd.f32 0.0, %v6068
    %v6070 = vpop.f32.mrb[0].mxu0
    %v6071 = vadd.f32 0.0, %v6070
    %v6072 = vpop.f32.mrb[0].mxu0
    %v6073 = vadd.f32 0.0, %v6072
    %v6074 = vpop.f32.mrb[0].mxu0
    %v6075 = vadd.f32 0.0, %v6074
    %6076 = vmatprep.mubr.bf16.mxu0 %v5689
    %6077 = vmatmul.mubr.bf16.gmra.mrb[0].mxu0 %v5687
    %v6078 = vpop.f32.mrb[0].mxu0
    %v6079 = vadd.f32 0.0, %v6078
    %v6080 = vpop.f32.mrb[0].mxu0
    %v6081 = vadd.f32 0.0, %v6080
    %v6082 = vpop.f32.mrb[0].mxu0
    %v6083 = vadd.f32 0.0, %v6082
    %v6084 = vpop.f32.mrb[0].mxu0
    %v6085 = vadd.f32 0.0, %v6084
    %6086 = vmatprep.mubr.bf16.mxu0 %v5693
    %6087 = vmatmul.mubr.bf16.gmra.mrb[0].mxu0 %v5691
    %v6088 = vpop.f32.mrb[0].mxu0
    %v6089 = vadd.f32 0.0, %v6088
    %v6090 = vpop.f32.mrb[0].mxu0
    %v6091 = vadd.f32 0.0, %v6090
    %v6092 = vpop.f32.mrb[0].mxu0
    %v6093 = vadd.f32 0.0, %v6092
    %v6094 = vpop.f32.mrb[0].mxu0
    %v6095 = vadd.f32 0.0, %v6094
    %6096 = vmatprep.mubr.bf16.mxu0 %v5697
    %6097 = vmatmul.mubr.bf16.gmra.mrb[0].mxu0 %v5695
    %v6098 = vpop.f32.mrb[0].mxu0
    %v6099 = vadd.f32 0.0, %v6098
    %v6100 = vpop.f32.mrb[0].mxu0
    %v6101 = vadd.f32 0.0, %v6100
    %v6102 = vpop.f32.mrb[0].mxu0
    %v6103 = vadd.f32 0.0, %v6102
    %v6104 = vpop.f32.mrb[0].mxu0
    %v6105 = vadd.f32 0.0, %v6104
    %6106 = vmatprep.mubr.bf16.mxu0 %v5701
    %6107 = vmatmul.mubr.bf16.gmra.mrb[0].mxu0 %v5699
    %v6108 = vpop.f32.mrb[0].mxu0
    %v6109 = vadd.f32 0.0, %v6108
    %v6110 = vpop.f32.mrb[0].mxu0
    %v6111 = vadd.f32 0.0, %v6110
    %v6112 = vpop.f32.mrb[0].mxu0
    %v6113 = vadd.f32 0.0, %v6112
    %v6114 = vpop.f32.mrb[0].mxu0
    %v6115 = vadd.f32 0.0, %v6114
    %6116 = vmatprep.mubr.bf16.mxu0 %v5705
    %6117 = vmatmul.mubr.bf16.gmra.mrb[0].mxu0 %v5703
    %v6118 = vpop.f32.mrb[0].mxu0
    %v6119 = vadd.f32 0.0, %v6118
    %v6120 = vpop.f32.mrb[0].mxu0
    %v6121 = vadd.f32 0.0, %v6120
    %v6122 = vpop.f32.mrb[0].mxu0
    %v6123 = vadd.f32 0.0, %v6122
    %v6124 = vpop.f32.mrb[0].mxu0
    %v6125 = vadd.f32 0.0, %v6124
    %6126 = vmatprep.mubr.bf16.mxu0 %v5709
    %6127 = vmatmul.mubr.bf16.gmra.mrb[0].mxu0 %v5707
    %v6128 = vpop.f32.mrb[0].mxu0
    %v6129 = vadd.f32 0.0, %v6128
    %v6130 = vpop.f32.mrb[0].mxu0
    %v6131 = vadd.f32 0.0, %v6130
    %v6132 = vpop.f32.mrb[0].mxu0
    %v6133 = vadd.f32 0.0, %v6132
    %v6134 = vpop.f32.mrb[0].mxu0
    %v6135 = vadd.f32 0.0, %v6134
    %6136 = vmatprep.mubr.bf16.mxu0 %v5713
    %6137 = vmatmul.mubr.bf16.gmra.mrb[0].mxu0 %v5711
    %v6138 = vpop.f32.mrb[0].mxu0
    %v6139 = vadd.f32 0.0, %v6138
    %v6140 = vpop.f32.mrb[0].mxu0
    %v6141 = vadd.f32 0.0, %v6140
    %v6142 = vpop.f32.mrb[0].mxu0
    %v6143 = vadd.f32 0.0, %v6142
    %v6144 = vpop.f32.mrb[0].mxu0
    %v6145 = vadd.f32 0.0, %v6144
    %6146 = vmatprep.mubr.bf16.mxu0 %v5717
    %6147 = vmatmul.mubr.bf16.gmra.mrb[0].mxu0 %v5715
    %v6148 = vpop.f32.mrb[0].mxu0
    %v6149 = vadd.f32 0.0, %v6148
    %v6150 = vpop.f32.mrb[0].mxu0
    %v6151 = vadd.f32 0.0, %v6150
    %v6152 = vpop.f32.mrb[0].mxu0
    %v6153 = vadd.f32 0.0, %v6152
    %v6154 = vpop.f32.mrb[0].mxu0
    %v6155 = vadd.f32 0.0, %v6154
    %6156 = vmatprep.mubr.bf16.mxu0 %v5721
    %6157 = vmatmul.mubr.bf16.gmra.mrb[0].mxu0 %v5719
    %v6158 = vpop.f32.mrb[0].mxu0
    %v6159 = vadd.f32 0.0, %v6158
    %v6160 = vpop.f32.mrb[0].mxu0
    %v6161 = vadd.f32 0.0, %v6160
    %v6162 = vpop.f32.mrb[0].mxu0
    %v6163 = vadd.f32 0.0, %v6162
    %v6164 = vpop.f32.mrb[0].mxu0
    %v6165 = vadd.f32 0.0, %v6164
    %6166 = vmatprep.mubr.bf16.mxu0 %v5725
    %6167 = vmatmul.mubr.bf16.gmra.mrb[0].mxu0 %v5723
    %v6168 = vpop.f32.mrb[0].mxu0
    %v6169 = vadd.f32 0.0, %v6168
    %v6170 = vpop.f32.mrb[0].mxu0
    %v6171 = vadd.f32 0.0, %v6170
    %v6172 = vpop.f32.mrb[0].mxu0
    %v6173 = vadd.f32 0.0, %v6172
    %v6174 = vpop.f32.mrb[0].mxu0
    %v6175 = vadd.f32 0.0, %v6174
    %6176 = vmatprep.mubr.bf16.mxu0 %v5729
    %6177 = vmatmul.mubr.bf16.gmra.mrb[0].mxu0 %v5727
    %v6178 = vpop.f32.mrb[0].mxu0
    %v6179 = vadd.f32 0.0, %v6178
    %v6180 = vpop.f32.mrb[0].mxu0
    %v6181 = vadd.f32 0.0, %v6180
    %v6182 = vpop.f32.mrb[0].mxu0
    %v6183 = vadd.f32 0.0, %v6182
    %v6184 = vpop.f32.mrb[0].mxu0
    %v6185 = vadd.f32 0.0, %v6184
    %6186 = vmatprep.mubr.bf16.mxu0 %v5733
    %6187 = vmatmul.mubr.bf16.gmra.mrb[0].mxu0 %v5731
    %v6188 = vpop.f32.mrb[0].mxu0
    %v6189 = vadd.f32 0.0, %v6188
    %v6190 = vpop.f32.mrb[0].mxu0
    %v6191 = vadd.f32 0.0, %v6190
    %v6192 = vpop.f32.mrb[0].mxu0
    %v6193 = vadd.f32 0.0, %v6192
    %v6194 = vpop.f32.mrb[0].mxu0
    %v6195 = vadd.f32 0.0, %v6194
    %6196 = vmatprep.mubr.bf16.mxu0 %v5737
    %6197 = vmatmul.mubr.bf16.gmra.mrb[0].mxu0 %v5735
    %v6198 = vpop.f32.mrb[0].mxu0
    %v6199 = vadd.f32 0.0, %v6198
    %v6200 = vpop.f32.mrb[0].mxu0
    %v6201 = vadd.f32 0.0, %v6200
    %v6202 = vpop.f32.mrb[0].mxu0
    %v6203 = vadd.f32 0.0, %v6202
    %v6204 = vpop.f32.mrb[0].mxu0
    %v6205 = vadd.f32 0.0, %v6204
    %6206 = vmatprep.mubr.bf16.mxu0 %v5741
    %6207 = vmatmul.mubr.bf16.gmra.mrb[0].mxu0 %v5739
    %v6208 = vpop.f32.mrb[0].mxu0
    %v6209 = vadd.f32 0.0, %v6208
    %v6210 = vpop.f32.mrb[0].mxu0
    %v6211 = vadd.f32 0.0, %v6210
    %v6212 = vpop.f32.mrb[0].mxu0
    %v6213 = vadd.f32 0.0, %v6212
    %v6214 = vpop.f32.mrb[0].mxu0
    %v6215 = vadd.f32 0.0, %v6214
    %6216 = vmatprep.mubr.bf16.mxu0 %v5745
    %6217 = vmatmul.mubr.bf16.gmra.mrb[0].mxu0 %v5743
    %v6218 = vpop.f32.mrb[0].mxu0
    %v6219 = vadd.f32 0.0, %v6218
    %v6220 = vpop.f32.mrb[0].mxu0
    %v6221 = vadd.f32 0.0, %v6220
    %v6222 = vpop.f32.mrb[0].mxu0
    %v6223 = vadd.f32 0.0, %v6222
    %v6224 = vpop.f32.mrb[0].mxu0
    %v6225 = vadd.f32 0.0, %v6224
    %6226 = vdwg.mxu0
    %v6228 = vunpack.c.l.b16 %v5337
    %v6229 = vunpack.c.h.b16 %v5337
    %v6230 = vpack.c.b16 %v5502, %v6228
    %v6231 = vpack.c.b16 %v5503, %v6229
    %v6312 = vunpack.c.l.b16 %v5385
    %v6313 = vunpack.c.h.b16 %v5385
    %v6314 = vunpack.c.l.b16 %v5386
    %v6315 = vunpack.c.h.b16 %v5386
    %v6316 = vunpack.c.l.b16 %v5387
    %v6317 = vunpack.c.h.b16 %v5387
    %v6318 = vunpack.c.l.b16 %v5388
    %v6319 = vunpack.c.h.b16 %v5388
    %v6320 = vunpack.c.l.b16 %v5389
    %v6321 = vunpack.c.h.b16 %v5389
    %v6322 = vunpack.c.l.b16 %v5390
    %v6323 = vunpack.c.h.b16 %v5390
    %v6324 = vunpack.c.l.b16 %v5391
    %v6325 = vunpack.c.h.b16 %v5391
    %v6326 = vunpack.c.l.b16 %v5392
    %v6327 = vunpack.c.h.b16 %v5392
    %v6328 = vunpack.c.l.b16 %v5393
    %v6329 = vunpack.c.h.b16 %v5393
    %v6330 = vunpack.c.l.b16 %v5394
    %v6331 = vunpack.c.h.b16 %v5394
    %v6332 = vunpack.c.l.b16 %v5395
    %v6333 = vunpack.c.h.b16 %v5395
    %v6334 = vunpack.c.l.b16 %v5396
    %v6335 = vunpack.c.h.b16 %v5396
    %v6336 = vunpack.c.l.b16 %v5397
    %v6337 = vunpack.c.h.b16 %v5397
    %v6338 = vunpack.c.l.b16 %v5398
    %v6339 = vunpack.c.h.b16 %v5398
    %v6340 = vunpack.c.l.b16 %v5399
    %v6341 = vunpack.c.h.b16 %v5399
    %v6342 = vunpack.c.l.b16 %v5400
    %v6343 = vunpack.c.h.b16 %v5400
    %v6344 = vunpack.c.l.b16 %v5401
    %v6345 = vunpack.c.h.b16 %v5401
    %v6346 = vunpack.c.l.b16 %v5402
    %v6347 = vunpack.c.h.b16 %v5402
    %v6348 = vunpack.c.l.b16 %v5403
    %v6349 = vunpack.c.h.b16 %v5403
    %v6350 = vunpack.c.l.b16 %v5404
    %v6351 = vunpack.c.h.b16 %v5404
    %v6352 = vunpack.c.l.b16 %v5405
    %v6353 = vunpack.c.h.b16 %v5405
    %v6354 = vunpack.c.l.b16 %v5406
    %v6355 = vunpack.c.h.b16 %v5406
    %v6356 = vunpack.c.l.b16 %v5407
    %v6357 = vunpack.c.h.b16 %v5407
    %v6358 = vunpack.c.l.b16 %v5408
    %v6359 = vunpack.c.h.b16 %v5408
    %v6360 = vunpack.c.l.b16 %v5409
    %v6361 = vunpack.c.h.b16 %v5409
    %v6362 = vunpack.c.l.b16 %v5410
    %v6363 = vunpack.c.h.b16 %v5410
    %v6364 = vunpack.c.l.b16 %v5411
    %v6365 = vunpack.c.h.b16 %v5411
    %v6366 = vunpack.c.l.b16 %v5412
    %v6367 = vunpack.c.h.b16 %v5412
    %v6368 = vunpack.c.l.b16 %v5413
    %v6369 = vunpack.c.h.b16 %v5413
    %v6370 = vunpack.c.l.b16 %v5414
    %v6371 = vunpack.c.h.b16 %v5414
    %v6372 = vunpack.c.l.b16 %v5415
    %v6373 = vunpack.c.h.b16 %v5415
    %v6374 = vunpack.c.l.b16 %v5416
    %v6375 = vunpack.c.h.b16 %v5416
    %v6376 = vpack.c.b16 %v6314, %v6312
    %v6377 = vpack.c.b16 %v6315, %v6313
    %v6378 = vpack.c.b16 %v6318, %v6316
    %v6379 = vpack.c.b16 %v6319, %v6317
    %v6380 = vpack.c.b16 %v6322, %v6320
    %v6381 = vpack.c.b16 %v6323, %v6321
    %v6382 = vpack.c.b16 %v6326, %v6324
    %v6383 = vpack.c.b16 %v6327, %v6325
    %v6384 = vpack.c.b16 %v6330, %v6328
    %v6385 = vpack.c.b16 %v6331, %v6329
    %v6386 = vpack.c.b16 %v6334, %v6332
    %v6387 = vpack.c.b16 %v6335, %v6333
    %v6388 = vpack.c.b16 %v6338, %v6336
    %v6389 = vpack.c.b16 %v6339, %v6337
    %v6390 = vpack.c.b16 %v6342, %v6340
    %v6391 = vpack.c.b16 %v6343, %v6341
    %v6392 = vpack.c.b16 %v6346, %v6344
    %v6393 = vpack.c.b16 %v6347, %v6345
    %v6394 = vpack.c.b16 %v6350, %v6348
    %v6395 = vpack.c.b16 %v6351, %v6349
    %v6396 = vpack.c.b16 %v6354, %v6352
    %v6397 = vpack.c.b16 %v6355, %v6353
    %v6398 = vpack.c.b16 %v6358, %v6356
    %v6399 = vpack.c.b16 %v6359, %v6357
    %v6400 = vpack.c.b16 %v6362, %v6360
    %v6401 = vpack.c.b16 %v6363, %v6361
    %v6402 = vpack.c.b16 %v6366, %v6364
    %v6403 = vpack.c.b16 %v6367, %v6365
    %v6404 = vpack.c.b16 %v6370, %v6368
    %v6405 = vpack.c.b16 %v6371, %v6369
    %v6406 = vpack.c.b16 %v6374, %v6372
    %v6407 = vpack.c.b16 %v6375, %v6373
    %6440 = vmatprep.subr.bf16.mxu0 %v6377
    %6441 = vmatpush1.bf16.msra.mxu0 %v6376
    %6442 = vmatprep.subr.bf16.mxu0 %v6379
    %6443 = vmatpush1.bf16.msra.mxu0 %v6378
    %6444 = vmatprep.subr.bf16.mxu0 %v6381
    %6445 = vmatpush1.bf16.msra.mxu0 %v6380
    %6446 = vmatprep.subr.bf16.mxu0 %v6383
    %6447 = vmatpush1.bf16.msra.mxu0 %v6382
    %6448 = vmatprep.subr.bf16.mxu0 %v6385
    %6449 = vmatpush1.bf16.msra.mxu0 %v6384
    %6450 = vmatprep.subr.bf16.mxu0 %v6387
    %6451 = vmatpush1.bf16.msra.mxu0 %v6386
    %6452 = vmatprep.subr.bf16.mxu0 %v6389
    %6453 = vmatpush1.bf16.msra.mxu0 %v6388
    %6454 = vmatprep.subr.bf16.mxu0 %v6391
    %6455 = vmatpush1.bf16.msra.mxu0 %v6390
    %6456 = vmatprep.subr.bf16.mxu0 %v6393
    %6457 = vmatpush1.bf16.msra.mxu0 %v6392
    %6458 = vmatprep.subr.bf16.mxu0 %v6395
    %6459 = vmatpush1.bf16.msra.mxu0 %v6394
    %6460 = vmatprep.subr.bf16.mxu0 %v6397
    %6461 = vmatpush1.bf16.msra.mxu0 %v6396
    %6462 = vmatprep.subr.bf16.mxu0 %v6399
    %6463 = vmatpush1.bf16.msra.mxu0 %v6398
    %6464 = vmatprep.subr.bf16.mxu0 %v6401
    %6465 = vmatpush1.bf16.msra.mxu0 %v6400
    %6466 = vmatprep.subr.bf16.mxu0 %v6403
    %6467 = vmatpush1.bf16.msra.mxu0 %v6402
    %6468 = vmatprep.subr.bf16.mxu0 %v6405
    %6469 = vmatpush1.bf16.msra.mxu0 %v6404
    %6470 = vmatprep.subr.bf16.mxu0 %v6407
    %6471 = vmatpush1.bf16.msra.mxu0 %v6406
    %6472 = vmatprep.mubr.bf16.mxu0 %v6231
    %6473 = vmatmul.mubr.bf16.gmra.mrb[0].mxu0 %v6230
    %v6474 = vpop.f32.mrb[0].mxu0
    %v6475 = vadd.f32 %v5989, %v6474
    %v6476 = vpop.f32.mrb[0].mxu0
    %v6477 = vadd.f32 %v5991, %v6476
    %v6478 = vpop.f32.mrb[0].mxu0
    %v6479 = vadd.f32 %v5993, %v6478
    %v6480 = vpop.f32.mrb[0].mxu0
    %v6481 = vadd.f32 %v5995, %v6480
    %6482 = vmatprep.mubr.bf16.mxu0 %v5601
    %6483 = vmatmul.mubr.bf16.gmra.mrb[0].mxu0 %v5600
    %v6484 = vpop.f32.mrb[0].mxu0
    %v6485 = vadd.f32 %v5999, %v6484
    %v6486 = vpop.f32.mrb[0].mxu0
    %v6487 = vadd.f32 %v6001, %v6486
    %v6488 = vpop.f32.mrb[0].mxu0
    %v6489 = vadd.f32 %v6003, %v6488
    %v6490 = vpop.f32.mrb[0].mxu0
    %v6491 = vadd.f32 %v6005, %v6490
    %6492 = vmatprep.mubr.bf16.mxu0 %v5603
    %6493 = vmatmul.mubr.bf16.gmra.mrb[0].mxu0 %v5602
    %v6494 = vpop.f32.mrb[0].mxu0
    %v6495 = vadd.f32 %v6009, %v6494
    %v6496 = vpop.f32.mrb[0].mxu0
    %v6497 = vadd.f32 %v6011, %v6496
    %v6498 = vpop.f32.mrb[0].mxu0
    %v6499 = vadd.f32 %v6013, %v6498
    %v6500 = vpop.f32.mrb[0].mxu0
    %v6501 = vadd.f32 %v6015, %v6500
    %6502 = vmatprep.mubr.bf16.mxu0 %v5605
    %6503 = vmatmul.mubr.bf16.gmra.mrb[0].mxu0 %v5604
    %v6504 = vpop.f32.mrb[0].mxu0
    %v6505 = vadd.f32 %v6019, %v6504
    %v6506 = vpop.f32.mrb[0].mxu0
    %v6507 = vadd.f32 %v6021, %v6506
    %v6508 = vpop.f32.mrb[0].mxu0
    %v6509 = vadd.f32 %v6023, %v6508
    %v6510 = vpop.f32.mrb[0].mxu0
    %v6511 = vadd.f32 %v6025, %v6510
    %6512 = vmatprep.mubr.bf16.mxu0 %v5607
    %6513 = vmatmul.mubr.bf16.gmra.mrb[0].mxu0 %v5606
    %v6514 = vpop.f32.mrb[0].mxu0
    %v6515 = vadd.f32 %v6029, %v6514
    %v6516 = vpop.f32.mrb[0].mxu0
    %v6517 = vadd.f32 %v6031, %v6516
    %v6518 = vpop.f32.mrb[0].mxu0
    %v6519 = vadd.f32 %v6033, %v6518
    %v6520 = vpop.f32.mrb[0].mxu0
    %v6521 = vadd.f32 %v6035, %v6520
    %6522 = vmatprep.mubr.bf16.mxu0 %v5609
    %6523 = vmatmul.mubr.bf16.gmra.mrb[0].mxu0 %v5608
    %v6524 = vpop.f32.mrb[0].mxu0
    %v6525 = vadd.f32 %v6039, %v6524
    %v6526 = vpop.f32.mrb[0].mxu0
    %v6527 = vadd.f32 %v6041, %v6526
    %v6528 = vpop.f32.mrb[0].mxu0
    %v6529 = vadd.f32 %v6043, %v6528
    %v6530 = vpop.f32.mrb[0].mxu0
    %v6531 = vadd.f32 %v6045, %v6530
    %6532 = vmatprep.mubr.bf16.mxu0 %v5611
    %6533 = vmatmul.mubr.bf16.gmra.mrb[0].mxu0 %v5610
    %v6534 = vpop.f32.mrb[0].mxu0
    %v6535 = vadd.f32 %v6049, %v6534
    %v6536 = vpop.f32.mrb[0].mxu0
    %v6537 = vadd.f32 %v6051, %v6536
    %v6538 = vpop.f32.mrb[0].mxu0
    %v6539 = vadd.f32 %v6053, %v6538
    %v6540 = vpop.f32.mrb[0].mxu0
    %v6541 = vadd.f32 %v6055, %v6540
    %6542 = vmatprep.mubr.bf16.mxu0 %v5613
    %6543 = vmatmul.mubr.bf16.gmra.mrb[0].mxu0 %v5612
    %v6544 = vpop.f32.mrb[0].mxu0
    %v6545 = vadd.f32 %v6059, %v6544
    %v6546 = vpop.f32.mrb[0].mxu0
    %v6547 = vadd.f32 %v6061, %v6546
    %v6548 = vpop.f32.mrb[0].mxu0
    %v6549 = vadd.f32 %v6063, %v6548
    %v6550 = vpop.f32.mrb[0].mxu0
    %v6551 = vadd.f32 %v6065, %v6550
    %6552 = vmatprep.mubr.bf16.mxu0 %v5615
    %6553 = vmatmul.mubr.bf16.gmra.mrb[0].mxu0 %v5614
    %v6554 = vpop.f32.mrb[0].mxu0
    %v6555 = vadd.f32 %v6069, %v6554
    %v6556 = vpop.f32.mrb[0].mxu0
    %v6557 = vadd.f32 %v6071, %v6556
    %v6558 = vpop.f32.mrb[0].mxu0
    %v6559 = vadd.f32 %v6073, %v6558
    %v6560 = vpop.f32.mrb[0].mxu0
    %v6561 = vadd.f32 %v6075, %v6560
    %6562 = vmatprep.mubr.bf16.mxu0 %v5617
    %6563 = vmatmul.mubr.bf16.gmra.mrb[0].mxu0 %v5616
    %v6564 = vpop.f32.mrb[0].mxu0
    %v6565 = vadd.f32 %v6079, %v6564
    %v6566 = vpop.f32.mrb[0].mxu0
    %v6567 = vadd.f32 %v6081, %v6566
    %v6568 = vpop.f32.mrb[0].mxu0
    %v6569 = vadd.f32 %v6083, %v6568
    %v6570 = vpop.f32.mrb[0].mxu0
    %v6571 = vadd.f32 %v6085, %v6570
    %6572 = vmatprep.mubr.bf16.mxu0 %v5619
    %6573 = vmatmul.mubr.bf16.gmra.mrb[0].mxu0 %v5618
    %v6574 = vpop.f32.mrb[0].mxu0
    %v6575 = vadd.f32 %v6089, %v6574
    %v6576 = vpop.f32.mrb[0].mxu0
    %v6577 = vadd.f32 %v6091, %v6576
    %v6578 = vpop.f32.mrb[0].mxu0
    %v6579 = vadd.f32 %v6093, %v6578
    %v6580 = vpop.f32.mrb[0].mxu0
    %v6581 = vadd.f32 %v6095, %v6580
    %6582 = vmatprep.mubr.bf16.mxu0 %v5621
    %6583 = vmatmul.mubr.bf16.gmra.mrb[0].mxu0 %v5620
    %v6584 = vpop.f32.mrb[0].mxu0
    %v6585 = vadd.f32 %v6099, %v6584
    %v6586 = vpop.f32.mrb[0].mxu0
    %v6587 = vadd.f32 %v6101, %v6586
    %v6588 = vpop.f32.mrb[0].mxu0
    %v6589 = vadd.f32 %v6103, %v6588
    %v6590 = vpop.f32.mrb[0].mxu0
    %v6591 = vadd.f32 %v6105, %v6590
    %6592 = vmatprep.mubr.bf16.mxu0 %v5623
    %6593 = vmatmul.mubr.bf16.gmra.mrb[0].mxu0 %v5622
    %v6594 = vpop.f32.mrb[0].mxu0
    %v6595 = vadd.f32 %v6109, %v6594
    %v6596 = vpop.f32.mrb[0].mxu0
    %v6597 = vadd.f32 %v6111, %v6596
    %v6598 = vpop.f32.mrb[0].mxu0
    %v6599 = vadd.f32 %v6113, %v6598
    %v6600 = vpop.f32.mrb[0].mxu0
    %v6601 = vadd.f32 %v6115, %v6600
    %6602 = vmatprep.mubr.bf16.mxu0 %v5625
    %6603 = vmatmul.mubr.bf16.gmra.mrb[0].mxu0 %v5624
    %v6604 = vpop.f32.mrb[0].mxu0
    %v6605 = vadd.f32 %v6119, %v6604
    %v6606 = vpop.f32.mrb[0].mxu0
    %v6607 = vadd.f32 %v6121, %v6606
    %v6608 = vpop.f32.mrb[0].mxu0
    %v6609 = vadd.f32 %v6123, %v6608
    %v6610 = vpop.f32.mrb[0].mxu0
    %v6611 = vadd.f32 %v6125, %v6610
    %6612 = vmatprep.mubr.bf16.mxu0 %v5627
    %6613 = vmatmul.mubr.bf16.gmra.mrb[0].mxu0 %v5626
    %v6614 = vpop.f32.mrb[0].mxu0
    %v6615 = vadd.f32 %v6129, %v6614
    %v6616 = vpop.f32.mrb[0].mxu0
    %v6617 = vadd.f32 %v6131, %v6616
    %v6618 = vpop.f32.mrb[0].mxu0
    %v6619 = vadd.f32 %v6133, %v6618
    %v6620 = vpop.f32.mrb[0].mxu0
    %v6621 = vadd.f32 %v6135, %v6620
    %6622 = vmatprep.mubr.bf16.mxu0 %v5629
    %6623 = vmatmul.mubr.bf16.gmra.mrb[0].mxu0 %v5628
    %v6624 = vpop.f32.mrb[0].mxu0
    %v6625 = vadd.f32 %v6139, %v6624
    %v6626 = vpop.f32.mrb[0].mxu0
    %v6627 = vadd.f32 %v6141, %v6626
    %v6628 = vpop.f32.mrb[0].mxu0
    %v6629 = vadd.f32 %v6143, %v6628
    %v6630 = vpop.f32.mrb[0].mxu0
    %v6631 = vadd.f32 %v6145, %v6630
    %6632 = vmatprep.mubr.bf16.mxu0 %v5631
    %6633 = vmatmul.mubr.bf16.gmra.mrb[0].mxu0 %v5630
    %v6634 = vpop.f32.mrb[0].mxu0
    %v6635 = vadd.f32 %v6149, %v6634
    %v6636 = vpop.f32.mrb[0].mxu0
    %v6637 = vadd.f32 %v6151, %v6636
    %v6638 = vpop.f32.mrb[0].mxu0
    %v6639 = vadd.f32 %v6153, %v6638
    %v6640 = vpop.f32.mrb[0].mxu0
    %v6641 = vadd.f32 %v6155, %v6640
    %6642 = vmatprep.mubr.bf16.mxu0 %v5633
    %6643 = vmatmul.mubr.bf16.gmra.mrb[0].mxu0 %v5632
    %v6644 = vpop.f32.mrb[0].mxu0
    %v6645 = vadd.f32 %v6159, %v6644
    %v6646 = vpop.f32.mrb[0].mxu0
    %v6647 = vadd.f32 %v6161, %v6646
    %v6648 = vpop.f32.mrb[0].mxu0
    %v6649 = vadd.f32 %v6163, %v6648
    %v6650 = vpop.f32.mrb[0].mxu0
    %v6651 = vadd.f32 %v6165, %v6650
    %6652 = vmatprep.mubr.bf16.mxu0 %v5635
    %6653 = vmatmul.mubr.bf16.gmra.mrb[0].mxu0 %v5634
    %v6654 = vpop.f32.mrb[0].mxu0
    %v6655 = vadd.f32 %v6169, %v6654
    %v6656 = vpop.f32.mrb[0].mxu0
    %v6657 = vadd.f32 %v6171, %v6656
    %v6658 = vpop.f32.mrb[0].mxu0
    %v6659 = vadd.f32 %v6173, %v6658
    %v6660 = vpop.f32.mrb[0].mxu0
    %v6661 = vadd.f32 %v6175, %v6660
    %6662 = vmatprep.mubr.bf16.mxu0 %v5637
    %6663 = vmatmul.mubr.bf16.gmra.mrb[0].mxu0 %v5636
    %v6664 = vpop.f32.mrb[0].mxu0
    %v6665 = vadd.f32 %v6179, %v6664
    %v6666 = vpop.f32.mrb[0].mxu0
    %v6667 = vadd.f32 %v6181, %v6666
    %v6668 = vpop.f32.mrb[0].mxu0
    %v6669 = vadd.f32 %v6183, %v6668
    %v6670 = vpop.f32.mrb[0].mxu0
    %v6671 = vadd.f32 %v6185, %v6670
    %6672 = vmatprep.mubr.bf16.mxu0 %v5639
    %6673 = vmatmul.mubr.bf16.gmra.mrb[0].mxu0 %v5638
    %v6674 = vpop.f32.mrb[0].mxu0
    %v6675 = vadd.f32 %v6189, %v6674
    %v6676 = vpop.f32.mrb[0].mxu0
    %v6677 = vadd.f32 %v6191, %v6676
    %v6678 = vpop.f32.mrb[0].mxu0
    %v6679 = vadd.f32 %v6193, %v6678
    %v6680 = vpop.f32.mrb[0].mxu0
    %v6681 = vadd.f32 %v6195, %v6680
    %6682 = vmatprep.mubr.bf16.mxu0 %v5641
    %6683 = vmatmul.mubr.bf16.gmra.mrb[0].mxu0 %v5640
    %v6684 = vpop.f32.mrb[0].mxu0
    %v6685 = vadd.f32 %v6199, %v6684
    %v6686 = vpop.f32.mrb[0].mxu0
    %v6687 = vadd.f32 %v6201, %v6686
    %v6688 = vpop.f32.mrb[0].mxu0
    %v6689 = vadd.f32 %v6203, %v6688
    %v6690 = vpop.f32.mrb[0].mxu0
    %v6691 = vadd.f32 %v6205, %v6690
    %6692 = vmatprep.mubr.bf16.mxu0 %v5643
    %6693 = vmatmul.mubr.bf16.gmra.mrb[0].mxu0 %v5642
    %v6694 = vpop.f32.mrb[0].mxu0
    %v6695 = vadd.f32 %v6209, %v6694
    %v6696 = vpop.f32.mrb[0].mxu0
    %v6697 = vadd.f32 %v6211, %v6696
    %v6698 = vpop.f32.mrb[0].mxu0
    %v6699 = vadd.f32 %v6213, %v6698
    %v6700 = vpop.f32.mrb[0].mxu0
    %v6701 = vadd.f32 %v6215, %v6700
    %6702 = vmatprep.mubr.bf16.mxu0 %v5645
    %6703 = vmatmul.mubr.bf16.gmra.mrb[0].mxu0 %v5644
    %v6704 = vpop.f32.mrb[0].mxu0
    %v6705 = vadd.f32 %v6219, %v6704
    %v6706 = vpop.f32.mrb[0].mxu0
    %v6707 = vadd.f32 %v6221, %v6706
    %v6708 = vpop.f32.mrb[0].mxu0
    %v6709 = vadd.f32 %v6223, %v6708
    %v6710 = vpop.f32.mrb[0].mxu0
    %v6711 = vadd.f32 %v6225, %v6710
    %6712 = vdwg.mxu0
    %v6713 = vld [vmem:[#allocation3 + $0x30] sm:$0xff]
    %v6714 = vld [vmem:[#allocation3 + $0x38] sm:$0xff]
    %v6715 = vld [vmem:[#allocation3 + $0x40] sm:$0xff]
    %v6716 = vld [vmem:[#allocation3 + $0x48] sm:$0xff]
    %v6717 = vld [vmem:[#allocation3 + $0x50] sm:$0xff]
    %v6718 = vld [vmem:[#allocation3 + $0x58] sm:$0xff]
    %v6719 = vld [vmem:[#allocation3 + $0x60] sm:$0xff]
    %v6720 = vld [vmem:[#allocation3 + $0x68] sm:$0xff]
    %v6721 = vld [vmem:[#allocation3 + $0x70] sm:$0xff]
    %v6722 = vld [vmem:[#allocation3 + $0x78] sm:$0xff]
    %v6723 = vld [vmem:[#allocation3 + $0x80] sm:$0xff]
    %v6724 = vld [vmem:[#allocation3 + $0x88] sm:$0xff]
    %v6725 = vld [vmem:[#allocation3 + $0x90] sm:$0xff]
    %v6726 = vld [vmem:[#allocation3 + $0x98] sm:$0xff]
    %v6727 = vld [vmem:[#allocation3 + $0xa0] sm:$0xff]
    %v6728 = vld [vmem:[#allocation3 + $0xa8] sm:$0xff]
    %v6729 = vld [vmem:[#allocation3 + $0xb0] sm:$0xff]
    %v6730 = vld [vmem:[#allocation3 + $0xb8] sm:$0xff]
    %v6731 = vld [vmem:[#allocation3 + $0xc0] sm:$0xff]
    %v6732 = vld [vmem:[#allocation3 + $0xc8] sm:$0xff]
    %v6733 = vld [vmem:[#allocation3 + $0xd0] sm:$0xff]
    %v6734 = vld [vmem:[#allocation3 + $0xd8] sm:$0xff]
    %v6735 = vld [vmem:[#allocation3 + $0xe0] sm:$0xff]
    %v6736 = vld [vmem:[#allocation3 + $0xe8] sm:$0xff]
    %v6737 = vld [vmem:[#allocation3 + $0xf0] sm:$0xff]
    %v6738 = vld [vmem:[#allocation3 + $0xf8] sm:$0xff]
    %v6739 = vld [vmem:[#allocation3 + $0x100] sm:$0xff]
    %v6740 = vld [vmem:[#allocation3 + $0x108] sm:$0xff]
    %v6741 = vld [vmem:[#allocation3 + $0x110] sm:$0xff]
    %v6742 = vld [vmem:[#allocation3 + $0x118] sm:$0xff]
    %v6743 = vld [vmem:[#allocation3 + $0x120] sm:$0xff]
    %v6744 = vld [vmem:[#allocation3 + $0x128] sm:$0xff]
    %v6745 = vld [vmem:[#allocation3 + $0x130] sm:$0xff]
    %v6746 = vld [vmem:[#allocation3 + $0x138] sm:$0xff]
    %v6747 = vld [vmem:[#allocation3 + $0x140] sm:$0xff]
    %v6748 = vld [vmem:[#allocation3 + $0x148] sm:$0xff]
    %v6749 = vld [vmem:[#allocation3 + $0x150] sm:$0xff]
    %v6750 = vld [vmem:[#allocation3 + $0x158] sm:$0xff]
    %v6751 = vld [vmem:[#allocation3 + $0x160] sm:$0xff]
    %v6752 = vld [vmem:[#allocation3 + $0x168] sm:$0xff]
    %v6753 = vld [vmem:[#allocation3 + $0x170] sm:$0xff]
    %v6754 = vld [vmem:[#allocation3 + $0x178] sm:$0xff]
    %v6755 = vld [vmem:[#allocation3 + $0x180] sm:$0xff]
    %v6756 = vld [vmem:[#allocation3 + $0x188] sm:$0xff]
    %v6757 = vld [vmem:[#allocation3 + $0x190] sm:$0xff]
    %v6758 = vld [vmem:[#allocation3 + $0x198] sm:$0xff]
    %v6759 = vld [vmem:[#allocation3 + $0x1a0] sm:$0xff]
    %v6760 = vld [vmem:[#allocation3 + $0x1a8] sm:$0xff]
    %v6761 = vld [vmem:[#allocation14 + $0x200] sm:$0xff]
    %v6762 = vld [vmem:[#allocation14 + $0x208] sm:$0xff]
    %v6763 = vld [vmem:[#allocation14 + $0x210] sm:$0xff]
    %v6764 = vld [vmem:[#allocation14 + $0x218] sm:$0xff]
    %v6765 = vld [vmem:[#allocation14 + $0x220] sm:$0xff]
    %v6766 = vld [vmem:[#allocation14 + $0x228] sm:$0xff]
    %v6767 = vld [vmem:[#allocation14 + $0x230] sm:$0xff]
    %v6768 = vld [vmem:[#allocation14 + $0x238] sm:$0xff]
    %v6769 = vld [vmem:[#allocation14 + $0x240] sm:$0xff]
    %v6770 = vld [vmem:[#allocation14 + $0x248] sm:$0xff]
    %v6771 = vld [vmem:[#allocation14 + $0x250] sm:$0xff]
    %v6772 = vld [vmem:[#allocation14 + $0x258] sm:$0xff]
    %v6773 = vld [vmem:[#allocation14 + $0x260] sm:$0xff]
    %v6774 = vld [vmem:[#allocation14 + $0x268] sm:$0xff]
    %v6775 = vld [vmem:[#allocation14 + $0x270] sm:$0xff]
    %v6776 = vld [vmem:[#allocation14 + $0x278] sm:$0xff]
    %v6777 = vld [vmem:[#allocation14 + $0x280] sm:$0xff]
    %v6778 = vld [vmem:[#allocation14 + $0x288] sm:$0xff]
    %v6779 = vld [vmem:[#allocation14 + $0x290] sm:$0xff]
    %v6780 = vld [vmem:[#allocation14 + $0x298] sm:$0xff]
    %v6781 = vld [vmem:[#allocation14 + $0x2a0] sm:$0xff]
    %v6782 = vld [vmem:[#allocation14 + $0x2a8] sm:$0xff]
    %v6783 = vld [vmem:[#allocation14 + $0x2b0] sm:$0xff]
    %v6784 = vld [vmem:[#allocation14 + $0x2b8] sm:$0xff]
    %v6785 = vld [vmem:[#allocation14 + $0x2c0] sm:$0xff]
    %v6786 = vld [vmem:[#allocation14 + $0x2c8] sm:$0xff]
    %v6787 = vld [vmem:[#allocation14 + $0x2d0] sm:$0xff]
    %v6788 = vld [vmem:[#allocation14 + $0x2d8] sm:$0xff]
    %v6789 = vld [vmem:[#allocation14 + $0x2e0] sm:$0xff]
    %v6790 = vld [vmem:[#allocation14 + $0x2e8] sm:$0xff]
    %v6791 = vld [vmem:[#allocation14 + $0x2f0] sm:$0xff]
    %v6792 = vld [vmem:[#allocation14 + $0x2f8] sm:$0xff]
    %v6841 = vunpack.c.l.b16 %v6713
    %v6842 = vunpack.c.h.b16 %v6713
    %v6843 = vunpack.c.l.b16 %v6714
    %v6844 = vunpack.c.h.b16 %v6714
    %v6845 = vunpack.c.l.b16 %v6715
    %v6846 = vunpack.c.h.b16 %v6715
    %v6847 = vunpack.c.l.b16 %v6716
    %v6848 = vunpack.c.h.b16 %v6716
    %v6849 = vunpack.c.l.b16 %v6717
    %v6850 = vunpack.c.h.b16 %v6717
    %v6851 = vunpack.c.l.b16 %v6718
    %v6852 = vunpack.c.h.b16 %v6718
    %v6853 = vunpack.c.l.b16 %v6719
    %v6854 = vunpack.c.h.b16 %v6719
    %v6855 = vunpack.c.l.b16 %v6720
    %v6856 = vunpack.c.h.b16 %v6720
    %v6857 = vunpack.c.l.b16 %v6721
    %v6858 = vunpack.c.h.b16 %v6721
    %v6859 = vunpack.c.l.b16 %v6722
    %v6860 = vunpack.c.h.b16 %v6722
    %v6861 = vunpack.c.l.b16 %v6723
    %v6862 = vunpack.c.h.b16 %v6723
    %v6863 = vunpack.c.l.b16 %v6724
    %v6864 = vunpack.c.h.b16 %v6724
    %v6865 = vunpack.c.l.b16 %v6725
    %v6866 = vunpack.c.h.b16 %v6725
    %v6867 = vunpack.c.l.b16 %v6726
    %v6868 = vunpack.c.h.b16 %v6726
    %v6869 = vunpack.c.l.b16 %v6727
    %v6870 = vunpack.c.h.b16 %v6727
    %v6871 = vunpack.c.l.b16 %v6728
    %v6872 = vunpack.c.h.b16 %v6728
    %v6873 = vunpack.c.l.b16 %v6729
    %v6874 = vunpack.c.h.b16 %v6729
    %v6875 = vunpack.c.l.b16 %v6730
    %v6876 = vunpack.c.h.b16 %v6730
    %v6877 = vunpack.c.l.b16 %v6731
    %v6878 = vunpack.c.h.b16 %v6731
    %v6879 = vunpack.c.l.b16 %v6732
    %v6880 = vunpack.c.h.b16 %v6732
    %v6881 = vunpack.c.l.b16 %v6733
    %v6882 = vunpack.c.h.b16 %v6733
    %v6883 = vunpack.c.l.b16 %v6734
    %v6884 = vunpack.c.h.b16 %v6734
    %v6885 = vunpack.c.l.b16 %v6735
    %v6886 = vunpack.c.h.b16 %v6735
    %v6887 = vunpack.c.l.b16 %v6736
    %v6888 = vunpack.c.h.b16 %v6736
    %v6889 = vunpack.c.l.b16 %v6737
    %v6890 = vunpack.c.h.b16 %v6737
    %v6891 = vunpack.c.l.b16 %v6738
    %v6892 = vunpack.c.h.b16 %v6738
    %v6893 = vunpack.c.l.b16 %v6739
    %v6894 = vunpack.c.h.b16 %v6739
    %v6895 = vunpack.c.l.b16 %v6740
    %v6896 = vunpack.c.h.b16 %v6740
    %v6897 = vunpack.c.l.b16 %v6741
    %v6898 = vunpack.c.h.b16 %v6741
    %v6899 = vunpack.c.l.b16 %v6742
    %v6900 = vunpack.c.h.b16 %v6742
    %v6901 = vunpack.c.l.b16 %v6743
    %v6902 = vunpack.c.h.b16 %v6743
    %v6903 = vunpack.c.l.b16 %v6744
    %v6904 = vunpack.c.h.b16 %v6744
    %v6905 = vunpack.c.l.b16 %v6745
    %v6906 = vunpack.c.h.b16 %v6745
    %v6907 = vunpack.c.l.b16 %v6746
    %v6908 = vunpack.c.h.b16 %v6746
    %v6909 = vunpack.c.l.b16 %v6747
    %v6910 = vunpack.c.h.b16 %v6747
    %v6911 = vunpack.c.l.b16 %v6748
    %v6912 = vunpack.c.h.b16 %v6748
    %v6913 = vunpack.c.l.b16 %v6749
    %v6914 = vunpack.c.h.b16 %v6749
    %v6915 = vunpack.c.l.b16 %v6750
    %v6916 = vunpack.c.h.b16 %v6750
    %v6917 = vunpack.c.l.b16 %v6751
    %v6918 = vunpack.c.h.b16 %v6751
    %v6919 = vunpack.c.l.b16 %v6752
    %v6920 = vunpack.c.h.b16 %v6752
    %v6921 = vunpack.c.l.b16 %v6753
    %v6922 = vunpack.c.h.b16 %v6753
    %v6923 = vunpack.c.l.b16 %v6754
    %v6924 = vunpack.c.h.b16 %v6754
    %v6925 = vunpack.c.l.b16 %v6755
    %v6926 = vunpack.c.h.b16 %v6755
    %v6927 = vunpack.c.l.b16 %v6756
    %v6928 = vunpack.c.h.b16 %v6756
    %v6929 = vunpack.c.l.b16 %v6757
    %v6930 = vunpack.c.h.b16 %v6757
    %v6931 = vunpack.c.l.b16 %v6758
    %v6932 = vunpack.c.h.b16 %v6758
    %v6933 = vunpack.c.l.b16 %v6759
    %v6934 = vunpack.c.h.b16 %v6759
    %v6935 = vunpack.c.l.b16 %v6760
    %v6936 = vunpack.c.h.b16 %v6760
    %v6937 = vpack.c.b16 %v6843, %v6841
    %v6938 = vpack.c.b16 %v6844, %v6842
    %v6939 = vpack.c.b16 %v6847, %v6845
    %v6940 = vpack.c.b16 %v6848, %v6846
    %v6941 = vpack.c.b16 %v6851, %v6849
    %v6942 = vpack.c.b16 %v6852, %v6850
    %v6943 = vpack.c.b16 %v6855, %v6853
    %v6944 = vpack.c.b16 %v6856, %v6854
    %v6945 = vpack.c.b16 %v6859, %v6857
    %v6946 = vpack.c.b16 %v6860, %v6858
    %v6947 = vpack.c.b16 %v6863, %v6861
    %v6948 = vpack.c.b16 %v6864, %v6862
    %v6949 = vpack.c.b16 %v6867, %v6865
    %v6950 = vpack.c.b16 %v6868, %v6866
    %v6951 = vpack.c.b16 %v6871, %v6869
    %v6952 = vpack.c.b16 %v6872, %v6870
    %v6953 = vpack.c.b16 %v6875, %v6873
    %v6954 = vpack.c.b16 %v6876, %v6874
    %v6955 = vpack.c.b16 %v6879, %v6877
    %v6956 = vpack.c.b16 %v6880, %v6878
    %v6957 = vpack.c.b16 %v6883, %v6881
    %v6958 = vpack.c.b16 %v6884, %v6882
    %v6959 = vpack.c.b16 %v6887, %v6885
    %v6960 = vpack.c.b16 %v6888, %v6886
    %v6961 = vpack.c.b16 %v6891, %v6889
    %v6962 = vpack.c.b16 %v6892, %v6890
    %v6963 = vpack.c.b16 %v6895, %v6893
    %v6964 = vpack.c.b16 %v6896, %v6894
    %v6965 = vpack.c.b16 %v6899, %v6897
    %v6966 = vpack.c.b16 %v6900, %v6898
    %v6967 = vpack.c.b16 %v6903, %v6901
    %v6968 = vpack.c.b16 %v6904, %v6902
    %v6969 = vpack.c.b16 %v6907, %v6905
    %v6970 = vpack.c.b16 %v6908, %v6906
    %v6971 = vpack.c.b16 %v6911, %v6909
    %v6972 = vpack.c.b16 %v6912, %v6910
    %v6973 = vpack.c.b16 %v6915, %v6913
    %v6974 = vpack.c.b16 %v6916, %v6914
    %v6975 = vpack.c.b16 %v6919, %v6917
    %v6976 = vpack.c.b16 %v6920, %v6918
    %v6977 = vpack.c.b16 %v6923, %v6921
    %v6978 = vpack.c.b16 %v6924, %v6922
    %v6979 = vpack.c.b16 %v6927, %v6925
    %v6980 = vpack.c.b16 %v6928, %v6926
    %v6981 = vpack.c.b16 %v6931, %v6929
    %v6982 = vpack.c.b16 %v6932, %v6930
    %v6983 = vpack.c.b16 %v6935, %v6933
    %v6984 = vpack.c.b16 %v6936, %v6934
    %v7065 = vunpack.c.l.b16 %v6761
    %v7066 = vunpack.c.h.b16 %v6761
    %v7067 = vunpack.c.l.b16 %v6762
    %v7068 = vunpack.c.h.b16 %v6762
    %v7069 = vunpack.c.l.b16 %v6763
    %v7070 = vunpack.c.h.b16 %v6763
    %v7071 = vunpack.c.l.b16 %v6764
    %v7072 = vunpack.c.h.b16 %v6764
    %v7073 = vunpack.c.l.b16 %v6765
    %v7074 = vunpack.c.h.b16 %v6765
    %v7075 = vunpack.c.l.b16 %v6766
    %v7076 = vunpack.c.h.b16 %v6766
    %v7077 = vunpack.c.l.b16 %v6767
    %v7078 = vunpack.c.h.b16 %v6767
    %v7079 = vunpack.c.l.b16 %v6768
    %v7080 = vunpack.c.h.b16 %v6768
    %v7081 = vunpack.c.l.b16 %v6769
    %v7082 = vunpack.c.h.b16 %v6769
    %v7083 = vunpack.c.l.b16 %v6770
    %v7084 = vunpack.c.h.b16 %v6770
    %v7085 = vunpack.c.l.b16 %v6771
    %v7086 = vunpack.c.h.b16 %v6771
    %v7087 = vunpack.c.l.b16 %v6772
    %v7088 = vunpack.c.h.b16 %v6772
    %v7089 = vunpack.c.l.b16 %v6773
    %v7090 = vunpack.c.h.b16 %v6773
    %v7091 = vunpack.c.l.b16 %v6774
    %v7092 = vunpack.c.h.b16 %v6774
    %v7093 = vunpack.c.l.b16 %v6775
    %v7094 = vunpack.c.h.b16 %v6775
    %v7095 = vunpack.c.l.b16 %v6776
    %v7096 = vunpack.c.h.b16 %v6776
    %v7097 = vunpack.c.l.b16 %v6777
    %v7098 = vunpack.c.h.b16 %v6777
    %v7099 = vunpack.c.l.b16 %v6778
    %v7100 = vunpack.c.h.b16 %v6778
    %v7101 = vunpack.c.l.b16 %v6779
    %v7102 = vunpack.c.h.b16 %v6779
    %v7103 = vunpack.c.l.b16 %v6780
    %v7104 = vunpack.c.h.b16 %v6780
    %v7105 = vunpack.c.l.b16 %v6781
    %v7106 = vunpack.c.h.b16 %v6781
    %v7107 = vunpack.c.l.b16 %v6782
    %v7108 = vunpack.c.h.b16 %v6782
    %v7109 = vunpack.c.l.b16 %v6783
    %v7110 = vunpack.c.h.b16 %v6783
    %v7111 = vunpack.c.l.b16 %v6784
    %v7112 = vunpack.c.h.b16 %v6784
    %v7113 = vunpack.c.l.b16 %v6785
    %v7114 = vunpack.c.h.b16 %v6785
    %v7115 = vunpack.c.l.b16 %v6786
    %v7116 = vunpack.c.h.b16 %v6786
    %v7117 = vunpack.c.l.b16 %v6787
    %v7118 = vunpack.c.h.b16 %v6787
    %v7119 = vunpack.c.l.b16 %v6788
    %v7120 = vunpack.c.h.b16 %v6788
    %v7121 = vunpack.c.l.b16 %v6789
    %v7122 = vunpack.c.h.b16 %v6789
    %v7123 = vunpack.c.l.b16 %v6790
    %v7124 = vunpack.c.h.b16 %v6790
    %v7125 = vunpack.c.l.b16 %v6791
    %v7126 = vunpack.c.h.b16 %v6791
    %v7127 = vunpack.c.l.b16 %v6792
    %v7128 = vunpack.c.h.b16 %v6792
    %v7129 = vpack.c.b16 %v7067, %v7065
    %v7130 = vpack.c.b16 %v7068, %v7066
    %v7131 = vpack.c.b16 %v7071, %v7069
    %v7132 = vpack.c.b16 %v7072, %v7070
    %v7133 = vpack.c.b16 %v7075, %v7073
    %v7134 = vpack.c.b16 %v7076, %v7074
    %v7135 = vpack.c.b16 %v7079, %v7077
    %v7136 = vpack.c.b16 %v7080, %v7078
    %v7137 = vpack.c.b16 %v7083, %v7081
    %v7138 = vpack.c.b16 %v7084, %v7082
    %v7139 = vpack.c.b16 %v7087, %v7085
    %v7140 = vpack.c.b16 %v7088, %v7086
    %v7141 = vpack.c.b16 %v7091, %v7089
    %v7142 = vpack.c.b16 %v7092, %v7090
    %v7143 = vpack.c.b16 %v7095, %v7093
    %v7144 = vpack.c.b16 %v7096, %v7094
    %v7145 = vpack.c.b16 %v7099, %v7097
    %v7146 = vpack.c.b16 %v7100, %v7098
    %v7147 = vpack.c.b16 %v7103, %v7101
    %v7148 = vpack.c.b16 %v7104, %v7102
    %v7149 = vpack.c.b16 %v7107, %v7105
    %v7150 = vpack.c.b16 %v7108, %v7106
    %v7151 = vpack.c.b16 %v7111, %v7109
    %v7152 = vpack.c.b16 %v7112, %v7110
    %v7153 = vpack.c.b16 %v7115, %v7113
    %v7154 = vpack.c.b16 %v7116, %v7114
    %v7155 = vpack.c.b16 %v7119, %v7117
    %v7156 = vpack.c.b16 %v7120, %v7118
    %v7157 = vpack.c.b16 %v7123, %v7121
    %v7158 = vpack.c.b16 %v7124, %v7122
    %v7159 = vpack.c.b16 %v7127, %v7125
    %v7160 = vpack.c.b16 %v7128, %v7126
    %7193 = vmatprep.subr.bf16.mxu0 %v7130
    %7194 = vmatpush1.bf16.msra.mxu0 %v7129
    %7195 = vmatprep.subr.bf16.mxu0 %v7132
    %7196 = vmatpush1.bf16.msra.mxu0 %v7131
    %7197 = vmatprep.subr.bf16.mxu0 %v7134
    %7198 = vmatpush1.bf16.msra.mxu0 %v7133
    %7199 = vmatprep.subr.bf16.mxu0 %v7136
    %7200 = vmatpush1.bf16.msra.mxu0 %v7135
    %7201 = vmatprep.subr.bf16.mxu0 %v7138
    %7202 = vmatpush1.bf16.msra.mxu0 %v7137
    %7203 = vmatprep.subr.bf16.mxu0 %v7140
    %7204 = vmatpush1.bf16.msra.mxu0 %v7139
    %7205 = vmatprep.subr.bf16.mxu0 %v7142
    %7206 = vmatpush1.bf16.msra.mxu0 %v7141
    %7207 = vmatprep.subr.bf16.mxu0 %v7144
    %7208 = vmatpush1.bf16.msra.mxu0 %v7143
    %7209 = vmatprep.subr.bf16.mxu0 %v7146
    %7210 = vmatpush1.bf16.msra.mxu0 %v7145
    %7211 = vmatprep.subr.bf16.mxu0 %v7148
    %7212 = vmatpush1.bf16.msra.mxu0 %v7147
    %7213 = vmatprep.subr.bf16.mxu0 %v7150
    %7214 = vmatpush1.bf16.msra.mxu0 %v7149
    %7215 = vmatprep.subr.bf16.mxu0 %v7152
    %7216 = vmatpush1.bf16.msra.mxu0 %v7151
    %7217 = vmatprep.subr.bf16.mxu0 %v7154
    %7218 = vmatpush1.bf16.msra.mxu0 %v7153
    %7219 = vmatprep.subr.bf16.mxu0 %v7156
    %7220 = vmatpush1.bf16.msra.mxu0 %v7155
    %7221 = vmatprep.subr.bf16.mxu0 %v7158
    %7222 = vmatpush1.bf16.msra.mxu0 %v7157
    %7223 = vmatprep.subr.bf16.mxu0 %v7160
    %7224 = vmatpush1.bf16.msra.mxu0 %v7159
    %7225 = vmatprep.mubr.bf16.mxu0 %v6938
    %7226 = vmatmul.mubr.bf16.gmra.mrb[0].mxu0 %v6937
    %v7227 = vpop.f32.mrb[0].mxu0
    %v7228 = vadd.f32 0.0, %v7227
    %v7229 = vpop.f32.mrb[0].mxu0
    %v7230 = vadd.f32 0.0, %v7229
    %v7231 = vpop.f32.mrb[0].mxu0
    %v7232 = vadd.f32 0.0, %v7231
    %v7233 = vpop.f32.mrb[0].mxu0
    %v7234 = vadd.f32 0.0, %v7233
    %7235 = vmatprep.mubr.bf16.mxu0 %v6940
    %7236 = vmatmul.mubr.bf16.gmra.mrb[0].mxu0 %v6939
    %v7237 = vpop.f32.mrb[0].mxu0
    %v7238 = vadd.f32 0.0, %v7237
    %v7239 = vpop.f32.mrb[0].mxu0
    %v7240 = vadd.f32 0.0, %v7239
    %v7241 = vpop.f32.mrb[0].mxu0
    %v7242 = vadd.f32 0.0, %v7241
    %v7243 = vpop.f32.mrb[0].mxu0
    %v7244 = vadd.f32 0.0, %v7243
    %7245 = vmatprep.mubr.bf16.mxu0 %v6942
    %7246 = vmatmul.mubr.bf16.gmra.mrb[0].mxu0 %v6941
    %v7247 = vpop.f32.mrb[0].mxu0
    %v7248 = vadd.f32 0.0, %v7247
    %v7249 = vpop.f32.mrb[0].mxu0
    %v7250 = vadd.f32 0.0, %v7249
    %v7251 = vpop.f32.mrb[0].mxu0
    %v7252 = vadd.f32 0.0, %v7251
    %v7253 = vpop.f32.mrb[0].mxu0
    %v7254 = vadd.f32 0.0, %v7253
    %7255 = vmatprep.mubr.bf16.mxu0 %v6944
    %7256 = vmatmul.mubr.bf16.gmra.mrb[0].mxu0 %v6943
    %v7257 = vpop.f32.mrb[0].mxu0
    %v7258 = vadd.f32 0.0, %v7257
    %v7259 = vpop.f32.mrb[0].mxu0
    %v7260 = vadd.f32 0.0, %v7259
    %v7261 = vpop.f32.mrb[0].mxu0
    %v7262 = vadd.f32 0.0, %v7261
    %v7263 = vpop.f32.mrb[0].mxu0
    %v7264 = vadd.f32 0.0, %v7263
    %7265 = vmatprep.mubr.bf16.mxu0 %v6946
    %7266 = vmatmul.mubr.bf16.gmra.mrb[0].mxu0 %v6945
    %v7267 = vpop.f32.mrb[0].mxu0
    %v7268 = vadd.f32 0.0, %v7267
    %v7269 = vpop.f32.mrb[0].mxu0
    %v7270 = vadd.f32 0.0, %v7269
    %v7271 = vpop.f32.mrb[0].mxu0
    %v7272 = vadd.f32 0.0, %v7271
    %v7273 = vpop.f32.mrb[0].mxu0
    %v7274 = vadd.f32 0.0, %v7273
    %7275 = vmatprep.mubr.bf16.mxu0 %v6948
    %7276 = vmatmul.mubr.bf16.gmra.mrb[0].mxu0 %v6947
    %v7277 = vpop.f32.mrb[0].mxu0
    %v7278 = vadd.f32 0.0, %v7277
    %v7279 = vpop.f32.mrb[0].mxu0
    %v7280 = vadd.f32 0.0, %v7279
    %v7281 = vpop.f32.mrb[0].mxu0
    %v7282 = vadd.f32 0.0, %v7281
    %v7283 = vpop.f32.mrb[0].mxu0
    %v7284 = vadd.f32 0.0, %v7283
    %7285 = vmatprep.mubr.bf16.mxu0 %v6950
    %7286 = vmatmul.mubr.bf16.gmra.mrb[0].mxu0 %v6949
    %v7287 = vpop.f32.mrb[0].mxu0
    %v7288 = vadd.f32 0.0, %v7287
    %v7289 = vpop.f32.mrb[0].mxu0
    %v7290 = vadd.f32 0.0, %v7289
    %v7291 = vpop.f32.mrb[0].mxu0
    %v7292 = vadd.f32 0.0, %v7291
    %v7293 = vpop.f32.mrb[0].mxu0
    %v7294 = vadd.f32 0.0, %v7293
    %7295 = vmatprep.mubr.bf16.mxu0 %v6952
    %7296 = vmatmul.mubr.bf16.gmra.mrb[0].mxu0 %v6951
    %v7297 = vpop.f32.mrb[0].mxu0
    %v7298 = vadd.f32 0.0, %v7297
    %v7299 = vpop.f32.mrb[0].mxu0
    %v7300 = vadd.f32 0.0, %v7299
    %v7301 = vpop.f32.mrb[0].mxu0
    %v7302 = vadd.f32 0.0, %v7301
    %v7303 = vpop.f32.mrb[0].mxu0
    %v7304 = vadd.f32 0.0, %v7303
    %7305 = vmatprep.mubr.bf16.mxu0 %v6954
    %7306 = vmatmul.mubr.bf16.gmra.mrb[0].mxu0 %v6953
    %v7307 = vpop.f32.mrb[0].mxu0
    %v7308 = vadd.f32 0.0, %v7307
    %v7309 = vpop.f32.mrb[0].mxu0
    %v7310 = vadd.f32 0.0, %v7309
    %v7311 = vpop.f32.mrb[0].mxu0
    %v7312 = vadd.f32 0.0, %v7311
    %v7313 = vpop.f32.mrb[0].mxu0
    %v7314 = vadd.f32 0.0, %v7313
    %7315 = vmatprep.mubr.bf16.mxu0 %v6956
    %7316 = vmatmul.mubr.bf16.gmra.mrb[0].mxu0 %v6955
    %v7317 = vpop.f32.mrb[0].mxu0
    %v7318 = vadd.f32 0.0, %v7317
    %v7319 = vpop.f32.mrb[0].mxu0
    %v7320 = vadd.f32 0.0, %v7319
    %v7321 = vpop.f32.mrb[0].mxu0
    %v7322 = vadd.f32 0.0, %v7321
    %v7323 = vpop.f32.mrb[0].mxu0
    %v7324 = vadd.f32 0.0, %v7323
    %7325 = vmatprep.mubr.bf16.mxu0 %v6958
    %7326 = vmatmul.mubr.bf16.gmra.mrb[0].mxu0 %v6957
    %v7327 = vpop.f32.mrb[0].mxu0
    %v7328 = vadd.f32 0.0, %v7327
    %v7329 = vpop.f32.mrb[0].mxu0
    %v7330 = vadd.f32 0.0, %v7329
    %v7331 = vpop.f32.mrb[0].mxu0
    %v7332 = vadd.f32 0.0, %v7331
    %v7333 = vpop.f32.mrb[0].mxu0
    %v7334 = vadd.f32 0.0, %v7333
    %7335 = vmatprep.mubr.bf16.mxu0 %v6960
    %7336 = vmatmul.mubr.bf16.gmra.mrb[0].mxu0 %v6959
    %v7337 = vpop.f32.mrb[0].mxu0
    %v7338 = vadd.f32 0.0, %v7337
    %v7339 = vpop.f32.mrb[0].mxu0
    %v7340 = vadd.f32 0.0, %v7339
    %v7341 = vpop.f32.mrb[0].mxu0
    %v7342 = vadd.f32 0.0, %v7341
    %v7343 = vpop.f32.mrb[0].mxu0
    %v7344 = vadd.f32 0.0, %v7343
    %7345 = vmatprep.mubr.bf16.mxu0 %v6962
    %7346 = vmatmul.mubr.bf16.gmra.mrb[0].mxu0 %v6961
    %v7347 = vpop.f32.mrb[0].mxu0
    %v7348 = vadd.f32 0.0, %v7347
    %v7349 = vpop.f32.mrb[0].mxu0
    %v7350 = vadd.f32 0.0, %v7349
    %v7351 = vpop.f32.mrb[0].mxu0
    %v7352 = vadd.f32 0.0, %v7351
    %v7353 = vpop.f32.mrb[0].mxu0
    %v7354 = vadd.f32 0.0, %v7353
    %7355 = vmatprep.mubr.bf16.mxu0 %v6964
    %7356 = vmatmul.mubr.bf16.gmra.mrb[0].mxu0 %v6963
    %v7357 = vpop.f32.mrb[0].mxu0
    %v7358 = vadd.f32 0.0, %v7357
    %v7359 = vpop.f32.mrb[0].mxu0
    %v7360 = vadd.f32 0.0, %v7359
    %v7361 = vpop.f32.mrb[0].mxu0
    %v7362 = vadd.f32 0.0, %v7361
    %v7363 = vpop.f32.mrb[0].mxu0
    %v7364 = vadd.f32 0.0, %v7363
    %7365 = vmatprep.mubr.bf16.mxu0 %v6966
    %7366 = vmatmul.mubr.bf16.gmra.mrb[0].mxu0 %v6965
    %v7367 = vpop.f32.mrb[0].mxu0
    %v7368 = vadd.f32 0.0, %v7367
    %v7369 = vpop.f32.mrb[0].mxu0
    %v7370 = vadd.f32 0.0, %v7369
    %v7371 = vpop.f32.mrb[0].mxu0
    %v7372 = vadd.f32 0.0, %v7371
    %v7373 = vpop.f32.mrb[0].mxu0
    %v7374 = vadd.f32 0.0, %v7373
    %7375 = vmatprep.mubr.bf16.mxu0 %v6968
    %7376 = vmatmul.mubr.bf16.gmra.mrb[0].mxu0 %v6967
    %v7377 = vpop.f32.mrb[0].mxu0
    %v7378 = vadd.f32 0.0, %v7377
    %v7379 = vpop.f32.mrb[0].mxu0
    %v7380 = vadd.f32 0.0, %v7379
    %v7381 = vpop.f32.mrb[0].mxu0
    %v7382 = vadd.f32 0.0, %v7381
    %v7383 = vpop.f32.mrb[0].mxu0
    %v7384 = vadd.f32 0.0, %v7383
    %7385 = vmatprep.mubr.bf16.mxu0 %v6970
    %7386 = vmatmul.mubr.bf16.gmra.mrb[0].mxu0 %v6969
    %v7387 = vpop.f32.mrb[0].mxu0
    %v7388 = vadd.f32 0.0, %v7387
    %v7389 = vpop.f32.mrb[0].mxu0
    %v7390 = vadd.f32 0.0, %v7389
    %v7391 = vpop.f32.mrb[0].mxu0
    %v7392 = vadd.f32 0.0, %v7391
    %v7393 = vpop.f32.mrb[0].mxu0
    %v7394 = vadd.f32 0.0, %v7393
    %7395 = vmatprep.mubr.bf16.mxu0 %v6972
    %7396 = vmatmul.mubr.bf16.gmra.mrb[0].mxu0 %v6971
    %v7397 = vpop.f32.mrb[0].mxu0
    %v7398 = vadd.f32 0.0, %v7397
    %v7399 = vpop.f32.mrb[0].mxu0
    %v7400 = vadd.f32 0.0, %v7399
    %v7401 = vpop.f32.mrb[0].mxu0
    %v7402 = vadd.f32 0.0, %v7401
    %v7403 = vpop.f32.mrb[0].mxu0
    %v7404 = vadd.f32 0.0, %v7403
    %7405 = vmatprep.mubr.bf16.mxu0 %v6974
    %7406 = vmatmul.mubr.bf16.gmra.mrb[0].mxu0 %v6973
    %v7407 = vpop.f32.mrb[0].mxu0
    %v7408 = vadd.f32 0.0, %v7407
    %v7409 = vpop.f32.mrb[0].mxu0
    %v7410 = vadd.f32 0.0, %v7409
    %v7411 = vpop.f32.mrb[0].mxu0
    %v7412 = vadd.f32 0.0, %v7411
    %v7413 = vpop.f32.mrb[0].mxu0
    %v7414 = vadd.f32 0.0, %v7413
    %7415 = vmatprep.mubr.bf16.mxu0 %v6976
    %7416 = vmatmul.mubr.bf16.gmra.mrb[0].mxu0 %v6975
    %v7417 = vpop.f32.mrb[0].mxu0
    %v7418 = vadd.f32 0.0, %v7417
    %v7419 = vpop.f32.mrb[0].mxu0
    %v7420 = vadd.f32 0.0, %v7419
    %v7421 = vpop.f32.mrb[0].mxu0
    %v7422 = vadd.f32 0.0, %v7421
    %v7423 = vpop.f32.mrb[0].mxu0
    %v7424 = vadd.f32 0.0, %v7423
    %7425 = vmatprep.mubr.bf16.mxu0 %v6978
    %7426 = vmatmul.mubr.bf16.gmra.mrb[0].mxu0 %v6977
    %v7427 = vpop.f32.mrb[0].mxu0
    %v7428 = vadd.f32 0.0, %v7427
    %v7429 = vpop.f32.mrb[0].mxu0
    %v7430 = vadd.f32 0.0, %v7429
    %v7431 = vpop.f32.mrb[0].mxu0
    %v7432 = vadd.f32 0.0, %v7431
    %v7433 = vpop.f32.mrb[0].mxu0
    %v7434 = vadd.f32 0.0, %v7433
    %7435 = vmatprep.mubr.bf16.mxu0 %v6980
    %7436 = vmatmul.mubr.bf16.gmra.mrb[0].mxu0 %v6979
    %v7437 = vpop.f32.mrb[0].mxu0
    %v7438 = vadd.f32 0.0, %v7437
    %v7439 = vpop.f32.mrb[0].mxu0
    %v7440 = vadd.f32 0.0, %v7439
    %v7441 = vpop.f32.mrb[0].mxu0
    %v7442 = vadd.f32 0.0, %v7441
    %v7443 = vpop.f32.mrb[0].mxu0
    %v7444 = vadd.f32 0.0, %v7443
    %7445 = vmatprep.mubr.bf16.mxu0 %v6982
    %7446 = vmatmul.mubr.bf16.gmra.mrb[0].mxu0 %v6981
    %v7447 = vpop.f32.mrb[0].mxu0
    %v7448 = vadd.f32 0.0, %v7447
    %v7449 = vpop.f32.mrb[0].mxu0
    %v7450 = vadd.f32 0.0, %v7449
    %v7451 = vpop.f32.mrb[0].mxu0
    %v7452 = vadd.f32 0.0, %v7451
    %v7453 = vpop.f32.mrb[0].mxu0
    %v7454 = vadd.f32 0.0, %v7453
    %7455 = vmatprep.mubr.bf16.mxu0 %v6984
    %7456 = vmatmul.mubr.bf16.gmra.mrb[0].mxu0 %v6983
    %v7457 = vpop.f32.mrb[0].mxu0
    %v7458 = vadd.f32 0.0, %v7457
    %v7459 = vpop.f32.mrb[0].mxu0
    %v7460 = vadd.f32 0.0, %v7459
    %v7461 = vpop.f32.mrb[0].mxu0
    %v7462 = vadd.f32 0.0, %v7461
    %v7463 = vpop.f32.mrb[0].mxu0
    %v7464 = vadd.f32 0.0, %v7463
    %7465 = vdwg.mxu0
    %v7466 = vadd.f32 %v6475, %v7228
    %v7467 = vadd.f32 %v6477, %v7230
    %v7468 = vadd.f32 %v6479, %v7232
    %v7469 = vadd.f32 %v6481, %v7234
    %v7470 = vadd.f32 %v6485, %v7238
    %v7471 = vadd.f32 %v6487, %v7240
    %v7472 = vadd.f32 %v6489, %v7242
    %v7473 = vadd.f32 %v6491, %v7244
    %v7474 = vadd.f32 %v6495, %v7248
    %v7475 = vadd.f32 %v6497, %v7250
    %v7476 = vadd.f32 %v6499, %v7252
    %v7477 = vadd.f32 %v6501, %v7254
    %v7478 = vadd.f32 %v6505, %v7258
    %v7479 = vadd.f32 %v6507, %v7260
    %v7480 = vadd.f32 %v6509, %v7262
    %v7481 = vadd.f32 %v6511, %v7264
    %v7482 = vadd.f32 %v6515, %v7268
    %v7483 = vadd.f32 %v6517, %v7270
    %v7484 = vadd.f32 %v6519, %v7272
    %v7485 = vadd.f32 %v6521, %v7274
    %v7486 = vadd.f32 %v6525, %v7278
    %v7487 = vadd.f32 %v6527, %v7280
    %v7488 = vadd.f32 %v6529, %v7282
    %v7489 = vadd.f32 %v6531, %v7284
    %v7490 = vadd.f32 %v6535, %v7288
    %v7491 = vadd.f32 %v6537, %v7290
    %v7492 = vadd.f32 %v6539, %v7292
    %v7493 = vadd.f32 %v6541, %v7294
    %v7494 = vadd.f32 %v6545, %v7298
    %v7495 = vadd.f32 %v6547, %v7300
    %v7496 = vadd.f32 %v6549, %v7302
    %v7497 = vadd.f32 %v6551, %v7304
    %v7498 = vadd.f32 %v6555, %v7308
    %v7499 = vadd.f32 %v6557, %v7310
    %v7500 = vadd.f32 %v6559, %v7312
    %v7501 = vadd.f32 %v6561, %v7314
    %v7502 = vadd.f32 %v6565, %v7318
    %v7503 = vadd.f32 %v6567, %v7320
    %v7504 = vadd.f32 %v6569, %v7322
    %v7505 = vadd.f32 %v6571, %v7324
    %v7506 = vadd.f32 %v6575, %v7328
    %v7507 = vadd.f32 %v6577, %v7330
    %v7508 = vadd.f32 %v6579, %v7332
    %v7509 = vadd.f32 %v6581, %v7334
    %v7510 = vadd.f32 %v6585, %v7338
    %v7511 = vadd.f32 %v6587, %v7340
    %v7512 = vadd.f32 %v6589, %v7342
    %v7513 = vadd.f32 %v6591, %v7344
    %v7514 = vadd.f32 %v6595, %v7348
    %v7515 = vadd.f32 %v6597, %v7350
    %v7516 = vadd.f32 %v6599, %v7352
    %v7517 = vadd.f32 %v6601, %v7354
    %v7518 = vadd.f32 %v6605, %v7358
    %v7519 = vadd.f32 %v6607, %v7360
    %v7520 = vadd.f32 %v6609, %v7362
    %v7521 = vadd.f32 %v6611, %v7364
    %v7522 = vadd.f32 %v6615, %v7368
    %v7523 = vadd.f32 %v6617, %v7370
    %v7524 = vadd.f32 %v6619, %v7372
    %v7525 = vadd.f32 %v6621, %v7374
    %v7526 = vadd.f32 %v6625, %v7378
    %v7527 = vadd.f32 %v6627, %v7380
    %v7528 = vadd.f32 %v6629, %v7382
    %v7529 = vadd.f32 %v6631, %v7384
    %v7530 = vadd.f32 %v6635, %v7388
    %v7531 = vadd.f32 %v6637, %v7390
    %v7532 = vadd.f32 %v6639, %v7392
    %v7533 = vadd.f32 %v6641, %v7394
    %v7534 = vadd.f32 %v6645, %v7398
    %v7535 = vadd.f32 %v6647, %v7400
    %v7536 = vadd.f32 %v6649, %v7402
    %v7537 = vadd.f32 %v6651, %v7404
    %v7538 = vadd.f32 %v6655, %v7408
    %v7539 = vadd.f32 %v6657, %v7410
    %v7540 = vadd.f32 %v6659, %v7412
    %v7541 = vadd.f32 %v6661, %v7414
    %v7542 = vadd.f32 %v6665, %v7418
    %v7543 = vadd.f32 %v6667, %v7420
    %v7544 = vadd.f32 %v6669, %v7422
    %v7545 = vadd.f32 %v6671, %v7424
    %v7546 = vadd.f32 %v6675, %v7428
    %v7547 = vadd.f32 %v6677, %v7430
    %v7548 = vadd.f32 %v6679, %v7432
    %v7549 = vadd.f32 %v6681, %v7434
    %v7550 = vadd.f32 %v6685, %v7438
    %v7551 = vadd.f32 %v6687, %v7440
    %v7552 = vadd.f32 %v6689, %v7442
    %v7553 = vadd.f32 %v6691, %v7444
    %v7554 = vadd.f32 %v6695, %v7448
    %v7555 = vadd.f32 %v6697, %v7450
    %v7556 = vadd.f32 %v6699, %v7452
    %v7557 = vadd.f32 %v6701, %v7454
    %v7558 = vadd.f32 %v6705, %v7458
    %v7559 = vadd.f32 %v6707, %v7460
    %v7560 = vadd.f32 %v6709, %v7462
    %v7561 = vadd.f32 %v6711, %v7464
    %v7562 = vld [vmem:[#allocation3 + $0x30] sm:$0x88]
    %v7563 = vld [vmem:[#allocation3 + $0x38] sm:$0xff]
    %v7564 = vld [vmem:[#allocation3 + $0x40] sm:$0xff]
    %v7565 = vld [vmem:[#allocation3 + $0x48] sm:$0xff]
    %v7566 = vld [vmem:[#allocation3 + $0x50] sm:$0xff]
    %v7567 = vld [vmem:[#allocation3 + $0x58] sm:$0xff]
    %v7568 = vld [vmem:[#allocation3 + $0x60] sm:$0xff]
    %v7569 = vld [vmem:[#allocation3 + $0x68] sm:$0xff]
    %v7570 = vld [vmem:[#allocation3 + $0x70] sm:$0xff]
    %v7571 = vld [vmem:[#allocation3 + $0x78] sm:$0xff]
    %v7572 = vld [vmem:[#allocation3 + $0x80] sm:$0xff]
    %v7573 = vld [vmem:[#allocation3 + $0x88] sm:$0xff]
    %v7574 = vld [vmem:[#allocation3 + $0x90] sm:$0xff]
    %v7575 = vld [vmem:[#allocation3 + $0x98] sm:$0xff]
    %v7576 = vld [vmem:[#allocation3 + $0xa0] sm:$0xff]
    %v7577 = vld [vmem:[#allocation3 + $0xa8] sm:$0xff]
    %v7578 = vld [vmem:[#allocation3 + $0xb0] sm:$0xff]
    %v7579 = vld [vmem:[#allocation3 + $0xb8] sm:$0xff]
    %v7580 = vld [vmem:[#allocation3 + $0xc0] sm:$0xff]
    %v7581 = vld [vmem:[#allocation3 + $0xc8] sm:$0xff]
    %v7582 = vld [vmem:[#allocation3 + $0xd0] sm:$0xff]
    %v7583 = vld [vmem:[#allocation3 + $0xd8] sm:$0xff]
    %v7584 = vld [vmem:[#allocation3 + $0xe0] sm:$0xff]
    %v7585 = vld [vmem:[#allocation3 + $0xe8] sm:$0xff]
    %v7586 = vld [vmem:[#allocation3 + $0xf0] sm:$0xff]
    %v7587 = vld [vmem:[#allocation3 + $0xf8] sm:$0xff]
    %v7588 = vld [vmem:[#allocation3 + $0x100] sm:$0xff]
    %v7589 = vld [vmem:[#allocation3 + $0x108] sm:$0xff]
    %v7590 = vld [vmem:[#allocation3 + $0x110] sm:$0xff]
    %v7591 = vld [vmem:[#allocation3 + $0x118] sm:$0xff]
    %v7592 = vld [vmem:[#allocation3 + $0x120] sm:$0xff]
    %v7593 = vld [vmem:[#allocation3 + $0x128] sm:$0xff]
    %v7594 = vld [vmem:[#allocation3 + $0x130] sm:$0xff]
    %v7595 = vld [vmem:[#allocation3 + $0x138] sm:$0xff]
    %v7596 = vld [vmem:[#allocation3 + $0x140] sm:$0xff]
    %v7597 = vld [vmem:[#allocation3 + $0x148] sm:$0xff]
    %v7598 = vld [vmem:[#allocation3 + $0x150] sm:$0xff]
    %v7599 = vld [vmem:[#allocation3 + $0x158] sm:$0xff]
    %v7600 = vld [vmem:[#allocation3 + $0x160] sm:$0xff]
    %v7601 = vld [vmem:[#allocation3 + $0x168] sm:$0xff]
    %v7602 = vld [vmem:[#allocation3 + $0x170] sm:$0xff]
    %v7603 = vld [vmem:[#allocation3 + $0x178] sm:$0xff]
    %v7604 = vld [vmem:[#allocation3 + $0x180] sm:$0xff]
    %v7605 = vld [vmem:[#allocation3 + $0x188] sm:$0xff]
    %v7606 = vld [vmem:[#allocation3 + $0x190] sm:$0xff]
    %v7607 = vld [vmem:[#allocation3 + $0x198] sm:$0xff]
    %v7608 = vld [vmem:[#allocation3 + $0x1a0] sm:$0xff]
    %v7609 = vld [vmem:[#allocation3 + $0x1a8] sm:$0xff]
    %v7610 = vld [vmem:[#allocation3 + $0x1b0] sm:$0x77]
    %v7611 = vld [vmem:[#allocation14 + $0x300] sm:$0xff]
    %v7612 = vld [vmem:[#allocation14 + $0x308] sm:$0xff]
    %v7613 = vld [vmem:[#allocation14 + $0x310] sm:$0xff]
    %v7614 = vld [vmem:[#allocation14 + $0x318] sm:$0xff]
    %v7615 = vld [vmem:[#allocation14 + $0x320] sm:$0xff]
    %v7616 = vld [vmem:[#allocation14 + $0x328] sm:$0xff]
    %v7617 = vld [vmem:[#allocation14 + $0x330] sm:$0xff]
    %v7618 = vld [vmem:[#allocation14 + $0x338] sm:$0xff]
    %v7619 = vld [vmem:[#allocation14 + $0x340] sm:$0xff]
    %v7620 = vld [vmem:[#allocation14 + $0x348] sm:$0xff]
    %v7621 = vld [vmem:[#allocation14 + $0x350] sm:$0xff]
    %v7622 = vld [vmem:[#allocation14 + $0x358] sm:$0xff]
    %v7623 = vld [vmem:[#allocation14 + $0x360] sm:$0xff]
    %v7624 = vld [vmem:[#allocation14 + $0x368] sm:$0xff]
    %v7625 = vld [vmem:[#allocation14 + $0x370] sm:$0xff]
    %v7626 = vld [vmem:[#allocation14 + $0x378] sm:$0xff]
    %v7627 = vld [vmem:[#allocation14 + $0x380] sm:$0xff]
    %v7628 = vld [vmem:[#allocation14 + $0x388] sm:$0xff]
    %v7629 = vld [vmem:[#allocation14 + $0x390] sm:$0xff]
    %v7630 = vld [vmem:[#allocation14 + $0x398] sm:$0xff]
    %v7631 = vld [vmem:[#allocation14 + $0x3a0] sm:$0xff]
    %v7632 = vld [vmem:[#allocation14 + $0x3a8] sm:$0xff]
    %v7633 = vld [vmem:[#allocation14 + $0x3b0] sm:$0xff]
    %v7634 = vld [vmem:[#allocation14 + $0x3b8] sm:$0xff]
    %v7635 = vld [vmem:[#allocation14 + $0x3c0] sm:$0xff]
    %v7636 = vld [vmem:[#allocation14 + $0x3c8] sm:$0xff]
    %v7637 = vld [vmem:[#allocation14 + $0x3d0] sm:$0xff]
    %v7638 = vld [vmem:[#allocation14 + $0x3d8] sm:$0xff]
    %v7639 = vld [vmem:[#allocation14 + $0x3e0] sm:$0xff]
    %v7640 = vld [vmem:[#allocation14 + $0x3e8] sm:$0xff]
    %v7641 = vld [vmem:[#allocation14 + $0x3f0] sm:$0xff]
    %v7642 = vld [vmem:[#allocation14 + $0x3f8] sm:$0xff]
    %v7692 = vunpack.c.l.b16 %v7562
    %v7693 = vunpack.c.h.b16 %v7562
    %v7694 = vunpack.c.l.b16 %v7563
    %v7695 = vunpack.c.h.b16 %v7563
    %v7696 = vunpack.c.l.b16 %v7564
    %v7697 = vunpack.c.h.b16 %v7564
    %v7698 = vunpack.c.l.b16 %v7565
    %v7699 = vunpack.c.h.b16 %v7565
    %v7700 = vunpack.c.l.b16 %v7566
    %v7701 = vunpack.c.h.b16 %v7566
    %v7702 = vunpack.c.l.b16 %v7567
    %v7703 = vunpack.c.h.b16 %v7567
    %v7704 = vunpack.c.l.b16 %v7568
    %v7705 = vunpack.c.h.b16 %v7568
    %v7706 = vunpack.c.l.b16 %v7569
    %v7707 = vunpack.c.h.b16 %v7569
    %v7708 = vunpack.c.l.b16 %v7570
    %v7709 = vunpack.c.h.b16 %v7570
    %v7710 = vunpack.c.l.b16 %v7571
    %v7711 = vunpack.c.h.b16 %v7571
    %v7712 = vunpack.c.l.b16 %v7572
    %v7713 = vunpack.c.h.b16 %v7572
    %v7714 = vunpack.c.l.b16 %v7573
    %v7715 = vunpack.c.h.b16 %v7573
    %v7716 = vunpack.c.l.b16 %v7574
    %v7717 = vunpack.c.h.b16 %v7574
    %v7718 = vunpack.c.l.b16 %v7575
    %v7719 = vunpack.c.h.b16 %v7575
    %v7720 = vunpack.c.l.b16 %v7576
    %v7721 = vunpack.c.h.b16 %v7576
    %v7722 = vunpack.c.l.b16 %v7577
    %v7723 = vunpack.c.h.b16 %v7577
    %v7724 = vunpack.c.l.b16 %v7578
    %v7725 = vunpack.c.h.b16 %v7578
    %v7726 = vunpack.c.l.b16 %v7579
    %v7727 = vunpack.c.h.b16 %v7579
    %v7728 = vunpack.c.l.b16 %v7580
    %v7729 = vunpack.c.h.b16 %v7580
    %v7730 = vunpack.c.l.b16 %v7581
    %v7731 = vunpack.c.h.b16 %v7581
    %v7732 = vunpack.c.l.b16 %v7582
    %v7733 = vunpack.c.h.b16 %v7582
    %v7734 = vunpack.c.l.b16 %v7583
    %v7735 = vunpack.c.h.b16 %v7583
    %v7736 = vunpack.c.l.b16 %v7584
    %v7737 = vunpack.c.h.b16 %v7584
    %v7738 = vunpack.c.l.b16 %v7585
    %v7739 = vunpack.c.h.b16 %v7585
    %v7740 = vunpack.c.l.b16 %v7586
    %v7741 = vunpack.c.h.b16 %v7586
    %v7742 = vunpack.c.l.b16 %v7587
    %v7743 = vunpack.c.h.b16 %v7587
    %v7744 = vunpack.c.l.b16 %v7588
    %v7745 = vunpack.c.h.b16 %v7588
    %v7746 = vunpack.c.l.b16 %v7589
    %v7747 = vunpack.c.h.b16 %v7589
    %v7748 = vunpack.c.l.b16 %v7590
    %v7749 = vunpack.c.h.b16 %v7590
    %v7750 = vunpack.c.l.b16 %v7591
    %v7751 = vunpack.c.h.b16 %v7591
    %v7752 = vunpack.c.l.b16 %v7592
    %v7753 = vunpack.c.h.b16 %v7592
    %v7754 = vunpack.c.l.b16 %v7593
    %v7755 = vunpack.c.h.b16 %v7593
    %v7756 = vunpack.c.l.b16 %v7594
    %v7757 = vunpack.c.h.b16 %v7594
    %v7758 = vunpack.c.l.b16 %v7595
    %v7759 = vunpack.c.h.b16 %v7595
    %v7760 = vunpack.c.l.b16 %v7596
    %v7761 = vunpack.c.h.b16 %v7596
    %v7762 = vunpack.c.l.b16 %v7597
    %v7763 = vunpack.c.h.b16 %v7597
    %v7764 = vunpack.c.l.b16 %v7598
    %v7765 = vunpack.c.h.b16 %v7598
    %v7766 = vunpack.c.l.b16 %v7599
    %v7767 = vunpack.c.h.b16 %v7599
    %v7768 = vunpack.c.l.b16 %v7600
    %v7769 = vunpack.c.h.b16 %v7600
    %v7770 = vunpack.c.l.b16 %v7601
    %v7771 = vunpack.c.h.b16 %v7601
    %v7772 = vunpack.c.l.b16 %v7602
    %v7773 = vunpack.c.h.b16 %v7602
    %v7774 = vunpack.c.l.b16 %v7603
    %v7775 = vunpack.c.h.b16 %v7603
    %v7776 = vunpack.c.l.b16 %v7604
    %v7777 = vunpack.c.h.b16 %v7604
    %v7778 = vunpack.c.l.b16 %v7605
    %v7779 = vunpack.c.h.b16 %v7605
    %v7780 = vunpack.c.l.b16 %v7606
    %v7781 = vunpack.c.h.b16 %v7606
    %v7782 = vunpack.c.l.b16 %v7607
    %v7783 = vunpack.c.h.b16 %v7607
    %v7784 = vunpack.c.l.b16 %v7608
    %v7785 = vunpack.c.h.b16 %v7608
    %v7786 = vunpack.c.l.b16 %v7609
    %v7787 = vunpack.c.h.b16 %v7609
    %v7788 = vunpack.c.l.b16 %v7610
    %v7789 = vunpack.c.h.b16 %v7610
    %v7790 = vpack.c.b16 %v7694, %v7692
    %v7791 = vpack.c.b16 %v7695, %v7693
    %v7792 = vpack.c.b16 %v7698, %v7696
    %v7793 = vpack.c.b16 %v7699, %v7697
    %v7794 = vpack.c.b16 %v7702, %v7700
    %v7795 = vpack.c.b16 %v7703, %v7701
    %v7796 = vpack.c.b16 %v7706, %v7704
    %v7797 = vpack.c.b16 %v7707, %v7705
    %v7798 = vpack.c.b16 %v7710, %v7708
    %v7799 = vpack.c.b16 %v7711, %v7709
    %v7800 = vpack.c.b16 %v7714, %v7712
    %v7801 = vpack.c.b16 %v7715, %v7713
    %v7802 = vpack.c.b16 %v7718, %v7716
    %v7803 = vpack.c.b16 %v7719, %v7717
    %v7804 = vpack.c.b16 %v7722, %v7720
    %v7805 = vpack.c.b16 %v7723, %v7721
    %v7806 = vpack.c.b16 %v7726, %v7724
    %v7807 = vpack.c.b16 %v7727, %v7725
    %v7808 = vpack.c.b16 %v7730, %v7728
    %v7809 = vpack.c.b16 %v7731, %v7729
    %v7810 = vpack.c.b16 %v7734, %v7732
    %v7811 = vpack.c.b16 %v7735, %v7733
    %v7812 = vpack.c.b16 %v7738, %v7736
    %v7813 = vpack.c.b16 %v7739, %v7737
    %v7814 = vpack.c.b16 %v7742, %v7740
    %v7815 = vpack.c.b16 %v7743, %v7741
    %v7816 = vpack.c.b16 %v7746, %v7744
    %v7817 = vpack.c.b16 %v7747, %v7745
    %v7818 = vpack.c.b16 %v7750, %v7748
    %v7819 = vpack.c.b16 %v7751, %v7749
    %v7820 = vpack.c.b16 %v7754, %v7752
    %v7821 = vpack.c.b16 %v7755, %v7753
    %v7822 = vpack.c.b16 %v7758, %v7756
    %v7823 = vpack.c.b16 %v7759, %v7757
    %v7824 = vpack.c.b16 %v7762, %v7760
    %v7825 = vpack.c.b16 %v7763, %v7761
    %v7826 = vpack.c.b16 %v7766, %v7764
    %v7827 = vpack.c.b16 %v7767, %v7765
    %v7828 = vpack.c.b16 %v7770, %v7768
    %v7829 = vpack.c.b16 %v7771, %v7769
    %v7830 = vpack.c.b16 %v7774, %v7772
    %v7831 = vpack.c.b16 %v7775, %v7773
    %v7832 = vpack.c.b16 %v7778, %v7776
    %v7833 = vpack.c.b16 %v7779, %v7777
    %v7834 = vpack.c.b16 %v7782, %v7780
    %v7835 = vpack.c.b16 %v7783, %v7781
    %v7836 = vpack.c.b16 %v7786, %v7784
    %v7837 = vpack.c.b16 %v7787, %v7785
    %v7838 = vpack.c.b16 %v7788, %v7788
    %v7839 = vpack.c.b16 %v7789, %v7789
    %v7840 = vrot.slane %v7790, 3
    %v7841 = vrot.slane %v7792, 3
    %v7842 = vsel %vm1737, %v7840, %v7841
    %v7843 = vrot.slane %v7791, 3
    %v7844 = vrot.slane %v7793, 3
    %v7845 = vsel %vm1737, %v7843, %v7844
    %v7846 = vrot.slane %v7794, 3
    %v7847 = vsel %vm1737, %v7841, %v7846
    %v7848 = vrot.slane %v7795, 3
    %v7849 = vsel %vm1737, %v7844, %v7848
    %v7850 = vrot.slane %v7796, 3
    %v7851 = vsel %vm1737, %v7846, %v7850
    %v7852 = vrot.slane %v7797, 3
    %v7853 = vsel %vm1737, %v7848, %v7852
    %v7854 = vrot.slane %v7798, 3
    %v7855 = vsel %vm1737, %v7850, %v7854
    %v7856 = vrot.slane %v7799, 3
    %v7857 = vsel %vm1737, %v7852, %v7856
    %v7858 = vrot.slane %v7800, 3
    %v7859 = vsel %vm1737, %v7854, %v7858
    %v7860 = vrot.slane %v7801, 3
    %v7861 = vsel %vm1737, %v7856, %v7860
    %v7862 = vrot.slane %v7802, 3
    %v7863 = vsel %vm1737, %v7858, %v7862
    %v7864 = vrot.slane %v7803, 3
    %v7865 = vsel %vm1737, %v7860, %v7864
    %v7866 = vrot.slane %v7804, 3
    %v7867 = vsel %vm1737, %v7862, %v7866
    %v7868 = vrot.slane %v7805, 3
    %v7869 = vsel %vm1737, %v7864, %v7868
    %v7870 = vrot.slane %v7806, 3
    %v7871 = vsel %vm1737, %v7866, %v7870
    %v7872 = vrot.slane %v7807, 3
    %v7873 = vsel %vm1737, %v7868, %v7872
    %v7874 = vrot.slane %v7808, 3
    %v7875 = vsel %vm1737, %v7870, %v7874
    %v7876 = vrot.slane %v7809, 3
    %v7877 = vsel %vm1737, %v7872, %v7876
    %v7878 = vrot.slane %v7810, 3
    %v7879 = vsel %vm1737, %v7874, %v7878
    %v7880 = vrot.slane %v7811, 3
    %v7881 = vsel %vm1737, %v7876, %v7880
    %v7882 = vrot.slane %v7812, 3
    %v7883 = vsel %vm1737, %v7878, %v7882
    %v7884 = vrot.slane %v7813, 3
    %v7885 = vsel %vm1737, %v7880, %v7884
    %v7886 = vrot.slane %v7814, 3
    %v7887 = vsel %vm1737, %v7882, %v7886
    %v7888 = vrot.slane %v7815, 3
    %v7889 = vsel %vm1737, %v7884, %v7888
    %v7890 = vrot.slane %v7816, 3
    %v7891 = vsel %vm1737, %v7886, %v7890
    %v7892 = vrot.slane %v7817, 3
    %v7893 = vsel %vm1737, %v7888, %v7892
    %v7894 = vrot.slane %v7818, 3
    %v7895 = vsel %vm1737, %v7890, %v7894
    %v7896 = vrot.slane %v7819, 3
    %v7897 = vsel %vm1737, %v7892, %v7896
    %v7898 = vrot.slane %v7820, 3
    %v7899 = vsel %vm1737, %v7894, %v7898
    %v7900 = vrot.slane %v7821, 3
    %v7901 = vsel %vm1737, %v7896, %v7900
    %v7902 = vrot.slane %v7822, 3
    %v7903 = vsel %vm1737, %v7898, %v7902
    %v7904 = vrot.slane %v7823, 3
    %v7905 = vsel %vm1737, %v7900, %v7904
    %v7906 = vrot.slane %v7824, 3
    %v7907 = vsel %vm1737, %v7902, %v7906
    %v7908 = vrot.slane %v7825, 3
    %v7909 = vsel %vm1737, %v7904, %v7908
    %v7910 = vrot.slane %v7826, 3
    %v7911 = vsel %vm1737, %v7906, %v7910
    %v7912 = vrot.slane %v7827, 3
    %v7913 = vsel %vm1737, %v7908, %v7912
    %v7914 = vrot.slane %v7828, 3
    %v7915 = vsel %vm1737, %v7910, %v7914
    %v7916 = vrot.slane %v7829, 3
    %v7917 = vsel %vm1737, %v7912, %v7916
    %v7918 = vrot.slane %v7830, 3
    %v7919 = vsel %vm1737, %v7914, %v7918
    %v7920 = vrot.slane %v7831, 3
    %v7921 = vsel %vm1737, %v7916, %v7920
    %v7922 = vrot.slane %v7832, 3
    %v7923 = vsel %vm1737, %v7918, %v7922
    %v7924 = vrot.slane %v7833, 3
    %v7925 = vsel %vm1737, %v7920, %v7924
    %v7926 = vrot.slane %v7834, 3
    %v7927 = vsel %vm1737, %v7922, %v7926
    %v7928 = vrot.slane %v7835, 3
    %v7929 = vsel %vm1737, %v7924, %v7928
    %v7930 = vrot.slane %v7836, 3
    %v7931 = vsel %vm1737, %v7926, %v7930
    %v7932 = vrot.slane %v7837, 3
    %v7933 = vsel %vm1737, %v7928, %v7932
    %v7934 = vrot.slane %v7838, 3
    %v7935 = vsel %vm1737, %v7930, %v7934
    %v7936 = vrot.slane %v7839, 3
    %v7937 = vsel %vm1737, %v7932, %v7936
    %v8018 = vunpack.c.l.b16 %v7611
    %v8019 = vunpack.c.h.b16 %v7611
    %v8020 = vunpack.c.l.b16 %v7612
    %v8021 = vunpack.c.h.b16 %v7612
    %v8022 = vunpack.c.l.b16 %v7613
    %v8023 = vunpack.c.h.b16 %v7613
    %v8024 = vunpack.c.l.b16 %v7614
    %v8025 = vunpack.c.h.b16 %v7614
    %v8026 = vunpack.c.l.b16 %v7615
    %v8027 = vunpack.c.h.b16 %v7615
    %v8028 = vunpack.c.l.b16 %v7616
    %v8029 = vunpack.c.h.b16 %v7616
    %v8030 = vunpack.c.l.b16 %v7617
    %v8031 = vunpack.c.h.b16 %v7617
    %v8032 = vunpack.c.l.b16 %v7618
    %v8033 = vunpack.c.h.b16 %v7618
    %v8034 = vunpack.c.l.b16 %v7619
    %v8035 = vunpack.c.h.b16 %v7619
    %v8036 = vunpack.c.l.b16 %v7620
    %v8037 = vunpack.c.h.b16 %v7620
    %v8038 = vunpack.c.l.b16 %v7621
    %v8039 = vunpack.c.h.b16 %v7621
    %v8040 = vunpack.c.l.b16 %v7622
    %v8041 = vunpack.c.h.b16 %v7622
    %v8042 = vunpack.c.l.b16 %v7623
    %v8043 = vunpack.c.h.b16 %v7623
    %v8044 = vunpack.c.l.b16 %v7624
    %v8045 = vunpack.c.h.b16 %v7624
    %v8046 = vunpack.c.l.b16 %v7625
    %v8047 = vunpack.c.h.b16 %v7625
    %v8048 = vunpack.c.l.b16 %v7626
    %v8049 = vunpack.c.h.b16 %v7626
    %v8050 = vunpack.c.l.b16 %v7627
    %v8051 = vunpack.c.h.b16 %v7627
    %v8052 = vunpack.c.l.b16 %v7628
    %v8053 = vunpack.c.h.b16 %v7628
    %v8054 = vunpack.c.l.b16 %v7629
    %v8055 = vunpack.c.h.b16 %v7629
    %v8056 = vunpack.c.l.b16 %v7630
    %v8057 = vunpack.c.h.b16 %v7630
    %v8058 = vunpack.c.l.b16 %v7631
    %v8059 = vunpack.c.h.b16 %v7631
    %v8060 = vunpack.c.l.b16 %v7632
    %v8061 = vunpack.c.h.b16 %v7632
    %v8062 = vunpack.c.l.b16 %v7633
    %v8063 = vunpack.c.h.b16 %v7633
    %v8064 = vunpack.c.l.b16 %v7634
    %v8065 = vunpack.c.h.b16 %v7634
    %v8066 = vunpack.c.l.b16 %v7635
    %v8067 = vunpack.c.h.b16 %v7635
    %v8068 = vunpack.c.l.b16 %v7636
    %v8069 = vunpack.c.h.b16 %v7636
    %v8070 = vunpack.c.l.b16 %v7637
    %v8071 = vunpack.c.h.b16 %v7637
    %v8072 = vunpack.c.l.b16 %v7638
    %v8073 = vunpack.c.h.b16 %v7638
    %v8074 = vunpack.c.l.b16 %v7639
    %v8075 = vunpack.c.h.b16 %v7639
    %v8076 = vunpack.c.l.b16 %v7640
    %v8077 = vunpack.c.h.b16 %v7640
    %v8078 = vunpack.c.l.b16 %v7641
    %v8079 = vunpack.c.h.b16 %v7641
    %v8080 = vunpack.c.l.b16 %v7642
    %v8081 = vunpack.c.h.b16 %v7642
    %v8082 = vpack.c.b16 %v8020, %v8018
    %v8083 = vpack.c.b16 %v8021, %v8019
    %v8084 = vpack.c.b16 %v8024, %v8022
    %v8085 = vpack.c.b16 %v8025, %v8023
    %v8086 = vpack.c.b16 %v8028, %v8026
    %v8087 = vpack.c.b16 %v8029, %v8027
    %v8088 = vpack.c.b16 %v8032, %v8030
    %v8089 = vpack.c.b16 %v8033, %v8031
    %v8090 = vpack.c.b16 %v8036, %v8034
    %v8091 = vpack.c.b16 %v8037, %v8035
    %v8092 = vpack.c.b16 %v8040, %v8038
    %v8093 = vpack.c.b16 %v8041, %v8039
    %v8094 = vpack.c.b16 %v8044, %v8042
    %v8095 = vpack.c.b16 %v8045, %v8043
    %v8096 = vpack.c.b16 %v8048, %v8046
    %v8097 = vpack.c.b16 %v8049, %v8047
    %v8098 = vpack.c.b16 %v8052, %v8050
    %v8099 = vpack.c.b16 %v8053, %v8051
    %v8100 = vpack.c.b16 %v8056, %v8054
    %v8101 = vpack.c.b16 %v8057, %v8055
    %v8102 = vpack.c.b16 %v8060, %v8058
    %v8103 = vpack.c.b16 %v8061, %v8059
    %v8104 = vpack.c.b16 %v8064, %v8062
    %v8105 = vpack.c.b16 %v8065, %v8063
    %v8106 = vpack.c.b16 %v8068, %v8066
    %v8107 = vpack.c.b16 %v8069, %v8067
    %v8108 = vpack.c.b16 %v8072, %v8070
    %v8109 = vpack.c.b16 %v8073, %v8071
    %v8110 = vpack.c.b16 %v8076, %v8074
    %v8111 = vpack.c.b16 %v8077, %v8075
    %v8112 = vpack.c.b16 %v8080, %v8078
    %v8113 = vpack.c.b16 %v8081, %v8079
    %8146 = vmatprep.subr.bf16.mxu0 %v8083
    %8147 = vmatpush1.bf16.msra.mxu0 %v8082
    %8148 = vmatprep.subr.bf16.mxu0 %v8085
    %8149 = vmatpush1.bf16.msra.mxu0 %v8084
    %8150 = vmatprep.subr.bf16.mxu0 %v8087
    %8151 = vmatpush1.bf16.msra.mxu0 %v8086
    %8152 = vmatprep.subr.bf16.mxu0 %v8089
    %8153 = vmatpush1.bf16.msra.mxu0 %v8088
    %8154 = vmatprep.subr.bf16.mxu0 %v8091
    %8155 = vmatpush1.bf16.msra.mxu0 %v8090
    %8156 = vmatprep.subr.bf16.mxu0 %v8093
    %8157 = vmatpush1.bf16.msra.mxu0 %v8092
    %8158 = vmatprep.subr.bf16.mxu0 %v8095
    %8159 = vmatpush1.bf16.msra.mxu0 %v8094
    %8160 = vmatprep.subr.bf16.mxu0 %v8097
    %8161 = vmatpush1.bf16.msra.mxu0 %v8096
    %8162 = vmatprep.subr.bf16.mxu0 %v8099
    %8163 = vmatpush1.bf16.msra.mxu0 %v8098
    %8164 = vmatprep.subr.bf16.mxu0 %v8101
    %8165 = vmatpush1.bf16.msra.mxu0 %v8100
    %8166 = vmatprep.subr.bf16.mxu0 %v8103
    %8167 = vmatpush1.bf16.msra.mxu0 %v8102
    %8168 = vmatprep.subr.bf16.mxu0 %v8105
    %8169 = vmatpush1.bf16.msra.mxu0 %v8104
    %8170 = vmatprep.subr.bf16.mxu0 %v8107
    %8171 = vmatpush1.bf16.msra.mxu0 %v8106
    %8172 = vmatprep.subr.bf16.mxu0 %v8109
    %8173 = vmatpush1.bf16.msra.mxu0 %v8108
    %8174 = vmatprep.subr.bf16.mxu0 %v8111
    %8175 = vmatpush1.bf16.msra.mxu0 %v8110
    %8176 = vmatprep.subr.bf16.mxu0 %v8113
    %8177 = vmatpush1.bf16.msra.mxu0 %v8112
    %8178 = vmatprep.mubr.bf16.mxu0 %v7845
    %8179 = vmatmul.mubr.bf16.gmra.mrb[0].mxu0 %v7842
    %v8180 = vpop.f32.mrb[0].mxu0
    %v8181 = vadd.f32 0.0, %v8180
    %v8182 = vpop.f32.mrb[0].mxu0
    %v8183 = vadd.f32 0.0, %v8182
    %v8184 = vpop.f32.mrb[0].mxu0
    %v8185 = vadd.f32 0.0, %v8184
    %v8186 = vpop.f32.mrb[0].mxu0
    %v8187 = vadd.f32 0.0, %v8186
    %8188 = vmatprep.mubr.bf16.mxu0 %v7849
    %8189 = vmatmul.mubr.bf16.gmra.mrb[0].mxu0 %v7847
    %v8190 = vpop.f32.mrb[0].mxu0
    %v8191 = vadd.f32 0.0, %v8190
    %v8192 = vpop.f32.mrb[0].mxu0
    %v8193 = vadd.f32 0.0, %v8192
    %v8194 = vpop.f32.mrb[0].mxu0
    %v8195 = vadd.f32 0.0, %v8194
    %v8196 = vpop.f32.mrb[0].mxu0
    %v8197 = vadd.f32 0.0, %v8196
    %8198 = vmatprep.mubr.bf16.mxu0 %v7853
    %8199 = vmatmul.mubr.bf16.gmra.mrb[0].mxu0 %v7851
    %v8200 = vpop.f32.mrb[0].mxu0
    %v8201 = vadd.f32 0.0, %v8200
    %v8202 = vpop.f32.mrb[0].mxu0
    %v8203 = vadd.f32 0.0, %v8202
    %v8204 = vpop.f32.mrb[0].mxu0
    %v8205 = vadd.f32 0.0, %v8204
    %v8206 = vpop.f32.mrb[0].mxu0
    %v8207 = vadd.f32 0.0, %v8206
    %8208 = vmatprep.mubr.bf16.mxu0 %v7857
    %8209 = vmatmul.mubr.bf16.gmra.mrb[0].mxu0 %v7855
    %v8210 = vpop.f32.mrb[0].mxu0
    %v8211 = vadd.f32 0.0, %v8210
    %v8212 = vpop.f32.mrb[0].mxu0
    %v8213 = vadd.f32 0.0, %v8212
    %v8214 = vpop.f32.mrb[0].mxu0
    %v8215 = vadd.f32 0.0, %v8214
    %v8216 = vpop.f32.mrb[0].mxu0
    %v8217 = vadd.f32 0.0, %v8216
    %8218 = vmatprep.mubr.bf16.mxu0 %v7861
    %8219 = vmatmul.mubr.bf16.gmra.mrb[0].mxu0 %v7859
    %v8220 = vpop.f32.mrb[0].mxu0
    %v8221 = vadd.f32 0.0, %v8220
    %v8222 = vpop.f32.mrb[0].mxu0
    %v8223 = vadd.f32 0.0, %v8222
    %v8224 = vpop.f32.mrb[0].mxu0
    %v8225 = vadd.f32 0.0, %v8224
    %v8226 = vpop.f32.mrb[0].mxu0
    %v8227 = vadd.f32 0.0, %v8226
    %8228 = vmatprep.mubr.bf16.mxu0 %v7865
    %8229 = vmatmul.mubr.bf16.gmra.mrb[0].mxu0 %v7863
    %v8230 = vpop.f32.mrb[0].mxu0
    %v8231 = vadd.f32 0.0, %v8230
    %v8232 = vpop.f32.mrb[0].mxu0
    %v8233 = vadd.f32 0.0, %v8232
    %v8234 = vpop.f32.mrb[0].mxu0
    %v8235 = vadd.f32 0.0, %v8234
    %v8236 = vpop.f32.mrb[0].mxu0
    %v8237 = vadd.f32 0.0, %v8236
    %8238 = vmatprep.mubr.bf16.mxu0 %v7869
    %8239 = vmatmul.mubr.bf16.gmra.mrb[0].mxu0 %v7867
    %v8240 = vpop.f32.mrb[0].mxu0
    %v8241 = vadd.f32 0.0, %v8240
    %v8242 = vpop.f32.mrb[0].mxu0
    %v8243 = vadd.f32 0.0, %v8242
    %v8244 = vpop.f32.mrb[0].mxu0
    %v8245 = vadd.f32 0.0, %v8244
    %v8246 = vpop.f32.mrb[0].mxu0
    %v8247 = vadd.f32 0.0, %v8246
    %8248 = vmatprep.mubr.bf16.mxu0 %v7873
    %8249 = vmatmul.mubr.bf16.gmra.mrb[0].mxu0 %v7871
    %v8250 = vpop.f32.mrb[0].mxu0
    %v8251 = vadd.f32 0.0, %v8250
    %v8252 = vpop.f32.mrb[0].mxu0
    %v8253 = vadd.f32 0.0, %v8252
    %v8254 = vpop.f32.mrb[0].mxu0
    %v8255 = vadd.f32 0.0, %v8254
    %v8256 = vpop.f32.mrb[0].mxu0
    %v8257 = vadd.f32 0.0, %v8256
    %8258 = vmatprep.mubr.bf16.mxu0 %v7877
    %8259 = vmatmul.mubr.bf16.gmra.mrb[0].mxu0 %v7875
    %v8260 = vpop.f32.mrb[0].mxu0
    %v8261 = vadd.f32 0.0, %v8260
    %v8262 = vpop.f32.mrb[0].mxu0
    %v8263 = vadd.f32 0.0, %v8262
    %v8264 = vpop.f32.mrb[0].mxu0
    %v8265 = vadd.f32 0.0, %v8264
    %v8266 = vpop.f32.mrb[0].mxu0
    %v8267 = vadd.f32 0.0, %v8266
    %8268 = vmatprep.mubr.bf16.mxu0 %v7881
    %8269 = vmatmul.mubr.bf16.gmra.mrb[0].mxu0 %v7879
    %v8270 = vpop.f32.mrb[0].mxu0
    %v8271 = vadd.f32 0.0, %v8270
    %v8272 = vpop.f32.mrb[0].mxu0
    %v8273 = vadd.f32 0.0, %v8272
    %v8274 = vpop.f32.mrb[0].mxu0
    %v8275 = vadd.f32 0.0, %v8274
    %v8276 = vpop.f32.mrb[0].mxu0
    %v8277 = vadd.f32 0.0, %v8276
    %8278 = vmatprep.mubr.bf16.mxu0 %v7885
    %8279 = vmatmul.mubr.bf16.gmra.mrb[0].mxu0 %v7883
    %v8280 = vpop.f32.mrb[0].mxu0
    %v8281 = vadd.f32 0.0, %v8280
    %v8282 = vpop.f32.mrb[0].mxu0
    %v8283 = vadd.f32 0.0, %v8282
    %v8284 = vpop.f32.mrb[0].mxu0
    %v8285 = vadd.f32 0.0, %v8284
    %v8286 = vpop.f32.mrb[0].mxu0
    %v8287 = vadd.f32 0.0, %v8286
    %8288 = vmatprep.mubr.bf16.mxu0 %v7889
    %8289 = vmatmul.mubr.bf16.gmra.mrb[0].mxu0 %v7887
    %v8290 = vpop.f32.mrb[0].mxu0
    %v8291 = vadd.f32 0.0, %v8290
    %v8292 = vpop.f32.mrb[0].mxu0
    %v8293 = vadd.f32 0.0, %v8292
    %v8294 = vpop.f32.mrb[0].mxu0
    %v8295 = vadd.f32 0.0, %v8294
    %v8296 = vpop.f32.mrb[0].mxu0
    %v8297 = vadd.f32 0.0, %v8296
    %8298 = vmatprep.mubr.bf16.mxu0 %v7893
    %8299 = vmatmul.mubr.bf16.gmra.mrb[0].mxu0 %v7891
    %v8300 = vpop.f32.mrb[0].mxu0
    %v8301 = vadd.f32 0.0, %v8300
    %v8302 = vpop.f32.mrb[0].mxu0
    %v8303 = vadd.f32 0.0, %v8302
    %v8304 = vpop.f32.mrb[0].mxu0
    %v8305 = vadd.f32 0.0, %v8304
    %v8306 = vpop.f32.mrb[0].mxu0
    %v8307 = vadd.f32 0.0, %v8306
    %8308 = vmatprep.mubr.bf16.mxu0 %v7897
    %8309 = vmatmul.mubr.bf16.gmra.mrb[0].mxu0 %v7895
    %v8310 = vpop.f32.mrb[0].mxu0
    %v8311 = vadd.f32 0.0, %v8310
    %v8312 = vpop.f32.mrb[0].mxu0
    %v8313 = vadd.f32 0.0, %v8312
    %v8314 = vpop.f32.mrb[0].mxu0
    %v8315 = vadd.f32 0.0, %v8314
    %v8316 = vpop.f32.mrb[0].mxu0
    %v8317 = vadd.f32 0.0, %v8316
    %8318 = vmatprep.mubr.bf16.mxu0 %v7901
    %8319 = vmatmul.mubr.bf16.gmra.mrb[0].mxu0 %v7899
    %v8320 = vpop.f32.mrb[0].mxu0
    %v8321 = vadd.f32 0.0, %v8320
    %v8322 = vpop.f32.mrb[0].mxu0
    %v8323 = vadd.f32 0.0, %v8322
    %v8324 = vpop.f32.mrb[0].mxu0
    %v8325 = vadd.f32 0.0, %v8324
    %v8326 = vpop.f32.mrb[0].mxu0
    %v8327 = vadd.f32 0.0, %v8326
    %8328 = vmatprep.mubr.bf16.mxu0 %v7905
    %8329 = vmatmul.mubr.bf16.gmra.mrb[0].mxu0 %v7903
    %v8330 = vpop.f32.mrb[0].mxu0
    %v8331 = vadd.f32 0.0, %v8330
    %v8332 = vpop.f32.mrb[0].mxu0
    %v8333 = vadd.f32 0.0, %v8332
    %v8334 = vpop.f32.mrb[0].mxu0
    %v8335 = vadd.f32 0.0, %v8334
    %v8336 = vpop.f32.mrb[0].mxu0
    %v8337 = vadd.f32 0.0, %v8336
    %8338 = vmatprep.mubr.bf16.mxu0 %v7909
    %8339 = vmatmul.mubr.bf16.gmra.mrb[0].mxu0 %v7907
    %v8340 = vpop.f32.mrb[0].mxu0
    %v8341 = vadd.f32 0.0, %v8340
    %v8342 = vpop.f32.mrb[0].mxu0
    %v8343 = vadd.f32 0.0, %v8342
    %v8344 = vpop.f32.mrb[0].mxu0
    %v8345 = vadd.f32 0.0, %v8344
    %v8346 = vpop.f32.mrb[0].mxu0
    %v8347 = vadd.f32 0.0, %v8346
    %8348 = vmatprep.mubr.bf16.mxu0 %v7913
    %8349 = vmatmul.mubr.bf16.gmra.mrb[0].mxu0 %v7911
    %v8350 = vpop.f32.mrb[0].mxu0
    %v8351 = vadd.f32 0.0, %v8350
    %v8352 = vpop.f32.mrb[0].mxu0
    %v8353 = vadd.f32 0.0, %v8352
    %v8354 = vpop.f32.mrb[0].mxu0
    %v8355 = vadd.f32 0.0, %v8354
    %v8356 = vpop.f32.mrb[0].mxu0
    %v8357 = vadd.f32 0.0, %v8356
    %8358 = vmatprep.mubr.bf16.mxu0 %v7917
    %8359 = vmatmul.mubr.bf16.gmra.mrb[0].mxu0 %v7915
    %v8360 = vpop.f32.mrb[0].mxu0
    %v8361 = vadd.f32 0.0, %v8360
    %v8362 = vpop.f32.mrb[0].mxu0
    %v8363 = vadd.f32 0.0, %v8362
    %v8364 = vpop.f32.mrb[0].mxu0
    %v8365 = vadd.f32 0.0, %v8364
    %v8366 = vpop.f32.mrb[0].mxu0
    %v8367 = vadd.f32 0.0, %v8366
    %8368 = vmatprep.mubr.bf16.mxu0 %v7921
    %8369 = vmatmul.mubr.bf16.gmra.mrb[0].mxu0 %v7919
    %v8370 = vpop.f32.mrb[0].mxu0
    %v8371 = vadd.f32 0.0, %v8370
    %v8372 = vpop.f32.mrb[0].mxu0
    %v8373 = vadd.f32 0.0, %v8372
    %v8374 = vpop.f32.mrb[0].mxu0
    %v8375 = vadd.f32 0.0, %v8374
    %v8376 = vpop.f32.mrb[0].mxu0
    %v8377 = vadd.f32 0.0, %v8376
    %8378 = vmatprep.mubr.bf16.mxu0 %v7925
    %8379 = vmatmul.mubr.bf16.gmra.mrb[0].mxu0 %v7923
    %v8380 = vpop.f32.mrb[0].mxu0
    %v8381 = vadd.f32 0.0, %v8380
    %v8382 = vpop.f32.mrb[0].mxu0
    %v8383 = vadd.f32 0.0, %v8382
    %v8384 = vpop.f32.mrb[0].mxu0
    %v8385 = vadd.f32 0.0, %v8384
    %v8386 = vpop.f32.mrb[0].mxu0
    %v8387 = vadd.f32 0.0, %v8386
    %8388 = vmatprep.mubr.bf16.mxu0 %v7929
    %8389 = vmatmul.mubr.bf16.gmra.mrb[0].mxu0 %v7927
    %v8390 = vpop.f32.mrb[0].mxu0
    %v8391 = vadd.f32 0.0, %v8390
    %v8392 = vpop.f32.mrb[0].mxu0
    %v8393 = vadd.f32 0.0, %v8392
    %v8394 = vpop.f32.mrb[0].mxu0
    %v8395 = vadd.f32 0.0, %v8394
    %v8396 = vpop.f32.mrb[0].mxu0
    %v8397 = vadd.f32 0.0, %v8396
    %8398 = vmatprep.mubr.bf16.mxu0 %v7933
    %8399 = vmatmul.mubr.bf16.gmra.mrb[0].mxu0 %v7931
    %v8400 = vpop.f32.mrb[0].mxu0
    %v8401 = vadd.f32 0.0, %v8400
    %v8402 = vpop.f32.mrb[0].mxu0
    %v8403 = vadd.f32 0.0, %v8402
    %v8404 = vpop.f32.mrb[0].mxu0
    %v8405 = vadd.f32 0.0, %v8404
    %v8406 = vpop.f32.mrb[0].mxu0
    %v8407 = vadd.f32 0.0, %v8406
    %8408 = vmatprep.mubr.bf16.mxu0 %v7937
    %8409 = vmatmul.mubr.bf16.gmra.mrb[0].mxu0 %v7935
    %v8410 = vpop.f32.mrb[0].mxu0
    %v8411 = vadd.f32 0.0, %v8410
    %v8412 = vpop.f32.mrb[0].mxu0
    %v8413 = vadd.f32 0.0, %v8412
    %v8414 = vpop.f32.mrb[0].mxu0
    %v8415 = vadd.f32 0.0, %v8414
    %v8416 = vpop.f32.mrb[0].mxu0
    %v8417 = vadd.f32 0.0, %v8416
    %8418 = vdwg.mxu0
    %v8419 = vadd.f32 %v7466, %v8181
    %v8420 = vadd.f32 %v7467, %v8183
    %v8421 = vadd.f32 %v7468, %v8185
    %v8422 = vadd.f32 %v7469, %v8187
    %v8423 = vadd.f32 %v7470, %v8191
    %v8424 = vadd.f32 %v7471, %v8193
    %v8425 = vadd.f32 %v7472, %v8195
    %v8426 = vadd.f32 %v7473, %v8197
    %v8427 = vadd.f32 %v7474, %v8201
    %v8428 = vadd.f32 %v7475, %v8203
    %v8429 = vadd.f32 %v7476, %v8205
    %v8430 = vadd.f32 %v7477, %v8207
    %v8431 = vadd.f32 %v7478, %v8211
    %v8432 = vadd.f32 %v7479, %v8213
    %v8433 = vadd.f32 %v7480, %v8215
    %v8434 = vadd.f32 %v7481, %v8217
    %v8435 = vadd.f32 %v7482, %v8221
    %v8436 = vadd.f32 %v7483, %v8223
    %v8437 = vadd.f32 %v7484, %v8225
    %v8438 = vadd.f32 %v7485, %v8227
    %v8439 = vadd.f32 %v7486, %v8231
    %v8440 = vadd.f32 %v7487, %v8233
    %v8441 = vadd.f32 %v7488, %v8235
    %v8442 = vadd.f32 %v7489, %v8237
    %v8443 = vadd.f32 %v7490, %v8241
    %v8444 = vadd.f32 %v7491, %v8243
    %v8445 = vadd.f32 %v7492, %v8245
    %v8446 = vadd.f32 %v7493, %v8247
    %v8447 = vadd.f32 %v7494, %v8251
    %v8448 = vadd.f32 %v7495, %v8253
    %v8449 = vadd.f32 %v7496, %v8255
    %v8450 = vadd.f32 %v7497, %v8257
    %v8451 = vadd.f32 %v7498, %v8261
    %v8452 = vadd.f32 %v7499, %v8263
    %v8453 = vadd.f32 %v7500, %v8265
    %v8454 = vadd.f32 %v7501, %v8267
    %v8455 = vadd.f32 %v7502, %v8271
    %v8456 = vadd.f32 %v7503, %v8273
    %v8457 = vadd.f32 %v7504, %v8275
    %v8458 = vadd.f32 %v7505, %v8277
    %v8459 = vadd.f32 %v7506, %v8281
    %v8460 = vadd.f32 %v7507, %v8283
    %v8461 = vadd.f32 %v7508, %v8285
    %v8462 = vadd.f32 %v7509, %v8287
    %v8463 = vadd.f32 %v7510, %v8291
    %v8464 = vadd.f32 %v7511, %v8293
    %v8465 = vadd.f32 %v7512, %v8295
    %v8466 = vadd.f32 %v7513, %v8297
    %v8467 = vadd.f32 %v7514, %v8301
    %v8468 = vadd.f32 %v7515, %v8303
    %v8469 = vadd.f32 %v7516, %v8305
    %v8470 = vadd.f32 %v7517, %v8307
    %v8471 = vadd.f32 %v7518, %v8311
    %v8472 = vadd.f32 %v7519, %v8313
    %v8473 = vadd.f32 %v7520, %v8315
    %v8474 = vadd.f32 %v7521, %v8317
    %v8475 = vadd.f32 %v7522, %v8321
    %v8476 = vadd.f32 %v7523, %v8323
    %v8477 = vadd.f32 %v7524, %v8325
    %v8478 = vadd.f32 %v7525, %v8327
    %v8479 = vadd.f32 %v7526, %v8331
    %v8480 = vadd.f32 %v7527, %v8333
    %v8481 = vadd.f32 %v7528, %v8335
    %v8482 = vadd.f32 %v7529, %v8337
    %v8483 = vadd.f32 %v7530, %v8341
    %v8484 = vadd.f32 %v7531, %v8343
    %v8485 = vadd.f32 %v7532, %v8345
    %v8486 = vadd.f32 %v7533, %v8347
    %v8487 = vadd.f32 %v7534, %v8351
    %v8488 = vadd.f32 %v7535, %v8353
    %v8489 = vadd.f32 %v7536, %v8355
    %v8490 = vadd.f32 %v7537, %v8357
    %v8491 = vadd.f32 %v7538, %v8361
    %v8492 = vadd.f32 %v7539, %v8363
    %v8493 = vadd.f32 %v7540, %v8365
    %v8494 = vadd.f32 %v7541, %v8367
    %v8495 = vadd.f32 %v7542, %v8371
    %v8496 = vadd.f32 %v7543, %v8373
    %v8497 = vadd.f32 %v7544, %v8375
    %v8498 = vadd.f32 %v7545, %v8377
    %v8499 = vadd.f32 %v7546, %v8381
    %v8500 = vadd.f32 %v7547, %v8383
    %v8501 = vadd.f32 %v7548, %v8385
    %v8502 = vadd.f32 %v7549, %v8387
    %v8503 = vadd.f32 %v7550, %v8391
    %v8504 = vadd.f32 %v7551, %v8393
    %v8505 = vadd.f32 %v7552, %v8395
    %v8506 = vadd.f32 %v7553, %v8397
    %v8507 = vadd.f32 %v7554, %v8401
    %v8508 = vadd.f32 %v7555, %v8403
    %v8509 = vadd.f32 %v7556, %v8405
    %v8510 = vadd.f32 %v7557, %v8407
    %v8511 = vadd.f32 %v7558, %v8411
    %v8512 = vadd.f32 %v7559, %v8413
    %v8513 = vadd.f32 %v7560, %v8415
    %v8514 = vadd.f32 %v7561, %v8417
    %v8515 = vld [vmem:[#allocation15] sm:$0x3]
    %v8517 = vlaneseq
    %v8518 = vshrl.u32 %v8517, 7
    %v8519 = vsub.s32 0, %v8518
    %v8520 = vrot.slane %v8515, %v8519
    %v8521 = vlaneseq
    %v8522 = vshrl.u32 %v8521, 7
    %v8523 = vsub.s32 1, %v8522
    %v8524 = vrot.slane %v8515, %v8523
    %v8527 = vadd.f32 %v8419, %v8520
    %v8528 = vadd.f32 %v8420, %v8524
    %v8529 = vadd.f32 %v8421, %v8520
    %v8530 = vadd.f32 %v8422, %v8524
    %v8531 = vadd.f32 %v8423, %v8520
    %v8532 = vadd.f32 %v8424, %v8524
    %v8533 = vadd.f32 %v8425, %v8520
    %v8534 = vadd.f32 %v8426, %v8524
    %v8535 = vadd.f32 %v8427, %v8520
    %v8536 = vadd.f32 %v8428, %v8524
    %v8537 = vadd.f32 %v8429, %v8520
    %v8538 = vadd.f32 %v8430, %v8524
    %v8539 = vadd.f32 %v8431, %v8520
    %v8540 = vadd.f32 %v8432, %v8524
    %v8541 = vadd.f32 %v8433, %v8520
    %v8542 = vadd.f32 %v8434, %v8524
    %v8543 = vadd.f32 %v8435, %v8520
    %v8544 = vadd.f32 %v8436, %v8524
    %v8545 = vadd.f32 %v8437, %v8520
    %v8546 = vadd.f32 %v8438, %v8524
    %v8547 = vadd.f32 %v8439, %v8520
    %v8548 = vadd.f32 %v8440, %v8524
    %v8549 = vadd.f32 %v8441, %v8520
    %v8550 = vadd.f32 %v8442, %v8524
    %v8551 = vadd.f32 %v8443, %v8520
    %v8552 = vadd.f32 %v8444, %v8524
    %v8553 = vadd.f32 %v8445, %v8520
    %v8554 = vadd.f32 %v8446, %v8524
    %v8555 = vadd.f32 %v8447, %v8520
    %v8556 = vadd.f32 %v8448, %v8524
    %v8557 = vadd.f32 %v8449, %v8520
    %v8558 = vadd.f32 %v8450, %v8524
    %v8559 = vadd.f32 %v8451, %v8520
    %v8560 = vadd.f32 %v8452, %v8524
    %v8561 = vadd.f32 %v8453, %v8520
    %v8562 = vadd.f32 %v8454, %v8524
    %v8563 = vadd.f32 %v8455, %v8520
    %v8564 = vadd.f32 %v8456, %v8524
    %v8565 = vadd.f32 %v8457, %v8520
    %v8566 = vadd.f32 %v8458, %v8524
    %v8567 = vadd.f32 %v8459, %v8520
    %v8568 = vadd.f32 %v8460, %v8524
    %v8569 = vadd.f32 %v8461, %v8520
    %v8570 = vadd.f32 %v8462, %v8524
    %v8571 = vadd.f32 %v8463, %v8520
    %v8572 = vadd.f32 %v8464, %v8524
    %v8573 = vadd.f32 %v8465, %v8520
    %v8574 = vadd.f32 %v8466, %v8524
    %v8575 = vadd.f32 %v8467, %v8520
    %v8576 = vadd.f32 %v8468, %v8524
    %v8577 = vadd.f32 %v8469, %v8520
    %v8578 = vadd.f32 %v8470, %v8524
    %v8579 = vadd.f32 %v8471, %v8520
    %v8580 = vadd.f32 %v8472, %v8524
    %v8581 = vadd.f32 %v8473, %v8520
    %v8582 = vadd.f32 %v8474, %v8524
    %v8583 = vadd.f32 %v8475, %v8520
    %v8584 = vadd.f32 %v8476, %v8524
    %v8585 = vadd.f32 %v8477, %v8520
    %v8586 = vadd.f32 %v8478, %v8524
    %v8587 = vadd.f32 %v8479, %v8520
    %v8588 = vadd.f32 %v8480, %v8524
    %v8589 = vadd.f32 %v8481, %v8520
    %v8590 = vadd.f32 %v8482, %v8524
    %v8591 = vadd.f32 %v8483, %v8520
    %v8592 = vadd.f32 %v8484, %v8524
    %v8593 = vadd.f32 %v8485, %v8520
    %v8594 = vadd.f32 %v8486, %v8524
    %v8595 = vadd.f32 %v8487, %v8520
    %v8596 = vadd.f32 %v8488, %v8524
    %v8597 = vadd.f32 %v8489, %v8520
    %v8598 = vadd.f32 %v8490, %v8524
    %v8599 = vadd.f32 %v8491, %v8520
    %v8600 = vadd.f32 %v8492, %v8524
    %v8601 = vadd.f32 %v8493, %v8520
    %v8602 = vadd.f32 %v8494, %v8524
    %v8603 = vadd.f32 %v8495, %v8520
    %v8604 = vadd.f32 %v8496, %v8524
    %v8605 = vadd.f32 %v8497, %v8520
    %v8606 = vadd.f32 %v8498, %v8524
    %v8607 = vadd.f32 %v8499, %v8520
    %v8608 = vadd.f32 %v8500, %v8524
    %v8609 = vadd.f32 %v8501, %v8520
    %v8610 = vadd.f32 %v8502, %v8524
    %v8611 = vadd.f32 %v8503, %v8520
    %v8612 = vadd.f32 %v8504, %v8524
    %v8613 = vadd.f32 %v8505, %v8520
    %v8614 = vadd.f32 %v8506, %v8524
    %v8615 = vadd.f32 %v8507, %v8520
    %v8616 = vadd.f32 %v8508, %v8524
    %v8617 = vadd.f32 %v8509, %v8520
    %v8618 = vadd.f32 %v8510, %v8524
    %v8619 = vadd.f32 %v8511, %v8520
    %v8620 = vadd.f32 %v8512, %v8524
    %v8621 = vadd.f32 %v8513, %v8520
    %v8622 = vadd.f32 %v8514, %v8524
    %vm8623 = vcmp.ge.f32.partialorder %v8527, 0.0
    %vm8624 = vcmp.ge.f32.partialorder %v8528, 0.0
    %vm8625 = vcmp.ge.f32.partialorder %v8529, 0.0
    %vm8626 = vcmp.ge.f32.partialorder %v8530, 0.0
    %vm8627 = vcmp.ge.f32.partialorder %v8531, 0.0
    %vm8628 = vcmp.ge.f32.partialorder %v8532, 0.0
    %vm8629 = vcmp.ge.f32.partialorder %v8533, 0.0
    %vm8630 = vcmp.ge.f32.partialorder %v8534, 0.0
    %vm8631 = vcmp.ge.f32.partialorder %v8535, 0.0
    %vm8632 = vcmp.ge.f32.partialorder %v8536, 0.0
    %vm8633 = vcmp.ge.f32.partialorder %v8537, 0.0
    %vm8634 = vcmp.ge.f32.partialorder %v8538, 0.0
    %vm8635 = vcmp.ge.f32.partialorder %v8539, 0.0
    %vm8636 = vcmp.ge.f32.partialorder %v8540, 0.0
    %vm8637 = vcmp.ge.f32.partialorder %v8541, 0.0
    %vm8638 = vcmp.ge.f32.partialorder %v8542, 0.0
    %vm8639 = vcmp.ge.f32.partialorder %v8543, 0.0
    %vm8640 = vcmp.ge.f32.partialorder %v8544, 0.0
    %vm8641 = vcmp.ge.f32.partialorder %v8545, 0.0
    %vm8642 = vcmp.ge.f32.partialorder %v8546, 0.0
    %vm8643 = vcmp.ge.f32.partialorder %v8547, 0.0
    %vm8644 = vcmp.ge.f32.partialorder %v8548, 0.0
    %vm8645 = vcmp.ge.f32.partialorder %v8549, 0.0
    %vm8646 = vcmp.ge.f32.partialorder %v8550, 0.0
    %vm8647 = vcmp.ge.f32.partialorder %v8551, 0.0
    %vm8648 = vcmp.ge.f32.partialorder %v8552, 0.0
    %vm8649 = vcmp.ge.f32.partialorder %v8553, 0.0
    %vm8650 = vcmp.ge.f32.partialorder %v8554, 0.0
    %vm8651 = vcmp.ge.f32.partialorder %v8555, 0.0
    %vm8652 = vcmp.ge.f32.partialorder %v8556, 0.0
    %vm8653 = vcmp.ge.f32.partialorder %v8557, 0.0
    %vm8654 = vcmp.ge.f32.partialorder %v8558, 0.0
    %vm8655 = vcmp.ge.f32.partialorder %v8559, 0.0
    %vm8656 = vcmp.ge.f32.partialorder %v8560, 0.0
    %vm8657 = vcmp.ge.f32.partialorder %v8561, 0.0
    %vm8658 = vcmp.ge.f32.partialorder %v8562, 0.0
    %vm8659 = vcmp.ge.f32.partialorder %v8563, 0.0
    %vm8660 = vcmp.ge.f32.partialorder %v8564, 0.0
    %vm8661 = vcmp.ge.f32.partialorder %v8565, 0.0
    %vm8662 = vcmp.ge.f32.partialorder %v8566, 0.0
    %vm8663 = vcmp.ge.f32.partialorder %v8567, 0.0
    %vm8664 = vcmp.ge.f32.partialorder %v8568, 0.0
    %vm8665 = vcmp.ge.f32.partialorder %v8569, 0.0
    %vm8666 = vcmp.ge.f32.partialorder %v8570, 0.0
    %vm8667 = vcmp.ge.f32.partialorder %v8571, 0.0
    %vm8668 = vcmp.ge.f32.partialorder %v8572, 0.0
    %vm8669 = vcmp.ge.f32.partialorder %v8573, 0.0
    %vm8670 = vcmp.ge.f32.partialorder %v8574, 0.0
    %vm8671 = vcmp.ge.f32.partialorder %v8575, 0.0
    %vm8672 = vcmp.ge.f32.partialorder %v8576, 0.0
    %vm8673 = vcmp.ge.f32.partialorder %v8577, 0.0
    %vm8674 = vcmp.ge.f32.partialorder %v8578, 0.0
    %vm8675 = vcmp.ge.f32.partialorder %v8579, 0.0
    %vm8676 = vcmp.ge.f32.partialorder %v8580, 0.0
    %vm8677 = vcmp.ge.f32.partialorder %v8581, 0.0
    %vm8678 = vcmp.ge.f32.partialorder %v8582, 0.0
    %vm8679 = vcmp.ge.f32.partialorder %v8583, 0.0
    %vm8680 = vcmp.ge.f32.partialorder %v8584, 0.0
    %vm8681 = vcmp.ge.f32.partialorder %v8585, 0.0
    %vm8682 = vcmp.ge.f32.partialorder %v8586, 0.0
    %vm8683 = vcmp.ge.f32.partialorder %v8587, 0.0
    %vm8684 = vcmp.ge.f32.partialorder %v8588, 0.0
    %vm8685 = vcmp.ge.f32.partialorder %v8589, 0.0
    %vm8686 = vcmp.ge.f32.partialorder %v8590, 0.0
    %vm8687 = vcmp.ge.f32.partialorder %v8591, 0.0
    %vm8688 = vcmp.ge.f32.partialorder %v8592, 0.0
    %vm8689 = vcmp.ge.f32.partialorder %v8593, 0.0
    %vm8690 = vcmp.ge.f32.partialorder %v8594, 0.0
    %vm8691 = vcmp.ge.f32.partialorder %v8595, 0.0
    %vm8692 = vcmp.ge.f32.partialorder %v8596, 0.0
    %vm8693 = vcmp.ge.f32.partialorder %v8597, 0.0
    %vm8694 = vcmp.ge.f32.partialorder %v8598, 0.0
    %vm8695 = vcmp.ge.f32.partialorder %v8599, 0.0
    %vm8696 = vcmp.ge.f32.partialorder %v8600, 0.0
    %vm8697 = vcmp.ge.f32.partialorder %v8601, 0.0
    %vm8698 = vcmp.ge.f32.partialorder %v8602, 0.0
    %vm8699 = vcmp.ge.f32.partialorder %v8603, 0.0
    %vm8700 = vcmp.ge.f32.partialorder %v8604, 0.0
    %vm8701 = vcmp.ge.f32.partialorder %v8605, 0.0
    %vm8702 = vcmp.ge.f32.partialorder %v8606, 0.0
    %vm8703 = vcmp.ge.f32.partialorder %v8607, 0.0
    %vm8704 = vcmp.ge.f32.partialorder %v8608, 0.0
    %vm8705 = vcmp.ge.f32.partialorder %v8609, 0.0
    %vm8706 = vcmp.ge.f32.partialorder %v8610, 0.0
    %vm8707 = vcmp.ge.f32.partialorder %v8611, 0.0
    %vm8708 = vcmp.ge.f32.partialorder %v8612, 0.0
    %vm8709 = vcmp.ge.f32.partialorder %v8613, 0.0
    %vm8710 = vcmp.ge.f32.partialorder %v8614, 0.0
    %vm8711 = vcmp.ge.f32.partialorder %v8615, 0.0
    %vm8712 = vcmp.ge.f32.partialorder %v8616, 0.0
    %vm8713 = vcmp.ge.f32.partialorder %v8617, 0.0
    %vm8714 = vcmp.ge.f32.partialorder %v8618, 0.0
    %vm8715 = vcmp.ge.f32.partialorder %v8619, 0.0
    %vm8716 = vcmp.ge.f32.partialorder %v8620, 0.0
    %vm8717 = vcmp.ge.f32.partialorder %v8621, 0.0
    %vm8718 = vcmp.ge.f32.partialorder %v8622, 0.0
    %v8719 = vmul.f32 %v8527, 2.0
    %v8720 = vmul.f32 %v8528, 2.0
    %v8721 = vmul.f32 %v8529, 2.0
    %v8722 = vmul.f32 %v8530, 2.0
    %v8723 = vmul.f32 %v8531, 2.0
    %v8724 = vmul.f32 %v8532, 2.0
    %v8725 = vmul.f32 %v8533, 2.0
    %v8726 = vmul.f32 %v8534, 2.0
    %v8727 = vmul.f32 %v8535, 2.0
    %v8728 = vmul.f32 %v8536, 2.0
    %v8729 = vmul.f32 %v8537, 2.0
    %v8730 = vmul.f32 %v8538, 2.0
    %v8731 = vmul.f32 %v8539, 2.0
    %v8732 = vmul.f32 %v8540, 2.0
    %v8733 = vmul.f32 %v8541, 2.0
    %v8734 = vmul.f32 %v8542, 2.0
    %v8735 = vmul.f32 %v8543, 2.0
    %v8736 = vmul.f32 %v8544, 2.0
    %v8737 = vmul.f32 %v8545, 2.0
    %v8738 = vmul.f32 %v8546, 2.0
    %v8739 = vmul.f32 %v8547, 2.0
    %v8740 = vmul.f32 %v8548, 2.0
    %v8741 = vmul.f32 %v8549, 2.0
    %v8742 = vmul.f32 %v8550, 2.0
    %v8743 = vmul.f32 %v8551, 2.0
    %v8744 = vmul.f32 %v8552, 2.0
    %v8745 = vmul.f32 %v8553, 2.0
    %v8746 = vmul.f32 %v8554, 2.0
    %v8747 = vmul.f32 %v8555, 2.0
    %v8748 = vmul.f32 %v8556, 2.0
    %v8749 = vmul.f32 %v8557, 2.0
    %v8750 = vmul.f32 %v8558, 2.0
    %v8751 = vmul.f32 %v8559, 2.0
    %v8752 = vmul.f32 %v8560, 2.0
    %v8753 = vmul.f32 %v8561, 2.0
    %v8754 = vmul.f32 %v8562, 2.0
    %v8755 = vmul.f32 %v8563, 2.0
    %v8756 = vmul.f32 %v8564, 2.0
    %v8757 = vmul.f32 %v8565, 2.0
    %v8758 = vmul.f32 %v8566, 2.0
    %v8759 = vmul.f32 %v8567, 2.0
    %v8760 = vmul.f32 %v8568, 2.0
    %v8761 = vmul.f32 %v8569, 2.0
    %v8762 = vmul.f32 %v8570, 2.0
    %v8763 = vmul.f32 %v8571, 2.0
    %v8764 = vmul.f32 %v8572, 2.0
    %v8765 = vmul.f32 %v8573, 2.0
    %v8766 = vmul.f32 %v8574, 2.0
    %v8767 = vmul.f32 %v8575, 2.0
    %v8768 = vmul.f32 %v8576, 2.0
    %v8769 = vmul.f32 %v8577, 2.0
    %v8770 = vmul.f32 %v8578, 2.0
    %v8771 = vmul.f32 %v8579, 2.0
    %v8772 = vmul.f32 %v8580, 2.0
    %v8773 = vmul.f32 %v8581, 2.0
    %v8774 = vmul.f32 %v8582, 2.0
    %v8775 = vmul.f32 %v8583, 2.0
    %v8776 = vmul.f32 %v8584, 2.0
    %v8777 = vmul.f32 %v8585, 2.0
    %v8778 = vmul.f32 %v8586, 2.0
    %v8779 = vmul.f32 %v8587, 2.0
    %v8780 = vmul.f32 %v8588, 2.0
    %v8781 = vmul.f32 %v8589, 2.0
    %v8782 = vmul.f32 %v8590, 2.0
    %v8783 = vmul.f32 %v8591, 2.0
    %v8784 = vmul.f32 %v8592, 2.0
    %v8785 = vmul.f32 %v8593, 2.0
    %v8786 = vmul.f32 %v8594, 2.0
    %v8787 = vmul.f32 %v8595, 2.0
    %v8788 = vmul.f32 %v8596, 2.0
    %v8789 = vmul.f32 %v8597, 2.0
    %v8790 = vmul.f32 %v8598, 2.0
    %v8791 = vmul.f32 %v8599, 2.0
    %v8792 = vmul.f32 %v8600, 2.0
    %v8793 = vmul.f32 %v8601, 2.0
    %v8794 = vmul.f32 %v8602, 2.0
    %v8795 = vmul.f32 %v8603, 2.0
    %v8796 = vmul.f32 %v8604, 2.0
    %v8797 = vmul.f32 %v8605, 2.0
    %v8798 = vmul.f32 %v8606, 2.0
    %v8799 = vmul.f32 %v8607, 2.0
    %v8800 = vmul.f32 %v8608, 2.0
    %v8801 = vmul.f32 %v8609, 2.0
    %v8802 = vmul.f32 %v8610, 2.0
    %v8803 = vmul.f32 %v8611, 2.0
    %v8804 = vmul.f32 %v8612, 2.0
    %v8805 = vmul.f32 %v8613, 2.0
    %v8806 = vmul.f32 %v8614, 2.0
    %v8807 = vmul.f32 %v8615, 2.0
    %v8808 = vmul.f32 %v8616, 2.0
    %v8809 = vmul.f32 %v8617, 2.0
    %v8810 = vmul.f32 %v8618, 2.0
    %v8811 = vmul.f32 %v8619, 2.0
    %v8812 = vmul.f32 %v8620, 2.0
    %v8813 = vmul.f32 %v8621, 2.0
    %v8814 = vmul.f32 %v8622, 2.0
    %v8815 = vsel %vm8623, %v8527, %v8719
    %v8816 = vsel %vm8624, %v8528, %v8720
    %v8817 = vsel %vm8625, %v8529, %v8721
    %v8818 = vsel %vm8626, %v8530, %v8722
    %v8819 = vsel %vm8627, %v8531, %v8723
    %v8820 = vsel %vm8628, %v8532, %v8724
    %v8821 = vsel %vm8629, %v8533, %v8725
    %v8822 = vsel %vm8630, %v8534, %v8726
    %v8823 = vsel %vm8631, %v8535, %v8727
    %v8824 = vsel %vm8632, %v8536, %v8728
    %v8825 = vsel %vm8633, %v8537, %v8729
    %v8826 = vsel %vm8634, %v8538, %v8730
    %v8827 = vsel %vm8635, %v8539, %v8731
    %v8828 = vsel %vm8636, %v8540, %v8732
    %v8829 = vsel %vm8637, %v8541, %v8733
    %v8830 = vsel %vm8638, %v8542, %v8734
    %v8831 = vsel %vm8639, %v8543, %v8735
    %v8832 = vsel %vm8640, %v8544, %v8736
    %v8833 = vsel %vm8641, %v8545, %v8737
    %v8834 = vsel %vm8642, %v8546, %v8738
    %v8835 = vsel %vm8643, %v8547, %v8739
    %v8836 = vsel %vm8644, %v8548, %v8740
    %v8837 = vsel %vm8645, %v8549, %v8741
    %v8838 = vsel %vm8646, %v8550, %v8742
    %v8839 = vsel %vm8647, %v8551, %v8743
    %v8840 = vsel %vm8648, %v8552, %v8744
    %v8841 = vsel %vm8649, %v8553, %v8745
    %v8842 = vsel %vm8650, %v8554, %v8746
    %v8843 = vsel %vm8651, %v8555, %v8747
    %v8844 = vsel %vm8652, %v8556, %v8748
    %v8845 = vsel %vm8653, %v8557, %v8749
    %v8846 = vsel %vm8654, %v8558, %v8750
    %v8847 = vsel %vm8655, %v8559, %v8751
    %v8848 = vsel %vm8656, %v8560, %v8752
    %v8849 = vsel %vm8657, %v8561, %v8753
    %v8850 = vsel %vm8658, %v8562, %v8754
    %v8851 = vsel %vm8659, %v8563, %v8755
    %v8852 = vsel %vm8660, %v8564, %v8756
    %v8853 = vsel %vm8661, %v8565, %v8757
    %v8854 = vsel %vm8662, %v8566, %v8758
    %v8855 = vsel %vm8663, %v8567, %v8759
    %v8856 = vsel %vm8664, %v8568, %v8760
    %v8857 = vsel %vm8665, %v8569, %v8761
    %v8858 = vsel %vm8666, %v8570, %v8762
    %v8859 = vsel %vm8667, %v8571, %v8763
    %v8860 = vsel %vm8668, %v8572, %v8764
    %v8861 = vsel %vm8669, %v8573, %v8765
    %v8862 = vsel %vm8670, %v8574, %v8766
    %v8863 = vsel %vm8671, %v8575, %v8767
    %v8864 = vsel %vm8672, %v8576, %v8768
    %v8865 = vsel %vm8673, %v8577, %v8769
    %v8866 = vsel %vm8674, %v8578, %v8770
    %v8867 = vsel %vm8675, %v8579, %v8771
    %v8868 = vsel %vm8676, %v8580, %v8772
    %v8869 = vsel %vm8677, %v8581, %v8773
    %v8870 = vsel %vm8678, %v8582, %v8774
    %v8871 = vsel %vm8679, %v8583, %v8775
    %v8872 = vsel %vm8680, %v8584, %v8776
    %v8873 = vsel %vm8681, %v8585, %v8777
    %v8874 = vsel %vm8682, %v8586, %v8778
    %v8875 = vsel %vm8683, %v8587, %v8779
    %v8876 = vsel %vm8684, %v8588, %v8780
    %v8877 = vsel %vm8685, %v8589, %v8781
    %v8878 = vsel %vm8686, %v8590, %v8782
    %v8879 = vsel %vm8687, %v8591, %v8783
    %v8880 = vsel %vm8688, %v8592, %v8784
    %v8881 = vsel %vm8689, %v8593, %v8785
    %v8882 = vsel %vm8690, %v8594, %v8786
    %v8883 = vsel %vm8691, %v8595, %v8787
    %v8884 = vsel %vm8692, %v8596, %v8788
    %v8885 = vsel %vm8693, %v8597, %v8789
    %v8886 = vsel %vm8694, %v8598, %v8790
    %v8887 = vsel %vm8695, %v8599, %v8791
    %v8888 = vsel %vm8696, %v8600, %v8792
    %v8889 = vsel %vm8697, %v8601, %v8793
    %v8890 = vsel %vm8698, %v8602, %v8794
    %v8891 = vsel %vm8699, %v8603, %v8795
    %v8892 = vsel %vm8700, %v8604, %v8796
    %v8893 = vsel %vm8701, %v8605, %v8797
    %v8894 = vsel %vm8702, %v8606, %v8798
    %v8895 = vsel %vm8703, %v8607, %v8799
    %v8896 = vsel %vm8704, %v8608, %v8800
    %v8897 = vsel %vm8705, %v8609, %v8801
    %v8898 = vsel %vm8706, %v8610, %v8802
    %v8899 = vsel %vm8707, %v8611, %v8803
    %v8900 = vsel %vm8708, %v8612, %v8804
    %v8901 = vsel %vm8709, %v8613, %v8805
    %v8902 = vsel %vm8710, %v8614, %v8806
    %v8903 = vsel %vm8711, %v8615, %v8807
    %v8904 = vsel %vm8712, %v8616, %v8808
    %v8905 = vsel %vm8713, %v8617, %v8809
    %v8906 = vsel %vm8714, %v8618, %v8810
    %v8907 = vsel %vm8715, %v8619, %v8811
    %v8908 = vsel %vm8716, %v8620, %v8812
    %v8909 = vsel %vm8717, %v8621, %v8813
    %v8910 = vsel %vm8718, %v8622, %v8814
    %v8911 = vpack.c.bf16 %v8817, %v8815
    %v8912 = vpack.c.bf16 %v8818, %v8816
    %v8913 = vpack.c.bf16 %v8821, %v8819
    %v8914 = vpack.c.bf16 %v8822, %v8820
    %v8915 = vpack.c.bf16 %v8825, %v8823
    %v8916 = vpack.c.bf16 %v8826, %v8824
    %v8917 = vpack.c.bf16 %v8829, %v8827
    %v8918 = vpack.c.bf16 %v8830, %v8828
    %v8919 = vpack.c.bf16 %v8833, %v8831
    %v8920 = vpack.c.bf16 %v8834, %v8832
    %v8921 = vpack.c.bf16 %v8837, %v8835
    %v8922 = vpack.c.bf16 %v8838, %v8836
    %v8923 = vpack.c.bf16 %v8841, %v8839
    %v8924 = vpack.c.bf16 %v8842, %v8840
    %v8925 = vpack.c.bf16 %v8845, %v8843
    %v8926 = vpack.c.bf16 %v8846, %v8844
    %v8927 = vpack.c.bf16 %v8849, %v8847
    %v8928 = vpack.c.bf16 %v8850, %v8848
    %v8929 = vpack.c.bf16 %v8853, %v8851
    %v8930 = vpack.c.bf16 %v8854, %v8852
    %v8931 = vpack.c.bf16 %v8857, %v8855
    %v8932 = vpack.c.bf16 %v8858, %v8856
    %v8933 = vpack.c.bf16 %v8861, %v8859
    %v8934 = vpack.c.bf16 %v8862, %v8860
    %v8935 = vpack.c.bf16 %v8865, %v8863
    %v8936 = vpack.c.bf16 %v8866, %v8864
    %v8937 = vpack.c.bf16 %v8869, %v8867
    %v8938 = vpack.c.bf16 %v8870, %v8868
    %v8939 = vpack.c.bf16 %v8873, %v8871
    %v8940 = vpack.c.bf16 %v8874, %v8872
    %v8941 = vpack.c.bf16 %v8877, %v8875
    %v8942 = vpack.c.bf16 %v8878, %v8876
    %v8943 = vpack.c.bf16 %v8881, %v8879
    %v8944 = vpack.c.bf16 %v8882, %v8880
    %v8945 = vpack.c.bf16 %v8885, %v8883
    %v8946 = vpack.c.bf16 %v8886, %v8884
    %v8947 = vpack.c.bf16 %v8889, %v8887
    %v8948 = vpack.c.bf16 %v8890, %v8888
    %v8949 = vpack.c.bf16 %v8893, %v8891
    %v8950 = vpack.c.bf16 %v8894, %v8892
    %v8951 = vpack.c.bf16 %v8897, %v8895
    %v8952 = vpack.c.bf16 %v8898, %v8896
    %v8953 = vpack.c.bf16 %v8901, %v8899
    %v8954 = vpack.c.bf16 %v8902, %v8900
    %v8955 = vpack.c.bf16 %v8905, %v8903
    %v8956 = vpack.c.bf16 %v8906, %v8904
    %v8957 = vpack.c.bf16 %v8909, %v8907
    %v8958 = vpack.c.bf16 %v8910, %v8908
    %8959 = vst [vmem:[#allocation4] sm:$0xff] %v8911
    %8960 = vst [vmem:[#allocation4 + $0x8] sm:$0xff] %v8912
    %8961 = vst [vmem:[#allocation4 + $0x10] sm:$0xff] %v8913
    %8962 = vst [vmem:[#allocation4 + $0x18] sm:$0xff] %v8914
    %8963 = vst [vmem:[#allocation4 + $0x20] sm:$0xff] %v8915
    %8964 = vst [vmem:[#allocation4 + $0x28] sm:$0xff] %v8916
    %8965 = vst [vmem:[#allocation4 + $0x30] sm:$0xff] %v8917
    %8966 = vst [vmem:[#allocation4 + $0x38] sm:$0xff] %v8918
    %8967 = vst [vmem:[#allocation4 + $0x40] sm:$0xff] %v8919
    %8968 = vst [vmem:[#allocation4 + $0x48] sm:$0xff] %v8920
    %8969 = vst [vmem:[#allocation4 + $0x50] sm:$0xff] %v8921
    %8970 = vst [vmem:[#allocation4 + $0x58] sm:$0xff] %v8922
    %8971 = vst [vmem:[#allocation4 + $0x60] sm:$0xff] %v8923
    %8972 = vst [vmem:[#allocation4 + $0x68] sm:$0xff] %v8924
    %8973 = vst [vmem:[#allocation4 + $0x70] sm:$0xff] %v8925
    %8974 = vst [vmem:[#allocation4 + $0x78] sm:$0xff] %v8926
    %8975 = vst [vmem:[#allocation4 + $0x80] sm:$0xff] %v8927
    %8976 = vst [vmem:[#allocation4 + $0x88] sm:$0xff] %v8928
    %8977 = vst [vmem:[#allocation4 + $0x90] sm:$0xff] %v8929
    %8978 = vst [vmem:[#allocation4 + $0x98] sm:$0xff] %v8930
    %8979 = vst [vmem:[#allocation4 + $0xa0] sm:$0xff] %v8931
    %8980 = vst [vmem:[#allocation4 + $0xa8] sm:$0xff] %v8932
    %8981 = vst [vmem:[#allocation4 + $0xb0] sm:$0xff] %v8933
    %8982 = vst [vmem:[#allocation4 + $0xb8] sm:$0xff] %v8934
    %8983 = vst [vmem:[#allocation4 + $0xc0] sm:$0xff] %v8935
    %8984 = vst [vmem:[#allocation4 + $0xc8] sm:$0xff] %v8936
    %8985 = vst [vmem:[#allocation4 + $0xd0] sm:$0xff] %v8937
    %8986 = vst [vmem:[#allocation4 + $0xd8] sm:$0xff] %v8938
    %8987 = vst [vmem:[#allocation4 + $0xe0] sm:$0xff] %v8939
    %8988 = vst [vmem:[#allocation4 + $0xe8] sm:$0xff] %v8940
    %8989 = vst [vmem:[#allocation4 + $0xf0] sm:$0xff] %v8941
    %8990 = vst [vmem:[#allocation4 + $0xf8] sm:$0xff] %v8942
    %8991 = vst [vmem:[#allocation4 + $0x100] sm:$0xff] %v8943
    %8992 = vst [vmem:[#allocation4 + $0x108] sm:$0xff] %v8944
    %8993 = vst [vmem:[#allocation4 + $0x110] sm:$0xff] %v8945
    %8994 = vst [vmem:[#allocation4 + $0x118] sm:$0xff] %v8946
    %8995 = vst [vmem:[#allocation4 + $0x120] sm:$0xff] %v8947
    %8996 = vst [vmem:[#allocation4 + $0x128] sm:$0xff] %v8948
    %8997 = vst [vmem:[#allocation4 + $0x130] sm:$0xff] %v8949
    %8998 = vst [vmem:[#allocation4 + $0x138] sm:$0xff] %v8950
    %8999 = vst [vmem:[#allocation4 + $0x140] sm:$0xff] %v8951
    %9000 = vst [vmem:[#allocation4 + $0x148] sm:$0xff] %v8952
    %9001 = vst [vmem:[#allocation4 + $0x150] sm:$0xff] %v8953
    %9002 = vst [vmem:[#allocation4 + $0x158] sm:$0xff] %v8954
    %9003 = vst [vmem:[#allocation4 + $0x160] sm:$0xff] %v8955
    %9004 = vst [vmem:[#allocation4 + $0x168] sm:$0xff] %v8956
    %9005 = vst [vmem:[#allocation4 + $0x170] sm:$0xff] %v8957
    %9006 = vst [vmem:[#allocation4 + $0x178] sm:$0xff] %v8958
    %s9007 = smul.u32 4, 800
    %s9008 = smul.u32 %s9007, 2
    %s9009 = sshll.u32 %s9008, 4
    %9010 = dma.done [#allocation6], %s9009
    %v9011 = vld [vmem:[#allocation4] sm:$0x7]
    %v9012 = vld [vmem:[#allocation4 + $0x8] sm:$0x7]
    %v9013 = vld [vmem:[#allocation5] sm:$0xff]
    %v9014 = vld [vmem:[#allocation5 + $0x8] sm:$0xff]
    %v9015 = vld [vmem:[#allocation5 + $0x10] sm:$0xff]
    %v9016 = vld [vmem:[#allocation5 + $0x18] sm:$0xff]
    %v9017 = vld [vmem:[#allocation5 + $0x20] sm:$0xff]
    %v9018 = vld [vmem:[#allocation5 + $0x28] sm:$0xff]
    %v9019 = vld [vmem:[#allocation5 + $0x30] sm:$0xff]
    %v9020 = vld [vmem:[#allocation5 + $0x38] sm:$0xff]
    %v9021 = vld [vmem:[#allocation5 + $0x40] sm:$0xff]
    %v9022 = vld [vmem:[#allocation5 + $0x48] sm:$0xff]
    %v9023 = vld [vmem:[#allocation5 + $0x50] sm:$0xff]
    %v9024 = vld [vmem:[#allocation5 + $0x58] sm:$0xff]
    %v9025 = vld [vmem:[#allocation5 + $0x60] sm:$0xff]
    %v9026 = vld [vmem:[#allocation5 + $0x68] sm:$0xff]
    %v9027 = vld [vmem:[#allocation5 + $0x70] sm:$0xff]
    %v9028 = vld [vmem:[#allocation5 + $0x78] sm:$0xff]
    %v9029 = vld [vmem:[#allocation5 + $0x80] sm:$0xff]
    %v9030 = vld [vmem:[#allocation5 + $0x88] sm:$0xff]
    %v9031 = vld [vmem:[#allocation5 + $0x90] sm:$0xff]
    %v9032 = vld [vmem:[#allocation5 + $0x98] sm:$0xff]
    %v9033 = vld [vmem:[#allocation5 + $0xa0] sm:$0xff]
    %v9034 = vld [vmem:[#allocation5 + $0xa8] sm:$0xff]
    %v9035 = vld [vmem:[#allocation5 + $0xb0] sm:$0xff]
    %v9036 = vld [vmem:[#allocation5 + $0xb8] sm:$0xff]
    %v9037 = vld [vmem:[#allocation5 + $0xc0] sm:$0xff]
    %v9038 = vld [vmem:[#allocation5 + $0xc8] sm:$0xff]
    %v9039 = vld [vmem:[#allocation5 + $0xd0] sm:$0xff]
    %v9040 = vld [vmem:[#allocation5 + $0xd8] sm:$0xff]
    %v9041 = vld [vmem:[#allocation5 + $0xe0] sm:$0xff]
    %v9042 = vld [vmem:[#allocation5 + $0xe8] sm:$0xff]
    %v9043 = vld [vmem:[#allocation5 + $0xf0] sm:$0xff]
    %v9044 = vld [vmem:[#allocation5 + $0xf8] sm:$0xff]
    %v9045 = vld [vmem:[#allocation4] sm:$0x38]
    %v9046 = vld [vmem:[#allocation4 + $0x8] sm:$0x38]
    %v9047 = vld [vmem:[#allocation5 + $0x100] sm:$0xff]
    %v9048 = vld [vmem:[#allocation5 + $0x108] sm:$0xff]
    %v9049 = vld [vmem:[#allocation5 + $0x110] sm:$0xff]
    %v9050 = vld [vmem:[#allocation5 + $0x118] sm:$0xff]
    %v9051 = vld [vmem:[#allocation5 + $0x120] sm:$0xff]
    %v9052 = vld [vmem:[#allocation5 + $0x128] sm:$0xff]
    %v9053 = vld [vmem:[#allocation5 + $0x130] sm:$0xff]
    %v9054 = vld [vmem:[#allocation5 + $0x138] sm:$0xff]
    %v9055 = vld [vmem:[#allocation5 + $0x140] sm:$0xff]
    %v9056 = vld [vmem:[#allocation5 + $0x148] sm:$0xff]
    %v9057 = vld [vmem:[#allocation5 + $0x150] sm:$0xff]
    %v9058 = vld [vmem:[#allocation5 + $0x158] sm:$0xff]
    %v9059 = vld [vmem:[#allocation5 + $0x160] sm:$0xff]
    %v9060 = vld [vmem:[#allocation5 + $0x168] sm:$0xff]
    %v9061 = vld [vmem:[#allocation5 + $0x170] sm:$0xff]
    %v9062 = vld [vmem:[#allocation5 + $0x178] sm:$0xff]
    %v9063 = vld [vmem:[#allocation5 + $0x180] sm:$0xff]
    %v9064 = vld [vmem:[#allocation5 + $0x188] sm:$0xff]
    %v9065 = vld [vmem:[#allocation5 + $0x190] sm:$0xff]
    %v9066 = vld [vmem:[#allocation5 + $0x198] sm:$0xff]
    %v9067 = vld [vmem:[#allocation5 + $0x1a0] sm:$0xff]
    %v9068 = vld [vmem:[#allocation5 + $0x1a8] sm:$0xff]
    %v9069 = vld [vmem:[#allocation5 + $0x1b0] sm:$0xff]
    %v9070 = vld [vmem:[#allocation5 + $0x1b8] sm:$0xff]
    %v9071 = vld [vmem:[#allocation5 + $0x1c0] sm:$0xff]
    %v9072 = vld [vmem:[#allocation5 + $0x1c8] sm:$0xff]
    %v9073 = vld [vmem:[#allocation5 + $0x1d0] sm:$0xff]
    %v9074 = vld [vmem:[#allocation5 + $0x1d8] sm:$0xff]
    %v9075 = vld [vmem:[#allocation5 + $0x1e0] sm:$0xff]
    %v9076 = vld [vmem:[#allocation5 + $0x1e8] sm:$0xff]
    %v9077 = vld [vmem:[#allocation5 + $0x1f0] sm:$0xff]
    %v9078 = vld [vmem:[#allocation5 + $0x1f8] sm:$0xff]
    %v9081 = vrot.slane %v9045, 3
    %v9082 = vrot.slane %v9046, 3
    %9085 = vmatprep.subr.bf16.mxu0 %v9048
    %9086 = vmatpush1.bf16.msra.mxu0 %v9047
    %9087 = vmatprep.subr.bf16.mxu0 %v9050
    %9088 = vmatpush1.bf16.msra.mxu0 %v9049
    %9089 = vmatprep.subr.bf16.mxu0 %v9052
    %9090 = vmatpush1.bf16.msra.mxu0 %v9051
    %9091 = vmatprep.subr.bf16.mxu0 %v9054
    %9092 = vmatpush1.bf16.msra.mxu0 %v9053
    %9093 = vmatprep.subr.bf16.mxu0 %v9056
    %9094 = vmatpush1.bf16.msra.mxu0 %v9055
    %9095 = vmatprep.subr.bf16.mxu0 %v9058
    %9096 = vmatpush1.bf16.msra.mxu0 %v9057
    %9097 = vmatprep.subr.bf16.mxu0 %v9060
    %9098 = vmatpush1.bf16.msra.mxu0 %v9059
    %9099 = vmatprep.subr.bf16.mxu0 %v9062
    %9100 = vmatpush1.bf16.msra.mxu0 %v9061
    %9101 = vmatprep.subr.bf16.mxu0 %v9064
    %9102 = vmatpush1.bf16.msra.mxu0 %v9063
    %9103 = vmatprep.subr.bf16.mxu0 %v9066
    %9104 = vmatpush1.bf16.msra.mxu0 %v9065
    %9105 = vmatprep.subr.bf16.mxu0 %v9068
    %9106 = vmatpush1.bf16.msra.mxu0 %v9067
    %9107 = vmatprep.subr.bf16.mxu0 %v9070
    %9108 = vmatpush1.bf16.msra.mxu0 %v9069
    %9109 = vmatprep.subr.bf16.mxu0 %v9072
    %9110 = vmatpush1.bf16.msra.mxu0 %v9071
    %9111 = vmatprep.subr.bf16.mxu0 %v9074
    %9112 = vmatpush1.bf16.msra.mxu0 %v9073
    %9113 = vmatprep.subr.bf16.mxu0 %v9076
    %9114 = vmatpush1.bf16.msra.mxu0 %v9075
    %9115 = vmatprep.subr.bf16.mxu0 %v9078
    %9116 = vmatpush1.bf16.msra.mxu0 %v9077
    %9117 = vmatprep.mubr.bf16.mxu0 %v9082
    %9118 = vmatmul.mubr.bf16.gmra.mrb[0].mxu0 %v9081
    %v9119 = vpop.f32.mrb[0].mxu0
    %v9120 = vadd.f32 0.0, %v9119
    %v9121 = vpop.f32.mrb[0].mxu0
    %v9122 = vadd.f32 0.0, %v9121
    %v9123 = vpop.f32.mrb[0].mxu0
    %v9124 = vpop.f32.mrb[0].mxu0
    %9125 = vdwg.mxu0
    %9126 = vmatprep.subr.bf16.mxu0 %v9014
    %9127 = vmatpush1.bf16.msra.mxu0 %v9013
    %9128 = vmatprep.subr.bf16.mxu0 %v9016
    %9129 = vmatpush1.bf16.msra.mxu0 %v9015
    %9130 = vmatprep.subr.bf16.mxu0 %v9018
    %9131 = vmatpush1.bf16.msra.mxu0 %v9017
    %9132 = vmatprep.subr.bf16.mxu0 %v9020
    %9133 = vmatpush1.bf16.msra.mxu0 %v9019
    %9134 = vmatprep.subr.bf16.mxu0 %v9022
    %9135 = vmatpush1.bf16.msra.mxu0 %v9021
    %9136 = vmatprep.subr.bf16.mxu0 %v9024
    %9137 = vmatpush1.bf16.msra.mxu0 %v9023
    %9138 = vmatprep.subr.bf16.mxu0 %v9026
    %9139 = vmatpush1.bf16.msra.mxu0 %v9025
    %9140 = vmatprep.subr.bf16.mxu0 %v9028
    %9141 = vmatpush1.bf16.msra.mxu0 %v9027
    %9142 = vmatprep.subr.bf16.mxu0 %v9030
    %9143 = vmatpush1.bf16.msra.mxu0 %v9029
    %9144 = vmatprep.subr.bf16.mxu0 %v9032
    %9145 = vmatpush1.bf16.msra.mxu0 %v9031
    %9146 = vmatprep.subr.bf16.mxu0 %v9034
    %9147 = vmatpush1.bf16.msra.mxu0 %v9033
    %9148 = vmatprep.subr.bf16.mxu0 %v9036
    %9149 = vmatpush1.bf16.msra.mxu0 %v9035
    %9150 = vmatprep.subr.bf16.mxu0 %v9038
    %9151 = vmatpush1.bf16.msra.mxu0 %v9037
    %9152 = vmatprep.subr.bf16.mxu0 %v9040
    %9153 = vmatpush1.bf16.msra.mxu0 %v9039
    %9154 = vmatprep.subr.bf16.mxu0 %v9042
    %9155 = vmatpush1.bf16.msra.mxu0 %v9041
    %9156 = vmatprep.subr.bf16.mxu0 %v9044
    %9157 = vmatpush1.bf16.msra.mxu0 %v9043
    %9158 = vmatprep.mubr.bf16.mxu0 %v9012
    %9159 = vmatmul.mubr.bf16.gmra.mrb[0].mxu0 %v9011
    %v9160 = vpop.f32.mrb[0].mxu0
    %v9161 = vadd.f32 %v9120, %v9160
    %v9162 = vpop.f32.mrb[0].mxu0
    %v9163 = vadd.f32 %v9122, %v9162
    %v9164 = vpop.f32.mrb[0].mxu0
    %v9165 = vpop.f32.mrb[0].mxu0
    %9166 = vdwg.mxu0
    %v9167 = vld [vmem:[#allocation4] sm:$0xc0]
    %v9168 = vld [vmem:[#allocation4 + $0x8] sm:$0xc0]
    %v9169 = vld [vmem:[#allocation4 + $0x10] sm:$0x1]
    %v9170 = vld [vmem:[#allocation4 + $0x18] sm:$0x1]
    %v9171 = vld [vmem:[#allocation5 + $0x200] sm:$0xff]
    %v9172 = vld [vmem:[#allocation5 + $0x208] sm:$0xff]
    %v9173 = vld [vmem:[#allocation5 + $0x210] sm:$0xff]
    %v9174 = vld [vmem:[#allocation5 + $0x218] sm:$0xff]
    %v9175 = vld [vmem:[#allocation5 + $0x220] sm:$0xff]
    %v9176 = vld [vmem:[#allocation5 + $0x228] sm:$0xff]
    %v9177 = vld [vmem:[#allocation5 + $0x230] sm:$0xff]
    %v9178 = vld [vmem:[#allocation5 + $0x238] sm:$0xff]
    %v9179 = vld [vmem:[#allocation5 + $0x240] sm:$0xff]
    %v9180 = vld [vmem:[#allocation5 + $0x248] sm:$0xff]
    %v9181 = vld [vmem:[#allocation5 + $0x250] sm:$0xff]
    %v9182 = vld [vmem:[#allocation5 + $0x258] sm:$0xff]
    %v9183 = vld [vmem:[#allocation5 + $0x260] sm:$0xff]
    %v9184 = vld [vmem:[#allocation5 + $0x268] sm:$0xff]
    %v9185 = vld [vmem:[#allocation5 + $0x270] sm:$0xff]
    %v9186 = vld [vmem:[#allocation5 + $0x278] sm:$0xff]
    %v9187 = vld [vmem:[#allocation5 + $0x280] sm:$0xff]
    %v9188 = vld [vmem:[#allocation5 + $0x288] sm:$0xff]
    %v9189 = vld [vmem:[#allocation5 + $0x290] sm:$0xff]
    %v9190 = vld [vmem:[#allocation5 + $0x298] sm:$0xff]
    %v9191 = vld [vmem:[#allocation5 + $0x2a0] sm:$0xff]
    %v9192 = vld [vmem:[#allocation5 + $0x2a8] sm:$0xff]
    %v9193 = vld [vmem:[#allocation5 + $0x2b0] sm:$0xff]
    %v9194 = vld [vmem:[#allocation5 + $0x2b8] sm:$0xff]
    %v9195 = vld [vmem:[#allocation5 + $0x2c0] sm:$0xff]
    %v9196 = vld [vmem:[#allocation5 + $0x2c8] sm:$0xff]
    %v9197 = vld [vmem:[#allocation5 + $0x2d0] sm:$0xff]
    %v9198 = vld [vmem:[#allocation5 + $0x2d8] sm:$0xff]
    %v9199 = vld [vmem:[#allocation5 + $0x2e0] sm:$0xff]
    %v9200 = vld [vmem:[#allocation5 + $0x2e8] sm:$0xff]
    %v9201 = vld [vmem:[#allocation5 + $0x2f0] sm:$0xff]
    %v9202 = vld [vmem:[#allocation5 + $0x2f8] sm:$0xff]
    %vm9207 = vcmask 1041408
    %v9208 = vrot.slane %v9167, 6
    %v9209 = vrot.slane %v9169, 6
    %v9210 = vsel %vm9207, %v9208, %v9209
    %v9211 = vrot.slane %v9168, 6
    %v9212 = vrot.slane %v9170, 6
    %v9213 = vsel %vm9207, %v9211, %v9212
    %9216 = vmatprep.subr.bf16.mxu0 %v9172
    %9217 = vmatpush1.bf16.msra.mxu0 %v9171
    %9218 = vmatprep.subr.bf16.mxu0 %v9174
    %9219 = vmatpush1.bf16.msra.mxu0 %v9173
    %9220 = vmatprep.subr.bf16.mxu0 %v9176
    %9221 = vmatpush1.bf16.msra.mxu0 %v9175
    %9222 = vmatprep.subr.bf16.mxu0 %v9178
    %9223 = vmatpush1.bf16.msra.mxu0 %v9177
    %9224 = vmatprep.subr.bf16.mxu0 %v9180
    %9225 = vmatpush1.bf16.msra.mxu0 %v9179
    %9226 = vmatprep.subr.bf16.mxu0 %v9182
    %9227 = vmatpush1.bf16.msra.mxu0 %v9181
    %9228 = vmatprep.subr.bf16.mxu0 %v9184
    %9229 = vmatpush1.bf16.msra.mxu0 %v9183
    %9230 = vmatprep.subr.bf16.mxu0 %v9186
    %9231 = vmatpush1.bf16.msra.mxu0 %v9185
    %9232 = vmatprep.subr.bf16.mxu0 %v9188
    %9233 = vmatpush1.bf16.msra.mxu0 %v9187
    %9234 = vmatprep.subr.bf16.mxu0 %v9190
    %9235 = vmatpush1.bf16.msra.mxu0 %v9189
    %9236 = vmatprep.subr.bf16.mxu0 %v9192
    %9237 = vmatpush1.bf16.msra.mxu0 %v9191
    %9238 = vmatprep.subr.bf16.mxu0 %v9194
    %9239 = vmatpush1.bf16.msra.mxu0 %v9193
    %9240 = vmatprep.subr.bf16.mxu0 %v9196
    %9241 = vmatpush1.bf16.msra.mxu0 %v9195
    %9242 = vmatprep.subr.bf16.mxu0 %v9198
    %9243 = vmatpush1.bf16.msra.mxu0 %v9197
    %9244 = vmatprep.subr.bf16.mxu0 %v9200
    %9245 = vmatpush1.bf16.msra.mxu0 %v9199
    %9246 = vmatprep.subr.bf16.mxu0 %v9202
    %9247 = vmatpush1.bf16.msra.mxu0 %v9201
    %9248 = vmatprep.mubr.bf16.mxu0 %v9213
    %9249 = vmatmul.mubr.bf16.gmra.mrb[0].mxu0 %v9210
    %v9250 = vpop.f32.mrb[0].mxu0
    %v9251 = vadd.f32 0.0, %v9250
    %v9252 = vpop.f32.mrb[0].mxu0
    %v9253 = vadd.f32 0.0, %v9252
    %v9254 = vpop.f32.mrb[0].mxu0
    %v9255 = vpop.f32.mrb[0].mxu0
    %9256 = vdwg.mxu0
    %v9257 = vadd.f32 %v9161, %v9251
    %v9258 = vadd.f32 %v9163, %v9253
    %v9259 = vld [vmem:[#allocation4 + $0x10] sm:$0xe]
    %v9260 = vld [vmem:[#allocation4 + $0x18] sm:$0xe]
    %v9261 = vld [vmem:[#allocation5 + $0x300] sm:$0xff]
    %v9262 = vld [vmem:[#allocation5 + $0x308] sm:$0xff]
    %v9263 = vld [vmem:[#allocation5 + $0x310] sm:$0xff]
    %v9264 = vld [vmem:[#allocation5 + $0x318] sm:$0xff]
    %v9265 = vld [vmem:[#allocation5 + $0x320] sm:$0xff]
    %v9266 = vld [vmem:[#allocation5 + $0x328] sm:$0xff]
    %v9267 = vld [vmem:[#allocation5 + $0x330] sm:$0xff]
    %v9268 = vld [vmem:[#allocation5 + $0x338] sm:$0xff]
    %v9269 = vld [vmem:[#allocation5 + $0x340] sm:$0xff]
    %v9270 = vld [vmem:[#allocation5 + $0x348] sm:$0xff]
    %v9271 = vld [vmem:[#allocation5 + $0x350] sm:$0xff]
    %v9272 = vld [vmem:[#allocation5 + $0x358] sm:$0xff]
    %v9273 = vld [vmem:[#allocation5 + $0x360] sm:$0xff]
    %v9274 = vld [vmem:[#allocation5 + $0x368] sm:$0xff]
    %v9275 = vld [vmem:[#allocation5 + $0x370] sm:$0xff]
    %v9276 = vld [vmem:[#allocation5 + $0x378] sm:$0xff]
    %v9277 = vld [vmem:[#allocation5 + $0x380] sm:$0xff]
    %v9278 = vld [vmem:[#allocation5 + $0x388] sm:$0xff]
    %v9279 = vld [vmem:[#allocation5 + $0x390] sm:$0xff]
    %v9280 = vld [vmem:[#allocation5 + $0x398] sm:$0xff]
    %v9281 = vld [vmem:[#allocation5 + $0x3a0] sm:$0xff]
    %v9282 = vld [vmem:[#allocation5 + $0x3a8] sm:$0xff]
    %v9283 = vld [vmem:[#allocation5 + $0x3b0] sm:$0xff]
    %v9284 = vld [vmem:[#allocation5 + $0x3b8] sm:$0xff]
    %v9285 = vld [vmem:[#allocation5 + $0x3c0] sm:$0xff]
    %v9286 = vld [vmem:[#allocation5 + $0x3c8] sm:$0xff]
    %v9287 = vld [vmem:[#allocation5 + $0x3d0] sm:$0xff]
    %v9288 = vld [vmem:[#allocation5 + $0x3d8] sm:$0xff]
    %v9289 = vld [vmem:[#allocation5 + $0x3e0] sm:$0xff]
    %v9290 = vld [vmem:[#allocation5 + $0x3e8] sm:$0xff]
    %v9291 = vld [vmem:[#allocation5 + $0x3f0] sm:$0xff]
    %v9292 = vld [vmem:[#allocation5 + $0x3f8] sm:$0xff]
    %v9295 = vrot.slane %v9259, 1
    %v9296 = vrot.slane %v9260, 1
    %9299 = vmatprep.subr.bf16.mxu0 %v9262
    %9300 = vmatpush1.bf16.msra.mxu0 %v9261
    %9301 = vmatprep.subr.bf16.mxu0 %v9264
    %9302 = vmatpush1.bf16.msra.mxu0 %v9263
    %9303 = vmatprep.subr.bf16.mxu0 %v9266
    %9304 = vmatpush1.bf16.msra.mxu0 %v9265
    %9305 = vmatprep.subr.bf16.mxu0 %v9268
    %9306 = vmatpush1.bf16.msra.mxu0 %v9267
    %9307 = vmatprep.subr.bf16.mxu0 %v9270
    %9308 = vmatpush1.bf16.msra.mxu0 %v9269
    %9309 = vmatprep.subr.bf16.mxu0 %v9272
    %9310 = vmatpush1.bf16.msra.mxu0 %v9271
    %9311 = vmatprep.subr.bf16.mxu0 %v9274
    %9312 = vmatpush1.bf16.msra.mxu0 %v9273
    %9313 = vmatprep.subr.bf16.mxu0 %v9276
    %9314 = vmatpush1.bf16.msra.mxu0 %v9275
    %9315 = vmatprep.subr.bf16.mxu0 %v9278
    %9316 = vmatpush1.bf16.msra.mxu0 %v9277
    %9317 = vmatprep.subr.bf16.mxu0 %v9280
    %9318 = vmatpush1.bf16.msra.mxu0 %v9279
    %9319 = vmatprep.subr.bf16.mxu0 %v9282
    %9320 = vmatpush1.bf16.msra.mxu0 %v9281
    %9321 = vmatprep.subr.bf16.mxu0 %v9284
    %9322 = vmatpush1.bf16.msra.mxu0 %v9283
    %9323 = vmatprep.subr.bf16.mxu0 %v9286
    %9324 = vmatpush1.bf16.msra.mxu0 %v9285
    %9325 = vmatprep.subr.bf16.mxu0 %v9288
    %9326 = vmatpush1.bf16.msra.mxu0 %v9287
    %9327 = vmatprep.subr.bf16.mxu0 %v9290
    %9328 = vmatpush1.bf16.msra.mxu0 %v9289
    %9329 = vmatprep.subr.bf16.mxu0 %v9292
    %9330 = vmatpush1.bf16.msra.mxu0 %v9291
    %9331 = vmatprep.mubr.bf16.mxu0 %v9296
    %9332 = vmatmul.mubr.bf16.gmra.mrb[0].mxu0 %v9295
    %v9333 = vpop.f32.mrb[0].mxu0
    %v9334 = vadd.f32 0.0, %v9333
    %v9335 = vpop.f32.mrb[0].mxu0
    %v9336 = vadd.f32 0.0, %v9335
    %v9337 = vpop.f32.mrb[0].mxu0
    %v9338 = vpop.f32.mrb[0].mxu0
    %9339 = vdwg.mxu0
    %v9340 = vadd.f32 %v9257, %v9334
    %v9341 = vadd.f32 %v9258, %v9336
    %v9342 = vld [vmem:[#allocation4 + $0x10] sm:$0x70]
    %v9343 = vld [vmem:[#allocation4 + $0x18] sm:$0x70]
    %v9344 = vld [vmem:[#allocation5 + $0x400] sm:$0xff]
    %v9345 = vld [vmem:[#allocation5 + $0x408] sm:$0xff]
    %v9346 = vld [vmem:[#allocation5 + $0x410] sm:$0xff]
    %v9347 = vld [vmem:[#allocation5 + $0x418] sm:$0xff]
    %v9348 = vld [vmem:[#allocation5 + $0x420] sm:$0xff]
    %v9349 = vld [vmem:[#allocation5 + $0x428] sm:$0xff]
    %v9350 = vld [vmem:[#allocation5 + $0x430] sm:$0xff]
    %v9351 = vld [vmem:[#allocation5 + $0x438] sm:$0xff]
    %v9352 = vld [vmem:[#allocation5 + $0x440] sm:$0xff]
    %v9353 = vld [vmem:[#allocation5 + $0x448] sm:$0xff]
    %v9354 = vld [vmem:[#allocation5 + $0x450] sm:$0xff]
    %v9355 = vld [vmem:[#allocation5 + $0x458] sm:$0xff]
    %v9356 = vld [vmem:[#allocation5 + $0x460] sm:$0xff]
    %v9357 = vld [vmem:[#allocation5 + $0x468] sm:$0xff]
    %v9358 = vld [vmem:[#allocation5 + $0x470] sm:$0xff]
    %v9359 = vld [vmem:[#allocation5 + $0x478] sm:$0xff]
    %v9360 = vld [vmem:[#allocation5 + $0x480] sm:$0xff]
    %v9361 = vld [vmem:[#allocation5 + $0x488] sm:$0xff]
    %v9362 = vld [vmem:[#allocation5 + $0x490] sm:$0xff]
    %v9363 = vld [vmem:[#allocation5 + $0x498] sm:$0xff]
    %v9364 = vld [vmem:[#allocation5 + $0x4a0] sm:$0xff]
    %v9365 = vld [vmem:[#allocation5 + $0x4a8] sm:$0xff]
    %v9366 = vld [vmem:[#allocation5 + $0x4b0] sm:$0xff]
    %v9367 = vld [vmem:[#allocation5 + $0x4b8] sm:$0xff]
    %v9368 = vld [vmem:[#allocation5 + $0x4c0] sm:$0xff]
    %v9369 = vld [vmem:[#allocation5 + $0x4c8] sm:$0xff]
    %v9370 = vld [vmem:[#allocation5 + $0x4d0] sm:$0xff]
    %v9371 = vld [vmem:[#allocation5 + $0x4d8] sm:$0xff]
    %v9372 = vld [vmem:[#allocation5 + $0x4e0] sm:$0xff]
    %v9373 = vld [vmem:[#allocation5 + $0x4e8] sm:$0xff]
    %v9374 = vld [vmem:[#allocation5 + $0x4f0] sm:$0xff]
    %v9375 = vld [vmem:[#allocation5 + $0x4f8] sm:$0xff]
    %v9378 = vrot.slane %v9342, 4
    %v9379 = vrot.slane %v9343, 4
    %9382 = vmatprep.subr.bf16.mxu0 %v9345
    %9383 = vmatpush1.bf16.msra.mxu0 %v9344
    %9384 = vmatprep.subr.bf16.mxu0 %v9347
    %9385 = vmatpush1.bf16.msra.mxu0 %v9346
    %9386 = vmatprep.subr.bf16.mxu0 %v9349
    %9387 = vmatpush1.bf16.msra.mxu0 %v9348
    %9388 = vmatprep.subr.bf16.mxu0 %v9351
    %9389 = vmatpush1.bf16.msra.mxu0 %v9350
    %9390 = vmatprep.subr.bf16.mxu0 %v9353
    %9391 = vmatpush1.bf16.msra.mxu0 %v9352
    %9392 = vmatprep.subr.bf16.mxu0 %v9355
    %9393 = vmatpush1.bf16.msra.mxu0 %v9354
    %9394 = vmatprep.subr.bf16.mxu0 %v9357
    %9395 = vmatpush1.bf16.msra.mxu0 %v9356
    %9396 = vmatprep.subr.bf16.mxu0 %v9359
    %9397 = vmatpush1.bf16.msra.mxu0 %v9358
    %9398 = vmatprep.subr.bf16.mxu0 %v9361
    %9399 = vmatpush1.bf16.msra.mxu0 %v9360
    %9400 = vmatprep.subr.bf16.mxu0 %v9363
    %9401 = vmatpush1.bf16.msra.mxu0 %v9362
    %9402 = vmatprep.subr.bf16.mxu0 %v9365
    %9403 = vmatpush1.bf16.msra.mxu0 %v9364
    %9404 = vmatprep.subr.bf16.mxu0 %v9367
    %9405 = vmatpush1.bf16.msra.mxu0 %v9366
    %9406 = vmatprep.subr.bf16.mxu0 %v9369
    %9407 = vmatpush1.bf16.msra.mxu0 %v9368
    %9408 = vmatprep.subr.bf16.mxu0 %v9371
    %9409 = vmatpush1.bf16.msra.mxu0 %v9370
    %9410 = vmatprep.subr.bf16.mxu0 %v9373
    %9411 = vmatpush1.bf16.msra.mxu0 %v9372
    %9412 = vmatprep.subr.bf16.mxu0 %v9375
    %9413 = vmatpush1.bf16.msra.mxu0 %v9374
    %9414 = vmatprep.mubr.bf16.mxu0 %v9379
    %9415 = vmatmul.mubr.bf16.gmra.mrb[0].mxu0 %v9378
    %v9416 = vpop.f32.mrb[0].mxu0
    %v9417 = vadd.f32 0.0, %v9416
    %v9418 = vpop.f32.mrb[0].mxu0
    %v9419 = vadd.f32 0.0, %v9418
    %v9420 = vpop.f32.mrb[0].mxu0
    %v9421 = vpop.f32.mrb[0].mxu0
    %9422 = vdwg.mxu0
    %v9423 = vadd.f32 %v9340, %v9417
    %v9424 = vadd.f32 %v9341, %v9419
    %v9425 = vld [vmem:[#allocation4 + $0x30] sm:$0x7]
    %v9426 = vld [vmem:[#allocation4 + $0x38] sm:$0x7]
    %v9427 = vld [vmem:[#allocation5 + $0x500] sm:$0xff]
    %v9428 = vld [vmem:[#allocation5 + $0x508] sm:$0xff]
    %v9429 = vld [vmem:[#allocation5 + $0x510] sm:$0xff]
    %v9430 = vld [vmem:[#allocation5 + $0x518] sm:$0xff]
    %v9431 = vld [vmem:[#allocation5 + $0x520] sm:$0xff]
    %v9432 = vld [vmem:[#allocation5 + $0x528] sm:$0xff]
    %v9433 = vld [vmem:[#allocation5 + $0x530] sm:$0xff]
    %v9434 = vld [vmem:[#allocation5 + $0x538] sm:$0xff]
    %v9435 = vld [vmem:[#allocation5 + $0x540] sm:$0xff]
    %v9436 = vld [vmem:[#allocation5 + $0x548] sm:$0xff]
    %v9437 = vld [vmem:[#allocation5 + $0x550] sm:$0xff]
    %v9438 = vld [vmem:[#allocation5 + $0x558] sm:$0xff]
    %v9439 = vld [vmem:[#allocation5 + $0x560] sm:$0xff]
    %v9440 = vld [vmem:[#allocation5 + $0x568] sm:$0xff]
    %v9441 = vld [vmem:[#allocation5 + $0x570] sm:$0xff]
    %v9442 = vld [vmem:[#allocation5 + $0x578] sm:$0xff]
    %v9443 = vld [vmem:[#allocation5 + $0x580] sm:$0xff]
    %v9444 = vld [vmem:[#allocation5 + $0x588] sm:$0xff]
    %v9445 = vld [vmem:[#allocation5 + $0x590] sm:$0xff]
    %v9446 = vld [vmem:[#allocation5 + $0x598] sm:$0xff]
    %v9447 = vld [vmem:[#allocation5 + $0x5a0] sm:$0xff]
    %v9448 = vld [vmem:[#allocation5 + $0x5a8] sm:$0xff]
    %v9449 = vld [vmem:[#allocation5 + $0x5b0] sm:$0xff]
    %v9450 = vld [vmem:[#allocation5 + $0x5b8] sm:$0xff]
    %v9451 = vld [vmem:[#allocation5 + $0x5c0] sm:$0xff]
    %v9452 = vld [vmem:[#allocation5 + $0x5c8] sm:$0xff]
    %v9453 = vld [vmem:[#allocation5 + $0x5d0] sm:$0xff]
    %v9454 = vld [vmem:[#allocation5 + $0x5d8] sm:$0xff]
    %v9455 = vld [vmem:[#allocation5 + $0x5e0] sm:$0xff]
    %v9456 = vld [vmem:[#allocation5 + $0x5e8] sm:$0xff]
    %v9457 = vld [vmem:[#allocation5 + $0x5f0] sm:$0xff]
    %v9458 = vld [vmem:[#allocation5 + $0x5f8] sm:$0xff]
    %9459 = vmatprep.subr.bf16.mxu0 %v9428
    %9460 = vmatpush1.bf16.msra.mxu0 %v9427
    %9461 = vmatprep.subr.bf16.mxu0 %v9430
    %9462 = vmatpush1.bf16.msra.mxu0 %v9429
    %9463 = vmatprep.subr.bf16.mxu0 %v9432
    %9464 = vmatpush1.bf16.msra.mxu0 %v9431
    %9465 = vmatprep.subr.bf16.mxu0 %v9434
    %9466 = vmatpush1.bf16.msra.mxu0 %v9433
    %9467 = vmatprep.subr.bf16.mxu0 %v9436
    %9468 = vmatpush1.bf16.msra.mxu0 %v9435
    %9469 = vmatprep.subr.bf16.mxu0 %v9438
    %9470 = vmatpush1.bf16.msra.mxu0 %v9437
    %9471 = vmatprep.subr.bf16.mxu0 %v9440
    %9472 = vmatpush1.bf16.msra.mxu0 %v9439
    %9473 = vmatprep.subr.bf16.mxu0 %v9442
    %9474 = vmatpush1.bf16.msra.mxu0 %v9441
    %9475 = vmatprep.subr.bf16.mxu0 %v9444
    %9476 = vmatpush1.bf16.msra.mxu0 %v9443
    %9477 = vmatprep.subr.bf16.mxu0 %v9446
    %9478 = vmatpush1.bf16.msra.mxu0 %v9445
    %9479 = vmatprep.subr.bf16.mxu0 %v9448
    %9480 = vmatpush1.bf16.msra.mxu0 %v9447
    %9481 = vmatprep.subr.bf16.mxu0 %v9450
    %9482 = vmatpush1.bf16.msra.mxu0 %v9449
    %9483 = vmatprep.subr.bf16.mxu0 %v9452
    %9484 = vmatpush1.bf16.msra.mxu0 %v9451
    %9485 = vmatprep.subr.bf16.mxu0 %v9454
    %9486 = vmatpush1.bf16.msra.mxu0 %v9453
    %9487 = vmatprep.subr.bf16.mxu0 %v9456
    %9488 = vmatpush1.bf16.msra.mxu0 %v9455
    %9489 = vmatprep.subr.bf16.mxu0 %v9458
    %9490 = vmatpush1.bf16.msra.mxu0 %v9457
    %9491 = vmatprep.mubr.bf16.mxu0 %v9426
    %9492 = vmatmul.mubr.bf16.gmra.mrb[0].mxu0 %v9425
    %v9493 = vpop.f32.mrb[0].mxu0
    %v9494 = vadd.f32 0.0, %v9493
    %v9495 = vpop.f32.mrb[0].mxu0
    %v9496 = vadd.f32 0.0, %v9495
    %v9497 = vpop.f32.mrb[0].mxu0
    %v9498 = vpop.f32.mrb[0].mxu0
    %9499 = vdwg.mxu0
    %v9500 = vadd.f32 %v9423, %v9494
    %v9501 = vadd.f32 %v9424, %v9496
    %v9502 = vld [vmem:[#allocation4 + $0x30] sm:$0x38]
    %v9503 = vld [vmem:[#allocation4 + $0x38] sm:$0x38]
    %v9504 = vld [vmem:[#allocation5 + $0x600] sm:$0xff]
    %v9505 = vld [vmem:[#allocation5 + $0x608] sm:$0xff]
    %v9506 = vld [vmem:[#allocation5 + $0x610] sm:$0xff]
    %v9507 = vld [vmem:[#allocation5 + $0x618] sm:$0xff]
    %v9508 = vld [vmem:[#allocation5 + $0x620] sm:$0xff]
    %v9509 = vld [vmem:[#allocation5 + $0x628] sm:$0xff]
    %v9510 = vld [vmem:[#allocation5 + $0x630] sm:$0xff]
    %v9511 = vld [vmem:[#allocation5 + $0x638] sm:$0xff]
    %v9512 = vld [vmem:[#allocation5 + $0x640] sm:$0xff]
    %v9513 = vld [vmem:[#allocation5 + $0x648] sm:$0xff]
    %v9514 = vld [vmem:[#allocation5 + $0x650] sm:$0xff]
    %v9515 = vld [vmem:[#allocation5 + $0x658] sm:$0xff]
    %v9516 = vld [vmem:[#allocation5 + $0x660] sm:$0xff]
    %v9517 = vld [vmem:[#allocation5 + $0x668] sm:$0xff]
    %v9518 = vld [vmem:[#allocation5 + $0x670] sm:$0xff]
    %v9519 = vld [vmem:[#allocation5 + $0x678] sm:$0xff]
    %v9520 = vld [vmem:[#allocation5 + $0x680] sm:$0xff]
    %v9521 = vld [vmem:[#allocation5 + $0x688] sm:$0xff]
    %v9522 = vld [vmem:[#allocation5 + $0x690] sm:$0xff]
    %v9523 = vld [vmem:[#allocation5 + $0x698] sm:$0xff]
    %v9524 = vld [vmem:[#allocation5 + $0x6a0] sm:$0xff]
    %v9525 = vld [vmem:[#allocation5 + $0x6a8] sm:$0xff]
    %v9526 = vld [vmem:[#allocation5 + $0x6b0] sm:$0xff]
    %v9527 = vld [vmem:[#allocation5 + $0x6b8] sm:$0xff]
    %v9528 = vld [vmem:[#allocation5 + $0x6c0] sm:$0xff]
    %v9529 = vld [vmem:[#allocation5 + $0x6c8] sm:$0xff]
    %v9530 = vld [vmem:[#allocation5 + $0x6d0] sm:$0xff]
    %v9531 = vld [vmem:[#allocation5 + $0x6d8] sm:$0xff]
    %v9532 = vld [vmem:[#allocation5 + $0x6e0] sm:$0xff]
    %v9533 = vld [vmem:[#allocation5 + $0x6e8] sm:$0xff]
    %v9534 = vld [vmem:[#allocation5 + $0x6f0] sm:$0xff]
    %v9535 = vld [vmem:[#allocation5 + $0x6f8] sm:$0xff]
    %v9538 = vrot.slane %v9502, 3
    %v9539 = vrot.slane %v9503, 3
    %9542 = vmatprep.subr.bf16.mxu0 %v9505
    %9543 = vmatpush1.bf16.msra.mxu0 %v9504
    %9544 = vmatprep.subr.bf16.mxu0 %v9507
    %9545 = vmatpush1.bf16.msra.mxu0 %v9506
    %9546 = vmatprep.subr.bf16.mxu0 %v9509
    %9547 = vmatpush1.bf16.msra.mxu0 %v9508
    %9548 = vmatprep.subr.bf16.mxu0 %v9511
    %9549 = vmatpush1.bf16.msra.mxu0 %v9510
    %9550 = vmatprep.subr.bf16.mxu0 %v9513
    %9551 = vmatpush1.bf16.msra.mxu0 %v9512
    %9552 = vmatprep.subr.bf16.mxu0 %v9515
    %9553 = vmatpush1.bf16.msra.mxu0 %v9514
    %9554 = vmatprep.subr.bf16.mxu0 %v9517
    %9555 = vmatpush1.bf16.msra.mxu0 %v9516
    %9556 = vmatprep.subr.bf16.mxu0 %v9519
    %9557 = vmatpush1.bf16.msra.mxu0 %v9518
    %9558 = vmatprep.subr.bf16.mxu0 %v9521
    %9559 = vmatpush1.bf16.msra.mxu0 %v9520
    %9560 = vmatprep.subr.bf16.mxu0 %v9523
    %9561 = vmatpush1.bf16.msra.mxu0 %v9522
    %9562 = vmatprep.subr.bf16.mxu0 %v9525
    %9563 = vmatpush1.bf16.msra.mxu0 %v9524
    %9564 = vmatprep.subr.bf16.mxu0 %v9527
    %9565 = vmatpush1.bf16.msra.mxu0 %v9526
    %9566 = vmatprep.subr.bf16.mxu0 %v9529
    %9567 = vmatpush1.bf16.msra.mxu0 %v9528
    %9568 = vmatprep.subr.bf16.mxu0 %v9531
    %9569 = vmatpush1.bf16.msra.mxu0 %v9530
    %9570 = vmatprep.subr.bf16.mxu0 %v9533
    %9571 = vmatpush1.bf16.msra.mxu0 %v9532
    %9572 = vmatprep.subr.bf16.mxu0 %v9535
    %9573 = vmatpush1.bf16.msra.mxu0 %v9534
    %9574 = vmatprep.mubr.bf16.mxu0 %v9539
    %9575 = vmatmul.mubr.bf16.gmra.mrb[0].mxu0 %v9538
    %v9576 = vpop.f32.mrb[0].mxu0
    %v9577 = vadd.f32 0.0, %v9576
    %v9578 = vpop.f32.mrb[0].mxu0
    %v9579 = vadd.f32 0.0, %v9578
    %v9580 = vpop.f32.mrb[0].mxu0
    %v9581 = vpop.f32.mrb[0].mxu0
    %9582 = vdwg.mxu0
    %v9583 = vadd.f32 %v9500, %v9577
    %v9584 = vadd.f32 %v9501, %v9579
    %v9585 = vld [vmem:[#allocation4 + $0x30] sm:$0xc0]
    %v9586 = vld [vmem:[#allocation4 + $0x38] sm:$0xc0]
    %v9587 = vld [vmem:[#allocation4 + $0x40] sm:$0x1]
    %v9588 = vld [vmem:[#allocation4 + $0x48] sm:$0x1]
    %v9589 = vld [vmem:[#allocation5 + $0x700] sm:$0xff]
    %v9590 = vld [vmem:[#allocation5 + $0x708] sm:$0xff]
    %v9591 = vld [vmem:[#allocation5 + $0x710] sm:$0xff]
    %v9592 = vld [vmem:[#allocation5 + $0x718] sm:$0xff]
    %v9593 = vld [vmem:[#allocation5 + $0x720] sm:$0xff]
    %v9594 = vld [vmem:[#allocation5 + $0x728] sm:$0xff]
    %v9595 = vld [vmem:[#allocation5 + $0x730] sm:$0xff]
    %v9596 = vld [vmem:[#allocation5 + $0x738] sm:$0xff]
    %v9597 = vld [vmem:[#allocation5 + $0x740] sm:$0xff]
    %v9598 = vld [vmem:[#allocation5 + $0x748] sm:$0xff]
    %v9599 = vld [vmem:[#allocation5 + $0x750] sm:$0xff]
    %v9600 = vld [vmem:[#allocation5 + $0x758] sm:$0xff]
    %v9601 = vld [vmem:[#allocation5 + $0x760] sm:$0xff]
    %v9602 = vld [vmem:[#allocation5 + $0x768] sm:$0xff]
    %v9603 = vld [vmem:[#allocation5 + $0x770] sm:$0xff]
    %v9604 = vld [vmem:[#allocation5 + $0x778] sm:$0xff]
    %v9605 = vld [vmem:[#allocation5 + $0x780] sm:$0xff]
    %v9606 = vld [vmem:[#allocation5 + $0x788] sm:$0xff]
    %v9607 = vld [vmem:[#allocation5 + $0x790] sm:$0xff]
    %v9608 = vld [vmem:[#allocation5 + $0x798] sm:$0xff]
    %v9609 = vld [vmem:[#allocation5 + $0x7a0] sm:$0xff]
    %v9610 = vld [vmem:[#allocation5 + $0x7a8] sm:$0xff]
    %v9611 = vld [vmem:[#allocation5 + $0x7b0] sm:$0xff]
    %v9612 = vld [vmem:[#allocation5 + $0x7b8] sm:$0xff]
    %v9613 = vld [vmem:[#allocation5 + $0x7c0] sm:$0xff]
    %v9614 = vld [vmem:[#allocation5 + $0x7c8] sm:$0xff]
    %v9615 = vld [vmem:[#allocation5 + $0x7d0] sm:$0xff]
    %v9616 = vld [vmem:[#allocation5 + $0x7d8] sm:$0xff]
    %v9617 = vld [vmem:[#allocation5 + $0x7e0] sm:$0xff]
    %v9618 = vld [vmem:[#allocation5 + $0x7e8] sm:$0xff]
    %v9619 = vld [vmem:[#allocation5 + $0x7f0] sm:$0xff]
    %v9620 = vld [vmem:[#allocation5 + $0x7f8] sm:$0xff]
    %v9625 = vrot.slane %v9585, 6
    %v9626 = vrot.slane %v9587, 6
    %v9627 = vsel %vm9207, %v9625, %v9626
    %v9628 = vrot.slane %v9586, 6
    %v9629 = vrot.slane %v9588, 6
    %v9630 = vsel %vm9207, %v9628, %v9629
    %9633 = vmatprep.subr.bf16.mxu0 %v9590
    %9634 = vmatpush1.bf16.msra.mxu0 %v9589
    %9635 = vmatprep.subr.bf16.mxu0 %v9592
    %9636 = vmatpush1.bf16.msra.mxu0 %v9591
    %9637 = vmatprep.subr.bf16.mxu0 %v9594
    %9638 = vmatpush1.bf16.msra.mxu0 %v9593
    %9639 = vmatprep.subr.bf16.mxu0 %v9596
    %9640 = vmatpush1.bf16.msra.mxu0 %v9595
    %9641 = vmatprep.subr.bf16.mxu0 %v9598
    %9642 = vmatpush1.bf16.msra.mxu0 %v9597
    %9643 = vmatprep.subr.bf16.mxu0 %v9600
    %9644 = vmatpush1.bf16.msra.mxu0 %v9599
    %9645 = vmatprep.subr.bf16.mxu0 %v9602
    %9646 = vmatpush1.bf16.msra.mxu0 %v9601
    %9647 = vmatprep.subr.bf16.mxu0 %v9604
    %9648 = vmatpush1.bf16.msra.mxu0 %v9603
    %9649 = vmatprep.subr.bf16.mxu0 %v9606
    %9650 = vmatpush1.bf16.msra.mxu0 %v9605
    %9651 = vmatprep.subr.bf16.mxu0 %v9608
    %9652 = vmatpush1.bf16.msra.mxu0 %v9607
    %9653 = vmatprep.subr.bf16.mxu0 %v9610
    %9654 = vmatpush1.bf16.msra.mxu0 %v9609
    %9655 = vmatprep.subr.bf16.mxu0 %v9612
    %9656 = vmatpush1.bf16.msra.mxu0 %v9611
    %9657 = vmatprep.subr.bf16.mxu0 %v9614
    %9658 = vmatpush1.bf16.msra.mxu0 %v9613
    %9659 = vmatprep.subr.bf16.mxu0 %v9616
    %9660 = vmatpush1.bf16.msra.mxu0 %v9615
    %9661 = vmatprep.subr.bf16.mxu0 %v9618
    %9662 = vmatpush1.bf16.msra.mxu0 %v9617
    %9663 = vmatprep.subr.bf16.mxu0 %v9620
    %9664 = vmatpush1.bf16.msra.mxu0 %v9619
    %9665 = vmatprep.mubr.bf16.mxu0 %v9630
    %9666 = vmatmul.mubr.bf16.gmra.mrb[0].mxu0 %v9627
    %v9667 = vpop.f32.mrb[0].mxu0
    %v9668 = vadd.f32 0.0, %v9667
    %v9669 = vpop.f32.mrb[0].mxu0
    %v9670 = vadd.f32 0.0, %v9669
    %v9671 = vpop.f32.mrb[0].mxu0
    %v9672 = vpop.f32.mrb[0].mxu0
    %9673 = vdwg.mxu0
    %v9674 = vadd.f32 %v9583, %v9668
    %v9675 = vadd.f32 %v9584, %v9670
    %v9676 = vld [vmem:[#allocation4 + $0x40] sm:$0xe]
    %v9677 = vld [vmem:[#allocation4 + $0x48] sm:$0xe]
    %v9678 = vld [vmem:[#allocation5 + $0x800] sm:$0xff]
    %v9679 = vld [vmem:[#allocation5 + $0x808] sm:$0xff]
    %v9680 = vld [vmem:[#allocation5 + $0x810] sm:$0xff]
    %v9681 = vld [vmem:[#allocation5 + $0x818] sm:$0xff]
    %v9682 = vld [vmem:[#allocation5 + $0x820] sm:$0xff]
    %v9683 = vld [vmem:[#allocation5 + $0x828] sm:$0xff]
    %v9684 = vld [vmem:[#allocation5 + $0x830] sm:$0xff]
    %v9685 = vld [vmem:[#allocation5 + $0x838] sm:$0xff]
    %v9686 = vld [vmem:[#allocation5 + $0x840] sm:$0xff]
    %v9687 = vld [vmem:[#allocation5 + $0x848] sm:$0xff]
    %v9688 = vld [vmem:[#allocation5 + $0x850] sm:$0xff]
    %v9689 = vld [vmem:[#allocation5 + $0x858] sm:$0xff]
    %v9690 = vld [vmem:[#allocation5 + $0x860] sm:$0xff]
    %v9691 = vld [vmem:[#allocation5 + $0x868] sm:$0xff]
    %v9692 = vld [vmem:[#allocation5 + $0x870] sm:$0xff]
    %v9693 = vld [vmem:[#allocation5 + $0x878] sm:$0xff]
    %v9694 = vld [vmem:[#allocation5 + $0x880] sm:$0xff]
    %v9695 = vld [vmem:[#allocation5 + $0x888] sm:$0xff]
    %v9696 = vld [vmem:[#allocation5 + $0x890] sm:$0xff]
    %v9697 = vld [vmem:[#allocation5 + $0x898] sm:$0xff]
    %v9698 = vld [vmem:[#allocation5 + $0x8a0] sm:$0xff]
    %v9699 = vld [vmem:[#allocation5 + $0x8a8] sm:$0xff]
    %v9700 = vld [vmem:[#allocation5 + $0x8b0] sm:$0xff]
    %v9701 = vld [vmem:[#allocation5 + $0x8b8] sm:$0xff]
    %v9702 = vld [vmem:[#allocation5 + $0x8c0] sm:$0xff]
    %v9703 = vld [vmem:[#allocation5 + $0x8c8] sm:$0xff]
    %v9704 = vld [vmem:[#allocation5 + $0x8d0] sm:$0xff]
    %v9705 = vld [vmem:[#allocation5 + $0x8d8] sm:$0xff]
    %v9706 = vld [vmem:[#allocation5 + $0x8e0] sm:$0xff]
    %v9707 = vld [vmem:[#allocation5 + $0x8e8] sm:$0xff]
    %v9708 = vld [vmem:[#allocation5 + $0x8f0] sm:$0xff]
    %v9709 = vld [vmem:[#allocation5 + $0x8f8] sm:$0xff]
    %v9712 = vrot.slane %v9676, 1
    %v9713 = vrot.slane %v9677, 1
    %9716 = vmatprep.subr.bf16.mxu0 %v9679
    %9717 = vmatpush1.bf16.msra.mxu0 %v9678
    %9718 = vmatprep.subr.bf16.mxu0 %v9681
    %9719 = vmatpush1.bf16.msra.mxu0 %v9680
    %9720 = vmatprep.subr.bf16.mxu0 %v9683
    %9721 = vmatpush1.bf16.msra.mxu0 %v9682
    %9722 = vmatprep.subr.bf16.mxu0 %v9685
    %9723 = vmatpush1.bf16.msra.mxu0 %v9684
    %9724 = vmatprep.subr.bf16.mxu0 %v9687
    %9725 = vmatpush1.bf16.msra.mxu0 %v9686
    %9726 = vmatprep.subr.bf16.mxu0 %v9689
    %9727 = vmatpush1.bf16.msra.mxu0 %v9688
    %9728 = vmatprep.subr.bf16.mxu0 %v9691
    %9729 = vmatpush1.bf16.msra.mxu0 %v9690
    %9730 = vmatprep.subr.bf16.mxu0 %v9693
    %9731 = vmatpush1.bf16.msra.mxu0 %v9692
    %9732 = vmatprep.subr.bf16.mxu0 %v9695
    %9733 = vmatpush1.bf16.msra.mxu0 %v9694
    %9734 = vmatprep.subr.bf16.mxu0 %v9697
    %9735 = vmatpush1.bf16.msra.mxu0 %v9696
    %9736 = vmatprep.subr.bf16.mxu0 %v9699
    %9737 = vmatpush1.bf16.msra.mxu0 %v9698
    %9738 = vmatprep.subr.bf16.mxu0 %v9701
    %9739 = vmatpush1.bf16.msra.mxu0 %v9700
    %9740 = vmatprep.subr.bf16.mxu0 %v9703
    %9741 = vmatpush1.bf16.msra.mxu0 %v9702
    %9742 = vmatprep.subr.bf16.mxu0 %v9705
    %9743 = vmatpush1.bf16.msra.mxu0 %v9704
    %9744 = vmatprep.subr.bf16.mxu0 %v9707
    %9745 = vmatpush1.bf16.msra.mxu0 %v9706
    %9746 = vmatprep.subr.bf16.mxu0 %v9709
    %9747 = vmatpush1.bf16.msra.mxu0 %v9708
    %9748 = vmatprep.mubr.bf16.mxu0 %v9713
    %9749 = vmatmul.mubr.bf16.gmra.mrb[0].mxu0 %v9712
    %v9750 = vpop.f32.mrb[0].mxu0
    %v9751 = vadd.f32 0.0, %v9750
    %v9752 = vpop.f32.mrb[0].mxu0
    %v9753 = vadd.f32 0.0, %v9752
    %v9754 = vpop.f32.mrb[0].mxu0
    %v9755 = vpop.f32.mrb[0].mxu0
    %9756 = vdwg.mxu0
    %v9757 = vadd.f32 %v9674, %v9751
    %v9758 = vadd.f32 %v9675, %v9753
    %v9759 = vld [vmem:[#allocation4 + $0x40] sm:$0x70]
    %v9760 = vld [vmem:[#allocation4 + $0x48] sm:$0x70]
    %v9761 = vld [vmem:[#allocation5 + $0x900] sm:$0xff]
    %v9762 = vld [vmem:[#allocation5 + $0x908] sm:$0xff]
    %v9763 = vld [vmem:[#allocation5 + $0x910] sm:$0xff]
    %v9764 = vld [vmem:[#allocation5 + $0x918] sm:$0xff]
    %v9765 = vld [vmem:[#allocation5 + $0x920] sm:$0xff]
    %v9766 = vld [vmem:[#allocation5 + $0x928] sm:$0xff]
    %v9767 = vld [vmem:[#allocation5 + $0x930] sm:$0xff]
    %v9768 = vld [vmem:[#allocation5 + $0x938] sm:$0xff]
    %v9769 = vld [vmem:[#allocation5 + $0x940] sm:$0xff]
    %v9770 = vld [vmem:[#allocation5 + $0x948] sm:$0xff]
    %v9771 = vld [vmem:[#allocation5 + $0x950] sm:$0xff]
    %v9772 = vld [vmem:[#allocation5 + $0x958] sm:$0xff]
    %v9773 = vld [vmem:[#allocation5 + $0x960] sm:$0xff]
    %v9774 = vld [vmem:[#allocation5 + $0x968] sm:$0xff]
    %v9775 = vld [vmem:[#allocation5 + $0x970] sm:$0xff]
    %v9776 = vld [vmem:[#allocation5 + $0x978] sm:$0xff]
    %v9777 = vld [vmem:[#allocation5 + $0x980] sm:$0xff]
    %v9778 = vld [vmem:[#allocation5 + $0x988] sm:$0xff]
    %v9779 = vld [vmem:[#allocation5 + $0x990] sm:$0xff]
    %v9780 = vld [vmem:[#allocation5 + $0x998] sm:$0xff]
    %v9781 = vld [vmem:[#allocation5 + $0x9a0] sm:$0xff]
    %v9782 = vld [vmem:[#allocation5 + $0x9a8] sm:$0xff]
    %v9783 = vld [vmem:[#allocation5 + $0x9b0] sm:$0xff]
    %v9784 = vld [vmem:[#allocation5 + $0x9b8] sm:$0xff]
    %v9785 = vld [vmem:[#allocation5 + $0x9c0] sm:$0xff]
    %v9786 = vld [vmem:[#allocation5 + $0x9c8] sm:$0xff]
    %v9787 = vld [vmem:[#allocation5 + $0x9d0] sm:$0xff]
    %v9788 = vld [vmem:[#allocation5 + $0x9d8] sm:$0xff]
    %v9789 = vld [vmem:[#allocation5 + $0x9e0] sm:$0xff]
    %v9790 = vld [vmem:[#allocation5 + $0x9e8] sm:$0xff]
    %v9791 = vld [vmem:[#allocation5 + $0x9f0] sm:$0xff]
    %v9792 = vld [vmem:[#allocation5 + $0x9f8] sm:$0xff]
    %v9795 = vrot.slane %v9759, 4
    %v9796 = vrot.slane %v9760, 4
    %9799 = vmatprep.subr.bf16.mxu0 %v9762
    %9800 = vmatpush1.bf16.msra.mxu0 %v9761
    %9801 = vmatprep.subr.bf16.mxu0 %v9764
    %9802 = vmatpush1.bf16.msra.mxu0 %v9763
    %9803 = vmatprep.subr.bf16.mxu0 %v9766
    %9804 = vmatpush1.bf16.msra.mxu0 %v9765
    %9805 = vmatprep.subr.bf16.mxu0 %v9768
    %9806 = vmatpush1.bf16.msra.mxu0 %v9767
    %9807 = vmatprep.subr.bf16.mxu0 %v9770
    %9808 = vmatpush1.bf16.msra.mxu0 %v9769
    %9809 = vmatprep.subr.bf16.mxu0 %v9772
    %9810 = vmatpush1.bf16.msra.mxu0 %v9771
    %9811 = vmatprep.subr.bf16.mxu0 %v9774
    %9812 = vmatpush1.bf16.msra.mxu0 %v9773
    %9813 = vmatprep.subr.bf16.mxu0 %v9776
    %9814 = vmatpush1.bf16.msra.mxu0 %v9775
    %9815 = vmatprep.subr.bf16.mxu0 %v9778
    %9816 = vmatpush1.bf16.msra.mxu0 %v9777
    %9817 = vmatprep.subr.bf16.mxu0 %v9780
    %9818 = vmatpush1.bf16.msra.mxu0 %v9779
    %9819 = vmatprep.subr.bf16.mxu0 %v9782
    %9820 = vmatpush1.bf16.msra.mxu0 %v9781
    %9821 = vmatprep.subr.bf16.mxu0 %v9784
    %9822 = vmatpush1.bf16.msra.mxu0 %v9783
    %9823 = vmatprep.subr.bf16.mxu0 %v9786
    %9824 = vmatpush1.bf16.msra.mxu0 %v9785
    %9825 = vmatprep.subr.bf16.mxu0 %v9788
    %9826 = vmatpush1.bf16.msra.mxu0 %v9787
    %9827 = vmatprep.subr.bf16.mxu0 %v9790
    %9828 = vmatpush1.bf16.msra.mxu0 %v9789
    %9829 = vmatprep.subr.bf16.mxu0 %v9792
    %9830 = vmatpush1.bf16.msra.mxu0 %v9791
    %9831 = vmatprep.mubr.bf16.mxu0 %v9796
    %9832 = vmatmul.mubr.bf16.gmra.mrb[0].mxu0 %v9795
    %v9833 = vpop.f32.mrb[0].mxu0
    %v9834 = vadd.f32 0.0, %v9833
    %v9835 = vpop.f32.mrb[0].mxu0
    %v9836 = vadd.f32 0.0, %v9835
    %v9837 = vpop.f32.mrb[0].mxu0
    %v9838 = vpop.f32.mrb[0].mxu0
    %9839 = vdwg.mxu0
    %v9840 = vadd.f32 %v9757, %v9834
    %v9841 = vadd.f32 %v9758, %v9836
    %v9842 = vld [vmem:[#allocation4 + $0x60] sm:$0x7]
    %v9843 = vld [vmem:[#allocation4 + $0x68] sm:$0x7]
    %v9844 = vld [vmem:[#allocation5 + $0xa00] sm:$0xff]
    %v9845 = vld [vmem:[#allocation5 + $0xa08] sm:$0xff]
    %v9846 = vld [vmem:[#allocation5 + $0xa10] sm:$0xff]
    %v9847 = vld [vmem:[#allocation5 + $0xa18] sm:$0xff]
    %v9848 = vld [vmem:[#allocation5 + $0xa20] sm:$0xff]
    %v9849 = vld [vmem:[#allocation5 + $0xa28] sm:$0xff]
    %v9850 = vld [vmem:[#allocation5 + $0xa30] sm:$0xff]
    %v9851 = vld [vmem:[#allocation5 + $0xa38] sm:$0xff]
    %v9852 = vld [vmem:[#allocation5 + $0xa40] sm:$0xff]
    %v9853 = vld [vmem:[#allocation5 + $0xa48] sm:$0xff]
    %v9854 = vld [vmem:[#allocation5 + $0xa50] sm:$0xff]
    %v9855 = vld [vmem:[#allocation5 + $0xa58] sm:$0xff]
    %v9856 = vld [vmem:[#allocation5 + $0xa60] sm:$0xff]
    %v9857 = vld [vmem:[#allocation5 + $0xa68] sm:$0xff]
    %v9858 = vld [vmem:[#allocation5 + $0xa70] sm:$0xff]
    %v9859 = vld [vmem:[#allocation5 + $0xa78] sm:$0xff]
    %v9860 = vld [vmem:[#allocation5 + $0xa80] sm:$0xff]
    %v9861 = vld [vmem:[#allocation5 + $0xa88] sm:$0xff]
    %v9862 = vld [vmem:[#allocation5 + $0xa90] sm:$0xff]
    %v9863 = vld [vmem:[#allocation5 + $0xa98] sm:$0xff]
    %v9864 = vld [vmem:[#allocation5 + $0xaa0] sm:$0xff]
    %v9865 = vld [vmem:[#allocation5 + $0xaa8] sm:$0xff]
    %v9866 = vld [vmem:[#allocation5 + $0xab0] sm:$0xff]
    %v9867 = vld [vmem:[#allocation5 + $0xab8] sm:$0xff]
    %v9868 = vld [vmem:[#allocation5 + $0xac0] sm:$0xff]
    %v9869 = vld [vmem:[#allocation5 + $0xac8] sm:$0xff]
    %v9870 = vld [vmem:[#allocation5 + $0xad0] sm:$0xff]
    %v9871 = vld [vmem:[#allocation5 + $0xad8] sm:$0xff]
    %v9872 = vld [vmem:[#allocation5 + $0xae0] sm:$0xff]
    %v9873 = vld [vmem:[#allocation5 + $0xae8] sm:$0xff]
    %v9874 = vld [vmem:[#allocation5 + $0xaf0] sm:$0xff]
    %v9875 = vld [vmem:[#allocation5 + $0xaf8] sm:$0xff]
    %9876 = vmatprep.subr.bf16.mxu0 %v9845
    %9877 = vmatpush1.bf16.msra.mxu0 %v9844
    %9878 = vmatprep.subr.bf16.mxu0 %v9847
    %9879 = vmatpush1.bf16.msra.mxu0 %v9846
    %9880 = vmatprep.subr.bf16.mxu0 %v9849
    %9881 = vmatpush1.bf16.msra.mxu0 %v9848
    %9882 = vmatprep.subr.bf16.mxu0 %v9851
    %9883 = vmatpush1.bf16.msra.mxu0 %v9850
    %9884 = vmatprep.subr.bf16.mxu0 %v9853
    %9885 = vmatpush1.bf16.msra.mxu0 %v9852
    %9886 = vmatprep.subr.bf16.mxu0 %v9855
    %9887 = vmatpush1.bf16.msra.mxu0 %v9854
    %9888 = vmatprep.subr.bf16.mxu0 %v9857
    %9889 = vmatpush1.bf16.msra.mxu0 %v9856
    %9890 = vmatprep.subr.bf16.mxu0 %v9859
    %9891 = vmatpush1.bf16.msra.mxu0 %v9858
    %9892 = vmatprep.subr.bf16.mxu0 %v9861
    %9893 = vmatpush1.bf16.msra.mxu0 %v9860
    %9894 = vmatprep.subr.bf16.mxu0 %v9863
    %9895 = vmatpush1.bf16.msra.mxu0 %v9862
    %9896 = vmatprep.subr.bf16.mxu0 %v9865
    %9897 = vmatpush1.bf16.msra.mxu0 %v9864
    %9898 = vmatprep.subr.bf16.mxu0 %v9867
    %9899 = vmatpush1.bf16.msra.mxu0 %v9866
    %9900 = vmatprep.subr.bf16.mxu0 %v9869
    %9901 = vmatpush1.bf16.msra.mxu0 %v9868
    %9902 = vmatprep.subr.bf16.mxu0 %v9871
    %9903 = vmatpush1.bf16.msra.mxu0 %v9870
    %9904 = vmatprep.subr.bf16.mxu0 %v9873
    %9905 = vmatpush1.bf16.msra.mxu0 %v9872
    %9906 = vmatprep.subr.bf16.mxu0 %v9875
    %9907 = vmatpush1.bf16.msra.mxu0 %v9874
    %9908 = vmatprep.mubr.bf16.mxu0 %v9843
    %9909 = vmatmul.mubr.bf16.gmra.mrb[0].mxu0 %v9842
    %v9910 = vpop.f32.mrb[0].mxu0
    %v9911 = vadd.f32 0.0, %v9910
    %v9912 = vpop.f32.mrb[0].mxu0
    %v9913 = vadd.f32 0.0, %v9912
    %v9914 = vpop.f32.mrb[0].mxu0
    %v9915 = vpop.f32.mrb[0].mxu0
    %9916 = vdwg.mxu0
    %v9917 = vadd.f32 %v9840, %v9911
    %v9918 = vadd.f32 %v9841, %v9913
    %v9919 = vld [vmem:[#allocation4 + $0x60] sm:$0x38]
    %v9920 = vld [vmem:[#allocation4 + $0x68] sm:$0x38]
    %v9921 = vld [vmem:[#allocation5 + $0xb00] sm:$0xff]
    %v9922 = vld [vmem:[#allocation5 + $0xb08] sm:$0xff]
    %v9923 = vld [vmem:[#allocation5 + $0xb10] sm:$0xff]
    %v9924 = vld [vmem:[#allocation5 + $0xb18] sm:$0xff]
    %v9925 = vld [vmem:[#allocation5 + $0xb20] sm:$0xff]
    %v9926 = vld [vmem:[#allocation5 + $0xb28] sm:$0xff]
    %v9927 = vld [vmem:[#allocation5 + $0xb30] sm:$0xff]
    %v9928 = vld [vmem:[#allocation5 + $0xb38] sm:$0xff]
    %v9929 = vld [vmem:[#allocation5 + $0xb40] sm:$0xff]
    %v9930 = vld [vmem:[#allocation5 + $0xb48] sm:$0xff]
    %v9931 = vld [vmem:[#allocation5 + $0xb50] sm:$0xff]
    %v9932 = vld [vmem:[#allocation5 + $0xb58] sm:$0xff]
    %v9933 = vld [vmem:[#allocation5 + $0xb60] sm:$0xff]
    %v9934 = vld [vmem:[#allocation5 + $0xb68] sm:$0xff]
    %v9935 = vld [vmem:[#allocation5 + $0xb70] sm:$0xff]
    %v9936 = vld [vmem:[#allocation5 + $0xb78] sm:$0xff]
    %v9937 = vld [vmem:[#allocation5 + $0xb80] sm:$0xff]
    %v9938 = vld [vmem:[#allocation5 + $0xb88] sm:$0xff]
    %v9939 = vld [vmem:[#allocation5 + $0xb90] sm:$0xff]
    %v9940 = vld [vmem:[#allocation5 + $0xb98] sm:$0xff]
    %v9941 = vld [vmem:[#allocation5 + $0xba0] sm:$0xff]
    %v9942 = vld [vmem:[#allocation5 + $0xba8] sm:$0xff]
    %v9943 = vld [vmem:[#allocation5 + $0xbb0] sm:$0xff]
    %v9944 = vld [vmem:[#allocation5 + $0xbb8] sm:$0xff]
    %v9945 = vld [vmem:[#allocation5 + $0xbc0] sm:$0xff]
    %v9946 = vld [vmem:[#allocation5 + $0xbc8] sm:$0xff]
    %v9947 = vld [vmem:[#allocation5 + $0xbd0] sm:$0xff]
    %v9948 = vld [vmem:[#allocation5 + $0xbd8] sm:$0xff]
    %v9949 = vld [vmem:[#allocation5 + $0xbe0] sm:$0xff]
    %v9950 = vld [vmem:[#allocation5 + $0xbe8] sm:$0xff]
    %v9951 = vld [vmem:[#allocation5 + $0xbf0] sm:$0xff]
    %v9952 = vld [vmem:[#allocation5 + $0xbf8] sm:$0xff]
    %v9955 = vrot.slane %v9919, 3
    %v9956 = vrot.slane %v9920, 3
    %9959 = vmatprep.subr.bf16.mxu0 %v9922
    %9960 = vmatpush1.bf16.msra.mxu0 %v9921
    %9961 = vmatprep.subr.bf16.mxu0 %v9924
    %9962 = vmatpush1.bf16.msra.mxu0 %v9923
    %9963 = vmatprep.subr.bf16.mxu0 %v9926
    %9964 = vmatpush1.bf16.msra.mxu0 %v9925
    %9965 = vmatprep.subr.bf16.mxu0 %v9928
    %9966 = vmatpush1.bf16.msra.mxu0 %v9927
    %9967 = vmatprep.subr.bf16.mxu0 %v9930
    %9968 = vmatpush1.bf16.msra.mxu0 %v9929
    %9969 = vmatprep.subr.bf16.mxu0 %v9932
    %9970 = vmatpush1.bf16.msra.mxu0 %v9931
    %9971 = vmatprep.subr.bf16.mxu0 %v9934
    %9972 = vmatpush1.bf16.msra.mxu0 %v9933
    %9973 = vmatprep.subr.bf16.mxu0 %v9936
    %9974 = vmatpush1.bf16.msra.mxu0 %v9935
    %9975 = vmatprep.subr.bf16.mxu0 %v9938
    %9976 = vmatpush1.bf16.msra.mxu0 %v9937
    %9977 = vmatprep.subr.bf16.mxu0 %v9940
    %9978 = vmatpush1.bf16.msra.mxu0 %v9939
    %9979 = vmatprep.subr.bf16.mxu0 %v9942
    %9980 = vmatpush1.bf16.msra.mxu0 %v9941
    %9981 = vmatprep.subr.bf16.mxu0 %v9944
    %9982 = vmatpush1.bf16.msra.mxu0 %v9943
    %9983 = vmatprep.subr.bf16.mxu0 %v9946
    %9984 = vmatpush1.bf16.msra.mxu0 %v9945
    %9985 = vmatprep.subr.bf16.mxu0 %v9948
    %9986 = vmatpush1.bf16.msra.mxu0 %v9947
    %9987 = vmatprep.subr.bf16.mxu0 %v9950
    %9988 = vmatpush1.bf16.msra.mxu0 %v9949
    %9989 = vmatprep.subr.bf16.mxu0 %v9952
    %9990 = vmatpush1.bf16.msra.mxu0 %v9951
    %9991 = vmatprep.mubr.bf16.mxu0 %v9956
    %9992 = vmatmul.mubr.bf16.gmra.mrb[0].mxu0 %v9955
    %v9993 = vpop.f32.mrb[0].mxu0
    %v9994 = vadd.f32 0.0, %v9993
    %v9995 = vpop.f32.mrb[0].mxu0
    %v9996 = vadd.f32 0.0, %v9995
    %v9997 = vpop.f32.mrb[0].mxu0
    %v9998 = vpop.f32.mrb[0].mxu0
    %9999 = vdwg.mxu0
    %v10000 = vadd.f32 %v9917, %v9994
    %v10001 = vadd.f32 %v9918, %v9996
    %v10002 = vld [vmem:[#allocation4 + $0x60] sm:$0xc0]
    %v10003 = vld [vmem:[#allocation4 + $0x68] sm:$0xc0]
    %v10004 = vld [vmem:[#allocation4 + $0x70] sm:$0x1]
    %v10005 = vld [vmem:[#allocation4 + $0x78] sm:$0x1]
    %v10006 = vld [vmem:[#allocation5 + $0xc00] sm:$0xff]
    %v10007 = vld [vmem:[#allocation5 + $0xc08] sm:$0xff]
    %v10008 = vld [vmem:[#allocation5 + $0xc10] sm:$0xff]
    %v10009 = vld [vmem:[#allocation5 + $0xc18] sm:$0xff]
    %v10010 = vld [vmem:[#allocation5 + $0xc20] sm:$0xff]
    %v10011 = vld [vmem:[#allocation5 + $0xc28] sm:$0xff]
    %v10012 = vld [vmem:[#allocation5 + $0xc30] sm:$0xff]
    %v10013 = vld [vmem:[#allocation5 + $0xc38] sm:$0xff]
    %v10014 = vld [vmem:[#allocation5 + $0xc40] sm:$0xff]
    %v10015 = vld [vmem:[#allocation5 + $0xc48] sm:$0xff]
    %v10016 = vld [vmem:[#allocation5 + $0xc50] sm:$0xff]
    %v10017 = vld [vmem:[#allocation5 + $0xc58] sm:$0xff]
    %v10018 = vld [vmem:[#allocation5 + $0xc60] sm:$0xff]
    %v10019 = vld [vmem:[#allocation5 + $0xc68] sm:$0xff]
    %v10020 = vld [vmem:[#allocation5 + $0xc70] sm:$0xff]
    %v10021 = vld [vmem:[#allocation5 + $0xc78] sm:$0xff]
    %v10022 = vld [vmem:[#allocation5 + $0xc80] sm:$0xff]
    %v10023 = vld [vmem:[#allocation5 + $0xc88] sm:$0xff]
    %v10024 = vld [vmem:[#allocation5 + $0xc90] sm:$0xff]
    %v10025 = vld [vmem:[#allocation5 + $0xc98] sm:$0xff]
    %v10026 = vld [vmem:[#allocation5 + $0xca0] sm:$0xff]
    %v10027 = vld [vmem:[#allocation5 + $0xca8] sm:$0xff]
    %v10028 = vld [vmem:[#allocation5 + $0xcb0] sm:$0xff]
    %v10029 = vld [vmem:[#allocation5 + $0xcb8] sm:$0xff]
    %v10030 = vld [vmem:[#allocation5 + $0xcc0] sm:$0xff]
    %v10031 = vld [vmem:[#allocation5 + $0xcc8] sm:$0xff]
    %v10032 = vld [vmem:[#allocation5 + $0xcd0] sm:$0xff]
    %v10033 = vld [vmem:[#allocation5 + $0xcd8] sm:$0xff]
    %v10034 = vld [vmem:[#allocation5 + $0xce0] sm:$0xff]
    %v10035 = vld [vmem:[#allocation5 + $0xce8] sm:$0xff]
    %v10036 = vld [vmem:[#allocation5 + $0xcf0] sm:$0xff]
    %v10037 = vld [vmem:[#allocation5 + $0xcf8] sm:$0xff]
    %v10042 = vrot.slane %v10002, 6
    %v10043 = vrot.slane %v10004, 6
    %v10044 = vsel %vm9207, %v10042, %v10043
    %v10045 = vrot.slane %v10003, 6
    %v10046 = vrot.slane %v10005, 6
    %v10047 = vsel %vm9207, %v10045, %v10046
    %10050 = vmatprep.subr.bf16.mxu0 %v10007
    %10051 = vmatpush1.bf16.msra.mxu0 %v10006
    %10052 = vmatprep.subr.bf16.mxu0 %v10009
    %10053 = vmatpush1.bf16.msra.mxu0 %v10008
    %10054 = vmatprep.subr.bf16.mxu0 %v10011
    %10055 = vmatpush1.bf16.msra.mxu0 %v10010
    %10056 = vmatprep.subr.bf16.mxu0 %v10013
    %10057 = vmatpush1.bf16.msra.mxu0 %v10012
    %10058 = vmatprep.subr.bf16.mxu0 %v10015
    %10059 = vmatpush1.bf16.msra.mxu0 %v10014
    %10060 = vmatprep.subr.bf16.mxu0 %v10017
    %10061 = vmatpush1.bf16.msra.mxu0 %v10016
    %10062 = vmatprep.subr.bf16.mxu0 %v10019
    %10063 = vmatpush1.bf16.msra.mxu0 %v10018
    %10064 = vmatprep.subr.bf16.mxu0 %v10021
    %10065 = vmatpush1.bf16.msra.mxu0 %v10020
    %10066 = vmatprep.subr.bf16.mxu0 %v10023
    %10067 = vmatpush1.bf16.msra.mxu0 %v10022
    %10068 = vmatprep.subr.bf16.mxu0 %v10025
    %10069 = vmatpush1.bf16.msra.mxu0 %v10024
    %10070 = vmatprep.subr.bf16.mxu0 %v10027
    %10071 = vmatpush1.bf16.msra.mxu0 %v10026
    %10072 = vmatprep.subr.bf16.mxu0 %v10029
    %10073 = vmatpush1.bf16.msra.mxu0 %v10028
    %10074 = vmatprep.subr.bf16.mxu0 %v10031
    %10075 = vmatpush1.bf16.msra.mxu0 %v10030
    %10076 = vmatprep.subr.bf16.mxu0 %v10033
    %10077 = vmatpush1.bf16.msra.mxu0 %v10032
    %10078 = vmatprep.subr.bf16.mxu0 %v10035
    %10079 = vmatpush1.bf16.msra.mxu0 %v10034
    %10080 = vmatprep.subr.bf16.mxu0 %v10037
    %10081 = vmatpush1.bf16.msra.mxu0 %v10036
    %10082 = vmatprep.mubr.bf16.mxu0 %v10047
    %10083 = vmatmul.mubr.bf16.gmra.mrb[0].mxu0 %v10044
    %v10084 = vpop.f32.mrb[0].mxu0
    %v10085 = vadd.f32 0.0, %v10084
    %v10086 = vpop.f32.mrb[0].mxu0
    %v10087 = vadd.f32 0.0, %v10086
    %v10088 = vpop.f32.mrb[0].mxu0
    %v10089 = vpop.f32.mrb[0].mxu0
    %10090 = vdwg.mxu0
    %v10091 = vadd.f32 %v10000, %v10085
    %v10092 = vadd.f32 %v10001, %v10087
    %v10093 = vld [vmem:[#allocation4 + $0x70] sm:$0xe]
    %v10094 = vld [vmem:[#allocation4 + $0x78] sm:$0xe]
    %v10095 = vld [vmem:[#allocation5 + $0xd00] sm:$0xff]
    %v10096 = vld [vmem:[#allocation5 + $0xd08] sm:$0xff]
    %v10097 = vld [vmem:[#allocation5 + $0xd10] sm:$0xff]
    %v10098 = vld [vmem:[#allocation5 + $0xd18] sm:$0xff]
    %v10099 = vld [vmem:[#allocation5 + $0xd20] sm:$0xff]
    %v10100 = vld [vmem:[#allocation5 + $0xd28] sm:$0xff]
    %v10101 = vld [vmem:[#allocation5 + $0xd30] sm:$0xff]
    %v10102 = vld [vmem:[#allocation5 + $0xd38] sm:$0xff]
    %v10103 = vld [vmem:[#allocation5 + $0xd40] sm:$0xff]
    %v10104 = vld [vmem:[#allocation5 + $0xd48] sm:$0xff]
    %v10105 = vld [vmem:[#allocation5 + $0xd50] sm:$0xff]
    %v10106 = vld [vmem:[#allocation5 + $0xd58] sm:$0xff]
    %v10107 = vld [vmem:[#allocation5 + $0xd60] sm:$0xff]
    %v10108 = vld [vmem:[#allocation5 + $0xd68] sm:$0xff]
    %v10109 = vld [vmem:[#allocation5 + $0xd70] sm:$0xff]
    %v10110 = vld [vmem:[#allocation5 + $0xd78] sm:$0xff]
    %v10111 = vld [vmem:[#allocation5 + $0xd80] sm:$0xff]
    %v10112 = vld [vmem:[#allocation5 + $0xd88] sm:$0xff]
    %v10113 = vld [vmem:[#allocation5 + $0xd90] sm:$0xff]
    %v10114 = vld [vmem:[#allocation5 + $0xd98] sm:$0xff]
    %v10115 = vld [vmem:[#allocation5 + $0xda0] sm:$0xff]
    %v10116 = vld [vmem:[#allocation5 + $0xda8] sm:$0xff]
    %v10117 = vld [vmem:[#allocation5 + $0xdb0] sm:$0xff]
    %v10118 = vld [vmem:[#allocation5 + $0xdb8] sm:$0xff]
    %v10119 = vld [vmem:[#allocation5 + $0xdc0] sm:$0xff]
    %v10120 = vld [vmem:[#allocation5 + $0xdc8] sm:$0xff]
    %v10121 = vld [vmem:[#allocation5 + $0xdd0] sm:$0xff]
    %v10122 = vld [vmem:[#allocation5 + $0xdd8] sm:$0xff]
    %v10123 = vld [vmem:[#allocation5 + $0xde0] sm:$0xff]
    %v10124 = vld [vmem:[#allocation5 + $0xde8] sm:$0xff]
    %v10125 = vld [vmem:[#allocation5 + $0xdf0] sm:$0xff]
    %v10126 = vld [vmem:[#allocation5 + $0xdf8] sm:$0xff]
    %v10129 = vrot.slane %v10093, 1
    %v10130 = vrot.slane %v10094, 1
    %10133 = vmatprep.subr.bf16.mxu0 %v10096
    %10134 = vmatpush1.bf16.msra.mxu0 %v10095
    %10135 = vmatprep.subr.bf16.mxu0 %v10098
    %10136 = vmatpush1.bf16.msra.mxu0 %v10097
    %10137 = vmatprep.subr.bf16.mxu0 %v10100
    %10138 = vmatpush1.bf16.msra.mxu0 %v10099
    %10139 = vmatprep.subr.bf16.mxu0 %v10102
    %10140 = vmatpush1.bf16.msra.mxu0 %v10101
    %10141 = vmatprep.subr.bf16.mxu0 %v10104
    %10142 = vmatpush1.bf16.msra.mxu0 %v10103
    %10143 = vmatprep.subr.bf16.mxu0 %v10106
    %10144 = vmatpush1.bf16.msra.mxu0 %v10105
    %10145 = vmatprep.subr.bf16.mxu0 %v10108
    %10146 = vmatpush1.bf16.msra.mxu0 %v10107
    %10147 = vmatprep.subr.bf16.mxu0 %v10110
    %10148 = vmatpush1.bf16.msra.mxu0 %v10109
    %10149 = vmatprep.subr.bf16.mxu0 %v10112
    %10150 = vmatpush1.bf16.msra.mxu0 %v10111
    %10151 = vmatprep.subr.bf16.mxu0 %v10114
    %10152 = vmatpush1.bf16.msra.mxu0 %v10113
    %10153 = vmatprep.subr.bf16.mxu0 %v10116
    %10154 = vmatpush1.bf16.msra.mxu0 %v10115
    %10155 = vmatprep.subr.bf16.mxu0 %v10118
    %10156 = vmatpush1.bf16.msra.mxu0 %v10117
    %10157 = vmatprep.subr.bf16.mxu0 %v10120
    %10158 = vmatpush1.bf16.msra.mxu0 %v10119
    %10159 = vmatprep.subr.bf16.mxu0 %v10122
    %10160 = vmatpush1.bf16.msra.mxu0 %v10121
    %10161 = vmatprep.subr.bf16.mxu0 %v10124
    %10162 = vmatpush1.bf16.msra.mxu0 %v10123
    %10163 = vmatprep.subr.bf16.mxu0 %v10126
    %10164 = vmatpush1.bf16.msra.mxu0 %v10125
    %10165 = vmatprep.mubr.bf16.mxu0 %v10130
    %10166 = vmatmul.mubr.bf16.gmra.mrb[0].mxu0 %v10129
    %v10167 = vpop.f32.mrb[0].mxu0
    %v10168 = vadd.f32 0.0, %v10167
    %v10169 = vpop.f32.mrb[0].mxu0
    %v10170 = vadd.f32 0.0, %v10169
    %v10171 = vpop.f32.mrb[0].mxu0
    %v10172 = vpop.f32.mrb[0].mxu0
    %10173 = vdwg.mxu0
    %v10174 = vadd.f32 %v10091, %v10168
    %v10175 = vadd.f32 %v10092, %v10170
    %v10176 = vld [vmem:[#allocation4 + $0x70] sm:$0x70]
    %v10177 = vld [vmem:[#allocation4 + $0x78] sm:$0x70]
    %v10178 = vld [vmem:[#allocation5 + $0xe00] sm:$0xff]
    %v10179 = vld [vmem:[#allocation5 + $0xe08] sm:$0xff]
    %v10180 = vld [vmem:[#allocation5 + $0xe10] sm:$0xff]
    %v10181 = vld [vmem:[#allocation5 + $0xe18] sm:$0xff]
    %v10182 = vld [vmem:[#allocation5 + $0xe20] sm:$0xff]
    %v10183 = vld [vmem:[#allocation5 + $0xe28] sm:$0xff]
    %v10184 = vld [vmem:[#allocation5 + $0xe30] sm:$0xff]
    %v10185 = vld [vmem:[#allocation5 + $0xe38] sm:$0xff]
    %v10186 = vld [vmem:[#allocation5 + $0xe40] sm:$0xff]
    %v10187 = vld [vmem:[#allocation5 + $0xe48] sm:$0xff]
    %v10188 = vld [vmem:[#allocation5 + $0xe50] sm:$0xff]
    %v10189 = vld [vmem:[#allocation5 + $0xe58] sm:$0xff]
    %v10190 = vld [vmem:[#allocation5 + $0xe60] sm:$0xff]
    %v10191 = vld [vmem:[#allocation5 + $0xe68] sm:$0xff]
    %v10192 = vld [vmem:[#allocation5 + $0xe70] sm:$0xff]
    %v10193 = vld [vmem:[#allocation5 + $0xe78] sm:$0xff]
    %v10194 = vld [vmem:[#allocation5 + $0xe80] sm:$0xff]
    %v10195 = vld [vmem:[#allocation5 + $0xe88] sm:$0xff]
    %v10196 = vld [vmem:[#allocation5 + $0xe90] sm:$0xff]
    %v10197 = vld [vmem:[#allocation5 + $0xe98] sm:$0xff]
    %v10198 = vld [vmem:[#allocation5 + $0xea0] sm:$0xff]
    %v10199 = vld [vmem:[#allocation5 + $0xea8] sm:$0xff]
    %v10200 = vld [vmem:[#allocation5 + $0xeb0] sm:$0xff]
    %v10201 = vld [vmem:[#allocation5 + $0xeb8] sm:$0xff]
    %v10202 = vld [vmem:[#allocation5 + $0xec0] sm:$0xff]
    %v10203 = vld [vmem:[#allocation5 + $0xec8] sm:$0xff]
    %v10204 = vld [vmem:[#allocation5 + $0xed0] sm:$0xff]
    %v10205 = vld [vmem:[#allocation5 + $0xed8] sm:$0xff]
    %v10206 = vld [vmem:[#allocation5 + $0xee0] sm:$0xff]
    %v10207 = vld [vmem:[#allocation5 + $0xee8] sm:$0xff]
    %v10208 = vld [vmem:[#allocation5 + $0xef0] sm:$0xff]
    %v10209 = vld [vmem:[#allocation5 + $0xef8] sm:$0xff]
    %v10212 = vrot.slane %v10176, 4
    %v10213 = vrot.slane %v10177, 4
    %10216 = vmatprep.subr.bf16.mxu0 %v10179
    %10217 = vmatpush1.bf16.msra.mxu0 %v10178
    %10218 = vmatprep.subr.bf16.mxu0 %v10181
    %10219 = vmatpush1.bf16.msra.mxu0 %v10180
    %10220 = vmatprep.subr.bf16.mxu0 %v10183
    %10221 = vmatpush1.bf16.msra.mxu0 %v10182
    %10222 = vmatprep.subr.bf16.mxu0 %v10185
    %10223 = vmatpush1.bf16.msra.mxu0 %v10184
    %10224 = vmatprep.subr.bf16.mxu0 %v10187
    %10225 = vmatpush1.bf16.msra.mxu0 %v10186
    %10226 = vmatprep.subr.bf16.mxu0 %v10189
    %10227 = vmatpush1.bf16.msra.mxu0 %v10188
    %10228 = vmatprep.subr.bf16.mxu0 %v10191
    %10229 = vmatpush1.bf16.msra.mxu0 %v10190
    %10230 = vmatprep.subr.bf16.mxu0 %v10193
    %10231 = vmatpush1.bf16.msra.mxu0 %v10192
    %10232 = vmatprep.subr.bf16.mxu0 %v10195
    %10233 = vmatpush1.bf16.msra.mxu0 %v10194
    %10234 = vmatprep.subr.bf16.mxu0 %v10197
    %10235 = vmatpush1.bf16.msra.mxu0 %v10196
    %10236 = vmatprep.subr.bf16.mxu0 %v10199
    %10237 = vmatpush1.bf16.msra.mxu0 %v10198
    %10238 = vmatprep.subr.bf16.mxu0 %v10201
    %10239 = vmatpush1.bf16.msra.mxu0 %v10200
    %10240 = vmatprep.subr.bf16.mxu0 %v10203
    %10241 = vmatpush1.bf16.msra.mxu0 %v10202
    %10242 = vmatprep.subr.bf16.mxu0 %v10205
    %10243 = vmatpush1.bf16.msra.mxu0 %v10204
    %10244 = vmatprep.subr.bf16.mxu0 %v10207
    %10245 = vmatpush1.bf16.msra.mxu0 %v10206
    %10246 = vmatprep.subr.bf16.mxu0 %v10209
    %10247 = vmatpush1.bf16.msra.mxu0 %v10208
    %10248 = vmatprep.mubr.bf16.mxu0 %v10213
    %10249 = vmatmul.mubr.bf16.gmra.mrb[0].mxu0 %v10212
    %v10250 = vpop.f32.mrb[0].mxu0
    %v10251 = vadd.f32 0.0, %v10250
    %v10252 = vpop.f32.mrb[0].mxu0
    %v10253 = vadd.f32 0.0, %v10252
    %v10254 = vpop.f32.mrb[0].mxu0
    %v10255 = vpop.f32.mrb[0].mxu0
    %10256 = vdwg.mxu0
    %v10257 = vadd.f32 %v10174, %v10251
    %v10258 = vadd.f32 %v10175, %v10253
    %v10259 = vld [vmem:[#allocation4 + $0x90] sm:$0x7]
    %v10260 = vld [vmem:[#allocation4 + $0x98] sm:$0x7]
    %v10261 = vld [vmem:[#allocation5 + $0xf00] sm:$0xff]
    %v10262 = vld [vmem:[#allocation5 + $0xf08] sm:$0xff]
    %v10263 = vld [vmem:[#allocation5 + $0xf10] sm:$0xff]
    %v10264 = vld [vmem:[#allocation5 + $0xf18] sm:$0xff]
    %v10265 = vld [vmem:[#allocation5 + $0xf20] sm:$0xff]
    %v10266 = vld [vmem:[#allocation5 + $0xf28] sm:$0xff]
    %v10267 = vld [vmem:[#allocation5 + $0xf30] sm:$0xff]
    %v10268 = vld [vmem:[#allocation5 + $0xf38] sm:$0xff]
    %v10269 = vld [vmem:[#allocation5 + $0xf40] sm:$0xff]
    %v10270 = vld [vmem:[#allocation5 + $0xf48] sm:$0xff]
    %v10271 = vld [vmem:[#allocation5 + $0xf50] sm:$0xff]
    %v10272 = vld [vmem:[#allocation5 + $0xf58] sm:$0xff]
    %v10273 = vld [vmem:[#allocation5 + $0xf60] sm:$0xff]
    %v10274 = vld [vmem:[#allocation5 + $0xf68] sm:$0xff]
    %v10275 = vld [vmem:[#allocation5 + $0xf70] sm:$0xff]
    %v10276 = vld [vmem:[#allocation5 + $0xf78] sm:$0xff]
    %v10277 = vld [vmem:[#allocation5 + $0xf80] sm:$0xff]
    %v10278 = vld [vmem:[#allocation5 + $0xf88] sm:$0xff]
    %v10279 = vld [vmem:[#allocation5 + $0xf90] sm:$0xff]
    %v10280 = vld [vmem:[#allocation5 + $0xf98] sm:$0xff]
    %v10281 = vld [vmem:[#allocation5 + $0xfa0] sm:$0xff]
    %v10282 = vld [vmem:[#allocation5 + $0xfa8] sm:$0xff]
    %v10283 = vld [vmem:[#allocation5 + $0xfb0] sm:$0xff]
    %v10284 = vld [vmem:[#allocation5 + $0xfb8] sm:$0xff]
    %v10285 = vld [vmem:[#allocation5 + $0xfc0] sm:$0xff]
    %v10286 = vld [vmem:[#allocation5 + $0xfc8] sm:$0xff]
    %v10287 = vld [vmem:[#allocation5 + $0xfd0] sm:$0xff]
    %v10288 = vld [vmem:[#allocation5 + $0xfd8] sm:$0xff]
    %v10289 = vld [vmem:[#allocation5 + $0xfe0] sm:$0xff]
    %v10290 = vld [vmem:[#allocation5 + $0xfe8] sm:$0xff]
    %v10291 = vld [vmem:[#allocation5 + $0xff0] sm:$0xff]
    %v10292 = vld [vmem:[#allocation5 + $0xff8] sm:$0xff]
    %10293 = vmatprep.subr.bf16.mxu0 %v10262
    %10294 = vmatpush1.bf16.msra.mxu0 %v10261
    %10295 = vmatprep.subr.bf16.mxu0 %v10264
    %10296 = vmatpush1.bf16.msra.mxu0 %v10263
    %10297 = vmatprep.subr.bf16.mxu0 %v10266
    %10298 = vmatpush1.bf16.msra.mxu0 %v10265
    %10299 = vmatprep.subr.bf16.mxu0 %v10268
    %10300 = vmatpush1.bf16.msra.mxu0 %v10267
    %10301 = vmatprep.subr.bf16.mxu0 %v10270
    %10302 = vmatpush1.bf16.msra.mxu0 %v10269
    %10303 = vmatprep.subr.bf16.mxu0 %v10272
    %10304 = vmatpush1.bf16.msra.mxu0 %v10271
    %10305 = vmatprep.subr.bf16.mxu0 %v10274
    %10306 = vmatpush1.bf16.msra.mxu0 %v10273
    %10307 = vmatprep.subr.bf16.mxu0 %v10276
    %10308 = vmatpush1.bf16.msra.mxu0 %v10275
    %10309 = vmatprep.subr.bf16.mxu0 %v10278
    %10310 = vmatpush1.bf16.msra.mxu0 %v10277
    %10311 = vmatprep.subr.bf16.mxu0 %v10280
    %10312 = vmatpush1.bf16.msra.mxu0 %v10279
    %10313 = vmatprep.subr.bf16.mxu0 %v10282
    %10314 = vmatpush1.bf16.msra.mxu0 %v10281
    %10315 = vmatprep.subr.bf16.mxu0 %v10284
    %10316 = vmatpush1.bf16.msra.mxu0 %v10283
    %10317 = vmatprep.subr.bf16.mxu0 %v10286
    %10318 = vmatpush1.bf16.msra.mxu0 %v10285
    %10319 = vmatprep.subr.bf16.mxu0 %v10288
    %10320 = vmatpush1.bf16.msra.mxu0 %v10287
    %10321 = vmatprep.subr.bf16.mxu0 %v10290
    %10322 = vmatpush1.bf16.msra.mxu0 %v10289
    %10323 = vmatprep.subr.bf16.mxu0 %v10292
    %10324 = vmatpush1.bf16.msra.mxu0 %v10291
    %10325 = vmatprep.mubr.bf16.mxu0 %v10260
    %10326 = vmatmul.mubr.bf16.gmra.mrb[0].mxu0 %v10259
    %v10327 = vpop.f32.mrb[0].mxu0
    %v10328 = vadd.f32 0.0, %v10327
    %v10329 = vpop.f32.mrb[0].mxu0
    %v10330 = vadd.f32 0.0, %v10329
    %v10331 = vpop.f32.mrb[0].mxu0
    %v10332 = vpop.f32.mrb[0].mxu0
    %10333 = vdwg.mxu0
    %v10334 = vadd.f32 %v10257, %v10328
    %v10335 = vadd.f32 %v10258, %v10330
    %v10336 = vld [vmem:[#allocation4 + $0x90] sm:$0x38]
    %v10337 = vld [vmem:[#allocation4 + $0x98] sm:$0x38]
    %v10338 = vld [vmem:[#allocation5 + $0x1000] sm:$0xff]
    %v10339 = vld [vmem:[#allocation5 + $0x1008] sm:$0xff]
    %v10340 = vld [vmem:[#allocation5 + $0x1010] sm:$0xff]
    %v10341 = vld [vmem:[#allocation5 + $0x1018] sm:$0xff]
    %v10342 = vld [vmem:[#allocation5 + $0x1020] sm:$0xff]
    %v10343 = vld [vmem:[#allocation5 + $0x1028] sm:$0xff]
    %v10344 = vld [vmem:[#allocation5 + $0x1030] sm:$0xff]
    %v10345 = vld [vmem:[#allocation5 + $0x1038] sm:$0xff]
    %v10346 = vld [vmem:[#allocation5 + $0x1040] sm:$0xff]
    %v10347 = vld [vmem:[#allocation5 + $0x1048] sm:$0xff]
    %v10348 = vld [vmem:[#allocation5 + $0x1050] sm:$0xff]
    %v10349 = vld [vmem:[#allocation5 + $0x1058] sm:$0xff]
    %v10350 = vld [vmem:[#allocation5 + $0x1060] sm:$0xff]
    %v10351 = vld [vmem:[#allocation5 + $0x1068] sm:$0xff]
    %v10352 = vld [vmem:[#allocation5 + $0x1070] sm:$0xff]
    %v10353 = vld [vmem:[#allocation5 + $0x1078] sm:$0xff]
    %v10354 = vld [vmem:[#allocation5 + $0x1080] sm:$0xff]
    %v10355 = vld [vmem:[#allocation5 + $0x1088] sm:$0xff]
    %v10356 = vld [vmem:[#allocation5 + $0x1090] sm:$0xff]
    %v10357 = vld [vmem:[#allocation5 + $0x1098] sm:$0xff]
    %v10358 = vld [vmem:[#allocation5 + $0x10a0] sm:$0xff]
    %v10359 = vld [vmem:[#allocation5 + $0x10a8] sm:$0xff]
    %v10360 = vld [vmem:[#allocation5 + $0x10b0] sm:$0xff]
    %v10361 = vld [vmem:[#allocation5 + $0x10b8] sm:$0xff]
    %v10362 = vld [vmem:[#allocation5 + $0x10c0] sm:$0xff]
    %v10363 = vld [vmem:[#allocation5 + $0x10c8] sm:$0xff]
    %v10364 = vld [vmem:[#allocation5 + $0x10d0] sm:$0xff]
    %v10365 = vld [vmem:[#allocation5 + $0x10d8] sm:$0xff]
    %v10366 = vld [vmem:[#allocation5 + $0x10e0] sm:$0xff]
    %v10367 = vld [vmem:[#allocation5 + $0x10e8] sm:$0xff]
    %v10368 = vld [vmem:[#allocation5 + $0x10f0] sm:$0xff]
    %v10369 = vld [vmem:[#allocation5 + $0x10f8] sm:$0xff]
    %v10372 = vrot.slane %v10336, 3
    %v10373 = vrot.slane %v10337, 3
    %10376 = vmatprep.subr.bf16.mxu0 %v10339
    %10377 = vmatpush1.bf16.msra.mxu0 %v10338
    %10378 = vmatprep.subr.bf16.mxu0 %v10341
    %10379 = vmatpush1.bf16.msra.mxu0 %v10340
    %10380 = vmatprep.subr.bf16.mxu0 %v10343
    %10381 = vmatpush1.bf16.msra.mxu0 %v10342
    %10382 = vmatprep.subr.bf16.mxu0 %v10345
    %10383 = vmatpush1.bf16.msra.mxu0 %v10344
    %10384 = vmatprep.subr.bf16.mxu0 %v10347
    %10385 = vmatpush1.bf16.msra.mxu0 %v10346
    %10386 = vmatprep.subr.bf16.mxu0 %v10349
    %10387 = vmatpush1.bf16.msra.mxu0 %v10348
    %10388 = vmatprep.subr.bf16.mxu0 %v10351
    %10389 = vmatpush1.bf16.msra.mxu0 %v10350
    %10390 = vmatprep.subr.bf16.mxu0 %v10353
    %10391 = vmatpush1.bf16.msra.mxu0 %v10352
    %10392 = vmatprep.subr.bf16.mxu0 %v10355
    %10393 = vmatpush1.bf16.msra.mxu0 %v10354
    %10394 = vmatprep.subr.bf16.mxu0 %v10357
    %10395 = vmatpush1.bf16.msra.mxu0 %v10356
    %10396 = vmatprep.subr.bf16.mxu0 %v10359
    %10397 = vmatpush1.bf16.msra.mxu0 %v10358
    %10398 = vmatprep.subr.bf16.mxu0 %v10361
    %10399 = vmatpush1.bf16.msra.mxu0 %v10360
    %10400 = vmatprep.subr.bf16.mxu0 %v10363
    %10401 = vmatpush1.bf16.msra.mxu0 %v10362
    %10402 = vmatprep.subr.bf16.mxu0 %v10365
    %10403 = vmatpush1.bf16.msra.mxu0 %v10364
    %10404 = vmatprep.subr.bf16.mxu0 %v10367
    %10405 = vmatpush1.bf16.msra.mxu0 %v10366
    %10406 = vmatprep.subr.bf16.mxu0 %v10369
    %10407 = vmatpush1.bf16.msra.mxu0 %v10368
    %10408 = vmatprep.mubr.bf16.mxu0 %v10373
    %10409 = vmatmul.mubr.bf16.gmra.mrb[0].mxu0 %v10372
    %v10410 = vpop.f32.mrb[0].mxu0
    %v10411 = vadd.f32 0.0, %v10410
    %v10412 = vpop.f32.mrb[0].mxu0
    %v10413 = vadd.f32 0.0, %v10412
    %v10414 = vpop.f32.mrb[0].mxu0
    %v10415 = vpop.f32.mrb[0].mxu0
    %10416 = vdwg.mxu0
    %v10417 = vadd.f32 %v10334, %v10411
    %v10418 = vadd.f32 %v10335, %v10413
    %v10419 = vld [vmem:[#allocation4 + $0x90] sm:$0xc0]
    %v10420 = vld [vmem:[#allocation4 + $0x98] sm:$0xc0]
    %v10421 = vld [vmem:[#allocation4 + $0xa0] sm:$0x1]
    %v10422 = vld [vmem:[#allocation4 + $0xa8] sm:$0x1]
    %v10423 = vld [vmem:[#allocation5 + $0x1100] sm:$0xff]
    %v10424 = vld [vmem:[#allocation5 + $0x1108] sm:$0xff]
    %v10425 = vld [vmem:[#allocation5 + $0x1110] sm:$0xff]
    %v10426 = vld [vmem:[#allocation5 + $0x1118] sm:$0xff]
    %v10427 = vld [vmem:[#allocation5 + $0x1120] sm:$0xff]
    %v10428 = vld [vmem:[#allocation5 + $0x1128] sm:$0xff]
    %v10429 = vld [vmem:[#allocation5 + $0x1130] sm:$0xff]
    %v10430 = vld [vmem:[#allocation5 + $0x1138] sm:$0xff]
    %v10431 = vld [vmem:[#allocation5 + $0x1140] sm:$0xff]
    %v10432 = vld [vmem:[#allocation5 + $0x1148] sm:$0xff]
    %v10433 = vld [vmem:[#allocation5 + $0x1150] sm:$0xff]
    %v10434 = vld [vmem:[#allocation5 + $0x1158] sm:$0xff]
    %v10435 = vld [vmem:[#allocation5 + $0x1160] sm:$0xff]
    %v10436 = vld [vmem:[#allocation5 + $0x1168] sm:$0xff]
    %v10437 = vld [vmem:[#allocation5 + $0x1170] sm:$0xff]
    %v10438 = vld [vmem:[#allocation5 + $0x1178] sm:$0xff]
    %v10439 = vld [vmem:[#allocation5 + $0x1180] sm:$0xff]
    %v10440 = vld [vmem:[#allocation5 + $0x1188] sm:$0xff]
    %v10441 = vld [vmem:[#allocation5 + $0x1190] sm:$0xff]
    %v10442 = vld [vmem:[#allocation5 + $0x1198] sm:$0xff]
    %v10443 = vld [vmem:[#allocation5 + $0x11a0] sm:$0xff]
    %v10444 = vld [vmem:[#allocation5 + $0x11a8] sm:$0xff]
    %v10445 = vld [vmem:[#allocation5 + $0x11b0] sm:$0xff]
    %v10446 = vld [vmem:[#allocation5 + $0x11b8] sm:$0xff]
    %v10447 = vld [vmem:[#allocation5 + $0x11c0] sm:$0xff]
    %v10448 = vld [vmem:[#allocation5 + $0x11c8] sm:$0xff]
    %v10449 = vld [vmem:[#allocation5 + $0x11d0] sm:$0xff]
    %v10450 = vld [vmem:[#allocation5 + $0x11d8] sm:$0xff]
    %v10451 = vld [vmem:[#allocation5 + $0x11e0] sm:$0xff]
    %v10452 = vld [vmem:[#allocation5 + $0x11e8] sm:$0xff]
    %v10453 = vld [vmem:[#allocation5 + $0x11f0] sm:$0xff]
    %v10454 = vld [vmem:[#allocation5 + $0x11f8] sm:$0xff]
    %v10459 = vrot.slane %v10419, 6
    %v10460 = vrot.slane %v10421, 6
    %v10461 = vsel %vm9207, %v10459, %v10460
    %v10462 = vrot.slane %v10420, 6
    %v10463 = vrot.slane %v10422, 6
    %v10464 = vsel %vm9207, %v10462, %v10463
    %10467 = vmatprep.subr.bf16.mxu0 %v10424
    %10468 = vmatpush1.bf16.msra.mxu0 %v10423
    %10469 = vmatprep.subr.bf16.mxu0 %v10426
    %10470 = vmatpush1.bf16.msra.mxu0 %v10425
    %10471 = vmatprep.subr.bf16.mxu0 %v10428
    %10472 = vmatpush1.bf16.msra.mxu0 %v10427
    %10473 = vmatprep.subr.bf16.mxu0 %v10430
    %10474 = vmatpush1.bf16.msra.mxu0 %v10429
    %10475 = vmatprep.subr.bf16.mxu0 %v10432
    %10476 = vmatpush1.bf16.msra.mxu0 %v10431
    %10477 = vmatprep.subr.bf16.mxu0 %v10434
    %10478 = vmatpush1.bf16.msra.mxu0 %v10433
    %10479 = vmatprep.subr.bf16.mxu0 %v10436
    %10480 = vmatpush1.bf16.msra.mxu0 %v10435
    %10481 = vmatprep.subr.bf16.mxu0 %v10438
    %10482 = vmatpush1.bf16.msra.mxu0 %v10437
    %10483 = vmatprep.subr.bf16.mxu0 %v10440
    %10484 = vmatpush1.bf16.msra.mxu0 %v10439
    %10485 = vmatprep.subr.bf16.mxu0 %v10442
    %10486 = vmatpush1.bf16.msra.mxu0 %v10441
    %10487 = vmatprep.subr.bf16.mxu0 %v10444
    %10488 = vmatpush1.bf16.msra.mxu0 %v10443
    %10489 = vmatprep.subr.bf16.mxu0 %v10446
    %10490 = vmatpush1.bf16.msra.mxu0 %v10445
    %10491 = vmatprep.subr.bf16.mxu0 %v10448
    %10492 = vmatpush1.bf16.msra.mxu0 %v10447
    %10493 = vmatprep.subr.bf16.mxu0 %v10450
    %10494 = vmatpush1.bf16.msra.mxu0 %v10449
    %10495 = vmatprep.subr.bf16.mxu0 %v10452
    %10496 = vmatpush1.bf16.msra.mxu0 %v10451
    %10497 = vmatprep.subr.bf16.mxu0 %v10454
    %10498 = vmatpush1.bf16.msra.mxu0 %v10453
    %10499 = vmatprep.mubr.bf16.mxu0 %v10464
    %10500 = vmatmul.mubr.bf16.gmra.mrb[0].mxu0 %v10461
    %v10501 = vpop.f32.mrb[0].mxu0
    %v10502 = vadd.f32 0.0, %v10501
    %v10503 = vpop.f32.mrb[0].mxu0
    %v10504 = vadd.f32 0.0, %v10503
    %v10505 = vpop.f32.mrb[0].mxu0
    %v10506 = vpop.f32.mrb[0].mxu0
    %10507 = vdwg.mxu0
    %v10508 = vadd.f32 %v10417, %v10502
    %v10509 = vadd.f32 %v10418, %v10504
    %v10510 = vld [vmem:[#allocation4 + $0xa0] sm:$0xe]
    %v10511 = vld [vmem:[#allocation4 + $0xa8] sm:$0xe]
    %v10512 = vld [vmem:[#allocation5 + $0x1200] sm:$0xff]
    %v10513 = vld [vmem:[#allocation5 + $0x1208] sm:$0xff]
    %v10514 = vld [vmem:[#allocation5 + $0x1210] sm:$0xff]
    %v10515 = vld [vmem:[#allocation5 + $0x1218] sm:$0xff]
    %v10516 = vld [vmem:[#allocation5 + $0x1220] sm:$0xff]
    %v10517 = vld [vmem:[#allocation5 + $0x1228] sm:$0xff]
    %v10518 = vld [vmem:[#allocation5 + $0x1230] sm:$0xff]
    %v10519 = vld [vmem:[#allocation5 + $0x1238] sm:$0xff]
    %v10520 = vld [vmem:[#allocation5 + $0x1240] sm:$0xff]
    %v10521 = vld [vmem:[#allocation5 + $0x1248] sm:$0xff]
    %v10522 = vld [vmem:[#allocation5 + $0x1250] sm:$0xff]
    %v10523 = vld [vmem:[#allocation5 + $0x1258] sm:$0xff]
    %v10524 = vld [vmem:[#allocation5 + $0x1260] sm:$0xff]
    %v10525 = vld [vmem:[#allocation5 + $0x1268] sm:$0xff]
    %v10526 = vld [vmem:[#allocation5 + $0x1270] sm:$0xff]
    %v10527 = vld [vmem:[#allocation5 + $0x1278] sm:$0xff]
    %v10528 = vld [vmem:[#allocation5 + $0x1280] sm:$0xff]
    %v10529 = vld [vmem:[#allocation5 + $0x1288] sm:$0xff]
    %v10530 = vld [vmem:[#allocation5 + $0x1290] sm:$0xff]
    %v10531 = vld [vmem:[#allocation5 + $0x1298] sm:$0xff]
    %v10532 = vld [vmem:[#allocation5 + $0x12a0] sm:$0xff]
    %v10533 = vld [vmem:[#allocation5 + $0x12a8] sm:$0xff]
    %v10534 = vld [vmem:[#allocation5 + $0x12b0] sm:$0xff]
    %v10535 = vld [vmem:[#allocation5 + $0x12b8] sm:$0xff]
    %v10536 = vld [vmem:[#allocation5 + $0x12c0] sm:$0xff]
    %v10537 = vld [vmem:[#allocation5 + $0x12c8] sm:$0xff]
    %v10538 = vld [vmem:[#allocation5 + $0x12d0] sm:$0xff]
    %v10539 = vld [vmem:[#allocation5 + $0x12d8] sm:$0xff]
    %v10540 = vld [vmem:[#allocation5 + $0x12e0] sm:$0xff]
    %v10541 = vld [vmem:[#allocation5 + $0x12e8] sm:$0xff]
    %v10542 = vld [vmem:[#allocation5 + $0x12f0] sm:$0xff]
    %v10543 = vld [vmem:[#allocation5 + $0x12f8] sm:$0xff]
    %v10546 = vrot.slane %v10510, 1
    %v10547 = vrot.slane %v10511, 1
    %10550 = vmatprep.subr.bf16.mxu0 %v10513
    %10551 = vmatpush1.bf16.msra.mxu0 %v10512
    %10552 = vmatprep.subr.bf16.mxu0 %v10515
    %10553 = vmatpush1.bf16.msra.mxu0 %v10514
    %10554 = vmatprep.subr.bf16.mxu0 %v10517
    %10555 = vmatpush1.bf16.msra.mxu0 %v10516
    %10556 = vmatprep.subr.bf16.mxu0 %v10519
    %10557 = vmatpush1.bf16.msra.mxu0 %v10518
    %10558 = vmatprep.subr.bf16.mxu0 %v10521
    %10559 = vmatpush1.bf16.msra.mxu0 %v10520
    %10560 = vmatprep.subr.bf16.mxu0 %v10523
    %10561 = vmatpush1.bf16.msra.mxu0 %v10522
    %10562 = vmatprep.subr.bf16.mxu0 %v10525
    %10563 = vmatpush1.bf16.msra.mxu0 %v10524
    %10564 = vmatprep.subr.bf16.mxu0 %v10527
    %10565 = vmatpush1.bf16.msra.mxu0 %v10526
    %10566 = vmatprep.subr.bf16.mxu0 %v10529
    %10567 = vmatpush1.bf16.msra.mxu0 %v10528
    %10568 = vmatprep.subr.bf16.mxu0 %v10531
    %10569 = vmatpush1.bf16.msra.mxu0 %v10530
    %10570 = vmatprep.subr.bf16.mxu0 %v10533
    %10571 = vmatpush1.bf16.msra.mxu0 %v10532
    %10572 = vmatprep.subr.bf16.mxu0 %v10535
    %10573 = vmatpush1.bf16.msra.mxu0 %v10534
    %10574 = vmatprep.subr.bf16.mxu0 %v10537
    %10575 = vmatpush1.bf16.msra.mxu0 %v10536
    %10576 = vmatprep.subr.bf16.mxu0 %v10539
    %10577 = vmatpush1.bf16.msra.mxu0 %v10538
    %10578 = vmatprep.subr.bf16.mxu0 %v10541
    %10579 = vmatpush1.bf16.msra.mxu0 %v10540
    %10580 = vmatprep.subr.bf16.mxu0 %v10543
    %10581 = vmatpush1.bf16.msra.mxu0 %v10542
    %10582 = vmatprep.mubr.bf16.mxu0 %v10547
    %10583 = vmatmul.mubr.bf16.gmra.mrb[0].mxu0 %v10546
    %v10584 = vpop.f32.mrb[0].mxu0
    %v10585 = vadd.f32 0.0, %v10584
    %v10586 = vpop.f32.mrb[0].mxu0
    %v10587 = vadd.f32 0.0, %v10586
    %v10588 = vpop.f32.mrb[0].mxu0
    %v10589 = vpop.f32.mrb[0].mxu0
    %10590 = vdwg.mxu0
    %v10591 = vadd.f32 %v10508, %v10585
    %v10592 = vadd.f32 %v10509, %v10587
    %v10593 = vld [vmem:[#allocation4 + $0xa0] sm:$0x70]
    %v10594 = vld [vmem:[#allocation4 + $0xa8] sm:$0x70]
    %v10595 = vld [vmem:[#allocation5 + $0x1300] sm:$0xff]
    %v10596 = vld [vmem:[#allocation5 + $0x1308] sm:$0xff]
    %v10597 = vld [vmem:[#allocation5 + $0x1310] sm:$0xff]
    %v10598 = vld [vmem:[#allocation5 + $0x1318] sm:$0xff]
    %v10599 = vld [vmem:[#allocation5 + $0x1320] sm:$0xff]
    %v10600 = vld [vmem:[#allocation5 + $0x1328] sm:$0xff]
    %v10601 = vld [vmem:[#allocation5 + $0x1330] sm:$0xff]
    %v10602 = vld [vmem:[#allocation5 + $0x1338] sm:$0xff]
    %v10603 = vld [vmem:[#allocation5 + $0x1340] sm:$0xff]
    %v10604 = vld [vmem:[#allocation5 + $0x1348] sm:$0xff]
    %v10605 = vld [vmem:[#allocation5 + $0x1350] sm:$0xff]
    %v10606 = vld [vmem:[#allocation5 + $0x1358] sm:$0xff]
    %v10607 = vld [vmem:[#allocation5 + $0x1360] sm:$0xff]
    %v10608 = vld [vmem:[#allocation5 + $0x1368] sm:$0xff]
    %v10609 = vld [vmem:[#allocation5 + $0x1370] sm:$0xff]
    %v10610 = vld [vmem:[#allocation5 + $0x1378] sm:$0xff]
    %v10611 = vld [vmem:[#allocation5 + $0x1380] sm:$0xff]
    %v10612 = vld [vmem:[#allocation5 + $0x1388] sm:$0xff]
    %v10613 = vld [vmem:[#allocation5 + $0x1390] sm:$0xff]
    %v10614 = vld [vmem:[#allocation5 + $0x1398] sm:$0xff]
    %v10615 = vld [vmem:[#allocation5 + $0x13a0] sm:$0xff]
    %v10616 = vld [vmem:[#allocation5 + $0x13a8] sm:$0xff]
    %v10617 = vld [vmem:[#allocation5 + $0x13b0] sm:$0xff]
    %v10618 = vld [vmem:[#allocation5 + $0x13b8] sm:$0xff]
    %v10619 = vld [vmem:[#allocation5 + $0x13c0] sm:$0xff]
    %v10620 = vld [vmem:[#allocation5 + $0x13c8] sm:$0xff]
    %v10621 = vld [vmem:[#allocation5 + $0x13d0] sm:$0xff]
    %v10622 = vld [vmem:[#allocation5 + $0x13d8] sm:$0xff]
    %v10623 = vld [vmem:[#allocation5 + $0x13e0] sm:$0xff]
    %v10624 = vld [vmem:[#allocation5 + $0x13e8] sm:$0xff]
    %v10625 = vld [vmem:[#allocation5 + $0x13f0] sm:$0xff]
    %v10626 = vld [vmem:[#allocation5 + $0x13f8] sm:$0xff]
    %v10629 = vrot.slane %v10593, 4
    %v10630 = vrot.slane %v10594, 4
    %10633 = vmatprep.subr.bf16.mxu0 %v10596
    %10634 = vmatpush1.bf16.msra.mxu0 %v10595
    %10635 = vmatprep.subr.bf16.mxu0 %v10598
    %10636 = vmatpush1.bf16.msra.mxu0 %v10597
    %10637 = vmatprep.subr.bf16.mxu0 %v10600
    %10638 = vmatpush1.bf16.msra.mxu0 %v10599
    %10639 = vmatprep.subr.bf16.mxu0 %v10602
    %10640 = vmatpush1.bf16.msra.mxu0 %v10601
    %10641 = vmatprep.subr.bf16.mxu0 %v10604
    %10642 = vmatpush1.bf16.msra.mxu0 %v10603
    %10643 = vmatprep.subr.bf16.mxu0 %v10606
    %10644 = vmatpush1.bf16.msra.mxu0 %v10605
    %10645 = vmatprep.subr.bf16.mxu0 %v10608
    %10646 = vmatpush1.bf16.msra.mxu0 %v10607
    %10647 = vmatprep.subr.bf16.mxu0 %v10610
    %10648 = vmatpush1.bf16.msra.mxu0 %v10609
    %10649 = vmatprep.subr.bf16.mxu0 %v10612
    %10650 = vmatpush1.bf16.msra.mxu0 %v10611
    %10651 = vmatprep.subr.bf16.mxu0 %v10614
    %10652 = vmatpush1.bf16.msra.mxu0 %v10613
    %10653 = vmatprep.subr.bf16.mxu0 %v10616
    %10654 = vmatpush1.bf16.msra.mxu0 %v10615
    %10655 = vmatprep.subr.bf16.mxu0 %v10618
    %10656 = vmatpush1.bf16.msra.mxu0 %v10617
    %10657 = vmatprep.subr.bf16.mxu0 %v10620
    %10658 = vmatpush1.bf16.msra.mxu0 %v10619
    %10659 = vmatprep.subr.bf16.mxu0 %v10622
    %10660 = vmatpush1.bf16.msra.mxu0 %v10621
    %10661 = vmatprep.subr.bf16.mxu0 %v10624
    %10662 = vmatpush1.bf16.msra.mxu0 %v10623
    %10663 = vmatprep.subr.bf16.mxu0 %v10626
    %10664 = vmatpush1.bf16.msra.mxu0 %v10625
    %10665 = vmatprep.mubr.bf16.mxu0 %v10630
    %10666 = vmatmul.mubr.bf16.gmra.mrb[0].mxu0 %v10629
    %v10667 = vpop.f32.mrb[0].mxu0
    %v10668 = vadd.f32 0.0, %v10667
    %v10669 = vpop.f32.mrb[0].mxu0
    %v10670 = vadd.f32 0.0, %v10669
    %v10671 = vpop.f32.mrb[0].mxu0
    %v10672 = vpop.f32.mrb[0].mxu0
    %10673 = vdwg.mxu0
    %v10674 = vadd.f32 %v10591, %v10668
    %v10675 = vadd.f32 %v10592, %v10670
    %v10676 = vld [vmem:[#allocation4 + $0xc0] sm:$0x7]
    %v10677 = vld [vmem:[#allocation4 + $0xc8] sm:$0x7]
    %v10678 = vld [vmem:[#allocation5 + $0x1400] sm:$0xff]
    %v10679 = vld [vmem:[#allocation5 + $0x1408] sm:$0xff]
    %v10680 = vld [vmem:[#allocation5 + $0x1410] sm:$0xff]
    %v10681 = vld [vmem:[#allocation5 + $0x1418] sm:$0xff]
    %v10682 = vld [vmem:[#allocation5 + $0x1420] sm:$0xff]
    %v10683 = vld [vmem:[#allocation5 + $0x1428] sm:$0xff]
    %v10684 = vld [vmem:[#allocation5 + $0x1430] sm:$0xff]
    %v10685 = vld [vmem:[#allocation5 + $0x1438] sm:$0xff]
    %v10686 = vld [vmem:[#allocation5 + $0x1440] sm:$0xff]
    %v10687 = vld [vmem:[#allocation5 + $0x1448] sm:$0xff]
    %v10688 = vld [vmem:[#allocation5 + $0x1450] sm:$0xff]
    %v10689 = vld [vmem:[#allocation5 + $0x1458] sm:$0xff]
    %v10690 = vld [vmem:[#allocation5 + $0x1460] sm:$0xff]
    %v10691 = vld [vmem:[#allocation5 + $0x1468] sm:$0xff]
    %v10692 = vld [vmem:[#allocation5 + $0x1470] sm:$0xff]
    %v10693 = vld [vmem:[#allocation5 + $0x1478] sm:$0xff]
    %v10694 = vld [vmem:[#allocation5 + $0x1480] sm:$0xff]
    %v10695 = vld [vmem:[#allocation5 + $0x1488] sm:$0xff]
    %v10696 = vld [vmem:[#allocation5 + $0x1490] sm:$0xff]
    %v10697 = vld [vmem:[#allocation5 + $0x1498] sm:$0xff]
    %v10698 = vld [vmem:[#allocation5 + $0x14a0] sm:$0xff]
    %v10699 = vld [vmem:[#allocation5 + $0x14a8] sm:$0xff]
    %v10700 = vld [vmem:[#allocation5 + $0x14b0] sm:$0xff]
    %v10701 = vld [vmem:[#allocation5 + $0x14b8] sm:$0xff]
    %v10702 = vld [vmem:[#allocation5 + $0x14c0] sm:$0xff]
    %v10703 = vld [vmem:[#allocation5 + $0x14c8] sm:$0xff]
    %v10704 = vld [vmem:[#allocation5 + $0x14d0] sm:$0xff]
    %v10705 = vld [vmem:[#allocation5 + $0x14d8] sm:$0xff]
    %v10706 = vld [vmem:[#allocation5 + $0x14e0] sm:$0xff]
    %v10707 = vld [vmem:[#allocation5 + $0x14e8] sm:$0xff]
    %v10708 = vld [vmem:[#allocation5 + $0x14f0] sm:$0xff]
    %v10709 = vld [vmem:[#allocation5 + $0x14f8] sm:$0xff]
    %10710 = vmatprep.subr.bf16.mxu0 %v10679
    %10711 = vmatpush1.bf16.msra.mxu0 %v10678
    %10712 = vmatprep.subr.bf16.mxu0 %v10681
    %10713 = vmatpush1.bf16.msra.mxu0 %v10680
    %10714 = vmatprep.subr.bf16.mxu0 %v10683
    %10715 = vmatpush1.bf16.msra.mxu0 %v10682
    %10716 = vmatprep.subr.bf16.mxu0 %v10685
    %10717 = vmatpush1.bf16.msra.mxu0 %v10684
    %10718 = vmatprep.subr.bf16.mxu0 %v10687
    %10719 = vmatpush1.bf16.msra.mxu0 %v10686
    %10720 = vmatprep.subr.bf16.mxu0 %v10689
    %10721 = vmatpush1.bf16.msra.mxu0 %v10688
    %10722 = vmatprep.subr.bf16.mxu0 %v10691
    %10723 = vmatpush1.bf16.msra.mxu0 %v10690
    %10724 = vmatprep.subr.bf16.mxu0 %v10693
    %10725 = vmatpush1.bf16.msra.mxu0 %v10692
    %10726 = vmatprep.subr.bf16.mxu0 %v10695
    %10727 = vmatpush1.bf16.msra.mxu0 %v10694
    %10728 = vmatprep.subr.bf16.mxu0 %v10697
    %10729 = vmatpush1.bf16.msra.mxu0 %v10696
    %10730 = vmatprep.subr.bf16.mxu0 %v10699
    %10731 = vmatpush1.bf16.msra.mxu0 %v10698
    %10732 = vmatprep.subr.bf16.mxu0 %v10701
    %10733 = vmatpush1.bf16.msra.mxu0 %v10700
    %10734 = vmatprep.subr.bf16.mxu0 %v10703
    %10735 = vmatpush1.bf16.msra.mxu0 %v10702
    %10736 = vmatprep.subr.bf16.mxu0 %v10705
    %10737 = vmatpush1.bf16.msra.mxu0 %v10704
    %10738 = vmatprep.subr.bf16.mxu0 %v10707
    %10739 = vmatpush1.bf16.msra.mxu0 %v10706
    %10740 = vmatprep.subr.bf16.mxu0 %v10709
    %10741 = vmatpush1.bf16.msra.mxu0 %v10708
    %10742 = vmatprep.mubr.bf16.mxu0 %v10677
    %10743 = vmatmul.mubr.bf16.gmra.mrb[0].mxu0 %v10676
    %v10744 = vpop.f32.mrb[0].mxu0
    %v10745 = vadd.f32 0.0, %v10744
    %v10746 = vpop.f32.mrb[0].mxu0
    %v10747 = vadd.f32 0.0, %v10746
    %v10748 = vpop.f32.mrb[0].mxu0
    %v10749 = vpop.f32.mrb[0].mxu0
    %10750 = vdwg.mxu0
    %v10751 = vadd.f32 %v10674, %v10745
    %v10752 = vadd.f32 %v10675, %v10747
    %v10753 = vld [vmem:[#allocation4 + $0xc0] sm:$0x38]
    %v10754 = vld [vmem:[#allocation4 + $0xc8] sm:$0x38]
    %v10755 = vld [vmem:[#allocation5 + $0x1500] sm:$0xff]
    %v10756 = vld [vmem:[#allocation5 + $0x1508] sm:$0xff]
    %v10757 = vld [vmem:[#allocation5 + $0x1510] sm:$0xff]
    %v10758 = vld [vmem:[#allocation5 + $0x1518] sm:$0xff]
    %v10759 = vld [vmem:[#allocation5 + $0x1520] sm:$0xff]
    %v10760 = vld [vmem:[#allocation5 + $0x1528] sm:$0xff]
    %v10761 = vld [vmem:[#allocation5 + $0x1530] sm:$0xff]
    %v10762 = vld [vmem:[#allocation5 + $0x1538] sm:$0xff]
    %v10763 = vld [vmem:[#allocation5 + $0x1540] sm:$0xff]
    %v10764 = vld [vmem:[#allocation5 + $0x1548] sm:$0xff]
    %v10765 = vld [vmem:[#allocation5 + $0x1550] sm:$0xff]
    %v10766 = vld [vmem:[#allocation5 + $0x1558] sm:$0xff]
    %v10767 = vld [vmem:[#allocation5 + $0x1560] sm:$0xff]
    %v10768 = vld [vmem:[#allocation5 + $0x1568] sm:$0xff]
    %v10769 = vld [vmem:[#allocation5 + $0x1570] sm:$0xff]
    %v10770 = vld [vmem:[#allocation5 + $0x1578] sm:$0xff]
    %v10771 = vld [vmem:[#allocation5 + $0x1580] sm:$0xff]
    %v10772 = vld [vmem:[#allocation5 + $0x1588] sm:$0xff]
    %v10773 = vld [vmem:[#allocation5 + $0x1590] sm:$0xff]
    %v10774 = vld [vmem:[#allocation5 + $0x1598] sm:$0xff]
    %v10775 = vld [vmem:[#allocation5 + $0x15a0] sm:$0xff]
    %v10776 = vld [vmem:[#allocation5 + $0x15a8] sm:$0xff]
    %v10777 = vld [vmem:[#allocation5 + $0x15b0] sm:$0xff]
    %v10778 = vld [vmem:[#allocation5 + $0x15b8] sm:$0xff]
    %v10779 = vld [vmem:[#allocation5 + $0x15c0] sm:$0xff]
    %v10780 = vld [vmem:[#allocation5 + $0x15c8] sm:$0xff]
    %v10781 = vld [vmem:[#allocation5 + $0x15d0] sm:$0xff]
    %v10782 = vld [vmem:[#allocation5 + $0x15d8] sm:$0xff]
    %v10783 = vld [vmem:[#allocation5 + $0x15e0] sm:$0xff]
    %v10784 = vld [vmem:[#allocation5 + $0x15e8] sm:$0xff]
    %v10785 = vld [vmem:[#allocation5 + $0x15f0] sm:$0xff]
    %v10786 = vld [vmem:[#allocation5 + $0x15f8] sm:$0xff]
    %v10789 = vrot.slane %v10753, 3
    %v10790 = vrot.slane %v10754, 3
    %10793 = vmatprep.subr.bf16.mxu0 %v10756
    %10794 = vmatpush1.bf16.msra.mxu0 %v10755
    %10795 = vmatprep.subr.bf16.mxu0 %v10758
    %10796 = vmatpush1.bf16.msra.mxu0 %v10757
    %10797 = vmatprep.subr.bf16.mxu0 %v10760
    %10798 = vmatpush1.bf16.msra.mxu0 %v10759
    %10799 = vmatprep.subr.bf16.mxu0 %v10762
    %10800 = vmatpush1.bf16.msra.mxu0 %v10761
    %10801 = vmatprep.subr.bf16.mxu0 %v10764
    %10802 = vmatpush1.bf16.msra.mxu0 %v10763
    %10803 = vmatprep.subr.bf16.mxu0 %v10766
    %10804 = vmatpush1.bf16.msra.mxu0 %v10765
    %10805 = vmatprep.subr.bf16.mxu0 %v10768
    %10806 = vmatpush1.bf16.msra.mxu0 %v10767
    %10807 = vmatprep.subr.bf16.mxu0 %v10770
    %10808 = vmatpush1.bf16.msra.mxu0 %v10769
    %10809 = vmatprep.subr.bf16.mxu0 %v10772
    %10810 = vmatpush1.bf16.msra.mxu0 %v10771
    %10811 = vmatprep.subr.bf16.mxu0 %v10774
    %10812 = vmatpush1.bf16.msra.mxu0 %v10773
    %10813 = vmatprep.subr.bf16.mxu0 %v10776
    %10814 = vmatpush1.bf16.msra.mxu0 %v10775
    %10815 = vmatprep.subr.bf16.mxu0 %v10778
    %10816 = vmatpush1.bf16.msra.mxu0 %v10777
    %10817 = vmatprep.subr.bf16.mxu0 %v10780
    %10818 = vmatpush1.bf16.msra.mxu0 %v10779
    %10819 = vmatprep.subr.bf16.mxu0 %v10782
    %10820 = vmatpush1.bf16.msra.mxu0 %v10781
    %10821 = vmatprep.subr.bf16.mxu0 %v10784
    %10822 = vmatpush1.bf16.msra.mxu0 %v10783
    %10823 = vmatprep.subr.bf16.mxu0 %v10786
    %10824 = vmatpush1.bf16.msra.mxu0 %v10785
    %10825 = vmatprep.mubr.bf16.mxu0 %v10790
    %10826 = vmatmul.mubr.bf16.gmra.mrb[0].mxu0 %v10789
    %v10827 = vpop.f32.mrb[0].mxu0
    %v10828 = vadd.f32 0.0, %v10827
    %v10829 = vpop.f32.mrb[0].mxu0
    %v10830 = vadd.f32 0.0, %v10829
    %v10831 = vpop.f32.mrb[0].mxu0
    %v10832 = vpop.f32.mrb[0].mxu0
    %10833 = vdwg.mxu0
    %v10834 = vadd.f32 %v10751, %v10828
    %v10835 = vadd.f32 %v10752, %v10830
    %v10836 = vld [vmem:[#allocation4 + $0xc0] sm:$0xc0]
    %v10837 = vld [vmem:[#allocation4 + $0xc8] sm:$0xc0]
    %v10838 = vld [vmem:[#allocation4 + $0xd0] sm:$0x1]
    %v10839 = vld [vmem:[#allocation4 + $0xd8] sm:$0x1]
    %v10840 = vld [vmem:[#allocation5 + $0x1600] sm:$0xff]
    %v10841 = vld [vmem:[#allocation5 + $0x1608] sm:$0xff]
    %v10842 = vld [vmem:[#allocation5 + $0x1610] sm:$0xff]
    %v10843 = vld [vmem:[#allocation5 + $0x1618] sm:$0xff]
    %v10844 = vld [vmem:[#allocation5 + $0x1620] sm:$0xff]
    %v10845 = vld [vmem:[#allocation5 + $0x1628] sm:$0xff]
    %v10846 = vld [vmem:[#allocation5 + $0x1630] sm:$0xff]
    %v10847 = vld [vmem:[#allocation5 + $0x1638] sm:$0xff]
    %v10848 = vld [vmem:[#allocation5 + $0x1640] sm:$0xff]
    %v10849 = vld [vmem:[#allocation5 + $0x1648] sm:$0xff]
    %v10850 = vld [vmem:[#allocation5 + $0x1650] sm:$0xff]
    %v10851 = vld [vmem:[#allocation5 + $0x1658] sm:$0xff]
    %v10852 = vld [vmem:[#allocation5 + $0x1660] sm:$0xff]
    %v10853 = vld [vmem:[#allocation5 + $0x1668] sm:$0xff]
    %v10854 = vld [vmem:[#allocation5 + $0x1670] sm:$0xff]
    %v10855 = vld [vmem:[#allocation5 + $0x1678] sm:$0xff]
    %v10856 = vld [vmem:[#allocation5 + $0x1680] sm:$0xff]
    %v10857 = vld [vmem:[#allocation5 + $0x1688] sm:$0xff]
    %v10858 = vld [vmem:[#allocation5 + $0x1690] sm:$0xff]
    %v10859 = vld [vmem:[#allocation5 + $0x1698] sm:$0xff]
    %v10860 = vld [vmem:[#allocation5 + $0x16a0] sm:$0xff]
    %v10861 = vld [vmem:[#allocation5 + $0x16a8] sm:$0xff]
    %v10862 = vld [vmem:[#allocation5 + $0x16b0] sm:$0xff]
    %v10863 = vld [vmem:[#allocation5 + $0x16b8] sm:$0xff]
    %v10864 = vld [vmem:[#allocation5 + $0x16c0] sm:$0xff]
    %v10865 = vld [vmem:[#allocation5 + $0x16c8] sm:$0xff]
    %v10866 = vld [vmem:[#allocation5 + $0x16d0] sm:$0xff]
    %v10867 = vld [vmem:[#allocation5 + $0x16d8] sm:$0xff]
    %v10868 = vld [vmem:[#allocation5 + $0x16e0] sm:$0xff]
    %v10869 = vld [vmem:[#allocation5 + $0x16e8] sm:$0xff]
    %v10870 = vld [vmem:[#allocation5 + $0x16f0] sm:$0xff]
    %v10871 = vld [vmem:[#allocation5 + $0x16f8] sm:$0xff]
    %v10876 = vrot.slane %v10836, 6
    %v10877 = vrot.slane %v10838, 6
    %v10878 = vsel %vm9207, %v10876, %v10877
    %v10879 = vrot.slane %v10837, 6
    %v10880 = vrot.slane %v10839, 6
    %v10881 = vsel %vm9207, %v10879, %v10880
    %10884 = vmatprep.subr.bf16.mxu0 %v10841
    %10885 = vmatpush1.bf16.msra.mxu0 %v10840
    %10886 = vmatprep.subr.bf16.mxu0 %v10843
    %10887 = vmatpush1.bf16.msra.mxu0 %v10842
    %10888 = vmatprep.subr.bf16.mxu0 %v10845
    %10889 = vmatpush1.bf16.msra.mxu0 %v10844
    %10890 = vmatprep.subr.bf16.mxu0 %v10847
    %10891 = vmatpush1.bf16.msra.mxu0 %v10846
    %10892 = vmatprep.subr.bf16.mxu0 %v10849
    %10893 = vmatpush1.bf16.msra.mxu0 %v10848
    %10894 = vmatprep.subr.bf16.mxu0 %v10851
    %10895 = vmatpush1.bf16.msra.mxu0 %v10850
    %10896 = vmatprep.subr.bf16.mxu0 %v10853
    %10897 = vmatpush1.bf16.msra.mxu0 %v10852
    %10898 = vmatprep.subr.bf16.mxu0 %v10855
    %10899 = vmatpush1.bf16.msra.mxu0 %v10854
    %10900 = vmatprep.subr.bf16.mxu0 %v10857
    %10901 = vmatpush1.bf16.msra.mxu0 %v10856
    %10902 = vmatprep.subr.bf16.mxu0 %v10859
    %10903 = vmatpush1.bf16.msra.mxu0 %v10858
    %10904 = vmatprep.subr.bf16.mxu0 %v10861
    %10905 = vmatpush1.bf16.msra.mxu0 %v10860
    %10906 = vmatprep.subr.bf16.mxu0 %v10863
    %10907 = vmatpush1.bf16.msra.mxu0 %v10862
    %10908 = vmatprep.subr.bf16.mxu0 %v10865
    %10909 = vmatpush1.bf16.msra.mxu0 %v10864
    %10910 = vmatprep.subr.bf16.mxu0 %v10867
    %10911 = vmatpush1.bf16.msra.mxu0 %v10866
    %10912 = vmatprep.subr.bf16.mxu0 %v10869
    %10913 = vmatpush1.bf16.msra.mxu0 %v10868
    %10914 = vmatprep.subr.bf16.mxu0 %v10871
    %10915 = vmatpush1.bf16.msra.mxu0 %v10870
    %10916 = vmatprep.mubr.bf16.mxu0 %v10881
    %10917 = vmatmul.mubr.bf16.gmra.mrb[0].mxu0 %v10878
    %v10918 = vpop.f32.mrb[0].mxu0
    %v10919 = vadd.f32 0.0, %v10918
    %v10920 = vpop.f32.mrb[0].mxu0
    %v10921 = vadd.f32 0.0, %v10920
    %v10922 = vpop.f32.mrb[0].mxu0
    %v10923 = vpop.f32.mrb[0].mxu0
    %10924 = vdwg.mxu0
    %v10925 = vadd.f32 %v10834, %v10919
    %v10926 = vadd.f32 %v10835, %v10921
    %v10927 = vld [vmem:[#allocation4 + $0xd0] sm:$0xe]
    %v10928 = vld [vmem:[#allocation4 + $0xd8] sm:$0xe]
    %v10929 = vld [vmem:[#allocation5 + $0x1700] sm:$0xff]
    %v10930 = vld [vmem:[#allocation5 + $0x1708] sm:$0xff]
    %v10931 = vld [vmem:[#allocation5 + $0x1710] sm:$0xff]
    %v10932 = vld [vmem:[#allocation5 + $0x1718] sm:$0xff]
    %v10933 = vld [vmem:[#allocation5 + $0x1720] sm:$0xff]
    %v10934 = vld [vmem:[#allocation5 + $0x1728] sm:$0xff]
    %v10935 = vld [vmem:[#allocation5 + $0x1730] sm:$0xff]
    %v10936 = vld [vmem:[#allocation5 + $0x1738] sm:$0xff]
    %v10937 = vld [vmem:[#allocation5 + $0x1740] sm:$0xff]
    %v10938 = vld [vmem:[#allocation5 + $0x1748] sm:$0xff]
    %v10939 = vld [vmem:[#allocation5 + $0x1750] sm:$0xff]
    %v10940 = vld [vmem:[#allocation5 + $0x1758] sm:$0xff]
    %v10941 = vld [vmem:[#allocation5 + $0x1760] sm:$0xff]
    %v10942 = vld [vmem:[#allocation5 + $0x1768] sm:$0xff]
    %v10943 = vld [vmem:[#allocation5 + $0x1770] sm:$0xff]
    %v10944 = vld [vmem:[#allocation5 + $0x1778] sm:$0xff]
    %v10945 = vld [vmem:[#allocation5 + $0x1780] sm:$0xff]
    %v10946 = vld [vmem:[#allocation5 + $0x1788] sm:$0xff]
    %v10947 = vld [vmem:[#allocation5 + $0x1790] sm:$0xff]
    %v10948 = vld [vmem:[#allocation5 + $0x1798] sm:$0xff]
    %v10949 = vld [vmem:[#allocation5 + $0x17a0] sm:$0xff]
    %v10950 = vld [vmem:[#allocation5 + $0x17a8] sm:$0xff]
    %v10951 = vld [vmem:[#allocation5 + $0x17b0] sm:$0xff]
    %v10952 = vld [vmem:[#allocation5 + $0x17b8] sm:$0xff]
    %v10953 = vld [vmem:[#allocation5 + $0x17c0] sm:$0xff]
    %v10954 = vld [vmem:[#allocation5 + $0x17c8] sm:$0xff]
    %v10955 = vld [vmem:[#allocation5 + $0x17d0] sm:$0xff]
    %v10956 = vld [vmem:[#allocation5 + $0x17d8] sm:$0xff]
    %v10957 = vld [vmem:[#allocation5 + $0x17e0] sm:$0xff]
    %v10958 = vld [vmem:[#allocation5 + $0x17e8] sm:$0xff]
    %v10959 = vld [vmem:[#allocation5 + $0x17f0] sm:$0xff]
    %v10960 = vld [vmem:[#allocation5 + $0x17f8] sm:$0xff]
    %v10963 = vrot.slane %v10927, 1
    %v10964 = vrot.slane %v10928, 1
    %10967 = vmatprep.subr.bf16.mxu0 %v10930
    %10968 = vmatpush1.bf16.msra.mxu0 %v10929
    %10969 = vmatprep.subr.bf16.mxu0 %v10932
    %10970 = vmatpush1.bf16.msra.mxu0 %v10931
    %10971 = vmatprep.subr.bf16.mxu0 %v10934
    %10972 = vmatpush1.bf16.msra.mxu0 %v10933
    %10973 = vmatprep.subr.bf16.mxu0 %v10936
    %10974 = vmatpush1.bf16.msra.mxu0 %v10935
    %10975 = vmatprep.subr.bf16.mxu0 %v10938
    %10976 = vmatpush1.bf16.msra.mxu0 %v10937
    %10977 = vmatprep.subr.bf16.mxu0 %v10940
    %10978 = vmatpush1.bf16.msra.mxu0 %v10939
    %10979 = vmatprep.subr.bf16.mxu0 %v10942
    %10980 = vmatpush1.bf16.msra.mxu0 %v10941
    %10981 = vmatprep.subr.bf16.mxu0 %v10944
    %10982 = vmatpush1.bf16.msra.mxu0 %v10943
    %10983 = vmatprep.subr.bf16.mxu0 %v10946
    %10984 = vmatpush1.bf16.msra.mxu0 %v10945
    %10985 = vmatprep.subr.bf16.mxu0 %v10948
    %10986 = vmatpush1.bf16.msra.mxu0 %v10947
    %10987 = vmatprep.subr.bf16.mxu0 %v10950
    %10988 = vmatpush1.bf16.msra.mxu0 %v10949
    %10989 = vmatprep.subr.bf16.mxu0 %v10952
    %10990 = vmatpush1.bf16.msra.mxu0 %v10951
    %10991 = vmatprep.subr.bf16.mxu0 %v10954
    %10992 = vmatpush1.bf16.msra.mxu0 %v10953
    %10993 = vmatprep.subr.bf16.mxu0 %v10956
    %10994 = vmatpush1.bf16.msra.mxu0 %v10955
    %10995 = vmatprep.subr.bf16.mxu0 %v10958
    %10996 = vmatpush1.bf16.msra.mxu0 %v10957
    %10997 = vmatprep.subr.bf16.mxu0 %v10960
    %10998 = vmatpush1.bf16.msra.mxu0 %v10959
    %10999 = vmatprep.mubr.bf16.mxu0 %v10964
    %11000 = vmatmul.mubr.bf16.gmra.mrb[0].mxu0 %v10963
    %v11001 = vpop.f32.mrb[0].mxu0
    %v11002 = vadd.f32 0.0, %v11001
    %v11003 = vpop.f32.mrb[0].mxu0
    %v11004 = vadd.f32 0.0, %v11003
    %v11005 = vpop.f32.mrb[0].mxu0
    %v11006 = vpop.f32.mrb[0].mxu0
    %11007 = vdwg.mxu0
    %v11008 = vadd.f32 %v10925, %v11002
    %v11009 = vadd.f32 %v10926, %v11004
    %v11010 = vld [vmem:[#allocation4 + $0xd0] sm:$0x70]
    %v11011 = vld [vmem:[#allocation4 + $0xd8] sm:$0x70]
    %v11012 = vld [vmem:[#allocation5 + $0x1800] sm:$0xff]
    %v11013 = vld [vmem:[#allocation5 + $0x1808] sm:$0xff]
    %v11014 = vld [vmem:[#allocation5 + $0x1810] sm:$0xff]
    %v11015 = vld [vmem:[#allocation5 + $0x1818] sm:$0xff]
    %v11016 = vld [vmem:[#allocation5 + $0x1820] sm:$0xff]
    %v11017 = vld [vmem:[#allocation5 + $0x1828] sm:$0xff]
    %v11018 = vld [vmem:[#allocation5 + $0x1830] sm:$0xff]
    %v11019 = vld [vmem:[#allocation5 + $0x1838] sm:$0xff]
    %v11020 = vld [vmem:[#allocation5 + $0x1840] sm:$0xff]
    %v11021 = vld [vmem:[#allocation5 + $0x1848] sm:$0xff]
    %v11022 = vld [vmem:[#allocation5 + $0x1850] sm:$0xff]
    %v11023 = vld [vmem:[#allocation5 + $0x1858] sm:$0xff]
    %v11024 = vld [vmem:[#allocation5 + $0x1860] sm:$0xff]
    %v11025 = vld [vmem:[#allocation5 + $0x1868] sm:$0xff]
    %v11026 = vld [vmem:[#allocation5 + $0x1870] sm:$0xff]
    %v11027 = vld [vmem:[#allocation5 + $0x1878] sm:$0xff]
    %v11028 = vld [vmem:[#allocation5 + $0x1880] sm:$0xff]
    %v11029 = vld [vmem:[#allocation5 + $0x1888] sm:$0xff]
    %v11030 = vld [vmem:[#allocation5 + $0x1890] sm:$0xff]
    %v11031 = vld [vmem:[#allocation5 + $0x1898] sm:$0xff]
    %v11032 = vld [vmem:[#allocation5 + $0x18a0] sm:$0xff]
    %v11033 = vld [vmem:[#allocation5 + $0x18a8] sm:$0xff]
    %v11034 = vld [vmem:[#allocation5 + $0x18b0] sm:$0xff]
    %v11035 = vld [vmem:[#allocation5 + $0x18b8] sm:$0xff]
    %v11036 = vld [vmem:[#allocation5 + $0x18c0] sm:$0xff]
    %v11037 = vld [vmem:[#allocation5 + $0x18c8] sm:$0xff]
    %v11038 = vld [vmem:[#allocation5 + $0x18d0] sm:$0xff]
    %v11039 = vld [vmem:[#allocation5 + $0x18d8] sm:$0xff]
    %v11040 = vld [vmem:[#allocation5 + $0x18e0] sm:$0xff]
    %v11041 = vld [vmem:[#allocation5 + $0x18e8] sm:$0xff]
    %v11042 = vld [vmem:[#allocation5 + $0x18f0] sm:$0xff]
    %v11043 = vld [vmem:[#allocation5 + $0x18f8] sm:$0xff]
    %v11046 = vrot.slane %v11010, 4
    %v11047 = vrot.slane %v11011, 4
    %11050 = vmatprep.subr.bf16.mxu0 %v11013
    %11051 = vmatpush1.bf16.msra.mxu0 %v11012
    %11052 = vmatprep.subr.bf16.mxu0 %v11015
    %11053 = vmatpush1.bf16.msra.mxu0 %v11014
    %11054 = vmatprep.subr.bf16.mxu0 %v11017
    %11055 = vmatpush1.bf16.msra.mxu0 %v11016
    %11056 = vmatprep.subr.bf16.mxu0 %v11019
    %11057 = vmatpush1.bf16.msra.mxu0 %v11018
    %11058 = vmatprep.subr.bf16.mxu0 %v11021
    %11059 = vmatpush1.bf16.msra.mxu0 %v11020
    %11060 = vmatprep.subr.bf16.mxu0 %v11023
    %11061 = vmatpush1.bf16.msra.mxu0 %v11022
    %11062 = vmatprep.subr.bf16.mxu0 %v11025
    %11063 = vmatpush1.bf16.msra.mxu0 %v11024
    %11064 = vmatprep.subr.bf16.mxu0 %v11027
    %11065 = vmatpush1.bf16.msra.mxu0 %v11026
    %11066 = vmatprep.subr.bf16.mxu0 %v11029
    %11067 = vmatpush1.bf16.msra.mxu0 %v11028
    %11068 = vmatprep.subr.bf16.mxu0 %v11031
    %11069 = vmatpush1.bf16.msra.mxu0 %v11030
    %11070 = vmatprep.subr.bf16.mxu0 %v11033
    %11071 = vmatpush1.bf16.msra.mxu0 %v11032
    %11072 = vmatprep.subr.bf16.mxu0 %v11035
    %11073 = vmatpush1.bf16.msra.mxu0 %v11034
    %11074 = vmatprep.subr.bf16.mxu0 %v11037
    %11075 = vmatpush1.bf16.msra.mxu0 %v11036
    %11076 = vmatprep.subr.bf16.mxu0 %v11039
    %11077 = vmatpush1.bf16.msra.mxu0 %v11038
    %11078 = vmatprep.subr.bf16.mxu0 %v11041
    %11079 = vmatpush1.bf16.msra.mxu0 %v11040
    %11080 = vmatprep.subr.bf16.mxu0 %v11043
    %11081 = vmatpush1.bf16.msra.mxu0 %v11042
    %11082 = vmatprep.mubr.bf16.mxu0 %v11047
    %11083 = vmatmul.mubr.bf16.gmra.mrb[0].mxu0 %v11046
    %v11084 = vpop.f32.mrb[0].mxu0
    %v11085 = vadd.f32 0.0, %v11084
    %v11086 = vpop.f32.mrb[0].mxu0
    %v11087 = vadd.f32 0.0, %v11086
    %v11088 = vpop.f32.mrb[0].mxu0
    %v11089 = vpop.f32.mrb[0].mxu0
    %11090 = vdwg.mxu0
    %v11091 = vadd.f32 %v11008, %v11085
    %v11092 = vadd.f32 %v11009, %v11087
    %v11093 = vld [vmem:[#allocation17] sm:$0x3]
    %v11095 = vlaneseq
    %v11096 = vshrl.u32 %v11095, 7
    %v11097 = vsub.s32 0, %v11096
    %v11098 = vrot.slane %v11093, %v11097
    %v11099 = vlaneseq
    %v11100 = vshrl.u32 %v11099, 7
    %v11101 = vsub.s32 1, %v11100
    %v11102 = vrot.slane %v11093, %v11101
    %v11105 = vadd.f32 %v11091, %v11098
    %v11106 = vadd.f32 %v11092, %v11102
    %vm11107 = vcmp.ge.f32.partialorder %v11105, 0.0
    %vm11108 = vcmp.ge.f32.partialorder %v11106, 0.0
    %v11109 = vmul.f32 %v11105, 2.0
    %v11110 = vmul.f32 %v11106, 2.0
    %v11111 = vsel %vm11107, %v11105, %v11109
    %v11112 = vsel %vm11108, %v11106, %v11110
    %v11113 = vpack.c.bf16 %v11111, %v11111
    %v11114 = vpack.c.bf16 %v11112, %v11112
    %v11115 = vld [vmem:[#allocation18] sm:$0xff]
    %v11116 = vld [vmem:[#allocation18 + $0x8] sm:$0xff]
    %v11117 = vld [vmem:[#allocation18 + $0x10] sm:$0xff]
    %v11118 = vld [vmem:[#allocation18 + $0x18] sm:$0xff]
    %v11119 = vld [vmem:[#allocation18 + $0x20] sm:$0xff]
    %v11120 = vld [vmem:[#allocation18 + $0x28] sm:$0xff]
    %v11121 = vld [vmem:[#allocation18 + $0x30] sm:$0xff]
    %v11122 = vld [vmem:[#allocation18 + $0x38] sm:$0xff]
    %v11123 = vld [vmem:[#allocation18 + $0x40] sm:$0xff]
    %v11124 = vld [vmem:[#allocation18 + $0x48] sm:$0xff]
    %v11125 = vld [vmem:[#allocation18 + $0x50] sm:$0xff]
    %v11126 = vld [vmem:[#allocation18 + $0x58] sm:$0xff]
    %v11127 = vld [vmem:[#allocation18 + $0x60] sm:$0xff]
    %v11128 = vld [vmem:[#allocation18 + $0x68] sm:$0xff]
    %v11129 = vld [vmem:[#allocation18 + $0x70] sm:$0xff]
    %v11130 = vld [vmem:[#allocation18 + $0x78] sm:$0xff]
    %v11131 = vld [vmem:[#allocation18 + $0x80] sm:$0xff]
    %v11132 = vld [vmem:[#allocation18 + $0x88] sm:$0xff]
    %v11133 = vld [vmem:[#allocation18 + $0x90] sm:$0xff]
    %v11134 = vld [vmem:[#allocation18 + $0x98] sm:$0xff]
    %v11135 = vld [vmem:[#allocation18 + $0xa0] sm:$0xff]
    %v11136 = vld [vmem:[#allocation18 + $0xa8] sm:$0xff]
    %v11137 = vld [vmem:[#allocation18 + $0xb0] sm:$0xff]
    %v11138 = vld [vmem:[#allocation18 + $0xb8] sm:$0xff]
    %v11139 = vld [vmem:[#allocation18 + $0xc0] sm:$0xff]
    %v11140 = vld [vmem:[#allocation18 + $0xc8] sm:$0xff]
    %v11141 = vld [vmem:[#allocation18 + $0xd0] sm:$0xff]
    %v11142 = vld [vmem:[#allocation18 + $0xd8] sm:$0xff]
    %v11143 = vld [vmem:[#allocation18 + $0xe0] sm:$0xff]
    %v11144 = vld [vmem:[#allocation18 + $0xe8] sm:$0xff]
    %v11145 = vld [vmem:[#allocation18 + $0xf0] sm:$0xff]
    %v11146 = vld [vmem:[#allocation18 + $0xf8] sm:$0xff]
    %v11147 = vld [vmem:[#allocation20] sm:$0x3]
    %v11149 = vlaneseq
    %v11150 = vshrl.u32 %v11149, 7
    %v11151 = vsub.s32 0, %v11150
    %v11152 = vrot.slane %v11147, %v11151
    %v11153 = vlaneseq
    %v11154 = vshrl.u32 %v11153, 7
    %v11155 = vsub.s32 1, %v11154
    %v11156 = vrot.slane %v11147, %v11155
    %v11191 = vunpack.c.l.b16 %v11115
    %v11192 = vunpack.c.h.b16 %v11115
    %v11193 = vunpack.c.l.b16 %v11116
    %v11194 = vunpack.c.h.b16 %v11116
    %v11195 = vunpack.c.l.b16 %v11117
    %v11196 = vunpack.c.h.b16 %v11117
    %v11197 = vunpack.c.l.b16 %v11118
    %v11198 = vunpack.c.h.b16 %v11118
    %v11199 = vunpack.c.l.b16 %v11119
    %v11200 = vunpack.c.h.b16 %v11119
    %v11201 = vunpack.c.l.b16 %v11120
    %v11202 = vunpack.c.h.b16 %v11120
    %v11203 = vunpack.c.l.b16 %v11121
    %v11204 = vunpack.c.h.b16 %v11121
    %v11205 = vunpack.c.l.b16 %v11122
    %v11206 = vunpack.c.h.b16 %v11122
    %v11207 = vunpack.c.l.b16 %v11123
    %v11208 = vunpack.c.h.b16 %v11123
    %v11209 = vunpack.c.l.b16 %v11124
    %v11210 = vunpack.c.h.b16 %v11124
    %v11211 = vunpack.c.l.b16 %v11125
    %v11212 = vunpack.c.h.b16 %v11125
    %v11213 = vunpack.c.l.b16 %v11126
    %v11214 = vunpack.c.h.b16 %v11126
    %v11215 = vunpack.c.l.b16 %v11127
    %v11216 = vunpack.c.h.b16 %v11127
    %v11217 = vunpack.c.l.b16 %v11128
    %v11218 = vunpack.c.h.b16 %v11128
    %v11219 = vunpack.c.l.b16 %v11129
    %v11220 = vunpack.c.h.b16 %v11129
    %v11221 = vunpack.c.l.b16 %v11130
    %v11222 = vunpack.c.h.b16 %v11130
    %v11223 = vunpack.c.l.b16 %v11131
    %v11224 = vunpack.c.h.b16 %v11131
    %v11225 = vunpack.c.l.b16 %v11132
    %v11226 = vunpack.c.h.b16 %v11132
    %v11227 = vunpack.c.l.b16 %v11133
    %v11228 = vunpack.c.h.b16 %v11133
    %v11229 = vunpack.c.l.b16 %v11134
    %v11230 = vunpack.c.h.b16 %v11134
    %v11231 = vunpack.c.l.b16 %v11135
    %v11232 = vunpack.c.h.b16 %v11135
    %v11233 = vunpack.c.l.b16 %v11136
    %v11234 = vunpack.c.h.b16 %v11136
    %v11235 = vunpack.c.l.b16 %v11137
    %v11236 = vunpack.c.h.b16 %v11137
    %v11237 = vunpack.c.l.b16 %v11138
    %v11238 = vunpack.c.h.b16 %v11138
    %v11239 = vunpack.c.l.b16 %v11139
    %v11240 = vunpack.c.h.b16 %v11139
    %v11241 = vunpack.c.l.b16 %v11140
    %v11242 = vunpack.c.h.b16 %v11140
    %v11243 = vunpack.c.l.b16 %v11141
    %v11244 = vunpack.c.h.b16 %v11141
    %v11245 = vunpack.c.l.b16 %v11142
    %v11246 = vunpack.c.h.b16 %v11142
    %v11247 = vunpack.c.l.b16 %v11143
    %v11248 = vunpack.c.h.b16 %v11143
    %v11249 = vunpack.c.l.b16 %v11144
    %v11250 = vunpack.c.h.b16 %v11144
    %v11251 = vunpack.c.l.b16 %v11145
    %v11252 = vunpack.c.h.b16 %v11145
    %v11253 = vunpack.c.l.b16 %v11146
    %v11254 = vunpack.c.h.b16 %v11146
    %v11255 = vpack.c.b16 %v11193, %v11191
    %v11256 = vpack.c.b16 %v11194, %v11192
    %v11257 = vpack.c.b16 %v11197, %v11195
    %v11258 = vpack.c.b16 %v11198, %v11196
    %v11259 = vpack.c.b16 %v11201, %v11199
    %v11260 = vpack.c.b16 %v11202, %v11200
    %v11261 = vpack.c.b16 %v11205, %v11203
    %v11262 = vpack.c.b16 %v11206, %v11204
    %v11263 = vpack.c.b16 %v11209, %v11207
    %v11264 = vpack.c.b16 %v11210, %v11208
    %v11265 = vpack.c.b16 %v11213, %v11211
    %v11266 = vpack.c.b16 %v11214, %v11212
    %v11267 = vpack.c.b16 %v11217, %v11215
    %v11268 = vpack.c.b16 %v11218, %v11216
    %v11269 = vpack.c.b16 %v11221, %v11219
    %v11270 = vpack.c.b16 %v11222, %v11220
    %v11271 = vpack.c.b16 %v11225, %v11223
    %v11272 = vpack.c.b16 %v11226, %v11224
    %v11273 = vpack.c.b16 %v11229, %v11227
    %v11274 = vpack.c.b16 %v11230, %v11228
    %v11275 = vpack.c.b16 %v11233, %v11231
    %v11276 = vpack.c.b16 %v11234, %v11232
    %v11277 = vpack.c.b16 %v11237, %v11235
    %v11278 = vpack.c.b16 %v11238, %v11236
    %v11279 = vpack.c.b16 %v11241, %v11239
    %v11280 = vpack.c.b16 %v11242, %v11240
    %v11281 = vpack.c.b16 %v11245, %v11243
    %v11282 = vpack.c.b16 %v11246, %v11244
    %v11283 = vpack.c.b16 %v11249, %v11247
    %v11284 = vpack.c.b16 %v11250, %v11248
    %v11285 = vpack.c.b16 %v11253, %v11251
    %v11286 = vpack.c.b16 %v11254, %v11252
    %11319 = vmatprep.subr.bf16.mxu0 %v11256
    %11320 = vmatpush1.bf16.msra.mxu0 %v11255
    %11321 = vmatprep.subr.bf16.mxu0 %v11258
    %11322 = vmatpush1.bf16.msra.mxu0 %v11257
    %11323 = vmatprep.subr.bf16.mxu0 %v11260
    %11324 = vmatpush1.bf16.msra.mxu0 %v11259
    %11325 = vmatprep.subr.bf16.mxu0 %v11262
    %11326 = vmatpush1.bf16.msra.mxu0 %v11261
    %11327 = vmatprep.subr.bf16.mxu0 %v11264
    %11328 = vmatpush1.bf16.msra.mxu0 %v11263
    %11329 = vmatprep.subr.bf16.mxu0 %v11266
    %11330 = vmatpush1.bf16.msra.mxu0 %v11265
    %11331 = vmatprep.subr.bf16.mxu0 %v11268
    %11332 = vmatpush1.bf16.msra.mxu0 %v11267
    %11333 = vmatprep.subr.bf16.mxu0 %v11270
    %11334 = vmatpush1.bf16.msra.mxu0 %v11269
    %11335 = vmatprep.subr.bf16.mxu0 %v11272
    %11336 = vmatpush1.bf16.msra.mxu0 %v11271
    %11337 = vmatprep.subr.bf16.mxu0 %v11274
    %11338 = vmatpush1.bf16.msra.mxu0 %v11273
    %11339 = vmatprep.subr.bf16.mxu0 %v11276
    %11340 = vmatpush1.bf16.msra.mxu0 %v11275
    %11341 = vmatprep.subr.bf16.mxu0 %v11278
    %11342 = vmatpush1.bf16.msra.mxu0 %v11277
    %11343 = vmatprep.subr.bf16.mxu0 %v11280
    %11344 = vmatpush1.bf16.msra.mxu0 %v11279
    %11345 = vmatprep.subr.bf16.mxu0 %v11282
    %11346 = vmatpush1.bf16.msra.mxu0 %v11281
    %11347 = vmatprep.subr.bf16.mxu0 %v11284
    %11348 = vmatpush1.bf16.msra.mxu0 %v11283
    %11349 = vmatprep.subr.bf16.mxu0 %v11286
    %11350 = vmatpush1.bf16.msra.mxu0 %v11285
    %11351 = vmatprep.mubr.bf16.mxu0 %v11114
    %11352 = vmatmul.mubr.bf16.gmra.mrb[0].mxu0 %v11113
    %v11353 = vpop.f32.mrb[0].mxu0
    %v11354 = vadd.f32 %v11152, %v11353
    %v11355 = vpop.f32.mrb[0].mxu0
    %v11356 = vadd.f32 %v11156, %v11355
    %v11357 = vpop.f32.mrb[0].mxu0
    %v11358 = vpop.f32.mrb[0].mxu0
    %11359 = vdwg.mxu0
    %vm11360 = vcmp.ge.f32.partialorder %v11354, 0.0
    %vm11361 = vcmp.ge.f32.partialorder %v11356, 0.0
    %v11362 = vmul.f32 %v11354, 2.0
    %v11363 = vmul.f32 %v11356, 2.0
    %v11364 = vsel %vm11360, %v11354, %v11362
    %v11365 = vsel %vm11361, %v11356, %v11363
    %v11366 = vld [vmem:[#allocation21] sm:$0xff]
    %v11367 = vld [vmem:[#allocation21 + $0x8] sm:$0xff]
    %v11368 = vld [vmem:[#allocation21 + $0x10] sm:$0xff]
    %v11369 = vld [vmem:[#allocation21 + $0x18] sm:$0xff]
    %v11370 = vld [vmem:[#allocation21 + $0x20] sm:$0xff]
    %v11371 = vld [vmem:[#allocation21 + $0x28] sm:$0xff]
    %v11372 = vld [vmem:[#allocation21 + $0x30] sm:$0xff]
    %v11373 = vld [vmem:[#allocation21 + $0x38] sm:$0xff]
    %v11374 = vld [vmem:[#allocation21 + $0x40] sm:$0xff]
    %v11375 = vld [vmem:[#allocation21 + $0x48] sm:$0xff]
    %v11376 = vld [vmem:[#allocation21 + $0x50] sm:$0xff]
    %v11377 = vld [vmem:[#allocation21 + $0x58] sm:$0xff]
    %v11378 = vld [vmem:[#allocation21 + $0x60] sm:$0xff]
    %v11379 = vld [vmem:[#allocation21 + $0x68] sm:$0xff]
    %v11380 = vld [vmem:[#allocation21 + $0x70] sm:$0xff]
    %v11381 = vld [vmem:[#allocation21 + $0x78] sm:$0xff]
    %v11382 = vld [vmem:[#allocation21 + $0x80] sm:$0xff]
    %v11383 = vld [vmem:[#allocation21 + $0x88] sm:$0xff]
    %v11384 = vld [vmem:[#allocation21 + $0x90] sm:$0xff]
    %v11385 = vld [vmem:[#allocation21 + $0x98] sm:$0xff]
    %v11386 = vld [vmem:[#allocation21 + $0xa0] sm:$0xff]
    %v11387 = vld [vmem:[#allocation21 + $0xa8] sm:$0xff]
    %v11388 = vld [vmem:[#allocation21 + $0xb0] sm:$0xff]
    %v11389 = vld [vmem:[#allocation21 + $0xb8] sm:$0xff]
    %v11390 = vld [vmem:[#allocation21 + $0xc0] sm:$0xff]
    %v11391 = vld [vmem:[#allocation21 + $0xc8] sm:$0xff]
    %v11392 = vld [vmem:[#allocation21 + $0xd0] sm:$0xff]
    %v11393 = vld [vmem:[#allocation21 + $0xd8] sm:$0xff]
    %v11394 = vld [vmem:[#allocation21 + $0xe0] sm:$0xff]
    %v11395 = vld [vmem:[#allocation21 + $0xe8] sm:$0xff]
    %v11396 = vld [vmem:[#allocation21 + $0xf0] sm:$0xff]
    %v11397 = vld [vmem:[#allocation21 + $0xf8] sm:$0xff]
    %v11398 = vld [vmem:[#allocation23] sm:$0x1]
    %v11400 = vlaneseq
    %v11401 = vshrl.u32 %v11400, 7
    %v11402 = vsub.s32 0, %v11401
    %v11403 = vrot.slane %v11398, %v11402
    %11405 = vmatprep.subr.mxu0 0.0
    %11406 = vmatpush1.msra.mxu0 %v11366
    %11407 = vmatprep.subr.mxu0 0.0
    %11408 = vmatpush1.msra.mxu0 %v11367
    %11409 = vmatprep.subr.mxu0 0.0
    %11410 = vmatpush1.msra.mxu0 %v11368
    %11411 = vmatprep.subr.mxu0 0.0
    %11412 = vmatpush1.msra.mxu0 %v11369
    %11413 = vmatprep.subr.mxu0 0.0
    %11414 = vmatpush1.msra.mxu0 %v11370
    %11415 = vmatprep.subr.mxu0 0.0
    %11416 = vmatpush1.msra.mxu0 %v11371
    %11417 = vmatprep.subr.mxu0 0.0
    %11418 = vmatpush1.msra.mxu0 %v11372
    %11419 = vmatprep.subr.mxu0 0.0
    %11420 = vmatpush1.msra.mxu0 %v11373
    %11421 = vmatprep.subr.mxu0 0.0
    %11422 = vmatpush1.msra.mxu0 %v11374
    %11423 = vmatprep.subr.mxu0 0.0
    %11424 = vmatpush1.msra.mxu0 %v11375
    %11425 = vmatprep.subr.mxu0 0.0
    %11426 = vmatpush1.msra.mxu0 %v11376
    %11427 = vmatprep.subr.mxu0 0.0
    %11428 = vmatpush1.msra.mxu0 %v11377
    %11429 = vmatprep.subr.mxu0 0.0
    %11430 = vmatpush1.msra.mxu0 %v11378
    %11431 = vmatprep.subr.mxu0 0.0
    %11432 = vmatpush1.msra.mxu0 %v11379
    %11433 = vmatprep.subr.mxu0 0.0
    %11434 = vmatpush1.msra.mxu0 %v11380
    %11435 = vmatprep.subr.mxu0 0.0
    %11436 = vmatpush1.msra.mxu0 %v11381
    %11437 = vmatprep.subr.mxu0 0.0
    %11438 = vmatpush1.msra.mxu0 %v11382
    %11439 = vmatprep.subr.mxu0 0.0
    %11440 = vmatpush1.msra.mxu0 %v11383
    %11441 = vmatprep.subr.mxu0 0.0
    %11442 = vmatpush1.msra.mxu0 %v11384
    %11443 = vmatprep.subr.mxu0 0.0
    %11444 = vmatpush1.msra.mxu0 %v11385
    %11445 = vmatprep.subr.mxu0 0.0
    %11446 = vmatpush1.msra.mxu0 %v11386
    %11447 = vmatprep.subr.mxu0 0.0
    %11448 = vmatpush1.msra.mxu0 %v11387
    %11449 = vmatprep.subr.mxu0 0.0
    %11450 = vmatpush1.msra.mxu0 %v11388
    %11451 = vmatprep.subr.mxu0 0.0
    %11452 = vmatpush1.msra.mxu0 %v11389
    %11453 = vmatprep.subr.mxu0 0.0
    %11454 = vmatpush1.msra.mxu0 %v11390
    %11455 = vmatprep.subr.mxu0 0.0
    %11456 = vmatpush1.msra.mxu0 %v11391
    %11457 = vmatprep.subr.mxu0 0.0
    %11458 = vmatpush1.msra.mxu0 %v11392
    %11459 = vmatprep.subr.mxu0 0.0
    %11460 = vmatpush1.msra.mxu0 %v11393
    %11461 = vmatprep.subr.mxu0 0.0
    %11462 = vmatpush1.msra.mxu0 %v11394
    %11463 = vmatprep.subr.mxu0 0.0
    %11464 = vmatpush1.msra.mxu0 %v11395
    %11465 = vmatprep.subr.mxu0 0.0
    %11466 = vmatpush1.msra.mxu0 %v11396
    %11467 = vmatprep.subr.mxu0 0.0
    %11468 = vmatpush1.msra.mxu0 %v11397
    %11469 = vmatprep.mubr.f32.mxu0 %v11365
    %11470 = vmatmul.mubr.f32.gmra.mrb[0].mxu0 %v11364
    %v11471 = vpop.f32.mrb[0].mxu0
    %v11472 = vadd.f32 %v11403, %v11471
    %v11473 = vpop.f32.mrb[0].mxu0
    %11474 = vdwg.mxu0
    %11475 = vst [vmem:[%s13] sm:$0x3f] %v11472
    // Predicated region
    $region94: #{siamese_forward.1} parent=1 // pred_check
      _
    $region95: #{siamese_forward.1} parent=1 // pred_check_branch
      %11477 = sbr.rel (0) target = $region97
    $region96: #{siamese_forward.1} parent=1 // pred_region
      _
    $region97: #{siamese_forward.1} parent=1 // pred_fallthru
      _
    // Predicated region
    $region98: #{siamese_forward.1} parent=1 // pred_check
      _
    $region99: #{siamese_forward.1} parent=1 // pred_check_branch
      %11479 = sbr.rel (0) target = $region101
    $region100: #{siamese_forward.1} parent=1 // pred_region
      _
    $region101: #{siamese_forward.1} parent=1 // pred_fallthru
      _
    %11480 = vsyncpa [#allocation8], 1
    %11481 = vsyncpa [#allocation10], 1
    %11482 = vsyncpa [#allocation13], 1
    %11483 = vsyncpa [#allocation16], 1
    %11484 = vsyncpa [#allocation19], 1
    %11485 = vsyncpa [#allocation22], 1
  %11486 = vsyncmov [#allocation6]
  %s11487 = vpop.sfrf %11486
  %p11488 = scmp.eq.s32.totalorder %s11487, 0
  %p11489 = pneg %p11488
  %11491 = shalt.err (%p11489)

</llo_original>
